<compile_context>
chip_gen: v5e
topology: v5e:2x2
jax: 0.10.0
libtpu: 0.0.40
codegen_flags: <defaults>
</compile_context>

<pallas_src>
import functools

import jax
import jax.numpy as jnp
from jax import lax
from jax.experimental import pallas as pl
from jax.experimental.pallas import tpu as pltpu


# ----------------------------------------------------------------------------
# In-kernel helpers
# ----------------------------------------------------------------------------
def _conv_im2col(pad_ref, w_ref, b_ref, K, H, W):
    """'Same' KxK conv (stride 1) from a zero-padded (H+K-1, W+K-1, Cr) scratch.

    Builds an (H*W, K*K*Cr) im2col tile and does a single MXU matmul against
    w_ref (K*K*Cr, Cout), then fuses bias + ReLU.
    """
    cr = pad_ref.shape[-1]
    cols = []
    for t in range(K * K):
        kh, kw = divmod(t, K)
        cols.append(pad_ref[pl.ds(kh, H), pl.ds(kw, W), :].reshape(H * W, cr))
    mat = jnp.concatenate(cols, axis=-1)                       # (H*W, K*K*Cr)
    acc = jnp.dot(mat, w_ref[...], preferred_element_type=jnp.float32)
    acc = acc + b_ref[...].astype(jnp.float32)                 # (1, Cout) bcast
    return jnp.maximum(acc, 0.0)


def _maxpool_from_pad(pad_ref, K, H, W):
    """KxK / stride 1 max pool from a -inf-padded (H+K-1, W+K-1, C) scratch."""
    c = pad_ref.shape[-1]
    acc = pad_ref[pl.ds(0, H), pl.ds(0, W), :]
    for t in range(1, K * K):
        kh, kw = divmod(t, K)
        acc = jnp.maximum(acc, pad_ref[pl.ds(kh, H), pl.ds(kw, W), :])
    return acc.reshape(H * W, c)


# ----------------------------------------------------------------------------
# Fused inception kernel (one batch element per grid step)
# ----------------------------------------------------------------------------
def _inception_kernel(x_ref, w1x1_ref, b1x1_ref, w2_ref, b2_ref,
                      w3_ref, b3_ref, w4_ref, b4_ref, o_ref,
                      t2_pad, t3_pad, pool_pad,
                      *, H, W, C1, Cr2, Cr3):
    cin = x_ref.shape[-1]
    x3 = x_ref[...][0].astype(jnp.float32)                     # (H, W, Cin)
    xm = x3.reshape(H * W, cin)                                # (H*W, Cin)

    # ---- merged 1x1 convs: branch1 | branch2-reduce | branch3-reduce -------
    y = jnp.dot(xm, w1x1_ref[...], preferred_element_type=jnp.float32)
    y = y + b1x1_ref[...].astype(jnp.float32)
    b1 = y[:, :C1]                                             # branch1: NO ReLU
    t2 = jnp.maximum(y[:, C1:C1 + Cr2], 0.0)                   # branch2 reduce
    t3 = jnp.maximum(y[:, C1 + Cr2:C1 + Cr2 + Cr3], 0.0)       # branch3 reduce

    # ---- branch2: 3x3 conv (pad 1) + ReLU, via im2col ----------------------
    t2_pad[...] = jnp.zeros(t2_pad.shape, t2_pad.dtype)
    t2_pad[pl.ds(1, H), pl.ds(1, W), :] = t2.reshape(H, W, Cr2)
    b2 = _conv_im2col(t2_pad, w2_ref, b2_ref, 3, H, W)

    # ---- branch3: 5x5 conv (pad 2) + ReLU, via im2col ----------------------
    t3_pad[...] = jnp.zeros(t3_pad.shape, t3_pad.dtype)
    t3_pad[pl.ds(2, H), pl.ds(2, W), :] = t3.reshape(H, W, Cr3)
    b3 = _conv_im2col(t3_pad, w3_ref, b3_ref, 5, H, W)

    # ---- branch4: 3x3 maxpool (stride 1, pad 1, -inf) -> 1x1 conv + ReLU ---
    pool_pad[...] = jnp.full(pool_pad.shape, -jnp.inf, pool_pad.dtype)
    pool_pad[pl.ds(1, H), pl.ds(1, W), :] = x3
    pooled = _maxpool_from_pad(pool_pad, 3, H, W)              # (H*W, Cin)
    b4 = jnp.dot(pooled, w4_ref[...], preferred_element_type=jnp.float32)
    b4 = jnp.maximum(b4 + b4_ref[...].astype(jnp.float32), 0.0)

    # ---- channel concat + single store -------------------------------------
    out = jnp.concatenate([b1, b2, b3, b4], axis=-1)           # (H*W, Ctot)
    o_ref[...] = out.reshape(1, H * W, out.shape[-1]).astype(o_ref.dtype)


# ----------------------------------------------------------------------------
# Wrapper
# ----------------------------------------------------------------------------
def inception_forward(x_nchw, p):
    """Pallas implementation of inception.forward (NCHW in, NCHW out)."""
    n, cin, h, w = x_nchw.shape
    x = jnp.transpose(x_nchw, (0, 2, 3, 1))                    # -> NHWC

    c1 = p["w1"].shape[-1]
    cr2 = p["w2r"].shape[-1]
    c3 = p["w2"].shape[-1]
    cr3 = p["w3r"].shape[-1]
    c5 = p["w3"].shape[-1]
    cpp = p["w4"].shape[-1]
    ctot = c1 + c3 + c5 + cpp
    c1x1 = c1 + cr2 + cr3

    # Merged 1x1 weights/bias (branch1 | branch2-reduce | branch3-reduce).
    w1x1 = jnp.concatenate([p["w1"].reshape(cin, c1),
                            p["w2r"].reshape(cin, cr2),
                            p["w3r"].reshape(cin, cr3)], axis=-1)
    b1x1 = jnp.concatenate([p["b1"], p["b2r"], p["b3r"]]).reshape(1, c1x1)
    # im2col-flattened conv weights: (KH*KW*Cin, Cout), tap-major / cin-minor.
    w2c = p["w2"].reshape(3 * 3 * cr2, c3)
    w3c = p["w3"].reshape(5 * 5 * cr3, c5)
    w4 = p["w4"].reshape(cin, cpp)
    b2 = p["b2"].reshape(1, c3)
    b3 = p["b3"].reshape(1, c5)
    b4 = p["b4"].reshape(1, cpp)

    kernel = functools.partial(_inception_kernel, H=h, W=w,
                               C1=c1, Cr2=cr2, Cr3=cr3)

    out = pl.pallas_call(
        kernel,
        out_shape=jax.ShapeDtypeStruct((n, h * w, ctot), x.dtype),
        grid=(n,),
        in_specs=[
            pl.BlockSpec((1, h, w, cin), lambda i: (i, 0, 0, 0)),
            pl.BlockSpec((cin, c1x1), lambda i: (0, 0)),
            pl.BlockSpec((1, c1x1), lambda i: (0, 0)),
            pl.BlockSpec((3 * 3 * cr2, c3), lambda i: (0, 0)),
            pl.BlockSpec((1, c3), lambda i: (0, 0)),
            pl.BlockSpec((5 * 5 * cr3, c5), lambda i: (0, 0)),
            pl.BlockSpec((1, c5), lambda i: (0, 0)),
            pl.BlockSpec((cin, cpp), lambda i: (0, 0)),
            pl.BlockSpec((1, cpp), lambda i: (0, 0)),
        ],
        out_specs=pl.BlockSpec((1, h * w, ctot), lambda i: (i, 0, 0)),
        scratch_shapes=[
            pltpu.VMEM((h + 2, w + 2, cr2), jnp.float32),   # padded t2
            pltpu.VMEM((h + 4, w + 4, cr3), jnp.float32),   # padded t3
            pltpu.VMEM((h + 2, w + 2, cin), jnp.float32),   # -inf padded x (pool)
        ],
        compiler_params=pltpu.CompilerParams(
            dimension_semantics=("parallel",)),
    )(x, w1x1, b1x1, w2c, b2, w3c, b3, w4, b4)

    out = out.reshape(n, h, w, ctot)
    return jnp.transpose(out, (0, 3, 1, 2))                    # back to NCHW


# ----------------------------------------------------------------------------
# Parameter init (deterministic synthetic params, HWIO weights)
# ----------------------------------------------------------------------------
def init_inception_params(key, in_channel, conv1x1, conv3x3_reduce, conv3x3,
                          conv5x5_reduce, conv5x5, pool_proj):
    ks = jax.random.split(key, 14)

    def w(k, kh, kw, cin, cout):
        return jax.random.normal(k, (kh, kw, cin, cout), jnp.float32) * 0.1

    def b(k, cout):
        return jax.random.normal(k, (cout,), jnp.float32) * 0.1

    return {
        "w1": w(ks[0], 1, 1, in_channel, conv1x1),         "b1": b(ks[1], conv1x1),
        "w2r": w(ks[2], 1, 1, in_channel, conv3x3_reduce), "b2r": b(ks[3], conv3x3_reduce),
        "w2": w(ks[4], 3, 3, conv3x3_reduce, conv3x3),     "b2": b(ks[5], conv3x3),
        "w3r": w(ks[6], 1, 1, in_channel, conv5x5_reduce), "b3r": b(ks[7], conv5x5_reduce),
        "w3": w(ks[8], 5, 5, conv5x5_reduce, conv5x5),     "b3": b(ks[9], conv5x5),
        "w4": w(ks[10], 1, 1, in_channel, pool_proj),      "b4": b(ks[11], pool_proj),
    }


# ----------------------------------------------------------------------------
# Pure-JAX reference (correctness check)
# ----------------------------------------------------------------------------
def _ref_conv(x_nchw, w_hwio, b, pad, relu):
    out = lax.conv_general_dilated(
        x_nchw, w_hwio, window_strides=(1, 1),
        padding=[(pad, pad), (pad, pad)],
        dimension_numbers=("NCHW", "HWIO", "NCHW"))
    out = out + b.reshape(1, -1, 1, 1)
    return jnp.maximum(out, 0.0) if relu else out


def ref_inception(x, p):
    b1 = _ref_conv(x, p["w1"], p["b1"], 0, False)
    b2 = _ref_conv(_ref_conv(x, p["w2r"], p["b2r"], 0, True), p["w2"], p["b2"], 1, True)
    b3 = _ref_conv(_ref_conv(x, p["w3r"], p["b3r"], 0, True), p["w3"], p["b3"], 2, True)
    pooled = lax.reduce_window(x, -jnp.inf, lax.max, (1, 1, 3, 3), (1, 1, 1, 1),
                               ((0, 0), (0, 0), (1, 1), (1, 1)))
    b4 = _ref_conv(pooled, p["w4"], p["b4"], 0, True)
    return jnp.concatenate([b1, b2, b3, b4], axis=1)


# ----------------------------------------------------------------------------
if __name__ == "__main__":
    key = jax.random.PRNGKey(0)
    kx, kp = jax.random.split(key)

    # Small shapes: batch=2, in_channels=4, spatial=16x16
    in_channel = 4
    cfg = dict(conv1x1=8, conv3x3_reduce=4, conv3x3=8,
               conv5x5_reduce=4, conv5x5=8, pool_proj=8)

    x = jax.random.normal(kx, (2, in_channel, 16, 16), jnp.float32)
    params = init_inception_params(kp, in_channel, **cfg)

    out = jax.jit(inception_forward)(x, params)
    out = jax.block_until_ready(out)

    expected = ref_inception(x, params)
    assert out.shape == (2, cfg["conv1x1"] + cfg["conv3x3"] + cfg["conv5x5"]
                         + cfg["pool_proj"], 16, 16), out.shape
    assert jnp.allclose(out, expected, atol=1e-4, rtol=1e-4), (
        float(jnp.max(jnp.abs(out - expected))))

    print("KERNEL_OK")
</pallas_src>

<mosaic_0001>
module attributes {stable_mosaic.version = 11 : i64} {
  func.func @_inception_kernel(%arg0: i32, %arg1: memref<1x16x16x4xf32, #tpu.memory_space<vmem>>, %arg2: memref<4x16xf32, #tpu.memory_space<vmem>>, %arg3: memref<1x16xf32, #tpu.memory_space<vmem>>, %arg4: memref<36x8xf32, #tpu.memory_space<vmem>>, %arg5: memref<1x8xf32, #tpu.memory_space<vmem>>, %arg6: memref<100x8xf32, #tpu.memory_space<vmem>>, %arg7: memref<1x8xf32, #tpu.memory_space<vmem>>, %arg8: memref<4x8xf32, #tpu.memory_space<vmem>>, %arg9: memref<1x8xf32, #tpu.memory_space<vmem>>, %arg10: memref<1x256x32xf32, #tpu.memory_space<vmem>>, %arg11: memref<18x18x4xf32, #tpu.memory_space<vmem>>, %arg12: memref<20x20x4xf32, #tpu.memory_space<vmem>>, %arg13: memref<18x18x4xf32, #tpu.memory_space<vmem>>) attributes {dimension_semantics = [#tpu.dimension_semantics<parallel>], iteration_bounds = array<i64: 2>, scalar_prefetch = 0 : i64, scratch_operands = 3 : i64, tpu.core_type = #tpu.core_type<tc>, window_params = [{transform_indices = @transform_0, window_bounds = array<i64: 1, 16, 16, 4>}, {pipeline_mode = #tpu.pipeline_mode<synchronous>, transform_indices = @transform_1, window_bounds = array<i64: 4, 16>}, {pipeline_mode = #tpu.pipeline_mode<synchronous>, transform_indices = @transform_2, window_bounds = array<i64: 1, 16>}, {pipeline_mode = #tpu.pipeline_mode<synchronous>, transform_indices = @transform_3, window_bounds = array<i64: 36, 8>}, {pipeline_mode = #tpu.pipeline_mode<synchronous>, transform_indices = @transform_4, window_bounds = array<i64: 1, 8>}, {pipeline_mode = #tpu.pipeline_mode<synchronous>, transform_indices = @transform_5, window_bounds = array<i64: 100, 8>}, {pipeline_mode = #tpu.pipeline_mode<synchronous>, transform_indices = @transform_6, window_bounds = array<i64: 1, 8>}, {pipeline_mode = #tpu.pipeline_mode<synchronous>, transform_indices = @transform_7, window_bounds = array<i64: 4, 8>}, {pipeline_mode = #tpu.pipeline_mode<synchronous>, transform_indices = @transform_8, window_bounds = array<i64: 1, 8>}, {transform_indices = @transform_9, window_bounds = array<i64: 1, 256, 32>}]} {
    %c0 = arith.constant 0 : index
    %c0_0 = arith.constant 0 : index
    %c0_1 = arith.constant 0 : index
    %c0_2 = arith.constant 0 : index
    %0 = vector.load %arg1[%c0, %c0_0, %c0_1, %c0_2] : memref<1x16x16x4xf32, #tpu.memory_space<vmem>>, vector<1x16x16x4xf32>
    %1 = vector.shape_cast %0 : vector<1x16x16x4xf32> to vector<16x16x4xf32>
    %2 = vector.shape_cast %1 : vector<16x16x4xf32> to vector<256x4xf32>
    %c0_3 = arith.constant 0 : index
    %c0_4 = arith.constant 0 : index
    %3 = vector.load %arg2[%c0_3, %c0_4] : memref<4x16xf32, #tpu.memory_space<vmem>>, vector<4x16xf32>
    %cst = arith.constant dense<0.000000e+00> : vector<256x16xf32>
    %4 = tpu.matmul %2, %3, %cst {dimension_numbers = #tpu.dot_dimension_numbers<[1], [0], [0], [1], [0, 0, 1, 1], [], []>} : vector<256x4xf32>, vector<4x16xf32>, vector<256x16xf32> -> vector<256x16xf32>
    %c0_5 = arith.constant 0 : index
    %c0_6 = arith.constant 0 : index
    %5 = vector.load %arg3[%c0_5, %c0_6] : memref<1x16xf32, #tpu.memory_space<vmem>>, vector<1x16xf32>
    %6 = vector.broadcast %5 : vector<1x16xf32> to vector<256x16xf32>
    %7 = arith.addf %4, %6 : vector<256x16xf32>
    %8 = vector.extract_strided_slice %7 {offsets = [0, 0], sizes = [256, 8], strides = [1, 1]} : vector<256x16xf32> to vector<256x8xf32>
    %9 = vector.extract_strided_slice %7 {offsets = [0, 8], sizes = [256, 4], strides = [1, 1]} : vector<256x16xf32> to vector<256x4xf32>
    %cst_7 = arith.constant 0.000000e+00 : f32
    %10 = vector.broadcast %cst_7 : f32 to vector<256x4xf32>
    %11 = arith.maximumf %9, %10 : vector<256x4xf32>
    %12 = vector.extract_strided_slice %7 {offsets = [0, 12], sizes = [256, 4], strides = [1, 1]} : vector<256x16xf32> to vector<256x4xf32>
    %cst_8 = arith.constant 0.000000e+00 : f32
    %13 = vector.broadcast %cst_8 : f32 to vector<256x4xf32>
    %14 = arith.maximumf %12, %13 : vector<256x4xf32>
    %cst_9 = arith.constant 0.000000e+00 : f32
    %15 = vector.broadcast %cst_9 : f32 to vector<18x18x4xf32>
    %c0_10 = arith.constant 0 : index
    %c0_11 = arith.constant 0 : index
    %c0_12 = arith.constant 0 : index
    %16 = vector.load %arg11[%c0_10, %c0_11, %c0_12] : memref<18x18x4xf32, #tpu.memory_space<vmem>>, vector<18x18x4xf32>
    tpu.vector_store %arg11[%c0_10, %c0_11, %c0_12], %15 {strides = array<i32>} : memref<18x18x4xf32, #tpu.memory_space<vmem>>, vector<18x18x4xf32>,
    %17 = vector.shape_cast %11 : vector<256x4xf32> to vector<16x16x4xf32>
    %c1 = arith.constant 1 : index
    %c1_13 = arith.constant 1 : index
    %c0_14 = arith.constant 0 : index
    %18 = vector.load %arg11[%c1, %c1_13, %c0_14] : memref<18x18x4xf32, #tpu.memory_space<vmem>>, vector<16x16x4xf32>
    tpu.vector_store %arg11[%c1, %c1_13, %c0_14], %17 {strides = array<i32>} : memref<18x18x4xf32, #tpu.memory_space<vmem>>, vector<16x16x4xf32>,
    %c0_15 = arith.constant 0 : index
    %c0_16 = arith.constant 0 : index
    %c0_17 = arith.constant 0 : index
    %19 = vector.load %arg11[%c0_15, %c0_16, %c0_17] : memref<18x18x4xf32, #tpu.memory_space<vmem>>, vector<16x16x4xf32>
    %20 = vector.shape_cast %19 : vector<16x16x4xf32> to vector<256x4xf32>
    %c0_18 = arith.constant 0 : index
    %c1_19 = arith.constant 1 : index
    %c0_20 = arith.constant 0 : index
    %21 = vector.load %arg11[%c0_18, %c1_19, %c0_20] : memref<18x18x4xf32, #tpu.memory_space<vmem>>, vector<16x16x4xf32>
    %22 = vector.shape_cast %21 : vector<16x16x4xf32> to vector<256x4xf32>
    %c0_21 = arith.constant 0 : index
    %c2 = arith.constant 2 : index
    %c0_22 = arith.constant 0 : index
    %23 = vector.load %arg11[%c0_21, %c2, %c0_22] : memref<18x18x4xf32, #tpu.memory_space<vmem>>, vector<16x16x4xf32>
    %24 = vector.shape_cast %23 : vector<16x16x4xf32> to vector<256x4xf32>
    %c1_23 = arith.constant 1 : index
    %c0_24 = arith.constant 0 : index
    %c0_25 = arith.constant 0 : index
    %25 = vector.load %arg11[%c1_23, %c0_24, %c0_25] : memref<18x18x4xf32, #tpu.memory_space<vmem>>, vector<16x16x4xf32>
    %26 = vector.shape_cast %25 : vector<16x16x4xf32> to vector<256x4xf32>
    %c1_26 = arith.constant 1 : index
    %c1_27 = arith.constant 1 : index
    %c0_28 = arith.constant 0 : index
    %27 = vector.load %arg11[%c1_26, %c1_27, %c0_28] : memref<18x18x4xf32, #tpu.memory_space<vmem>>, vector<16x16x4xf32>
    %28 = vector.shape_cast %27 : vector<16x16x4xf32> to vector<256x4xf32>
    %c1_29 = arith.constant 1 : index
    %c2_30 = arith.constant 2 : index
    %c0_31 = arith.constant 0 : index
    %29 = vector.load %arg11[%c1_29, %c2_30, %c0_31] : memref<18x18x4xf32, #tpu.memory_space<vmem>>, vector<16x16x4xf32>
    %30 = vector.shape_cast %29 : vector<16x16x4xf32> to vector<256x4xf32>
    %c2_32 = arith.constant 2 : index
    %c0_33 = arith.constant 0 : index
    %c0_34 = arith.constant 0 : index
    %31 = vector.load %arg11[%c2_32, %c0_33, %c0_34] : memref<18x18x4xf32, #tpu.memory_space<vmem>>, vector<16x16x4xf32>
    %32 = vector.shape_cast %31 : vector<16x16x4xf32> to vector<256x4xf32>
    %c2_35 = arith.constant 2 : index
    %c1_36 = arith.constant 1 : index
    %c0_37 = arith.constant 0 : index
    %33 = vector.load %arg11[%c2_35, %c1_36, %c0_37] : memref<18x18x4xf32, #tpu.memory_space<vmem>>, vector<16x16x4xf32>
    %34 = vector.shape_cast %33 : vector<16x16x4xf32> to vector<256x4xf32>
    %c2_38 = arith.constant 2 : index
    %c2_39 = arith.constant 2 : index
    %c0_40 = arith.constant 0 : index
    %35 = vector.load %arg11[%c2_38, %c2_39, %c0_40] : memref<18x18x4xf32, #tpu.memory_space<vmem>>, vector<16x16x4xf32>
    %36 = vector.shape_cast %35 : vector<16x16x4xf32> to vector<256x4xf32>
    %37 = tpu.concatenate %20, %22, %24, %26, %28, %30, %32, %34, %36 in 1 : vector<256x4xf32>, vector<256x4xf32>, vector<256x4xf32>, vector<256x4xf32>, vector<256x4xf32>, vector<256x4xf32>, vector<256x4xf32>, vector<256x4xf32>, vector<256x4xf32> -> vector<256x36xf32>
    %c0_41 = arith.constant 0 : index
    %c0_42 = arith.constant 0 : index
    %38 = vector.load %arg4[%c0_41, %c0_42] : memref<36x8xf32, #tpu.memory_space<vmem>>, vector<36x8xf32>
    %cst_43 = arith.constant dense<0.000000e+00> : vector<256x8xf32>
    %39 = tpu.matmul %37, %38, %cst_43 {dimension_numbers = #tpu.dot_dimension_numbers<[1], [0], [0], [1], [0, 0, 1, 1], [], []>} : vector<256x36xf32>, vector<36x8xf32>, vector<256x8xf32> -> vector<256x8xf32>
    %c0_44 = arith.constant 0 : index
    %c0_45 = arith.constant 0 : index
    %40 = vector.load %arg5[%c0_44, %c0_45] : memref<1x8xf32, #tpu.memory_space<vmem>>, vector<1x8xf32>
    %41 = vector.broadcast %40 : vector<1x8xf32> to vector<256x8xf32>
    %42 = arith.addf %39, %41 : vector<256x8xf32>
    %cst_46 = arith.constant 0.000000e+00 : f32
    %43 = vector.broadcast %cst_46 : f32 to vector<256x8xf32>
    %44 = arith.maximumf %42, %43 : vector<256x8xf32>
    %cst_47 = arith.constant 0.000000e+00 : f32
    %45 = vector.broadcast %cst_47 : f32 to vector<20x20x4xf32>
    %c0_48 = arith.constant 0 : index
    %c0_49 = arith.constant 0 : index
    %c0_50 = arith.constant 0 : index
    %46 = vector.load %arg12[%c0_48, %c0_49, %c0_50] : memref<20x20x4xf32, #tpu.memory_space<vmem>>, vector<20x20x4xf32>
    tpu.vector_store %arg12[%c0_48, %c0_49, %c0_50], %45 {strides = array<i32>} : memref<20x20x4xf32, #tpu.memory_space<vmem>>, vector<20x20x4xf32>,
    %47 = vector.shape_cast %14 : vector<256x4xf32> to vector<16x16x4xf32>
    %c2_51 = arith.constant 2 : index
    %c2_52 = arith.constant 2 : index
    %c0_53 = arith.constant 0 : index
    %48 = vector.load %arg12[%c2_51, %c2_52, %c0_53] : memref<20x20x4xf32, #tpu.memory_space<vmem>>, vector<16x16x4xf32>
    tpu.vector_store %arg12[%c2_51, %c2_52, %c0_53], %47 {strides = array<i32>} : memref<20x20x4xf32, #tpu.memory_space<vmem>>, vector<16x16x4xf32>,
    %c0_54 = arith.constant 0 : index
    %c0_55 = arith.constant 0 : index
    %c0_56 = arith.constant 0 : index
    %49 = vector.load %arg12[%c0_54, %c0_55, %c0_56] : memref<20x20x4xf32, #tpu.memory_space<vmem>>, vector<16x16x4xf32>
    %50 = vector.shape_cast %49 : vector<16x16x4xf32> to vector<256x4xf32>
    %c0_57 = arith.constant 0 : index
    %c1_58 = arith.constant 1 : index
    %c0_59 = arith.constant 0 : index
    %51 = vector.load %arg12[%c0_57, %c1_58, %c0_59] : memref<20x20x4xf32, #tpu.memory_space<vmem>>, vector<16x16x4xf32>
    %52 = vector.shape_cast %51 : vector<16x16x4xf32> to vector<256x4xf32>
    %c0_60 = arith.constant 0 : index
    %c2_61 = arith.constant 2 : index
    %c0_62 = arith.constant 0 : index
    %53 = vector.load %arg12[%c0_60, %c2_61, %c0_62] : memref<20x20x4xf32, #tpu.memory_space<vmem>>, vector<16x16x4xf32>
    %54 = vector.shape_cast %53 : vector<16x16x4xf32> to vector<256x4xf32>
    %c0_63 = arith.constant 0 : index
    %c3 = arith.constant 3 : index
    %c0_64 = arith.constant 0 : index
    %55 = vector.load %arg12[%c0_63, %c3, %c0_64] : memref<20x20x4xf32, #tpu.memory_space<vmem>>, vector<16x16x4xf32>
    %56 = vector.shape_cast %55 : vector<16x16x4xf32> to vector<256x4xf32>
    %c0_65 = arith.constant 0 : index
    %c4 = arith.constant 4 : index
    %c0_66 = arith.constant 0 : index
    %57 = vector.load %arg12[%c0_65, %c4, %c0_66] : memref<20x20x4xf32, #tpu.memory_space<vmem>>, vector<16x16x4xf32>
    %58 = vector.shape_cast %57 : vector<16x16x4xf32> to vector<256x4xf32>
    %c1_67 = arith.constant 1 : index
    %c0_68 = arith.constant 0 : index
    %c0_69 = arith.constant 0 : index
    %59 = vector.load %arg12[%c1_67, %c0_68, %c0_69] : memref<20x20x4xf32, #tpu.memory_space<vmem>>, vector<16x16x4xf32>
    %60 = vector.shape_cast %59 : vector<16x16x4xf32> to vector<256x4xf32>
    %c1_70 = arith.constant 1 : index
    %c1_71 = arith.constant 1 : index
    %c0_72 = arith.constant 0 : index
    %61 = vector.load %arg12[%c1_70, %c1_71, %c0_72] : memref<20x20x4xf32, #tpu.memory_space<vmem>>, vector<16x16x4xf32>
    %62 = vector.shape_cast %61 : vector<16x16x4xf32> to vector<256x4xf32>
    %c1_73 = arith.constant 1 : index
    %c2_74 = arith.constant 2 : index
    %c0_75 = arith.constant 0 : index
    %63 = vector.load %arg12[%c1_73, %c2_74, %c0_75] : memref<20x20x4xf32, #tpu.memory_space<vmem>>, vector<16x16x4xf32>
    %64 = vector.shape_cast %63 : vector<16x16x4xf32> to vector<256x4xf32>
    %c1_76 = arith.constant 1 : index
    %c3_77 = arith.constant 3 : index
    %c0_78 = arith.constant 0 : index
    %65 = vector.load %arg12[%c1_76, %c3_77, %c0_78] : memref<20x20x4xf32, #tpu.memory_space<vmem>>, vector<16x16x4xf32>
    %66 = vector.shape_cast %65 : vector<16x16x4xf32> to vector<256x4xf32>
    %c1_79 = arith.constant 1 : index
    %c4_80 = arith.constant 4 : index
    %c0_81 = arith.constant 0 : index
    %67 = vector.load %arg12[%c1_79, %c4_80, %c0_81] : memref<20x20x4xf32, #tpu.memory_space<vmem>>, vector<16x16x4xf32>
    %68 = vector.shape_cast %67 : vector<16x16x4xf32> to vector<256x4xf32>
    %c2_82 = arith.constant 2 : index
    %c0_83 = arith.constant 0 : index
    %c0_84 = arith.constant 0 : index
    %69 = vector.load %arg12[%c2_82, %c0_83, %c0_84] : memref<20x20x4xf32, #tpu.memory_space<vmem>>, vector<16x16x4xf32>
    %70 = vector.shape_cast %69 : vector<16x16x4xf32> to vector<256x4xf32>
    %c2_85 = arith.constant 2 : index
    %c1_86 = arith.constant 1 : index
    %c0_87 = arith.constant 0 : index
    %71 = vector.load %arg12[%c2_85, %c1_86, %c0_87] : memref<20x20x4xf32, #tpu.memory_space<vmem>>, vector<16x16x4xf32>
    %72 = vector.shape_cast %71 : vector<16x16x4xf32> to vector<256x4xf32>
    %c2_88 = arith.constant 2 : index
    %c2_89 = arith.constant 2 : index
    %c0_90 = arith.constant 0 : index
    %73 = vector.load %arg12[%c2_88, %c2_89, %c0_90] : memref<20x20x4xf32, #tpu.memory_space<vmem>>, vector<16x16x4xf32>
    %74 = vector.shape_cast %73 : vector<16x16x4xf32> to vector<256x4xf32>
    %c2_91 = arith.constant 2 : index
    %c3_92 = arith.constant 3 : index
    %c0_93 = arith.constant 0 : index
    %75 = vector.load %arg12[%c2_91, %c3_92, %c0_93] : memref<20x20x4xf32, #tpu.memory_space<vmem>>, vector<16x16x4xf32>
    %76 = vector.shape_cast %75 : vector<16x16x4xf32> to vector<256x4xf32>
    %c2_94 = arith.constant 2 : index
    %c4_95 = arith.constant 4 : index
    %c0_96 = arith.constant 0 : index
    %77 = vector.load %arg12[%c2_94, %c4_95, %c0_96] : memref<20x20x4xf32, #tpu.memory_space<vmem>>, vector<16x16x4xf32>
    %78 = vector.shape_cast %77 : vector<16x16x4xf32> to vector<256x4xf32>
    %c3_97 = arith.constant 3 : index
    %c0_98 = arith.constant 0 : index
    %c0_99 = arith.constant 0 : index
    %79 = vector.load %arg12[%c3_97, %c0_98, %c0_99] : memref<20x20x4xf32, #tpu.memory_space<vmem>>, vector<16x16x4xf32>
    %80 = vector.shape_cast %79 : vector<16x16x4xf32> to vector<256x4xf32>
    %c3_100 = arith.constant 3 : index
    %c1_101 = arith.constant 1 : index
    %c0_102 = arith.constant 0 : index
    %81 = vector.load %arg12[%c3_100, %c1_101, %c0_102] : memref<20x20x4xf32, #tpu.memory_space<vmem>>, vector<16x16x4xf32>
    %82 = vector.shape_cast %81 : vector<16x16x4xf32> to vector<256x4xf32>
    %c3_103 = arith.constant 3 : index
    %c2_104 = arith.constant 2 : index
    %c0_105 = arith.constant 0 : index
    %83 = vector.load %arg12[%c3_103, %c2_104, %c0_105] : memref<20x20x4xf32, #tpu.memory_space<vmem>>, vector<16x16x4xf32>
    %84 = vector.shape_cast %83 : vector<16x16x4xf32> to vector<256x4xf32>
    %c3_106 = arith.constant 3 : index
    %c3_107 = arith.constant 3 : index
    %c0_108 = arith.constant 0 : index
    %85 = vector.load %arg12[%c3_106, %c3_107, %c0_108] : memref<20x20x4xf32, #tpu.memory_space<vmem>>, vector<16x16x4xf32>
    %86 = vector.shape_cast %85 : vector<16x16x4xf32> to vector<256x4xf32>
    %c3_109 = arith.constant 3 : index
    %c4_110 = arith.constant 4 : index
    %c0_111 = arith.constant 0 : index
    %87 = vector.load %arg12[%c3_109, %c4_110, %c0_111] : memref<20x20x4xf32, #tpu.memory_space<vmem>>, vector<16x16x4xf32>
    %88 = vector.shape_cast %87 : vector<16x16x4xf32> to vector<256x4xf32>
    %c4_112 = arith.constant 4 : index
    %c0_113 = arith.constant 0 : index
    %c0_114 = arith.constant 0 : index
    %89 = vector.load %arg12[%c4_112, %c0_113, %c0_114] : memref<20x20x4xf32, #tpu.memory_space<vmem>>, vector<16x16x4xf32>
    %90 = vector.shape_cast %89 : vector<16x16x4xf32> to vector<256x4xf32>
    %c4_115 = arith.constant 4 : index
    %c1_116 = arith.constant 1 : index
    %c0_117 = arith.constant 0 : index
    %91 = vector.load %arg12[%c4_115, %c1_116, %c0_117] : memref<20x20x4xf32, #tpu.memory_space<vmem>>, vector<16x16x4xf32>
    %92 = vector.shape_cast %91 : vector<16x16x4xf32> to vector<256x4xf32>
    %c4_118 = arith.constant 4 : index
    %c2_119 = arith.constant 2 : index
    %c0_120 = arith.constant 0 : index
    %93 = vector.load %arg12[%c4_118, %c2_119, %c0_120] : memref<20x20x4xf32, #tpu.memory_space<vmem>>, vector<16x16x4xf32>
    %94 = vector.shape_cast %93 : vector<16x16x4xf32> to vector<256x4xf32>
    %c4_121 = arith.constant 4 : index
    %c3_122 = arith.constant 3 : index
    %c0_123 = arith.constant 0 : index
    %95 = vector.load %arg12[%c4_121, %c3_122, %c0_123] : memref<20x20x4xf32, #tpu.memory_space<vmem>>, vector<16x16x4xf32>
    %96 = vector.shape_cast %95 : vector<16x16x4xf32> to vector<256x4xf32>
    %c4_124 = arith.constant 4 : index
    %c4_125 = arith.constant 4 : index
    %c0_126 = arith.constant 0 : index
    %97 = vector.load %arg12[%c4_124, %c4_125, %c0_126] : memref<20x20x4xf32, #tpu.memory_space<vmem>>, vector<16x16x4xf32>
    %98 = vector.shape_cast %97 : vector<16x16x4xf32> to vector<256x4xf32>
    %99 = tpu.concatenate %50, %52, %54, %56, %58, %60, %62, %64, %66, %68, %70, %72, %74, %76, %78, %80 in 1 : vector<256x4xf32>, vector<256x4xf32>, vector<256x4xf32>, vector<256x4xf32>, vector<256x4xf32>, vector<256x4xf32>, vector<256x4xf32>, vector<256x4xf32>, vector<256x4xf32>, vector<256x4xf32>, vector<256x4xf32>, vector<256x4xf32>, vector<256x4xf32>, vector<256x4xf32>, vector<256x4xf32>, vector<256x4xf32> -> vector<256x64xf32>
    %100 = tpu.concatenate %82, %84, %86, %88, %90, %92, %94, %96, %98 in 1 : vector<256x4xf32>, vector<256x4xf32>, vector<256x4xf32>, vector<256x4xf32>, vector<256x4xf32>, vector<256x4xf32>, vector<256x4xf32>, vector<256x4xf32>, vector<256x4xf32> -> vector<256x36xf32>
    %101 = tpu.concatenate %99, %100 in 1 : vector<256x64xf32>, vector<256x36xf32> -> vector<256x100xf32>
    %c0_127 = arith.constant 0 : index
    %c0_128 = arith.constant 0 : index
    %102 = vector.load %arg6[%c0_127, %c0_128] : memref<100x8xf32, #tpu.memory_space<vmem>>, vector<100x8xf32>
    %cst_129 = arith.constant dense<0.000000e+00> : vector<256x8xf32>
    %103 = tpu.matmul %101, %102, %cst_129 {dimension_numbers = #tpu.dot_dimension_numbers<[1], [0], [0], [1], [0, 0, 1, 1], [], []>} : vector<256x100xf32>, vector<100x8xf32>, vector<256x8xf32> -> vector<256x8xf32>
    %c0_130 = arith.constant 0 : index
    %c0_131 = arith.constant 0 : index
    %104 = vector.load %arg7[%c0_130, %c0_131] : memref<1x8xf32, #tpu.memory_space<vmem>>, vector<1x8xf32>
    %105 = vector.broadcast %104 : vector<1x8xf32> to vector<256x8xf32>
    %106 = arith.addf %103, %105 : vector<256x8xf32>
    %cst_132 = arith.constant 0.000000e+00 : f32
    %107 = vector.broadcast %cst_132 : f32 to vector<256x8xf32>
    %108 = arith.maximumf %106, %107 : vector<256x8xf32>
    %cst_133 = arith.constant 0xFF800000 : f32
    %109 = vector.broadcast %cst_133 : f32 to vector<18x18x4xf32>
    %c0_134 = arith.constant 0 : index
    %c0_135 = arith.constant 0 : index
    %c0_136 = arith.constant 0 : index
    %110 = vector.load %arg13[%c0_134, %c0_135, %c0_136] : memref<18x18x4xf32, #tpu.memory_space<vmem>>, vector<18x18x4xf32>
    tpu.vector_store %arg13[%c0_134, %c0_135, %c0_136], %109 {strides = array<i32>} : memref<18x18x4xf32, #tpu.memory_space<vmem>>, vector<18x18x4xf32>,
    %c1_137 = arith.constant 1 : index
    %c1_138 = arith.constant 1 : index
    %c0_139 = arith.constant 0 : index
    %111 = vector.load %arg13[%c1_137, %c1_138, %c0_139] : memref<18x18x4xf32, #tpu.memory_space<vmem>>, vector<16x16x4xf32>
    tpu.vector_store %arg13[%c1_137, %c1_138, %c0_139], %1 {strides = array<i32>} : memref<18x18x4xf32, #tpu.memory_space<vmem>>, vector<16x16x4xf32>,
    %c0_140 = arith.constant 0 : index
    %c0_141 = arith.constant 0 : index
    %c0_142 = arith.constant 0 : index
    %112 = vector.load %arg13[%c0_140, %c0_141, %c0_142] : memref<18x18x4xf32, #tpu.memory_space<vmem>>, vector<16x16x4xf32>
    %c0_143 = arith.constant 0 : index
    %c1_144 = arith.constant 1 : index
    %c0_145 = arith.constant 0 : index
    %113 = vector.load %arg13[%c0_143, %c1_144, %c0_145] : memref<18x18x4xf32, #tpu.memory_space<vmem>>, vector<16x16x4xf32>
    %114 = arith.maximumf %112, %113 : vector<16x16x4xf32>
    %c0_146 = arith.constant 0 : index
    %c2_147 = arith.constant 2 : index
    %c0_148 = arith.constant 0 : index
    %115 = vector.load %arg13[%c0_146, %c2_147, %c0_148] : memref<18x18x4xf32, #tpu.memory_space<vmem>>, vector<16x16x4xf32>
    %116 = arith.maximumf %114, %115 : vector<16x16x4xf32>
    %c1_149 = arith.constant 1 : index
    %c0_150 = arith.constant 0 : index
    %c0_151 = arith.constant 0 : index
    %117 = vector.load %arg13[%c1_149, %c0_150, %c0_151] : memref<18x18x4xf32, #tpu.memory_space<vmem>>, vector<16x16x4xf32>
    %118 = arith.maximumf %116, %117 : vector<16x16x4xf32>
    %c1_152 = arith.constant 1 : index
    %c1_153 = arith.constant 1 : index
    %c0_154 = arith.constant 0 : index
    %119 = vector.load %arg13[%c1_152, %c1_153, %c0_154] : memref<18x18x4xf32, #tpu.memory_space<vmem>>, vector<16x16x4xf32>
    %120 = arith.maximumf %118, %119 : vector<16x16x4xf32>
    %c1_155 = arith.constant 1 : index
    %c2_156 = arith.constant 2 : index
    %c0_157 = arith.constant 0 : index
    %121 = vector.load %arg13[%c1_155, %c2_156, %c0_157] : memref<18x18x4xf32, #tpu.memory_space<vmem>>, vector<16x16x4xf32>
    %122 = arith.maximumf %120, %121 : vector<16x16x4xf32>
    %c2_158 = arith.constant 2 : index
    %c0_159 = arith.constant 0 : index
    %c0_160 = arith.constant 0 : index
    %123 = vector.load %arg13[%c2_158, %c0_159, %c0_160] : memref<18x18x4xf32, #tpu.memory_space<vmem>>, vector<16x16x4xf32>
    %124 = arith.maximumf %122, %123 : vector<16x16x4xf32>
    %c2_161 = arith.constant 2 : index
    %c1_162 = arith.constant 1 : index
    %c0_163 = arith.constant 0 : index
    %125 = vector.load %arg13[%c2_161, %c1_162, %c0_163] : memref<18x18x4xf32, #tpu.memory_space<vmem>>, vector<16x16x4xf32>
    %126 = arith.maximumf %124, %125 : vector<16x16x4xf32>
    %c2_164 = arith.constant 2 : index
    %c2_165 = arith.constant 2 : index
    %c0_166 = arith.constant 0 : index
    %127 = vector.load %arg13[%c2_164, %c2_165, %c0_166] : memref<18x18x4xf32, #tpu.memory_space<vmem>>, vector<16x16x4xf32>
    %128 = arith.maximumf %126, %127 : vector<16x16x4xf32>
    %129 = vector.shape_cast %128 : vector<16x16x4xf32> to vector<256x4xf32>
    %c0_167 = arith.constant 0 : index
    %c0_168 = arith.constant 0 : index
    %130 = vector.load %arg8[%c0_167, %c0_168] : memref<4x8xf32, #tpu.memory_space<vmem>>, vector<4x8xf32>
    %cst_169 = arith.constant dense<0.000000e+00> : vector<256x8xf32>
    %131 = tpu.matmul %129, %130, %cst_169 {dimension_numbers = #tpu.dot_dimension_numbers<[1], [0], [0], [1], [0, 0, 1, 1], [], []>} : vector<256x4xf32>, vector<4x8xf32>, vector<256x8xf32> -> vector<256x8xf32>
    %c0_170 = arith.constant 0 : index
    %c0_171 = arith.constant 0 : index
    %132 = vector.load %arg9[%c0_170, %c0_171] : memref<1x8xf32, #tpu.memory_space<vmem>>, vector<1x8xf32>
    %133 = vector.broadcast %132 : vector<1x8xf32> to vector<256x8xf32>
    %134 = arith.addf %131, %133 : vector<256x8xf32>
    %cst_172 = arith.constant 0.000000e+00 : f32
    %135 = vector.broadcast %cst_172 : f32 to vector<256x8xf32>
    %136 = arith.maximumf %134, %135 : vector<256x8xf32>
    %137 = tpu.concatenate %8, %44, %108, %136 in 1 : vector<256x8xf32>, vector<256x8xf32>, vector<256x8xf32>, vector<256x8xf32> -> vector<256x32xf32>
    %138 = vector.shape_cast %137 : vector<256x32xf32> to vector<1x256x32xf32>
    %c0_173 = arith.constant 0 : index
    %c0_174 = arith.constant 0 : index
    %c0_175 = arith.constant 0 : index
    %139 = vector.load %arg10[%c0_173, %c0_174, %c0_175] : memref<1x256x32xf32, #tpu.memory_space<vmem>>, vector<1x256x32xf32>
    tpu.vector_store %arg10[%c0_173, %c0_174, %c0_175], %138 {strides = array<i32>} : memref<1x256x32xf32, #tpu.memory_space<vmem>>, vector<1x256x32xf32>,
    return
  }
  func.func @transform_0(%arg0: i32) -> (i32, i32, i32, i32) {
    %c0_i32 = arith.constant 0 : i32
    %c0_i32_0 = arith.constant 0 : i32
    %c0_i32_1 = arith.constant 0 : i32
    %c0_i32_2 = arith.constant 0 : i32
    return %arg0, %c0_i32, %c0_i32_0, %c0_i32_1 : i32, i32, i32, i32
  }
  func.func @transform_1(%arg0: i32) -> (i32, i32) {
    %c0_i32 = arith.constant 0 : i32
    %c0_i32_0 = arith.constant 0 : i32
    %c0_i32_1 = arith.constant 0 : i32
    return %c0_i32, %c0_i32_0 : i32, i32
  }
  func.func @transform_2(%arg0: i32) -> (i32, i32) {
    %c0_i32 = arith.constant 0 : i32
    %c0_i32_0 = arith.constant 0 : i32
    %c0_i32_1 = arith.constant 0 : i32
    return %c0_i32, %c0_i32_0 : i32, i32
  }
  func.func @transform_3(%arg0: i32) -> (i32, i32) {
    %c0_i32 = arith.constant 0 : i32
    %c0_i32_0 = arith.constant 0 : i32
    %c0_i32_1 = arith.constant 0 : i32
    return %c0_i32, %c0_i32_0 : i32, i32
  }
  func.func @transform_4(%arg0: i32) -> (i32, i32) {
    %c0_i32 = arith.constant 0 : i32
    %c0_i32_0 = arith.constant 0 : i32
    %c0_i32_1 = arith.constant 0 : i32
    return %c0_i32, %c0_i32_0 : i32, i32
  }
  func.func @transform_5(%arg0: i32) -> (i32, i32) {
    %c0_i32 = arith.constant 0 : i32
    %c0_i32_0 = arith.constant 0 : i32
    %c0_i32_1 = arith.constant 0 : i32
    return %c0_i32, %c0_i32_0 : i32, i32
  }
  func.func @transform_6(%arg0: i32) -> (i32, i32) {
    %c0_i32 = arith.constant 0 : i32
    %c0_i32_0 = arith.constant 0 : i32
    %c0_i32_1 = arith.constant 0 : i32
    return %c0_i32, %c0_i32_0 : i32, i32
  }
  func.func @transform_7(%arg0: i32) -> (i32, i32) {
    %c0_i32 = arith.constant 0 : i32
    %c0_i32_0 = arith.constant 0 : i32
    %c0_i32_1 = arith.constant 0 : i32
    return %c0_i32, %c0_i32_0 : i32, i32
  }
  func.func @transform_8(%arg0: i32) -> (i32, i32) {
    %c0_i32 = arith.constant 0 : i32
    %c0_i32_0 = arith.constant 0 : i32
    %c0_i32_1 = arith.constant 0 : i32
    return %c0_i32, %c0_i32_0 : i32, i32
  }
  func.func @transform_9(%arg0: i32) -> (i32, i32, i32) {
    %c0_i32 = arith.constant 0 : i32
    %c0_i32_0 = arith.constant 0 : i32
    %c0_i32_1 = arith.constant 0 : i32
    return %arg0, %c0_i32, %c0_i32_0 : i32, i32, i32
  }
}

</mosaic_0001>

<llo_original>
// kernel: inception_forward.1
$region0: #{inception_forward.1}
  #allocation0 [shape = 'u32[]', space=smem, size = 0x4, offset = 0x4, fixed_abs, tag = 'smem constant byte address 0x4 - core index']
  #allocation1 [shape = 'u32[72,128]{1,0:T(1,128)}', space=vmem, size = 0x9000, scoped, tag = 'internal scratch']
  #allocation2 [shape = 'f32[18,18,4]{2,1,0:T(8,128)}', space=vmem, size = 0x36000, scoped, tag = 'scratch operand']
  #allocation3 [shape = 'f32[20,20,4]{2,1,0:T(8,128)}', space=vmem, size = 0x3c000, scoped, tag = 'scratch operand']
  #allocation4 [shape = 'f32[18,18,4]{2,1,0:T(8,128)}', space=vmem, size = 0x36000, scoped, tag = 'scratch operand']
  %s0 = inlined_call_operand.vmem [shape: f32[2,16,16,4], index: 0, kind: input, shape index: {}]
  %s1 = inlined_call_operand.vmem [shape: f32[4,16], index: 1, kind: input, shape index: {}]
  %s2 = inlined_call_operand.vmem [shape: f32[1,16], index: 2, kind: input, shape index: {}]
  %s3 = inlined_call_operand.vmem [shape: f32[36,8], index: 3, kind: input, shape index: {}]
  %s4 = inlined_call_operand.vmem [shape: f32[1,8], index: 4, kind: input, shape index: {}]
  %s5 = inlined_call_operand.vmem [shape: f32[100,8], index: 5, kind: input, shape index: {}]
  %s6 = inlined_call_operand.vmem [shape: f32[1,8], index: 6, kind: input, shape index: {}]
  %s7 = inlined_call_operand.vmem [shape: f32[4,8], index: 7, kind: input, shape index: {}]
  %s8 = inlined_call_operand.vmem [shape: f32[1,8], index: 8, kind: input, shape index: {}]
  %s9 = inlined_call_operand.hbm [shape: f32[2,256,32], index: 9, kind: output, shape index: {}]
  %s10 = sld [smem:[#allocation0]]
  $region69: #{inception_forward.1} parent=0
    _
  %s12 = ssub.s32 1, %s10
  %s13 = scalar_select 0, %s12, %s10
  $region1: #{inception_forward.1} parent=0
    #allocation5 [shape = 'u8[262144]{0}', space=vmem, size = 0x40000, scoped, tag = 'output window, operand 0']
    #allocation6 [shape = 's32[2]{0}', space=sflag, size = 0x8, scoped, tag = 'scoped memory for inception_forward.1']
    %14 = vsyncpa [#allocation6], 0
    %s15 = scalar_lea.sflag [#allocation6], 1
    %16 = vsyncpa %s15, 0
    loop: start=0, step=1, limit=4
    $region2: #{inception_forward.1} parent=1 // loop_pre_header
      _
    $region3: #{inception_forward.1} parent=1 // loop_header
      %s18 = sphi 0, %s22
      %p19 = scmp.ge.s32.totalorder %s18, 4
      %s28 = sphi 0, %s30
      %s31 = sphi 0, %s28
      %s32 = sphi 0, %s31
      %s48 = sphi 0, %s32
      %s52 = sphi 0, %s52
      %s54 = sphi 0, %s52
      %s55 = sphi 0, %s54
      %s69 = sphi 0, %s55
      %s73 = sphi 0, %s73
      %s75 = sphi 0, %s73
      %s76 = sphi 0, %s75
      %s90 = sphi 0, %s76
      %s94 = sphi 0, %s94
      %s96 = sphi 0, %s94
      %s97 = sphi 0, %s96
      %s111 = sphi 0, %s97
      %s115 = sphi 0, %s115
      %s117 = sphi 0, %s115
      %s118 = sphi 0, %s117
      %s132 = sphi 0, %s118
      %s136 = sphi 0, %s136
      %s138 = sphi 0, %s136
      %s139 = sphi 0, %s138
      %s153 = sphi 0, %s139
      %s157 = sphi 0, %s157
      %s159 = sphi 0, %s157
      %s160 = sphi 0, %s159
      %s174 = sphi 0, %s160
      %s178 = sphi 0, %s178
      %s180 = sphi 0, %s178
      %s181 = sphi 0, %s180
      %s195 = sphi 0, %s181
      %s199 = sphi 0, %s199
      %s201 = sphi 0, %s199
      %s202 = sphi 0, %s201
      %s216 = sphi 0, %s202
      %s222 = sphi 0, %s224
      %s225 = sphi 0, %s222
      %s226 = sphi 0, %s225
      %s242 = sphi 0, %s226
    $region4: #{inception_forward.1} parent=1 // loop_header_branch
      %21 = sbr.rel (%p19) target = $region8
    $region5: #{inception_forward.1} parent=1 // loop_body
      %s23 = ssub.s32 %s18, 1
      %s24 = ssub.s32 %s18, 2
      %s25 = sadd.s32 %s18, 1
      %s26 = ssub.s32 %s18, %s25
      %p27 = scmp.eq.s32.totalorder %s26, 0
      %s29 = sadd.s32 %s28, 1
      %s30 = scalar_select %p27, %s28, %s29
      %p33 = pneg %p27
      %p34 = scmp.eq.s32.totalorder %s18, 1
      %p35 = por %p33, %p34
      %p36 = scmp.ne.s32.totalorder %s28, %s31
      %p37 = scmp.eq.s32.totalorder %s18, 0
      %p38 = por %p36, %p37
      %p39 = scmp.ne.s32.totalorder %s28, %s31
      %p40 = scmp.eq.s32.totalorder %s23, 1
      %p41 = por %p39, %p40
      %p42 = scmp.ne.s32.totalorder %s31, %s32
      %p43 = scmp.eq.s32.totalorder %s23, 0
      %p44 = por %p42, %p43
      %p45 = scmp.ne.s32.totalorder %s31, %s32
      %p46 = scmp.eq.s32.totalorder %s24, 1
      %p47 = por %p45, %p46
      %p49 = scmp.ne.s32.totalorder %s32, %s48
      %p50 = scmp.eq.s32.totalorder %s24, 0
      %p51 = por %p49, %p50
      %s53 = sadd.s32 %s52, 1
      %p56 = scmp.eq.s32.totalorder %s18, 1
      %p57 = scmp.ne.s32.totalorder %s52, %s54
      %p58 = scmp.eq.s32.totalorder %s18, 0
      %p59 = por %p57, %p58
      %p60 = scmp.ne.s32.totalorder %s52, %s54
      %p61 = scmp.eq.s32.totalorder %s23, 1
      %p62 = por %p60, %p61
      %p63 = scmp.ne.s32.totalorder %s54, %s55
      %p64 = scmp.eq.s32.totalorder %s23, 0
      %p65 = por %p63, %p64
      %p66 = scmp.ne.s32.totalorder %s54, %s55
      %p67 = scmp.eq.s32.totalorder %s24, 1
      %p68 = por %p66, %p67
      %p70 = scmp.ne.s32.totalorder %s55, %s69
      %p71 = scmp.eq.s32.totalorder %s24, 0
      %p72 = por %p70, %p71
      %s74 = sadd.s32 %s73, 1
      %p77 = scmp.eq.s32.totalorder %s18, 1
      %p78 = scmp.ne.s32.totalorder %s73, %s75
      %p79 = scmp.eq.s32.totalorder %s18, 0
      %p80 = por %p78, %p79
      %p81 = scmp.ne.s32.totalorder %s73, %s75
      %p82 = scmp.eq.s32.totalorder %s23, 1
      %p83 = por %p81, %p82
      %p84 = scmp.ne.s32.totalorder %s75, %s76
      %p85 = scmp.eq.s32.totalorder %s23, 0
      %p86 = por %p84, %p85
      %p87 = scmp.ne.s32.totalorder %s75, %s76
      %p88 = scmp.eq.s32.totalorder %s24, 1
      %p89 = por %p87, %p88
      %p91 = scmp.ne.s32.totalorder %s76, %s90
      %p92 = scmp.eq.s32.totalorder %s24, 0
      %p93 = por %p91, %p92
      %s95 = sadd.s32 %s94, 1
      %p98 = scmp.eq.s32.totalorder %s18, 1
      %p99 = scmp.ne.s32.totalorder %s94, %s96
      %p100 = scmp.eq.s32.totalorder %s18, 0
      %p101 = por %p99, %p100
      %p102 = scmp.ne.s32.totalorder %s94, %s96
      %p103 = scmp.eq.s32.totalorder %s23, 1
      %p104 = por %p102, %p103
      %p105 = scmp.ne.s32.totalorder %s96, %s97
      %p106 = scmp.eq.s32.totalorder %s23, 0
      %p107 = por %p105, %p106
      %p108 = scmp.ne.s32.totalorder %s96, %s97
      %p109 = scmp.eq.s32.totalorder %s24, 1
      %p110 = por %p108, %p109
      %p112 = scmp.ne.s32.totalorder %s97, %s111
      %p113 = scmp.eq.s32.totalorder %s24, 0
      %p114 = por %p112, %p113
      %s116 = sadd.s32 %s115, 1
      %p119 = scmp.eq.s32.totalorder %s18, 1
      %p120 = scmp.ne.s32.totalorder %s115, %s117
      %p121 = scmp.eq.s32.totalorder %s18, 0
      %p122 = por %p120, %p121
      %p123 = scmp.ne.s32.totalorder %s115, %s117
      %p124 = scmp.eq.s32.totalorder %s23, 1
      %p125 = por %p123, %p124
      %p126 = scmp.ne.s32.totalorder %s117, %s118
      %p127 = scmp.eq.s32.totalorder %s23, 0
      %p128 = por %p126, %p127
      %p129 = scmp.ne.s32.totalorder %s117, %s118
      %p130 = scmp.eq.s32.totalorder %s24, 1
      %p131 = por %p129, %p130
      %p133 = scmp.ne.s32.totalorder %s118, %s132
      %p134 = scmp.eq.s32.totalorder %s24, 0
      %p135 = por %p133, %p134
      %s137 = sadd.s32 %s136, 1
      %p140 = scmp.eq.s32.totalorder %s18, 1
      %p141 = scmp.ne.s32.totalorder %s136, %s138
      %p142 = scmp.eq.s32.totalorder %s18, 0
      %p143 = por %p141, %p142
      %p144 = scmp.ne.s32.totalorder %s136, %s138
      %p145 = scmp.eq.s32.totalorder %s23, 1
      %p146 = por %p144, %p145
      %p147 = scmp.ne.s32.totalorder %s138, %s139
      %p148 = scmp.eq.s32.totalorder %s23, 0
      %p149 = por %p147, %p148
      %p150 = scmp.ne.s32.totalorder %s138, %s139
      %p151 = scmp.eq.s32.totalorder %s24, 1
      %p152 = por %p150, %p151
      %p154 = scmp.ne.s32.totalorder %s139, %s153
      %p155 = scmp.eq.s32.totalorder %s24, 0
      %p156 = por %p154, %p155
      %s158 = sadd.s32 %s157, 1
      %p161 = scmp.eq.s32.totalorder %s18, 1
      %p162 = scmp.ne.s32.totalorder %s157, %s159
      %p163 = scmp.eq.s32.totalorder %s18, 0
      %p164 = por %p162, %p163
      %p165 = scmp.ne.s32.totalorder %s157, %s159
      %p166 = scmp.eq.s32.totalorder %s23, 1
      %p167 = por %p165, %p166
      %p168 = scmp.ne.s32.totalorder %s159, %s160
      %p169 = scmp.eq.s32.totalorder %s23, 0
      %p170 = por %p168, %p169
      %p171 = scmp.ne.s32.totalorder %s159, %s160
      %p172 = scmp.eq.s32.totalorder %s24, 1
      %p173 = por %p171, %p172
      %p175 = scmp.ne.s32.totalorder %s160, %s174
      %p176 = scmp.eq.s32.totalorder %s24, 0
      %p177 = por %p175, %p176
      %s179 = sadd.s32 %s178, 1
      %p182 = scmp.eq.s32.totalorder %s18, 1
      %p183 = scmp.ne.s32.totalorder %s178, %s180
      %p184 = scmp.eq.s32.totalorder %s18, 0
      %p185 = por %p183, %p184
      %p186 = scmp.ne.s32.totalorder %s178, %s180
      %p187 = scmp.eq.s32.totalorder %s23, 1
      %p188 = por %p186, %p187
      %p189 = scmp.ne.s32.totalorder %s180, %s181
      %p190 = scmp.eq.s32.totalorder %s23, 0
      %p191 = por %p189, %p190
      %p192 = scmp.ne.s32.totalorder %s180, %s181
      %p193 = scmp.eq.s32.totalorder %s24, 1
      %p194 = por %p192, %p193
      %p196 = scmp.ne.s32.totalorder %s181, %s195
      %p197 = scmp.eq.s32.totalorder %s24, 0
      %p198 = por %p196, %p197
      %s200 = sadd.s32 %s199, 1
      %p203 = scmp.eq.s32.totalorder %s18, 1
      %p204 = scmp.ne.s32.totalorder %s199, %s201
      %p205 = scmp.eq.s32.totalorder %s18, 0
      %p206 = por %p204, %p205
      %p207 = scmp.ne.s32.totalorder %s199, %s201
      %p208 = scmp.eq.s32.totalorder %s23, 1
      %p209 = por %p207, %p208
      %p210 = scmp.ne.s32.totalorder %s201, %s202
      %p211 = scmp.eq.s32.totalorder %s23, 0
      %p212 = por %p210, %p211
      %p213 = scmp.ne.s32.totalorder %s201, %s202
      %p214 = scmp.eq.s32.totalorder %s24, 1
      %p215 = por %p213, %p214
      %p217 = scmp.ne.s32.totalorder %s202, %s216
      %p218 = scmp.eq.s32.totalorder %s24, 0
      %p219 = por %p217, %p218
      %s220 = ssub.s32 %s18, %s25
      %p221 = scmp.eq.s32.totalorder %s220, 0
      %s223 = sadd.s32 %s222, 1
      %s224 = scalar_select %p221, %s222, %s223
      %p227 = pneg %p221
      %p228 = scmp.eq.s32.totalorder %s18, 1
      %p229 = por %p227, %p228
      %p230 = scmp.ne.s32.totalorder %s222, %s225
      %p231 = scmp.eq.s32.totalorder %s18, 0
      %p232 = por %p230, %p231
      %p233 = scmp.ne.s32.totalorder %s222, %s225
      %p234 = scmp.eq.s32.totalorder %s23, 1
      %p235 = por %p233, %p234
      %p236 = scmp.ne.s32.totalorder %s225, %s226
      %p237 = scmp.eq.s32.totalorder %s23, 0
      %p238 = por %p236, %p237
      %p239 = scmp.ne.s32.totalorder %s225, %s226
      %p240 = scmp.eq.s32.totalorder %s24, 1
      %p241 = por %p239, %p240
      %p243 = scmp.ne.s32.totalorder %s226, %s242
      %p244 = scmp.eq.s32.totalorder %s24, 0
      %p245 = por %p243, %p244
      %p246 = scmp.le.s32.totalorder 1, %s18
      %p247 = scmp.lt.s32.totalorder %s18, 3
      %p248 = pnand %p246, %p247
      %p249 = pneg %p248
      // Predicated region
      $region9: #{inception_forward.1} parent=5 // pred_check
        _
      $region10: #{inception_forward.1} parent=5 // pred_check_branch
        %251 = sbr.rel (%p248) target = $region12
      $region11: #{inception_forward.1} parent=5 // pred_region
        %s252 = ssub.s32 %s18, 1
        // Predicated region
        $region13: #{inception_forward.1} parent=11 // pred_check
          %p253 = pneg %p65
        $region14: #{inception_forward.1} parent=11 // pred_check_branch
          %255 = sbr.rel (%p253) target = $region16
        $region15: #{inception_forward.1} parent=11 // pred_region
          _
        $region16: #{inception_forward.1} parent=11 // pred_fallthru
          _
        // Predicated region
        $region17: #{inception_forward.1} parent=11 // pred_check
          %p256 = pneg %p86
        $region18: #{inception_forward.1} parent=11 // pred_check_branch
          %258 = sbr.rel (%p256) target = $region20
        $region19: #{inception_forward.1} parent=11 // pred_region
          _
        $region20: #{inception_forward.1} parent=11 // pred_fallthru
          _
        // Predicated region
        $region21: #{inception_forward.1} parent=11 // pred_check
          %p259 = pneg %p107
        $region22: #{inception_forward.1} parent=11 // pred_check_branch
          %261 = sbr.rel (%p259) target = $region24
        $region23: #{inception_forward.1} parent=11 // pred_region
          _
        $region24: #{inception_forward.1} parent=11 // pred_fallthru
          _
        // Predicated region
        $region25: #{inception_forward.1} parent=11 // pred_check
          %p262 = pneg %p128
        $region26: #{inception_forward.1} parent=11 // pred_check_branch
          %264 = sbr.rel (%p262) target = $region28
        $region27: #{inception_forward.1} parent=11 // pred_region
          _
        $region28: #{inception_forward.1} parent=11 // pred_fallthru
          _
        // Predicated region
        $region29: #{inception_forward.1} parent=11 // pred_check
          %p265 = pneg %p149
        $region30: #{inception_forward.1} parent=11 // pred_check_branch
          %267 = sbr.rel (%p265) target = $region32
        $region31: #{inception_forward.1} parent=11 // pred_region
          _
        $region32: #{inception_forward.1} parent=11 // pred_fallthru
          _
        // Predicated region
        $region33: #{inception_forward.1} parent=11 // pred_check
          %p268 = pneg %p170
        $region34: #{inception_forward.1} parent=11 // pred_check_branch
          %270 = sbr.rel (%p268) target = $region36
        $region35: #{inception_forward.1} parent=11 // pred_region
          _
        $region36: #{inception_forward.1} parent=11 // pred_fallthru
          _
        // Predicated region
        $region37: #{inception_forward.1} parent=11 // pred_check
          %p271 = pneg %p191
        $region38: #{inception_forward.1} parent=11 // pred_check_branch
          %273 = sbr.rel (%p271) target = $region40
        $region39: #{inception_forward.1} parent=11 // pred_region
          _
        $region40: #{inception_forward.1} parent=11 // pred_fallthru
          _
        // Predicated region
        $region41: #{inception_forward.1} parent=11 // pred_check
          %p274 = pneg %p212
        $region42: #{inception_forward.1} parent=11 // pred_check_branch
          %276 = sbr.rel (%p274) target = $region44
        $region43: #{inception_forward.1} parent=11 // pred_region
          _
        $region44: #{inception_forward.1} parent=11 // pred_fallthru
          _
      $region12: #{inception_forward.1} parent=5 // pred_fallthru
        _
      %p277 = scmp.lt.s32.totalorder %s18, 2
      // Predicated region
      $region45: #{inception_forward.1} parent=5 // pred_check
        %p278 = pneg %p277
      $region46: #{inception_forward.1} parent=5 // pred_check_branch
        %280 = sbr.rel (%p278) target = $region48
      $region47: #{inception_forward.1} parent=5 // pred_region
        // Predicated region
        $region49: #{inception_forward.1} parent=47 // pred_check
          %p281 = pneg %p38
        $region50: #{inception_forward.1} parent=47 // pred_check_branch
          %283 = sbr.rel (%p281) target = $region52
        $region51: #{inception_forward.1} parent=47 // pred_region
          %p284 = scmp.lt.s32.totalorder %s18, 1
          %s285 = scalar_select %p284, %s18, 1
          %s286 = smul.addr %s285, 32
          %s287 = smul.addr %s286, 8
          %s288 = scalar_lea.vmem %s0, %s287
        $region52: #{inception_forward.1} parent=47 // pred_fallthru
          _
      $region48: #{inception_forward.1} parent=5 // pred_fallthru
        _
      %p289 = scmp.le.s32.totalorder 1, %s18
      %p290 = scmp.lt.s32.totalorder %s18, 3
      %p291 = pnand %p289, %p290
      %p292 = pneg %p291
      // Predicated region
      $region53: #{inception_forward.1} parent=5 // pred_check
        _
      $region54: #{inception_forward.1} parent=5 // pred_check_branch
        %294 = sbr.rel (%p291) target = $region56
      $region55: #{inception_forward.1} parent=5 // pred_region
        %s295 = ssub.s32 %s18, 1
        %p296 = scmp.lt.s32.totalorder %s23, 1
        %s297 = scalar_select %p296, %s23, 1
        %s298 = smul.addr %s297, 32
        %s299 = smul.addr %s298, 8
        %s300 = scalar_lea.vmem %s0, %s299
        %p301 = pneg %p44
        %p302 = pneg %p41
        %p303 = pneg %p65
        %p304 = pneg %p62
        %p305 = pneg %p86
        %p306 = pneg %p83
        %p307 = pneg %p107
        %p308 = pneg %p104
        %p309 = pneg %p128
        %p310 = pneg %p125
        %p311 = pneg %p149
        %p312 = pneg %p146
        %p313 = pneg %p170
        %p314 = pneg %p167
        %p315 = pneg %p191
        %p316 = pneg %p188
        %p317 = pneg %p212
        %p318 = pneg %p209
        %p319 = pneg %p238
        %p320 = pneg %p235
        %s321 = sand.u32 %s225, 1
        %s322 = scalar_lea.sflag [#allocation6], %s321
        %s323 = sand.u32 %s225, 1
        %s324 = smul.addr %s323, 256
        %s325 = scalar_lea.vmem [#allocation5], %s324
        %p326 = scmp.lt.s32.totalorder %s23, 1
        %s327 = scalar_select %p326, %s23, 1
        %s328 = smul.addr %s327, 32
        %s329 = smul.addr %s328, 8
        %s330 = scalar_lea.vmem %s0, %s329
        %v331 = vld [vmem:[%s330] sm:$0xff]
        %v332 = vld [vmem:[%s330 + $0x8] sm:$0xff]
        %v333 = vld [vmem:[%s330 + $0x10] sm:$0xff]
        %v334 = vld [vmem:[%s330 + $0x18] sm:$0xff]
        %v335 = vld [vmem:[%s330 + $0x20] sm:$0xff]
        %v336 = vld [vmem:[%s330 + $0x28] sm:$0xff]
        %v337 = vld [vmem:[%s330 + $0x30] sm:$0xff]
        %v338 = vld [vmem:[%s330 + $0x38] sm:$0xff]
        %v339 = vld [vmem:[%s330 + $0x40] sm:$0xff]
        %v340 = vld [vmem:[%s330 + $0x48] sm:$0xff]
        %v341 = vld [vmem:[%s330 + $0x50] sm:$0xff]
        %v342 = vld [vmem:[%s330 + $0x58] sm:$0xff]
        %v343 = vld [vmem:[%s330 + $0x60] sm:$0xff]
        %v344 = vld [vmem:[%s330 + $0x68] sm:$0xff]
        %v345 = vld [vmem:[%s330 + $0x70] sm:$0xff]
        %v346 = vld [vmem:[%s330 + $0x78] sm:$0xff]
        %v347 = vld [vmem:[%s330 + $0x80] sm:$0xff]
        %v348 = vld [vmem:[%s330 + $0x88] sm:$0xff]
        %v349 = vld [vmem:[%s330 + $0x90] sm:$0xff]
        %v350 = vld [vmem:[%s330 + $0x98] sm:$0xff]
        %v351 = vld [vmem:[%s330 + $0xa0] sm:$0xff]
        %v352 = vld [vmem:[%s330 + $0xa8] sm:$0xff]
        %v353 = vld [vmem:[%s330 + $0xb0] sm:$0xff]
        %v354 = vld [vmem:[%s330 + $0xb8] sm:$0xff]
        %v355 = vld [vmem:[%s330 + $0xc0] sm:$0xff]
        %v356 = vld [vmem:[%s330 + $0xc8] sm:$0xff]
        %v357 = vld [vmem:[%s330 + $0xd0] sm:$0xff]
        %v358 = vld [vmem:[%s330 + $0xd8] sm:$0xff]
        %v359 = vld [vmem:[%s330 + $0xe0] sm:$0xff]
        %v360 = vld [vmem:[%s330 + $0xe8] sm:$0xff]
        %v361 = vld [vmem:[%s330 + $0xf0] sm:$0xff]
        %v362 = vld [vmem:[%s330 + $0xf8] sm:$0xff]
        %v363 = vld [vmem:[%s1] sm:$0xf]
        %v364 = vld [vmem:[%s2] sm:$0x1]
        %v366 = vperm.slane %v364, 0
        %vm368 = vcmask 31744
        %v370 = vsel %vm368, %v331, 0
        %v373 = vsel %vm368, %v332, 0
        %v376 = vsel %vm368, %v333, 0
        %v379 = vsel %vm368, %v334, 0
        %v382 = vsel %vm368, %v335, 0
        %v385 = vsel %vm368, %v336, 0
        %v388 = vsel %vm368, %v337, 0
        %v391 = vsel %vm368, %v338, 0
        %v394 = vsel %vm368, %v339, 0
        %v397 = vsel %vm368, %v340, 0
        %v400 = vsel %vm368, %v341, 0
        %v403 = vsel %vm368, %v342, 0
        %v406 = vsel %vm368, %v343, 0
        %v409 = vsel %vm368, %v344, 0
        %v412 = vsel %vm368, %v345, 0
        %v415 = vsel %vm368, %v346, 0
        %v418 = vsel %vm368, %v347, 0
        %v421 = vsel %vm368, %v348, 0
        %v424 = vsel %vm368, %v349, 0
        %v427 = vsel %vm368, %v350, 0
        %v430 = vsel %vm368, %v351, 0
        %v433 = vsel %vm368, %v352, 0
        %v436 = vsel %vm368, %v353, 0
        %v439 = vsel %vm368, %v354, 0
        %v442 = vsel %vm368, %v355, 0
        %v445 = vsel %vm368, %v356, 0
        %v448 = vsel %vm368, %v357, 0
        %v451 = vsel %vm368, %v358, 0
        %v454 = vsel %vm368, %v359, 0
        %v457 = vsel %vm368, %v360, 0
        %v460 = vsel %vm368, %v361, 0
        %v463 = vsel %vm368, %v362, 0
        %vm465 = vcmask 1043456
        %v467 = vsel %vm465, %v363, 0
        %469 = vmatpush.msra.mxu0 0.0
        %470 = vmatpush.msra.mxu0 0.0
        %471 = vmatpush.msra.mxu0 0.0
        %472 = vmatpush.msra.mxu0 0.0
        %473 = vmatpush.msra.mxu0 0.0
        %474 = vmatpush.msra.mxu0 0.0
        %475 = vmatpush.msra.mxu0 0.0
        %476 = vmatpush.msra.mxu0 0.0
        %477 = vmatpush.msra.mxu0 0.0
        %478 = vmatpush.msra.mxu0 0.0
        %479 = vmatpush.msra.mxu0 0.0
        %480 = vmatpush.msra.mxu0 0.0
        %481 = vmatpush.msra.mxu0 0.0
        %482 = vmatpush.msra.mxu0 0.0
        %483 = vmatpush.msra.mxu0 0.0
        %484 = vmatpush.msra.mxu0 %v467
        %485 = vmatmul.f32.gmra.mxu0 %v370
        %v486 = vpop.f32.mrf.mxu0
        %v487 = vadd.f32 %v366, %v486
        %488 = vmatmul.f32.gmra.mxu0 %v373
        %v489 = vpop.f32.mrf.mxu0
        %v490 = vadd.f32 %v366, %v489
        %491 = vmatmul.f32.gmra.mxu0 %v376
        %v492 = vpop.f32.mrf.mxu0
        %v493 = vadd.f32 %v366, %v492
        %494 = vmatmul.f32.gmra.mxu0 %v379
        %v495 = vpop.f32.mrf.mxu0
        %v496 = vadd.f32 %v366, %v495
        %497 = vmatmul.f32.gmra.mxu0 %v382
        %v498 = vpop.f32.mrf.mxu0
        %v499 = vadd.f32 %v366, %v498
        %500 = vmatmul.f32.gmra.mxu0 %v385
        %v501 = vpop.f32.mrf.mxu0
        %v502 = vadd.f32 %v366, %v501
        %503 = vmatmul.f32.gmra.mxu0 %v388
        %v504 = vpop.f32.mrf.mxu0
        %v505 = vadd.f32 %v366, %v504
        %506 = vmatmul.f32.gmra.mxu0 %v391
        %v507 = vpop.f32.mrf.mxu0
        %v508 = vadd.f32 %v366, %v507
        %509 = vmatmul.f32.gmra.mxu0 %v394
        %v510 = vpop.f32.mrf.mxu0
        %v511 = vadd.f32 %v366, %v510
        %512 = vmatmul.f32.gmra.mxu0 %v397
        %v513 = vpop.f32.mrf.mxu0
        %v514 = vadd.f32 %v366, %v513
        %515 = vmatmul.f32.gmra.mxu0 %v400
        %v516 = vpop.f32.mrf.mxu0
        %v517 = vadd.f32 %v366, %v516
        %518 = vmatmul.f32.gmra.mxu0 %v403
        %v519 = vpop.f32.mrf.mxu0
        %v520 = vadd.f32 %v366, %v519
        %521 = vmatmul.f32.gmra.mxu0 %v406
        %v522 = vpop.f32.mrf.mxu0
        %v523 = vadd.f32 %v366, %v522
        %524 = vmatmul.f32.gmra.mxu0 %v409
        %v525 = vpop.f32.mrf.mxu0
        %v526 = vadd.f32 %v366, %v525
        %527 = vmatmul.f32.gmra.mxu0 %v412
        %v528 = vpop.f32.mrf.mxu0
        %v529 = vadd.f32 %v366, %v528
        %530 = vmatmul.f32.gmra.mxu0 %v415
        %v531 = vpop.f32.mrf.mxu0
        %v532 = vadd.f32 %v366, %v531
        %533 = vmatmul.f32.gmra.mxu0 %v418
        %v534 = vpop.f32.mrf.mxu0
        %v535 = vadd.f32 %v366, %v534
        %536 = vmatmul.f32.gmra.mxu0 %v421
        %v537 = vpop.f32.mrf.mxu0
        %v538 = vadd.f32 %v366, %v537
        %539 = vmatmul.f32.gmra.mxu0 %v424
        %v540 = vpop.f32.mrf.mxu0
        %v541 = vadd.f32 %v366, %v540
        %542 = vmatmul.f32.gmra.mxu0 %v427
        %v543 = vpop.f32.mrf.mxu0
        %v544 = vadd.f32 %v366, %v543
        %545 = vmatmul.f32.gmra.mxu0 %v430
        %v546 = vpop.f32.mrf.mxu0
        %v547 = vadd.f32 %v366, %v546
        %548 = vmatmul.f32.gmra.mxu0 %v433
        %v549 = vpop.f32.mrf.mxu0
        %v550 = vadd.f32 %v366, %v549
        %551 = vmatmul.f32.gmra.mxu0 %v436
        %v552 = vpop.f32.mrf.mxu0
        %v553 = vadd.f32 %v366, %v552
        %554 = vmatmul.f32.gmra.mxu0 %v439
        %v555 = vpop.f32.mrf.mxu0
        %v556 = vadd.f32 %v366, %v555
        %557 = vmatmul.f32.gmra.mxu0 %v442
        %v558 = vpop.f32.mrf.mxu0
        %v559 = vadd.f32 %v366, %v558
        %560 = vmatmul.f32.gmra.mxu0 %v445
        %v561 = vpop.f32.mrf.mxu0
        %v562 = vadd.f32 %v366, %v561
        %563 = vmatmul.f32.gmra.mxu0 %v448
        %v564 = vpop.f32.mrf.mxu0
        %v565 = vadd.f32 %v366, %v564
        %566 = vmatmul.f32.gmra.mxu0 %v451
        %v567 = vpop.f32.mrf.mxu0
        %v568 = vadd.f32 %v366, %v567
        %569 = vmatmul.f32.gmra.mxu0 %v454
        %v570 = vpop.f32.mrf.mxu0
        %v571 = vadd.f32 %v366, %v570
        %572 = vmatmul.f32.gmra.mxu0 %v457
        %v573 = vpop.f32.mrf.mxu0
        %v574 = vadd.f32 %v366, %v573
        %575 = vmatmul.f32.gmra.mxu0 %v460
        %v576 = vpop.f32.mrf.mxu0
        %v577 = vadd.f32 %v366, %v576
        %578 = vmatmul.f32.gmra.mxu0 %v463
        %v579 = vpop.f32.mrf.mxu0
        %v580 = vadd.f32 %v366, %v579
        %581 = vdwg.mxu0
        %v582 = vmax.f32 %v487, 0.0
        %v583 = vmax.f32 %v490, 0.0
        %v584 = vmax.f32 %v493, 0.0
        %v585 = vmax.f32 %v496, 0.0
        %v586 = vmax.f32 %v499, 0.0
        %v587 = vmax.f32 %v502, 0.0
        %v588 = vmax.f32 %v505, 0.0
        %v589 = vmax.f32 %v508, 0.0
        %v590 = vmax.f32 %v511, 0.0
        %v591 = vmax.f32 %v514, 0.0
        %v592 = vmax.f32 %v517, 0.0
        %v593 = vmax.f32 %v520, 0.0
        %v594 = vmax.f32 %v523, 0.0
        %v595 = vmax.f32 %v526, 0.0
        %v596 = vmax.f32 %v529, 0.0
        %v597 = vmax.f32 %v532, 0.0
        %v598 = vmax.f32 %v535, 0.0
        %v599 = vmax.f32 %v538, 0.0
        %v600 = vmax.f32 %v541, 0.0
        %v601 = vmax.f32 %v544, 0.0
        %v602 = vmax.f32 %v547, 0.0
        %v603 = vmax.f32 %v550, 0.0
        %v604 = vmax.f32 %v553, 0.0
        %v605 = vmax.f32 %v556, 0.0
        %v606 = vmax.f32 %v559, 0.0
        %v607 = vmax.f32 %v562, 0.0
        %v608 = vmax.f32 %v565, 0.0
        %v609 = vmax.f32 %v568, 0.0
        %v610 = vmax.f32 %v571, 0.0
        %v611 = vmax.f32 %v574, 0.0
        %v612 = vmax.f32 %v577, 0.0
        %v613 = vmax.f32 %v580, 0.0
        %614 = vst.msk [vmem:[#allocation2] sm:$0xff] %vm368, 0.0
        %615 = vst.msk [vmem:[#allocation2 + $0x8] sm:$0xff] %vm368, 0.0
        %vm616 = vcmask 25600
        %617 = vst.msk [vmem:[#allocation2 + $0x10] sm:$0x3] %vm616, 0.0
        %618 = vst.msk [vmem:[#allocation2 + $0x18] sm:$0xff] %vm368, 0.0
        %619 = vst.msk [vmem:[#allocation2 + $0x20] sm:$0xff] %vm368, 0.0
        %620 = vst.msk [vmem:[#allocation2 + $0x28] sm:$0x3] %vm616, 0.0
        %621 = vst.msk [vmem:[#allocation2 + $0x30] sm:$0xff] %vm368, 0.0
        %622 = vst.msk [vmem:[#allocation2 + $0x38] sm:$0xff] %vm368, 0.0
        %623 = vst.msk [vmem:[#allocation2 + $0x40] sm:$0x3] %vm616, 0.0
        %624 = vst.msk [vmem:[#allocation2 + $0x48] sm:$0xff] %vm368, 0.0
        %625 = vst.msk [vmem:[#allocation2 + $0x50] sm:$0xff] %vm368, 0.0
        %626 = vst.msk [vmem:[#allocation2 + $0x58] sm:$0x3] %vm616, 0.0
        %627 = vst.msk [vmem:[#allocation2 + $0x60] sm:$0xff] %vm368, 0.0
        %628 = vst.msk [vmem:[#allocation2 + $0x68] sm:$0xff] %vm368, 0.0
        %629 = vst.msk [vmem:[#allocation2 + $0x70] sm:$0x3] %vm616, 0.0
        %630 = vst.msk [vmem:[#allocation2 + $0x78] sm:$0xff] %vm368, 0.0
        %631 = vst.msk [vmem:[#allocation2 + $0x80] sm:$0xff] %vm368, 0.0
        %632 = vst.msk [vmem:[#allocation2 + $0x88] sm:$0x3] %vm616, 0.0
        %633 = vst.msk [vmem:[#allocation2 + $0x90] sm:$0xff] %vm368, 0.0
        %634 = vst.msk [vmem:[#allocation2 + $0x98] sm:$0xff] %vm368, 0.0
        %635 = vst.msk [vmem:[#allocation2 + $0xa0] sm:$0x3] %vm616, 0.0
        %636 = vst.msk [vmem:[#allocation2 + $0xa8] sm:$0xff] %vm368, 0.0
        %637 = vst.msk [vmem:[#allocation2 + $0xb0] sm:$0xff] %vm368, 0.0
        %638 = vst.msk [vmem:[#allocation2 + $0xb8] sm:$0x3] %vm616, 0.0
        %639 = vst.msk [vmem:[#allocation2 + $0xc0] sm:$0xff] %vm368, 0.0
        %640 = vst.msk [vmem:[#allocation2 + $0xc8] sm:$0xff] %vm368, 0.0
        %641 = vst.msk [vmem:[#allocation2 + $0xd0] sm:$0x3] %vm616, 0.0
        %642 = vst.msk [vmem:[#allocation2 + $0xd8] sm:$0xff] %vm368, 0.0
        %643 = vst.msk [vmem:[#allocation2 + $0xe0] sm:$0xff] %vm368, 0.0
        %644 = vst.msk [vmem:[#allocation2 + $0xe8] sm:$0x3] %vm616, 0.0
        %645 = vst.msk [vmem:[#allocation2 + $0xf0] sm:$0xff] %vm368, 0.0
        %646 = vst.msk [vmem:[#allocation2 + $0xf8] sm:$0xff] %vm368, 0.0
        %647 = vst.msk [vmem:[#allocation2 + $0x100] sm:$0x3] %vm616, 0.0
        %648 = vst.msk [vmem:[#allocation2 + $0x108] sm:$0xff] %vm368, 0.0
        %649 = vst.msk [vmem:[#allocation2 + $0x110] sm:$0xff] %vm368, 0.0
        %650 = vst.msk [vmem:[#allocation2 + $0x118] sm:$0x3] %vm616, 0.0
        %651 = vst.msk [vmem:[#allocation2 + $0x120] sm:$0xff] %vm368, 0.0
        %652 = vst.msk [vmem:[#allocation2 + $0x128] sm:$0xff] %vm368, 0.0
        %653 = vst.msk [vmem:[#allocation2 + $0x130] sm:$0x3] %vm616, 0.0
        %654 = vst.msk [vmem:[#allocation2 + $0x138] sm:$0xff] %vm368, 0.0
        %655 = vst.msk [vmem:[#allocation2 + $0x140] sm:$0xff] %vm368, 0.0
        %656 = vst.msk [vmem:[#allocation2 + $0x148] sm:$0x3] %vm616, 0.0
        %657 = vst.msk [vmem:[#allocation2 + $0x150] sm:$0xff] %vm368, 0.0
        %658 = vst.msk [vmem:[#allocation2 + $0x158] sm:$0xff] %vm368, 0.0
        %659 = vst.msk [vmem:[#allocation2 + $0x160] sm:$0x3] %vm616, 0.0
        %660 = vst.msk [vmem:[#allocation2 + $0x168] sm:$0xff] %vm368, 0.0
        %661 = vst.msk [vmem:[#allocation2 + $0x170] sm:$0xff] %vm368, 0.0
        %662 = vst.msk [vmem:[#allocation2 + $0x178] sm:$0x3] %vm616, 0.0
        %663 = vst.msk [vmem:[#allocation2 + $0x180] sm:$0xff] %vm368, 0.0
        %664 = vst.msk [vmem:[#allocation2 + $0x188] sm:$0xff] %vm368, 0.0
        %665 = vst.msk [vmem:[#allocation2 + $0x190] sm:$0x3] %vm616, 0.0
        %666 = vst.msk [vmem:[#allocation2 + $0x198] sm:$0xff] %vm368, 0.0
        %667 = vst.msk [vmem:[#allocation2 + $0x1a0] sm:$0xff] %vm368, 0.0
        %668 = vst.msk [vmem:[#allocation2 + $0x1a8] sm:$0x3] %vm616, 0.0
        %701 = vrot.lane.b32.xlu0 %v582, 120
        %v702 = vpop.permute.xlu0 %701
        %703 = vrot.lane.b32.xlu0 %v583, 120
        %v704 = vpop.permute.xlu0 %703
        %705 = vrot.lane.b32.xlu0 %v584, 120
        %v706 = vpop.permute.xlu0 %705
        %707 = vrot.lane.b32.xlu0 %v585, 120
        %v708 = vpop.permute.xlu0 %707
        %709 = vrot.lane.b32.xlu0 %v586, 120
        %v710 = vpop.permute.xlu0 %709
        %711 = vrot.lane.b32.xlu0 %v587, 120
        %v712 = vpop.permute.xlu0 %711
        %713 = vrot.lane.b32.xlu0 %v588, 120
        %v714 = vpop.permute.xlu0 %713
        %715 = vrot.lane.b32.xlu0 %v589, 120
        %v716 = vpop.permute.xlu0 %715
        %717 = vrot.lane.b32.xlu0 %v590, 120
        %v718 = vpop.permute.xlu0 %717
        %719 = vrot.lane.b32.xlu0 %v591, 120
        %v720 = vpop.permute.xlu0 %719
        %721 = vrot.lane.b32.xlu0 %v592, 120
        %v722 = vpop.permute.xlu0 %721
        %723 = vrot.lane.b32.xlu0 %v593, 120
        %v724 = vpop.permute.xlu0 %723
        %725 = vrot.lane.b32.xlu0 %v594, 120
        %v726 = vpop.permute.xlu0 %725
        %727 = vrot.lane.b32.xlu0 %v595, 120
        %v728 = vpop.permute.xlu0 %727
        %729 = vrot.lane.b32.xlu0 %v596, 120
        %v730 = vpop.permute.xlu0 %729
        %731 = vrot.lane.b32.xlu0 %v597, 120
        %v732 = vpop.permute.xlu0 %731
        %733 = vrot.lane.b32.xlu0 %v598, 120
        %v734 = vpop.permute.xlu0 %733
        %735 = vrot.lane.b32.xlu0 %v599, 120
        %v736 = vpop.permute.xlu0 %735
        %737 = vrot.lane.b32.xlu0 %v600, 120
        %v738 = vpop.permute.xlu0 %737
        %739 = vrot.lane.b32.xlu0 %v601, 120
        %v740 = vpop.permute.xlu0 %739
        %741 = vrot.lane.b32.xlu0 %v602, 120
        %v742 = vpop.permute.xlu0 %741
        %743 = vrot.lane.b32.xlu0 %v603, 120
        %v744 = vpop.permute.xlu0 %743
        %745 = vrot.lane.b32.xlu0 %v604, 120
        %v746 = vpop.permute.xlu0 %745
        %747 = vrot.lane.b32.xlu0 %v605, 120
        %v748 = vpop.permute.xlu0 %747
        %749 = vrot.lane.b32.xlu0 %v606, 120
        %v750 = vpop.permute.xlu0 %749
        %751 = vrot.lane.b32.xlu0 %v607, 120
        %v752 = vpop.permute.xlu0 %751
        %753 = vrot.lane.b32.xlu0 %v608, 120
        %v754 = vpop.permute.xlu0 %753
        %755 = vrot.lane.b32.xlu0 %v609, 120
        %v756 = vpop.permute.xlu0 %755
        %757 = vrot.lane.b32.xlu0 %v610, 120
        %v758 = vpop.permute.xlu0 %757
        %759 = vrot.lane.b32.xlu0 %v611, 120
        %v760 = vpop.permute.xlu0 %759
        %761 = vrot.lane.b32.xlu0 %v612, 120
        %v762 = vpop.permute.xlu0 %761
        %763 = vrot.lane.b32.xlu0 %v613, 120
        %v764 = vpop.permute.xlu0 %763
        %s797 = scalar_lea.vmem [#allocation2], 24
        %798 = vst.msk [vmem:[%s797 + $0x1] sm:$0xff] %vm368, %v702
        %799 = vst.msk [vmem:[%s797 + $0x9] sm:$0xff] %vm368, %v704
        %800 = vst.msk [vmem:[%s797 + $0x19] sm:$0xff] %vm368, %v706
        %801 = vst.msk [vmem:[%s797 + $0x21] sm:$0xff] %vm368, %v708
        %802 = vst.msk [vmem:[%s797 + $0x31] sm:$0xff] %vm368, %v710
        %803 = vst.msk [vmem:[%s797 + $0x39] sm:$0xff] %vm368, %v712
        %804 = vst.msk [vmem:[%s797 + $0x49] sm:$0xff] %vm368, %v714
        %805 = vst.msk [vmem:[%s797 + $0x51] sm:$0xff] %vm368, %v716
        %806 = vst.msk [vmem:[%s797 + $0x61] sm:$0xff] %vm368, %v718
        %807 = vst.msk [vmem:[%s797 + $0x69] sm:$0xff] %vm368, %v720
        %808 = vst.msk [vmem:[%s797 + $0x79] sm:$0xff] %vm368, %v722
        %809 = vst.msk [vmem:[%s797 + $0x81] sm:$0xff] %vm368, %v724
        %810 = vst.msk [vmem:[%s797 + $0x91] sm:$0xff] %vm368, %v726
        %811 = vst.msk [vmem:[%s797 + $0x99] sm:$0xff] %vm368, %v728
        %812 = vst.msk [vmem:[%s797 + $0xa9] sm:$0xff] %vm368, %v730
        %813 = vst.msk [vmem:[%s797 + $0xb1] sm:$0xff] %vm368, %v732
        %814 = vst.msk [vmem:[%s797 + $0xc1] sm:$0xff] %vm368, %v734
        %815 = vst.msk [vmem:[%s797 + $0xc9] sm:$0xff] %vm368, %v736
        %816 = vst.msk [vmem:[%s797 + $0xd9] sm:$0xff] %vm368, %v738
        %817 = vst.msk [vmem:[%s797 + $0xe1] sm:$0xff] %vm368, %v740
        %818 = vst.msk [vmem:[%s797 + $0xf1] sm:$0xff] %vm368, %v742
        %819 = vst.msk [vmem:[%s797 + $0xf9] sm:$0xff] %vm368, %v744
        %820 = vst.msk [vmem:[%s797 + $0x109] sm:$0xff] %vm368, %v746
        %821 = vst.msk [vmem:[%s797 + $0x111] sm:$0xff] %vm368, %v748
        %822 = vst.msk [vmem:[%s797 + $0x121] sm:$0xff] %vm368, %v750
        %823 = vst.msk [vmem:[%s797 + $0x129] sm:$0xff] %vm368, %v752
        %824 = vst.msk [vmem:[%s797 + $0x139] sm:$0xff] %vm368, %v754
        %825 = vst.msk [vmem:[%s797 + $0x141] sm:$0xff] %vm368, %v756
        %826 = vst.msk [vmem:[%s797 + $0x151] sm:$0xff] %vm368, %v758
        %827 = vst.msk [vmem:[%s797 + $0x159] sm:$0xff] %vm368, %v760
        %828 = vst.msk [vmem:[%s797 + $0x169] sm:$0xff] %vm368, %v762
        %829 = vst.msk [vmem:[%s797 + $0x171] sm:$0xff] %vm368, %v764
        %v830 = vld [vmem:[#allocation2] sm:$0xff]
        %v831 = vld [vmem:[#allocation2 + $0x8] sm:$0xff]
        %v832 = vld [vmem:[#allocation2 + $0x18] sm:$0xff]
        %v833 = vld [vmem:[#allocation2 + $0x20] sm:$0xff]
        %v834 = vld [vmem:[#allocation2 + $0x30] sm:$0xff]
        %v835 = vld [vmem:[#allocation2 + $0x38] sm:$0xff]
        %v836 = vld [vmem:[#allocation2 + $0x48] sm:$0xff]
        %v837 = vld [vmem:[#allocation2 + $0x50] sm:$0xff]
        %v838 = vld [vmem:[#allocation2 + $0x60] sm:$0xff]
        %v839 = vld [vmem:[#allocation2 + $0x68] sm:$0xff]
        %v840 = vld [vmem:[#allocation2 + $0x78] sm:$0xff]
        %v841 = vld [vmem:[#allocation2 + $0x80] sm:$0xff]
        %v842 = vld [vmem:[#allocation2 + $0x90] sm:$0xff]
        %v843 = vld [vmem:[#allocation2 + $0x98] sm:$0xff]
        %v844 = vld [vmem:[#allocation2 + $0xa8] sm:$0xff]
        %v845 = vld [vmem:[#allocation2 + $0xb0] sm:$0xff]
        %v846 = vld [vmem:[#allocation2 + $0xc0] sm:$0xff]
        %v847 = vld [vmem:[#allocation2 + $0xc8] sm:$0xff]
        %v848 = vld [vmem:[#allocation2 + $0xd8] sm:$0xff]
        %v849 = vld [vmem:[#allocation2 + $0xe0] sm:$0xff]
        %v850 = vld [vmem:[#allocation2 + $0xf0] sm:$0xff]
        %v851 = vld [vmem:[#allocation2 + $0xf8] sm:$0xff]
        %v852 = vld [vmem:[#allocation2 + $0x108] sm:$0xff]
        %v853 = vld [vmem:[#allocation2 + $0x110] sm:$0xff]
        %v854 = vld [vmem:[#allocation2 + $0x120] sm:$0xff]
        %v855 = vld [vmem:[#allocation2 + $0x128] sm:$0xff]
        %v856 = vld [vmem:[#allocation2 + $0x138] sm:$0xff]
        %v857 = vld [vmem:[#allocation2 + $0x140] sm:$0xff]
        %v858 = vld [vmem:[#allocation2 + $0x150] sm:$0xff]
        %v859 = vld [vmem:[#allocation2 + $0x158] sm:$0xff]
        %v860 = vld [vmem:[#allocation2 + $0x168] sm:$0xff]
        %v861 = vld [vmem:[#allocation2 + $0x170] sm:$0xff]
        %v862 = vld [vmem:[#allocation2 + $0x1] sm:$0xff]
        %v863 = vld [vmem:[#allocation2 + $0x9] sm:$0xff]
        %v864 = vld [vmem:[#allocation2 + $0x19] sm:$0xff]
        %v865 = vld [vmem:[#allocation2 + $0x21] sm:$0xff]
        %v866 = vld [vmem:[#allocation2 + $0x31] sm:$0xff]
        %v867 = vld [vmem:[#allocation2 + $0x39] sm:$0xff]
        %v868 = vld [vmem:[#allocation2 + $0x49] sm:$0xff]
        %v869 = vld [vmem:[#allocation2 + $0x51] sm:$0xff]
        %v870 = vld [vmem:[#allocation2 + $0x61] sm:$0xff]
        %v871 = vld [vmem:[#allocation2 + $0x69] sm:$0xff]
        %v872 = vld [vmem:[#allocation2 + $0x79] sm:$0xff]
        %v873 = vld [vmem:[#allocation2 + $0x81] sm:$0xff]
        %v874 = vld [vmem:[#allocation2 + $0x91] sm:$0xff]
        %v875 = vld [vmem:[#allocation2 + $0x99] sm:$0xff]
        %v876 = vld [vmem:[#allocation2 + $0xa9] sm:$0xff]
        %v877 = vld [vmem:[#allocation2 + $0xb1] sm:$0xff]
        %v878 = vld [vmem:[#allocation2 + $0xc1] sm:$0xff]
        %v879 = vld [vmem:[#allocation2 + $0xc9] sm:$0xff]
        %v880 = vld [vmem:[#allocation2 + $0xd9] sm:$0xff]
        %v881 = vld [vmem:[#allocation2 + $0xe1] sm:$0xff]
        %v882 = vld [vmem:[#allocation2 + $0xf1] sm:$0xff]
        %v883 = vld [vmem:[#allocation2 + $0xf9] sm:$0xff]
        %v884 = vld [vmem:[#allocation2 + $0x109] sm:$0xff]
        %v885 = vld [vmem:[#allocation2 + $0x111] sm:$0xff]
        %v886 = vld [vmem:[#allocation2 + $0x121] sm:$0xff]
        %v887 = vld [vmem:[#allocation2 + $0x129] sm:$0xff]
        %v888 = vld [vmem:[#allocation2 + $0x139] sm:$0xff]
        %v889 = vld [vmem:[#allocation2 + $0x141] sm:$0xff]
        %v890 = vld [vmem:[#allocation2 + $0x151] sm:$0xff]
        %v891 = vld [vmem:[#allocation2 + $0x159] sm:$0xff]
        %v892 = vld [vmem:[#allocation2 + $0x169] sm:$0xff]
        %v893 = vld [vmem:[#allocation2 + $0x171] sm:$0xff]
        %v894 = vld [vmem:[#allocation2 + $0x2] sm:$0xff]
        %v895 = vld [vmem:[#allocation2 + $0xa] sm:$0xff]
        %v896 = vld [vmem:[#allocation2 + $0x1a] sm:$0xff]
        %v897 = vld [vmem:[#allocation2 + $0x22] sm:$0xff]
        %v898 = vld [vmem:[#allocation2 + $0x32] sm:$0xff]
        %v899 = vld [vmem:[#allocation2 + $0x3a] sm:$0xff]
        %v900 = vld [vmem:[#allocation2 + $0x4a] sm:$0xff]
        %v901 = vld [vmem:[#allocation2 + $0x52] sm:$0xff]
        %v902 = vld [vmem:[#allocation2 + $0x62] sm:$0xff]
        %v903 = vld [vmem:[#allocation2 + $0x6a] sm:$0xff]
        %v904 = vld [vmem:[#allocation2 + $0x7a] sm:$0xff]
        %v905 = vld [vmem:[#allocation2 + $0x82] sm:$0xff]
        %v906 = vld [vmem:[#allocation2 + $0x92] sm:$0xff]
        %v907 = vld [vmem:[#allocation2 + $0x9a] sm:$0xff]
        %v908 = vld [vmem:[#allocation2 + $0xaa] sm:$0xff]
        %v909 = vld [vmem:[#allocation2 + $0xb2] sm:$0xff]
        %v910 = vld [vmem:[#allocation2 + $0xc2] sm:$0xff]
        %v911 = vld [vmem:[#allocation2 + $0xca] sm:$0xff]
        %v912 = vld [vmem:[#allocation2 + $0xda] sm:$0xff]
        %v913 = vld [vmem:[#allocation2 + $0xe2] sm:$0xff]
        %v914 = vld [vmem:[#allocation2 + $0xf2] sm:$0xff]
        %v915 = vld [vmem:[#allocation2 + $0xfa] sm:$0xff]
        %v916 = vld [vmem:[#allocation2 + $0x10a] sm:$0xff]
        %v917 = vld [vmem:[#allocation2 + $0x112] sm:$0xff]
        %v918 = vld [vmem:[#allocation2 + $0x122] sm:$0xff]
        %v919 = vld [vmem:[#allocation2 + $0x12a] sm:$0xff]
        %v920 = vld [vmem:[#allocation2 + $0x13a] sm:$0xff]
        %v921 = vld [vmem:[#allocation2 + $0x142] sm:$0xff]
        %v922 = vld [vmem:[#allocation2 + $0x152] sm:$0xff]
        %v923 = vld [vmem:[#allocation2 + $0x15a] sm:$0xff]
        %v924 = vld [vmem:[#allocation2 + $0x16a] sm:$0xff]
        %v925 = vld [vmem:[#allocation2 + $0x172] sm:$0xff]
        %v926 = vld [vmem:[%s797] sm:$0xff]
        %v927 = vld [vmem:[%s797 + $0x8] sm:$0xff]
        %v928 = vld [vmem:[%s797 + $0x18] sm:$0xff]
        %v929 = vld [vmem:[%s797 + $0x20] sm:$0xff]
        %v930 = vld [vmem:[%s797 + $0x30] sm:$0xff]
        %v931 = vld [vmem:[%s797 + $0x38] sm:$0xff]
        %v932 = vld [vmem:[%s797 + $0x48] sm:$0xff]
        %v933 = vld [vmem:[%s797 + $0x50] sm:$0xff]
        %v934 = vld [vmem:[%s797 + $0x60] sm:$0xff]
        %v935 = vld [vmem:[%s797 + $0x68] sm:$0xff]
        %v936 = vld [vmem:[%s797 + $0x78] sm:$0xff]
        %v937 = vld [vmem:[%s797 + $0x80] sm:$0xff]
        %v938 = vld [vmem:[%s797 + $0x90] sm:$0xff]
        %v939 = vld [vmem:[%s797 + $0x98] sm:$0xff]
        %v940 = vld [vmem:[%s797 + $0xa8] sm:$0xff]
        %v941 = vld [vmem:[%s797 + $0xb0] sm:$0xff]
        %v942 = vld [vmem:[%s797 + $0xc0] sm:$0xff]
        %v943 = vld [vmem:[%s797 + $0xc8] sm:$0xff]
        %v944 = vld [vmem:[%s797 + $0xd8] sm:$0xff]
        %v945 = vld [vmem:[%s797 + $0xe0] sm:$0xff]
        %v946 = vld [vmem:[%s797 + $0xf0] sm:$0xff]
        %v947 = vld [vmem:[%s797 + $0xf8] sm:$0xff]
        %v948 = vld [vmem:[%s797 + $0x108] sm:$0xff]
        %v949 = vld [vmem:[%s797 + $0x110] sm:$0xff]
        %v950 = vld [vmem:[%s797 + $0x120] sm:$0xff]
        %v951 = vld [vmem:[%s797 + $0x128] sm:$0xff]
        %v952 = vld [vmem:[%s797 + $0x138] sm:$0xff]
        %v953 = vld [vmem:[%s797 + $0x140] sm:$0xff]
        %v954 = vld [vmem:[%s797 + $0x150] sm:$0xff]
        %v955 = vld [vmem:[%s797 + $0x158] sm:$0xff]
        %v956 = vld [vmem:[%s797 + $0x168] sm:$0xff]
        %v957 = vld [vmem:[%s797 + $0x170] sm:$0xff]
        %v958 = vld [vmem:[%s797 + $0x1] sm:$0xff]
        %v959 = vld [vmem:[%s797 + $0x9] sm:$0xff]
        %v960 = vld [vmem:[%s797 + $0x19] sm:$0xff]
        %v961 = vld [vmem:[%s797 + $0x21] sm:$0xff]
        %v962 = vld [vmem:[%s797 + $0x31] sm:$0xff]
        %v963 = vld [vmem:[%s797 + $0x39] sm:$0xff]
        %v964 = vld [vmem:[%s797 + $0x49] sm:$0xff]
        %v965 = vld [vmem:[%s797 + $0x51] sm:$0xff]
        %v966 = vld [vmem:[%s797 + $0x61] sm:$0xff]
        %v967 = vld [vmem:[%s797 + $0x69] sm:$0xff]
        %v968 = vld [vmem:[%s797 + $0x79] sm:$0xff]
        %v969 = vld [vmem:[%s797 + $0x81] sm:$0xff]
        %v970 = vld [vmem:[%s797 + $0x91] sm:$0xff]
        %v971 = vld [vmem:[%s797 + $0x99] sm:$0xff]
        %v972 = vld [vmem:[%s797 + $0xa9] sm:$0xff]
        %v973 = vld [vmem:[%s797 + $0xb1] sm:$0xff]
        %v974 = vld [vmem:[%s797 + $0xc1] sm:$0xff]
        %v975 = vld [vmem:[%s797 + $0xc9] sm:$0xff]
        %v976 = vld [vmem:[%s797 + $0xd9] sm:$0xff]
        %v977 = vld [vmem:[%s797 + $0xe1] sm:$0xff]
        %v978 = vld [vmem:[%s797 + $0xf1] sm:$0xff]
        %v979 = vld [vmem:[%s797 + $0xf9] sm:$0xff]
        %v980 = vld [vmem:[%s797 + $0x109] sm:$0xff]
        %v981 = vld [vmem:[%s797 + $0x111] sm:$0xff]
        %v982 = vld [vmem:[%s797 + $0x121] sm:$0xff]
        %v983 = vld [vmem:[%s797 + $0x129] sm:$0xff]
        %v984 = vld [vmem:[%s797 + $0x139] sm:$0xff]
        %v985 = vld [vmem:[%s797 + $0x141] sm:$0xff]
        %v986 = vld [vmem:[%s797 + $0x151] sm:$0xff]
        %v987 = vld [vmem:[%s797 + $0x159] sm:$0xff]
        %v988 = vld [vmem:[%s797 + $0x169] sm:$0xff]
        %v989 = vld [vmem:[%s797 + $0x171] sm:$0xff]
        %v990 = vld [vmem:[%s797 + $0x2] sm:$0xff]
        %v991 = vld [vmem:[%s797 + $0xa] sm:$0xff]
        %v992 = vld [vmem:[%s797 + $0x1a] sm:$0xff]
        %v993 = vld [vmem:[%s797 + $0x22] sm:$0xff]
        %v994 = vld [vmem:[%s797 + $0x32] sm:$0xff]
        %v995 = vld [vmem:[%s797 + $0x3a] sm:$0xff]
        %v996 = vld [vmem:[%s797 + $0x4a] sm:$0xff]
        %v997 = vld [vmem:[%s797 + $0x52] sm:$0xff]
        %v998 = vld [vmem:[%s797 + $0x62] sm:$0xff]
        %v999 = vld [vmem:[%s797 + $0x6a] sm:$0xff]
        %v1000 = vld [vmem:[%s797 + $0x7a] sm:$0xff]
        %v1001 = vld [vmem:[%s797 + $0x82] sm:$0xff]
        %v1002 = vld [vmem:[%s797 + $0x92] sm:$0xff]
        %v1003 = vld [vmem:[%s797 + $0x9a] sm:$0xff]
        %v1004 = vld [vmem:[%s797 + $0xaa] sm:$0xff]
        %v1005 = vld [vmem:[%s797 + $0xb2] sm:$0xff]
        %v1006 = vld [vmem:[%s797 + $0xc2] sm:$0xff]
        %v1007 = vld [vmem:[%s797 + $0xca] sm:$0xff]
        %v1008 = vld [vmem:[%s797 + $0xda] sm:$0xff]
        %v1009 = vld [vmem:[%s797 + $0xe2] sm:$0xff]
        %v1010 = vld [vmem:[%s797 + $0xf2] sm:$0xff]
        %v1011 = vld [vmem:[%s797 + $0xfa] sm:$0xff]
        %v1012 = vld [vmem:[%s797 + $0x10a] sm:$0xff]
        %v1013 = vld [vmem:[%s797 + $0x112] sm:$0xff]
        %v1014 = vld [vmem:[%s797 + $0x122] sm:$0xff]
        %v1015 = vld [vmem:[%s797 + $0x12a] sm:$0xff]
        %v1016 = vld [vmem:[%s797 + $0x13a] sm:$0xff]
        %v1017 = vld [vmem:[%s797 + $0x142] sm:$0xff]
        %v1018 = vld [vmem:[%s797 + $0x152] sm:$0xff]
        %v1019 = vld [vmem:[%s797 + $0x15a] sm:$0xff]
        %v1020 = vld [vmem:[%s797 + $0x16a] sm:$0xff]
        %v1021 = vld [vmem:[%s797 + $0x172] sm:$0xff]
        %s1022 = scalar_lea.vmem [#allocation2], 48
        %v1023 = vld [vmem:[%s1022] sm:$0xff]
        %v1024 = vld [vmem:[%s1022 + $0x8] sm:$0xff]
        %v1025 = vld [vmem:[%s1022 + $0x18] sm:$0xff]
        %v1026 = vld [vmem:[%s1022 + $0x20] sm:$0xff]
        %v1027 = vld [vmem:[%s1022 + $0x30] sm:$0xff]
        %v1028 = vld [vmem:[%s1022 + $0x38] sm:$0xff]
        %v1029 = vld [vmem:[%s1022 + $0x48] sm:$0xff]
        %v1030 = vld [vmem:[%s1022 + $0x50] sm:$0xff]
        %v1031 = vld [vmem:[%s1022 + $0x60] sm:$0xff]
        %v1032 = vld [vmem:[%s1022 + $0x68] sm:$0xff]
        %v1033 = vld [vmem:[%s1022 + $0x78] sm:$0xff]
        %v1034 = vld [vmem:[%s1022 + $0x80] sm:$0xff]
        %v1035 = vld [vmem:[%s1022 + $0x90] sm:$0xff]
        %v1036 = vld [vmem:[%s1022 + $0x98] sm:$0xff]
        %v1037 = vld [vmem:[%s1022 + $0xa8] sm:$0xff]
        %v1038 = vld [vmem:[%s1022 + $0xb0] sm:$0xff]
        %v1039 = vld [vmem:[%s1022 + $0xc0] sm:$0xff]
        %v1040 = vld [vmem:[%s1022 + $0xc8] sm:$0xff]
        %v1041 = vld [vmem:[%s1022 + $0xd8] sm:$0xff]
        %v1042 = vld [vmem:[%s1022 + $0xe0] sm:$0xff]
        %v1043 = vld [vmem:[%s1022 + $0xf0] sm:$0xff]
        %v1044 = vld [vmem:[%s1022 + $0xf8] sm:$0xff]
        %v1045 = vld [vmem:[%s1022 + $0x108] sm:$0xff]
        %v1046 = vld [vmem:[%s1022 + $0x110] sm:$0xff]
        %v1047 = vld [vmem:[%s1022 + $0x120] sm:$0xff]
        %v1048 = vld [vmem:[%s1022 + $0x128] sm:$0xff]
        %v1049 = vld [vmem:[%s1022 + $0x138] sm:$0xff]
        %v1050 = vld [vmem:[%s1022 + $0x140] sm:$0xff]
        %v1051 = vld [vmem:[%s1022 + $0x150] sm:$0xff]
        %v1052 = vld [vmem:[%s1022 + $0x158] sm:$0xff]
        %v1053 = vld [vmem:[%s1022 + $0x168] sm:$0xff]
        %v1054 = vld [vmem:[%s1022 + $0x170] sm:$0xff]
        %v1055 = vld [vmem:[%s1022 + $0x1] sm:$0xff]
        %v1056 = vld [vmem:[%s1022 + $0x9] sm:$0xff]
        %v1057 = vld [vmem:[%s1022 + $0x19] sm:$0xff]
        %v1058 = vld [vmem:[%s1022 + $0x21] sm:$0xff]
        %v1059 = vld [vmem:[%s1022 + $0x31] sm:$0xff]
        %v1060 = vld [vmem:[%s1022 + $0x39] sm:$0xff]
        %v1061 = vld [vmem:[%s1022 + $0x49] sm:$0xff]
        %v1062 = vld [vmem:[%s1022 + $0x51] sm:$0xff]
        %v1063 = vld [vmem:[%s1022 + $0x61] sm:$0xff]
        %v1064 = vld [vmem:[%s1022 + $0x69] sm:$0xff]
        %v1065 = vld [vmem:[%s1022 + $0x79] sm:$0xff]
        %v1066 = vld [vmem:[%s1022 + $0x81] sm:$0xff]
        %v1067 = vld [vmem:[%s1022 + $0x91] sm:$0xff]
        %v1068 = vld [vmem:[%s1022 + $0x99] sm:$0xff]
        %v1069 = vld [vmem:[%s1022 + $0xa9] sm:$0xff]
        %v1070 = vld [vmem:[%s1022 + $0xb1] sm:$0xff]
        %v1071 = vld [vmem:[%s1022 + $0xc1] sm:$0xff]
        %v1072 = vld [vmem:[%s1022 + $0xc9] sm:$0xff]
        %v1073 = vld [vmem:[%s1022 + $0xd9] sm:$0xff]
        %v1074 = vld [vmem:[%s1022 + $0xe1] sm:$0xff]
        %v1075 = vld [vmem:[%s1022 + $0xf1] sm:$0xff]
        %v1076 = vld [vmem:[%s1022 + $0xf9] sm:$0xff]
        %v1077 = vld [vmem:[%s1022 + $0x109] sm:$0xff]
        %v1078 = vld [vmem:[%s1022 + $0x111] sm:$0xff]
        %v1079 = vld [vmem:[%s1022 + $0x121] sm:$0xff]
        %v1080 = vld [vmem:[%s1022 + $0x129] sm:$0xff]
        %v1081 = vld [vmem:[%s1022 + $0x139] sm:$0xff]
        %v1082 = vld [vmem:[%s1022 + $0x141] sm:$0xff]
        %v1083 = vld [vmem:[%s1022 + $0x151] sm:$0xff]
        %v1084 = vld [vmem:[%s1022 + $0x159] sm:$0xff]
        %v1085 = vld [vmem:[%s1022 + $0x169] sm:$0xff]
        %v1086 = vld [vmem:[%s1022 + $0x171] sm:$0xff]
        %v1087 = vld [vmem:[%s1022 + $0x2] sm:$0xff]
        %v1088 = vld [vmem:[%s1022 + $0xa] sm:$0xff]
        %v1089 = vld [vmem:[%s1022 + $0x1a] sm:$0xff]
        %v1090 = vld [vmem:[%s1022 + $0x22] sm:$0xff]
        %v1091 = vld [vmem:[%s1022 + $0x32] sm:$0xff]
        %v1092 = vld [vmem:[%s1022 + $0x3a] sm:$0xff]
        %v1093 = vld [vmem:[%s1022 + $0x4a] sm:$0xff]
        %v1094 = vld [vmem:[%s1022 + $0x52] sm:$0xff]
        %v1095 = vld [vmem:[%s1022 + $0x62] sm:$0xff]
        %v1096 = vld [vmem:[%s1022 + $0x6a] sm:$0xff]
        %v1097 = vld [vmem:[%s1022 + $0x7a] sm:$0xff]
        %v1098 = vld [vmem:[%s1022 + $0x82] sm:$0xff]
        %v1099 = vld [vmem:[%s1022 + $0x92] sm:$0xff]
        %v1100 = vld [vmem:[%s1022 + $0x9a] sm:$0xff]
        %v1101 = vld [vmem:[%s1022 + $0xaa] sm:$0xff]
        %v1102 = vld [vmem:[%s1022 + $0xb2] sm:$0xff]
        %v1103 = vld [vmem:[%s1022 + $0xc2] sm:$0xff]
        %v1104 = vld [vmem:[%s1022 + $0xca] sm:$0xff]
        %v1105 = vld [vmem:[%s1022 + $0xda] sm:$0xff]
        %v1106 = vld [vmem:[%s1022 + $0xe2] sm:$0xff]
        %v1107 = vld [vmem:[%s1022 + $0xf2] sm:$0xff]
        %v1108 = vld [vmem:[%s1022 + $0xfa] sm:$0xff]
        %v1109 = vld [vmem:[%s1022 + $0x10a] sm:$0xff]
        %v1110 = vld [vmem:[%s1022 + $0x112] sm:$0xff]
        %v1111 = vld [vmem:[%s1022 + $0x122] sm:$0xff]
        %v1112 = vld [vmem:[%s1022 + $0x12a] sm:$0xff]
        %v1113 = vld [vmem:[%s1022 + $0x13a] sm:$0xff]
        %v1114 = vld [vmem:[%s1022 + $0x142] sm:$0xff]
        %v1115 = vld [vmem:[%s1022 + $0x152] sm:$0xff]
        %v1116 = vld [vmem:[%s1022 + $0x15a] sm:$0xff]
        %v1117 = vld [vmem:[%s1022 + $0x16a] sm:$0xff]
        %v1118 = vld [vmem:[%s1022 + $0x172] sm:$0xff]
        %1151 = vrot.lane.b32.xlu0 %v862, 4
        %v1152 = vpop.permute.xlu0 %1151
        %1153 = vrot.lane.b32.xlu0 %v863, 4
        %v1154 = vpop.permute.xlu0 %1153
        %1155 = vrot.lane.b32.xlu0 %v864, 4
        %v1156 = vpop.permute.xlu0 %1155
        %1157 = vrot.lane.b32.xlu0 %v865, 4
        %v1158 = vpop.permute.xlu0 %1157
        %1159 = vrot.lane.b32.xlu0 %v866, 4
        %v1160 = vpop.permute.xlu0 %1159
        %1161 = vrot.lane.b32.xlu0 %v867, 4
        %v1162 = vpop.permute.xlu0 %1161
        %1163 = vrot.lane.b32.xlu0 %v868, 4
        %v1164 = vpop.permute.xlu0 %1163
        %1165 = vrot.lane.b32.xlu0 %v869, 4
        %v1166 = vpop.permute.xlu0 %1165
        %1167 = vrot.lane.b32.xlu0 %v870, 4
        %v1168 = vpop.permute.xlu0 %1167
        %1169 = vrot.lane.b32.xlu0 %v871, 4
        %v1170 = vpop.permute.xlu0 %1169
        %1171 = vrot.lane.b32.xlu0 %v872, 4
        %v1172 = vpop.permute.xlu0 %1171
        %1173 = vrot.lane.b32.xlu0 %v873, 4
        %v1174 = vpop.permute.xlu0 %1173
        %1175 = vrot.lane.b32.xlu0 %v874, 4
        %v1176 = vpop.permute.xlu0 %1175
        %1177 = vrot.lane.b32.xlu0 %v875, 4
        %v1178 = vpop.permute.xlu0 %1177
        %1179 = vrot.lane.b32.xlu0 %v876, 4
        %v1180 = vpop.permute.xlu0 %1179
        %1181 = vrot.lane.b32.xlu0 %v877, 4
        %v1182 = vpop.permute.xlu0 %1181
        %1183 = vrot.lane.b32.xlu0 %v878, 4
        %v1184 = vpop.permute.xlu0 %1183
        %1185 = vrot.lane.b32.xlu0 %v879, 4
        %v1186 = vpop.permute.xlu0 %1185
        %1187 = vrot.lane.b32.xlu0 %v880, 4
        %v1188 = vpop.permute.xlu0 %1187
        %1189 = vrot.lane.b32.xlu0 %v881, 4
        %v1190 = vpop.permute.xlu0 %1189
        %1191 = vrot.lane.b32.xlu0 %v882, 4
        %v1192 = vpop.permute.xlu0 %1191
        %1193 = vrot.lane.b32.xlu0 %v883, 4
        %v1194 = vpop.permute.xlu0 %1193
        %1195 = vrot.lane.b32.xlu0 %v884, 4
        %v1196 = vpop.permute.xlu0 %1195
        %1197 = vrot.lane.b32.xlu0 %v885, 4
        %v1198 = vpop.permute.xlu0 %1197
        %1199 = vrot.lane.b32.xlu0 %v886, 4
        %v1200 = vpop.permute.xlu0 %1199
        %1201 = vrot.lane.b32.xlu0 %v887, 4
        %v1202 = vpop.permute.xlu0 %1201
        %1203 = vrot.lane.b32.xlu0 %v888, 4
        %v1204 = vpop.permute.xlu0 %1203
        %1205 = vrot.lane.b32.xlu0 %v889, 4
        %v1206 = vpop.permute.xlu0 %1205
        %1207 = vrot.lane.b32.xlu0 %v890, 4
        %v1208 = vpop.permute.xlu0 %1207
        %1209 = vrot.lane.b32.xlu0 %v891, 4
        %v1210 = vpop.permute.xlu0 %1209
        %1211 = vrot.lane.b32.xlu0 %v892, 4
        %v1212 = vpop.permute.xlu0 %1211
        %1213 = vrot.lane.b32.xlu0 %v893, 4
        %v1214 = vpop.permute.xlu0 %1213
        %1279 = vrot.lane.b32.xlu0 %v894, 8
        %v1280 = vpop.permute.xlu0 %1279
        %1281 = vrot.lane.b32.xlu0 %v895, 8
        %v1282 = vpop.permute.xlu0 %1281
        %1283 = vrot.lane.b32.xlu0 %v896, 8
        %v1284 = vpop.permute.xlu0 %1283
        %1285 = vrot.lane.b32.xlu0 %v897, 8
        %v1286 = vpop.permute.xlu0 %1285
        %1287 = vrot.lane.b32.xlu0 %v898, 8
        %v1288 = vpop.permute.xlu0 %1287
        %1289 = vrot.lane.b32.xlu0 %v899, 8
        %v1290 = vpop.permute.xlu0 %1289
        %1291 = vrot.lane.b32.xlu0 %v900, 8
        %v1292 = vpop.permute.xlu0 %1291
        %1293 = vrot.lane.b32.xlu0 %v901, 8
        %v1294 = vpop.permute.xlu0 %1293
        %1295 = vrot.lane.b32.xlu0 %v902, 8
        %v1296 = vpop.permute.xlu0 %1295
        %1297 = vrot.lane.b32.xlu0 %v903, 8
        %v1298 = vpop.permute.xlu0 %1297
        %1299 = vrot.lane.b32.xlu0 %v904, 8
        %v1300 = vpop.permute.xlu0 %1299
        %1301 = vrot.lane.b32.xlu0 %v905, 8
        %v1302 = vpop.permute.xlu0 %1301
        %1303 = vrot.lane.b32.xlu0 %v906, 8
        %v1304 = vpop.permute.xlu0 %1303
        %1305 = vrot.lane.b32.xlu0 %v907, 8
        %v1306 = vpop.permute.xlu0 %1305
        %1307 = vrot.lane.b32.xlu0 %v908, 8
        %v1308 = vpop.permute.xlu0 %1307
        %1309 = vrot.lane.b32.xlu0 %v909, 8
        %v1310 = vpop.permute.xlu0 %1309
        %1311 = vrot.lane.b32.xlu0 %v910, 8
        %v1312 = vpop.permute.xlu0 %1311
        %1313 = vrot.lane.b32.xlu0 %v911, 8
        %v1314 = vpop.permute.xlu0 %1313
        %1315 = vrot.lane.b32.xlu0 %v912, 8
        %v1316 = vpop.permute.xlu0 %1315
        %1317 = vrot.lane.b32.xlu0 %v913, 8
        %v1318 = vpop.permute.xlu0 %1317
        %1319 = vrot.lane.b32.xlu0 %v914, 8
        %v1320 = vpop.permute.xlu0 %1319
        %1321 = vrot.lane.b32.xlu0 %v915, 8
        %v1322 = vpop.permute.xlu0 %1321
        %1323 = vrot.lane.b32.xlu0 %v916, 8
        %v1324 = vpop.permute.xlu0 %1323
        %1325 = vrot.lane.b32.xlu0 %v917, 8
        %v1326 = vpop.permute.xlu0 %1325
        %1327 = vrot.lane.b32.xlu0 %v918, 8
        %v1328 = vpop.permute.xlu0 %1327
        %1329 = vrot.lane.b32.xlu0 %v919, 8
        %v1330 = vpop.permute.xlu0 %1329
        %1331 = vrot.lane.b32.xlu0 %v920, 8
        %v1332 = vpop.permute.xlu0 %1331
        %1333 = vrot.lane.b32.xlu0 %v921, 8
        %v1334 = vpop.permute.xlu0 %1333
        %1335 = vrot.lane.b32.xlu0 %v922, 8
        %v1336 = vpop.permute.xlu0 %1335
        %1337 = vrot.lane.b32.xlu0 %v923, 8
        %v1338 = vpop.permute.xlu0 %1337
        %1339 = vrot.lane.b32.xlu0 %v924, 8
        %v1340 = vpop.permute.xlu0 %1339
        %1341 = vrot.lane.b32.xlu0 %v925, 8
        %v1342 = vpop.permute.xlu0 %1341
        %1407 = vrot.lane.b32.xlu0 %v926, 12
        %v1408 = vpop.permute.xlu0 %1407
        %1409 = vrot.lane.b32.xlu0 %v927, 12
        %v1410 = vpop.permute.xlu0 %1409
        %1411 = vrot.lane.b32.xlu0 %v928, 12
        %v1412 = vpop.permute.xlu0 %1411
        %1413 = vrot.lane.b32.xlu0 %v929, 12
        %v1414 = vpop.permute.xlu0 %1413
        %1415 = vrot.lane.b32.xlu0 %v930, 12
        %v1416 = vpop.permute.xlu0 %1415
        %1417 = vrot.lane.b32.xlu0 %v931, 12
        %v1418 = vpop.permute.xlu0 %1417
        %1419 = vrot.lane.b32.xlu0 %v932, 12
        %v1420 = vpop.permute.xlu0 %1419
        %1421 = vrot.lane.b32.xlu0 %v933, 12
        %v1422 = vpop.permute.xlu0 %1421
        %1423 = vrot.lane.b32.xlu0 %v934, 12
        %v1424 = vpop.permute.xlu0 %1423
        %1425 = vrot.lane.b32.xlu0 %v935, 12
        %v1426 = vpop.permute.xlu0 %1425
        %1427 = vrot.lane.b32.xlu0 %v936, 12
        %v1428 = vpop.permute.xlu0 %1427
        %1429 = vrot.lane.b32.xlu0 %v937, 12
        %v1430 = vpop.permute.xlu0 %1429
        %1431 = vrot.lane.b32.xlu0 %v938, 12
        %v1432 = vpop.permute.xlu0 %1431
        %1433 = vrot.lane.b32.xlu0 %v939, 12
        %v1434 = vpop.permute.xlu0 %1433
        %1435 = vrot.lane.b32.xlu0 %v940, 12
        %v1436 = vpop.permute.xlu0 %1435
        %1437 = vrot.lane.b32.xlu0 %v941, 12
        %v1438 = vpop.permute.xlu0 %1437
        %1439 = vrot.lane.b32.xlu0 %v942, 12
        %v1440 = vpop.permute.xlu0 %1439
        %1441 = vrot.lane.b32.xlu0 %v943, 12
        %v1442 = vpop.permute.xlu0 %1441
        %1443 = vrot.lane.b32.xlu0 %v944, 12
        %v1444 = vpop.permute.xlu0 %1443
        %1445 = vrot.lane.b32.xlu0 %v945, 12
        %v1446 = vpop.permute.xlu0 %1445
        %1447 = vrot.lane.b32.xlu0 %v946, 12
        %v1448 = vpop.permute.xlu0 %1447
        %1449 = vrot.lane.b32.xlu0 %v947, 12
        %v1450 = vpop.permute.xlu0 %1449
        %1451 = vrot.lane.b32.xlu0 %v948, 12
        %v1452 = vpop.permute.xlu0 %1451
        %1453 = vrot.lane.b32.xlu0 %v949, 12
        %v1454 = vpop.permute.xlu0 %1453
        %1455 = vrot.lane.b32.xlu0 %v950, 12
        %v1456 = vpop.permute.xlu0 %1455
        %1457 = vrot.lane.b32.xlu0 %v951, 12
        %v1458 = vpop.permute.xlu0 %1457
        %1459 = vrot.lane.b32.xlu0 %v952, 12
        %v1460 = vpop.permute.xlu0 %1459
        %1461 = vrot.lane.b32.xlu0 %v953, 12
        %v1462 = vpop.permute.xlu0 %1461
        %1463 = vrot.lane.b32.xlu0 %v954, 12
        %v1464 = vpop.permute.xlu0 %1463
        %1465 = vrot.lane.b32.xlu0 %v955, 12
        %v1466 = vpop.permute.xlu0 %1465
        %1467 = vrot.lane.b32.xlu0 %v956, 12
        %v1468 = vpop.permute.xlu0 %1467
        %1469 = vrot.lane.b32.xlu0 %v957, 12
        %v1470 = vpop.permute.xlu0 %1469
        %1535 = vrot.lane.b32.xlu0 %v958, 16
        %v1536 = vpop.permute.xlu0 %1535
        %1537 = vrot.lane.b32.xlu0 %v959, 16
        %v1538 = vpop.permute.xlu0 %1537
        %1539 = vrot.lane.b32.xlu0 %v960, 16
        %v1540 = vpop.permute.xlu0 %1539
        %1541 = vrot.lane.b32.xlu0 %v961, 16
        %v1542 = vpop.permute.xlu0 %1541
        %1543 = vrot.lane.b32.xlu0 %v962, 16
        %v1544 = vpop.permute.xlu0 %1543
        %1545 = vrot.lane.b32.xlu0 %v963, 16
        %v1546 = vpop.permute.xlu0 %1545
        %1547 = vrot.lane.b32.xlu0 %v964, 16
        %v1548 = vpop.permute.xlu0 %1547
        %1549 = vrot.lane.b32.xlu0 %v965, 16
        %v1550 = vpop.permute.xlu0 %1549
        %1551 = vrot.lane.b32.xlu0 %v966, 16
        %v1552 = vpop.permute.xlu0 %1551
        %1553 = vrot.lane.b32.xlu0 %v967, 16
        %v1554 = vpop.permute.xlu0 %1553
        %1555 = vrot.lane.b32.xlu0 %v968, 16
        %v1556 = vpop.permute.xlu0 %1555
        %1557 = vrot.lane.b32.xlu0 %v969, 16
        %v1558 = vpop.permute.xlu0 %1557
        %1559 = vrot.lane.b32.xlu0 %v970, 16
        %v1560 = vpop.permute.xlu0 %1559
        %1561 = vrot.lane.b32.xlu0 %v971, 16
        %v1562 = vpop.permute.xlu0 %1561
        %1563 = vrot.lane.b32.xlu0 %v972, 16
        %v1564 = vpop.permute.xlu0 %1563
        %1565 = vrot.lane.b32.xlu0 %v973, 16
        %v1566 = vpop.permute.xlu0 %1565
        %1567 = vrot.lane.b32.xlu0 %v974, 16
        %v1568 = vpop.permute.xlu0 %1567
        %1569 = vrot.lane.b32.xlu0 %v975, 16
        %v1570 = vpop.permute.xlu0 %1569
        %1571 = vrot.lane.b32.xlu0 %v976, 16
        %v1572 = vpop.permute.xlu0 %1571
        %1573 = vrot.lane.b32.xlu0 %v977, 16
        %v1574 = vpop.permute.xlu0 %1573
        %1575 = vrot.lane.b32.xlu0 %v978, 16
        %v1576 = vpop.permute.xlu0 %1575
        %1577 = vrot.lane.b32.xlu0 %v979, 16
        %v1578 = vpop.permute.xlu0 %1577
        %1579 = vrot.lane.b32.xlu0 %v980, 16
        %v1580 = vpop.permute.xlu0 %1579
        %1581 = vrot.lane.b32.xlu0 %v981, 16
        %v1582 = vpop.permute.xlu0 %1581
        %1583 = vrot.lane.b32.xlu0 %v982, 16
        %v1584 = vpop.permute.xlu0 %1583
        %1585 = vrot.lane.b32.xlu0 %v983, 16
        %v1586 = vpop.permute.xlu0 %1585
        %1587 = vrot.lane.b32.xlu0 %v984, 16
        %v1588 = vpop.permute.xlu0 %1587
        %1589 = vrot.lane.b32.xlu0 %v985, 16
        %v1590 = vpop.permute.xlu0 %1589
        %1591 = vrot.lane.b32.xlu0 %v986, 16
        %v1592 = vpop.permute.xlu0 %1591
        %1593 = vrot.lane.b32.xlu0 %v987, 16
        %v1594 = vpop.permute.xlu0 %1593
        %1595 = vrot.lane.b32.xlu0 %v988, 16
        %v1596 = vpop.permute.xlu0 %1595
        %1597 = vrot.lane.b32.xlu0 %v989, 16
        %v1598 = vpop.permute.xlu0 %1597
        %1663 = vrot.lane.b32.xlu0 %v990, 20
        %v1664 = vpop.permute.xlu0 %1663
        %1665 = vrot.lane.b32.xlu0 %v991, 20
        %v1666 = vpop.permute.xlu0 %1665
        %1667 = vrot.lane.b32.xlu0 %v992, 20
        %v1668 = vpop.permute.xlu0 %1667
        %1669 = vrot.lane.b32.xlu0 %v993, 20
        %v1670 = vpop.permute.xlu0 %1669
        %1671 = vrot.lane.b32.xlu0 %v994, 20
        %v1672 = vpop.permute.xlu0 %1671
        %1673 = vrot.lane.b32.xlu0 %v995, 20
        %v1674 = vpop.permute.xlu0 %1673
        %1675 = vrot.lane.b32.xlu0 %v996, 20
        %v1676 = vpop.permute.xlu0 %1675
        %1677 = vrot.lane.b32.xlu0 %v997, 20
        %v1678 = vpop.permute.xlu0 %1677
        %1679 = vrot.lane.b32.xlu0 %v998, 20
        %v1680 = vpop.permute.xlu0 %1679
        %1681 = vrot.lane.b32.xlu0 %v999, 20
        %v1682 = vpop.permute.xlu0 %1681
        %1683 = vrot.lane.b32.xlu0 %v1000, 20
        %v1684 = vpop.permute.xlu0 %1683
        %1685 = vrot.lane.b32.xlu0 %v1001, 20
        %v1686 = vpop.permute.xlu0 %1685
        %1687 = vrot.lane.b32.xlu0 %v1002, 20
        %v1688 = vpop.permute.xlu0 %1687
        %1689 = vrot.lane.b32.xlu0 %v1003, 20
        %v1690 = vpop.permute.xlu0 %1689
        %1691 = vrot.lane.b32.xlu0 %v1004, 20
        %v1692 = vpop.permute.xlu0 %1691
        %1693 = vrot.lane.b32.xlu0 %v1005, 20
        %v1694 = vpop.permute.xlu0 %1693
        %1695 = vrot.lane.b32.xlu0 %v1006, 20
        %v1696 = vpop.permute.xlu0 %1695
        %1697 = vrot.lane.b32.xlu0 %v1007, 20
        %v1698 = vpop.permute.xlu0 %1697
        %1699 = vrot.lane.b32.xlu0 %v1008, 20
        %v1700 = vpop.permute.xlu0 %1699
        %1701 = vrot.lane.b32.xlu0 %v1009, 20
        %v1702 = vpop.permute.xlu0 %1701
        %1703 = vrot.lane.b32.xlu0 %v1010, 20
        %v1704 = vpop.permute.xlu0 %1703
        %1705 = vrot.lane.b32.xlu0 %v1011, 20
        %v1706 = vpop.permute.xlu0 %1705
        %1707 = vrot.lane.b32.xlu0 %v1012, 20
        %v1708 = vpop.permute.xlu0 %1707
        %1709 = vrot.lane.b32.xlu0 %v1013, 20
        %v1710 = vpop.permute.xlu0 %1709
        %1711 = vrot.lane.b32.xlu0 %v1014, 20
        %v1712 = vpop.permute.xlu0 %1711
        %1713 = vrot.lane.b32.xlu0 %v1015, 20
        %v1714 = vpop.permute.xlu0 %1713
        %1715 = vrot.lane.b32.xlu0 %v1016, 20
        %v1716 = vpop.permute.xlu0 %1715
        %1717 = vrot.lane.b32.xlu0 %v1017, 20
        %v1718 = vpop.permute.xlu0 %1717
        %1719 = vrot.lane.b32.xlu0 %v1018, 20
        %v1720 = vpop.permute.xlu0 %1719
        %1721 = vrot.lane.b32.xlu0 %v1019, 20
        %v1722 = vpop.permute.xlu0 %1721
        %1723 = vrot.lane.b32.xlu0 %v1020, 20
        %v1724 = vpop.permute.xlu0 %1723
        %1725 = vrot.lane.b32.xlu0 %v1021, 20
        %v1726 = vpop.permute.xlu0 %1725
        %1791 = vrot.lane.b32.xlu0 %v1023, 24
        %v1792 = vpop.permute.xlu0 %1791
        %1793 = vrot.lane.b32.xlu0 %v1024, 24
        %v1794 = vpop.permute.xlu0 %1793
        %1795 = vrot.lane.b32.xlu0 %v1025, 24
        %v1796 = vpop.permute.xlu0 %1795
        %1797 = vrot.lane.b32.xlu0 %v1026, 24
        %v1798 = vpop.permute.xlu0 %1797
        %1799 = vrot.lane.b32.xlu0 %v1027, 24
        %v1800 = vpop.permute.xlu0 %1799
        %1801 = vrot.lane.b32.xlu0 %v1028, 24
        %v1802 = vpop.permute.xlu0 %1801
        %1803 = vrot.lane.b32.xlu0 %v1029, 24
        %v1804 = vpop.permute.xlu0 %1803
        %1805 = vrot.lane.b32.xlu0 %v1030, 24
        %v1806 = vpop.permute.xlu0 %1805
        %1807 = vrot.lane.b32.xlu0 %v1031, 24
        %v1808 = vpop.permute.xlu0 %1807
        %1809 = vrot.lane.b32.xlu0 %v1032, 24
        %v1810 = vpop.permute.xlu0 %1809
        %1811 = vrot.lane.b32.xlu0 %v1033, 24
        %v1812 = vpop.permute.xlu0 %1811
        %1813 = vrot.lane.b32.xlu0 %v1034, 24
        %v1814 = vpop.permute.xlu0 %1813
        %1815 = vrot.lane.b32.xlu0 %v1035, 24
        %v1816 = vpop.permute.xlu0 %1815
        %1817 = vrot.lane.b32.xlu0 %v1036, 24
        %v1818 = vpop.permute.xlu0 %1817
        %1819 = vrot.lane.b32.xlu0 %v1037, 24
        %v1820 = vpop.permute.xlu0 %1819
        %1821 = vrot.lane.b32.xlu0 %v1038, 24
        %v1822 = vpop.permute.xlu0 %1821
        %1823 = vrot.lane.b32.xlu0 %v1039, 24
        %v1824 = vpop.permute.xlu0 %1823
        %1825 = vrot.lane.b32.xlu0 %v1040, 24
        %v1826 = vpop.permute.xlu0 %1825
        %1827 = vrot.lane.b32.xlu0 %v1041, 24
        %v1828 = vpop.permute.xlu0 %1827
        %1829 = vrot.lane.b32.xlu0 %v1042, 24
        %v1830 = vpop.permute.xlu0 %1829
        %1831 = vrot.lane.b32.xlu0 %v1043, 24
        %v1832 = vpop.permute.xlu0 %1831
        %1833 = vrot.lane.b32.xlu0 %v1044, 24
        %v1834 = vpop.permute.xlu0 %1833
        %1835 = vrot.lane.b32.xlu0 %v1045, 24
        %v1836 = vpop.permute.xlu0 %1835
        %1837 = vrot.lane.b32.xlu0 %v1046, 24
        %v1838 = vpop.permute.xlu0 %1837
        %1839 = vrot.lane.b32.xlu0 %v1047, 24
        %v1840 = vpop.permute.xlu0 %1839
        %1841 = vrot.lane.b32.xlu0 %v1048, 24
        %v1842 = vpop.permute.xlu0 %1841
        %1843 = vrot.lane.b32.xlu0 %v1049, 24
        %v1844 = vpop.permute.xlu0 %1843
        %1845 = vrot.lane.b32.xlu0 %v1050, 24
        %v1846 = vpop.permute.xlu0 %1845
        %1847 = vrot.lane.b32.xlu0 %v1051, 24
        %v1848 = vpop.permute.xlu0 %1847
        %1849 = vrot.lane.b32.xlu0 %v1052, 24
        %v1850 = vpop.permute.xlu0 %1849
        %1851 = vrot.lane.b32.xlu0 %v1053, 24
        %v1852 = vpop.permute.xlu0 %1851
        %1853 = vrot.lane.b32.xlu0 %v1054, 24
        %v1854 = vpop.permute.xlu0 %1853
        %1919 = vrot.lane.b32.xlu0 %v1055, 28
        %v1920 = vpop.permute.xlu0 %1919
        %1921 = vrot.lane.b32.xlu0 %v1056, 28
        %v1922 = vpop.permute.xlu0 %1921
        %1923 = vrot.lane.b32.xlu0 %v1057, 28
        %v1924 = vpop.permute.xlu0 %1923
        %1925 = vrot.lane.b32.xlu0 %v1058, 28
        %v1926 = vpop.permute.xlu0 %1925
        %1927 = vrot.lane.b32.xlu0 %v1059, 28
        %v1928 = vpop.permute.xlu0 %1927
        %1929 = vrot.lane.b32.xlu0 %v1060, 28
        %v1930 = vpop.permute.xlu0 %1929
        %1931 = vrot.lane.b32.xlu0 %v1061, 28
        %v1932 = vpop.permute.xlu0 %1931
        %1933 = vrot.lane.b32.xlu0 %v1062, 28
        %v1934 = vpop.permute.xlu0 %1933
        %1935 = vrot.lane.b32.xlu0 %v1063, 28
        %v1936 = vpop.permute.xlu0 %1935
        %1937 = vrot.lane.b32.xlu0 %v1064, 28
        %v1938 = vpop.permute.xlu0 %1937
        %1939 = vrot.lane.b32.xlu0 %v1065, 28
        %v1940 = vpop.permute.xlu0 %1939
        %1941 = vrot.lane.b32.xlu0 %v1066, 28
        %v1942 = vpop.permute.xlu0 %1941
        %1943 = vrot.lane.b32.xlu0 %v1067, 28
        %v1944 = vpop.permute.xlu0 %1943
        %1945 = vrot.lane.b32.xlu0 %v1068, 28
        %v1946 = vpop.permute.xlu0 %1945
        %1947 = vrot.lane.b32.xlu0 %v1069, 28
        %v1948 = vpop.permute.xlu0 %1947
        %1949 = vrot.lane.b32.xlu0 %v1070, 28
        %v1950 = vpop.permute.xlu0 %1949
        %1951 = vrot.lane.b32.xlu0 %v1071, 28
        %v1952 = vpop.permute.xlu0 %1951
        %1953 = vrot.lane.b32.xlu0 %v1072, 28
        %v1954 = vpop.permute.xlu0 %1953
        %1955 = vrot.lane.b32.xlu0 %v1073, 28
        %v1956 = vpop.permute.xlu0 %1955
        %1957 = vrot.lane.b32.xlu0 %v1074, 28
        %v1958 = vpop.permute.xlu0 %1957
        %1959 = vrot.lane.b32.xlu0 %v1075, 28
        %v1960 = vpop.permute.xlu0 %1959
        %1961 = vrot.lane.b32.xlu0 %v1076, 28
        %v1962 = vpop.permute.xlu0 %1961
        %1963 = vrot.lane.b32.xlu0 %v1077, 28
        %v1964 = vpop.permute.xlu0 %1963
        %1965 = vrot.lane.b32.xlu0 %v1078, 28
        %v1966 = vpop.permute.xlu0 %1965
        %1967 = vrot.lane.b32.xlu0 %v1079, 28
        %v1968 = vpop.permute.xlu0 %1967
        %1969 = vrot.lane.b32.xlu0 %v1080, 28
        %v1970 = vpop.permute.xlu0 %1969
        %1971 = vrot.lane.b32.xlu0 %v1081, 28
        %v1972 = vpop.permute.xlu0 %1971
        %1973 = vrot.lane.b32.xlu0 %v1082, 28
        %v1974 = vpop.permute.xlu0 %1973
        %1975 = vrot.lane.b32.xlu0 %v1083, 28
        %v1976 = vpop.permute.xlu0 %1975
        %1977 = vrot.lane.b32.xlu0 %v1084, 28
        %v1978 = vpop.permute.xlu0 %1977
        %1979 = vrot.lane.b32.xlu0 %v1085, 28
        %v1980 = vpop.permute.xlu0 %1979
        %1981 = vrot.lane.b32.xlu0 %v1086, 28
        %v1982 = vpop.permute.xlu0 %1981
        %2047 = vrot.lane.b32.xlu0 %v1087, 32
        %v2048 = vpop.permute.xlu0 %2047
        %2049 = vrot.lane.b32.xlu0 %v1088, 32
        %v2050 = vpop.permute.xlu0 %2049
        %2051 = vrot.lane.b32.xlu0 %v1089, 32
        %v2052 = vpop.permute.xlu0 %2051
        %2053 = vrot.lane.b32.xlu0 %v1090, 32
        %v2054 = vpop.permute.xlu0 %2053
        %2055 = vrot.lane.b32.xlu0 %v1091, 32
        %v2056 = vpop.permute.xlu0 %2055
        %2057 = vrot.lane.b32.xlu0 %v1092, 32
        %v2058 = vpop.permute.xlu0 %2057
        %2059 = vrot.lane.b32.xlu0 %v1093, 32
        %v2060 = vpop.permute.xlu0 %2059
        %2061 = vrot.lane.b32.xlu0 %v1094, 32
        %v2062 = vpop.permute.xlu0 %2061
        %2063 = vrot.lane.b32.xlu0 %v1095, 32
        %v2064 = vpop.permute.xlu0 %2063
        %2065 = vrot.lane.b32.xlu0 %v1096, 32
        %v2066 = vpop.permute.xlu0 %2065
        %2067 = vrot.lane.b32.xlu0 %v1097, 32
        %v2068 = vpop.permute.xlu0 %2067
        %2069 = vrot.lane.b32.xlu0 %v1098, 32
        %v2070 = vpop.permute.xlu0 %2069
        %2071 = vrot.lane.b32.xlu0 %v1099, 32
        %v2072 = vpop.permute.xlu0 %2071
        %2073 = vrot.lane.b32.xlu0 %v1100, 32
        %v2074 = vpop.permute.xlu0 %2073
        %2075 = vrot.lane.b32.xlu0 %v1101, 32
        %v2076 = vpop.permute.xlu0 %2075
        %2077 = vrot.lane.b32.xlu0 %v1102, 32
        %v2078 = vpop.permute.xlu0 %2077
        %2079 = vrot.lane.b32.xlu0 %v1103, 32
        %v2080 = vpop.permute.xlu0 %2079
        %2081 = vrot.lane.b32.xlu0 %v1104, 32
        %v2082 = vpop.permute.xlu0 %2081
        %2083 = vrot.lane.b32.xlu0 %v1105, 32
        %v2084 = vpop.permute.xlu0 %2083
        %2085 = vrot.lane.b32.xlu0 %v1106, 32
        %v2086 = vpop.permute.xlu0 %2085
        %2087 = vrot.lane.b32.xlu0 %v1107, 32
        %v2088 = vpop.permute.xlu0 %2087
        %2089 = vrot.lane.b32.xlu0 %v1108, 32
        %v2090 = vpop.permute.xlu0 %2089
        %2091 = vrot.lane.b32.xlu0 %v1109, 32
        %v2092 = vpop.permute.xlu0 %2091
        %2093 = vrot.lane.b32.xlu0 %v1110, 32
        %v2094 = vpop.permute.xlu0 %2093
        %2095 = vrot.lane.b32.xlu0 %v1111, 32
        %v2096 = vpop.permute.xlu0 %2095
        %2097 = vrot.lane.b32.xlu0 %v1112, 32
        %v2098 = vpop.permute.xlu0 %2097
        %2099 = vrot.lane.b32.xlu0 %v1113, 32
        %v2100 = vpop.permute.xlu0 %2099
        %2101 = vrot.lane.b32.xlu0 %v1114, 32
        %v2102 = vpop.permute.xlu0 %2101
        %2103 = vrot.lane.b32.xlu0 %v1115, 32
        %v2104 = vpop.permute.xlu0 %2103
        %2105 = vrot.lane.b32.xlu0 %v1116, 32
        %v2106 = vpop.permute.xlu0 %2105
        %2107 = vrot.lane.b32.xlu0 %v1117, 32
        %v2108 = vpop.permute.xlu0 %2107
        %2109 = vrot.lane.b32.xlu0 %v1118, 32
        %v2110 = vpop.permute.xlu0 %2109
        %v2143 = vsel %vm368, %v830, %v1152
        %v2144 = vsel %vm368, %v831, %v1154
        %v2145 = vsel %vm368, %v832, %v1156
        %v2146 = vsel %vm368, %v833, %v1158
        %v2147 = vsel %vm368, %v834, %v1160
        %v2148 = vsel %vm368, %v835, %v1162
        %v2149 = vsel %vm368, %v836, %v1164
        %v2150 = vsel %vm368, %v837, %v1166
        %v2151 = vsel %vm368, %v838, %v1168
        %v2152 = vsel %vm368, %v839, %v1170
        %v2153 = vsel %vm368, %v840, %v1172
        %v2154 = vsel %vm368, %v841, %v1174
        %v2155 = vsel %vm368, %v842, %v1176
        %v2156 = vsel %vm368, %v843, %v1178
        %v2157 = vsel %vm368, %v844, %v1180
        %v2158 = vsel %vm368, %v845, %v1182
        %v2159 = vsel %vm368, %v846, %v1184
        %v2160 = vsel %vm368, %v847, %v1186
        %v2161 = vsel %vm368, %v848, %v1188
        %v2162 = vsel %vm368, %v849, %v1190
        %v2163 = vsel %vm368, %v850, %v1192
        %v2164 = vsel %vm368, %v851, %v1194
        %v2165 = vsel %vm368, %v852, %v1196
        %v2166 = vsel %vm368, %v853, %v1198
        %v2167 = vsel %vm368, %v854, %v1200
        %v2168 = vsel %vm368, %v855, %v1202
        %v2169 = vsel %vm368, %v856, %v1204
        %v2170 = vsel %vm368, %v857, %v1206
        %v2171 = vsel %vm368, %v858, %v1208
        %v2172 = vsel %vm368, %v859, %v1210
        %v2173 = vsel %vm368, %v860, %v1212
        %v2174 = vsel %vm368, %v861, %v1214
        %vm2175 = vcmask 64512
        %v2176 = vsel %vm2175, %v2143, %v1280
        %v2177 = vsel %vm2175, %v2144, %v1282
        %v2178 = vsel %vm2175, %v2145, %v1284
        %v2179 = vsel %vm2175, %v2146, %v1286
        %v2180 = vsel %vm2175, %v2147, %v1288
        %v2181 = vsel %vm2175, %v2148, %v1290
        %v2182 = vsel %vm2175, %v2149, %v1292
        %v2183 = vsel %vm2175, %v2150, %v1294
        %v2184 = vsel %vm2175, %v2151, %v1296
        %v2185 = vsel %vm2175, %v2152, %v1298
        %v2186 = vsel %vm2175, %v2153, %v1300
        %v2187 = vsel %vm2175, %v2154, %v1302
        %v2188 = vsel %vm2175, %v2155, %v1304
        %v2189 = vsel %vm2175, %v2156, %v1306
        %v2190 = vsel %vm2175, %v2157, %v1308
        %v2191 = vsel %vm2175, %v2158, %v1310
        %v2192 = vsel %vm2175, %v2159, %v1312
        %v2193 = vsel %vm2175, %v2160, %v1314
        %v2194 = vsel %vm2175, %v2161, %v1316
        %v2195 = vsel %vm2175, %v2162, %v1318
        %v2196 = vsel %vm2175, %v2163, %v1320
        %v2197 = vsel %vm2175, %v2164, %v1322
        %v2198 = vsel %vm2175, %v2165, %v1324
        %v2199 = vsel %vm2175, %v2166, %v1326
        %v2200 = vsel %vm2175, %v2167, %v1328
        %v2201 = vsel %vm2175, %v2168, %v1330
        %v2202 = vsel %vm2175, %v2169, %v1332
        %v2203 = vsel %vm2175, %v2170, %v1334
        %v2204 = vsel %vm2175, %v2171, %v1336
        %v2205 = vsel %vm2175, %v2172, %v1338
        %v2206 = vsel %vm2175, %v2173, %v1340
        %v2207 = vsel %vm2175, %v2174, %v1342
        %vm2208 = vcmask 97280
        %v2209 = vsel %vm2208, %v2176, %v1408
        %v2210 = vsel %vm2208, %v2177, %v1410
        %v2211 = vsel %vm2208, %v2178, %v1412
        %v2212 = vsel %vm2208, %v2179, %v1414
        %v2213 = vsel %vm2208, %v2180, %v1416
        %v2214 = vsel %vm2208, %v2181, %v1418
        %v2215 = vsel %vm2208, %v2182, %v1420
        %v2216 = vsel %vm2208, %v2183, %v1422
        %v2217 = vsel %vm2208, %v2184, %v1424
        %v2218 = vsel %vm2208, %v2185, %v1426
        %v2219 = vsel %vm2208, %v2186, %v1428
        %v2220 = vsel %vm2208, %v2187, %v1430
        %v2221 = vsel %vm2208, %v2188, %v1432
        %v2222 = vsel %vm2208, %v2189, %v1434
        %v2223 = vsel %vm2208, %v2190, %v1436
        %v2224 = vsel %vm2208, %v2191, %v1438
        %v2225 = vsel %vm2208, %v2192, %v1440
        %v2226 = vsel %vm2208, %v2193, %v1442
        %v2227 = vsel %vm2208, %v2194, %v1444
        %v2228 = vsel %vm2208, %v2195, %v1446
        %v2229 = vsel %vm2208, %v2196, %v1448
        %v2230 = vsel %vm2208, %v2197, %v1450
        %v2231 = vsel %vm2208, %v2198, %v1452
        %v2232 = vsel %vm2208, %v2199, %v1454
        %v2233 = vsel %vm2208, %v2200, %v1456
        %v2234 = vsel %vm2208, %v2201, %v1458
        %v2235 = vsel %vm2208, %v2202, %v1460
        %v2236 = vsel %vm2208, %v2203, %v1462
        %v2237 = vsel %vm2208, %v2204, %v1464
        %v2238 = vsel %vm2208, %v2205, %v1466
        %v2239 = vsel %vm2208, %v2206, %v1468
        %v2240 = vsel %vm2208, %v2207, %v1470
        %vm2241 = vcmask 130048
        %v2242 = vsel %vm2241, %v2209, %v1536
        %v2243 = vsel %vm2241, %v2210, %v1538
        %v2244 = vsel %vm2241, %v2211, %v1540
        %v2245 = vsel %vm2241, %v2212, %v1542
        %v2246 = vsel %vm2241, %v2213, %v1544
        %v2247 = vsel %vm2241, %v2214, %v1546
        %v2248 = vsel %vm2241, %v2215, %v1548
        %v2249 = vsel %vm2241, %v2216, %v1550
        %v2250 = vsel %vm2241, %v2217, %v1552
        %v2251 = vsel %vm2241, %v2218, %v1554
        %v2252 = vsel %vm2241, %v2219, %v1556
        %v2253 = vsel %vm2241, %v2220, %v1558
        %v2254 = vsel %vm2241, %v2221, %v1560
        %v2255 = vsel %vm2241, %v2222, %v1562
        %v2256 = vsel %vm2241, %v2223, %v1564
        %v2257 = vsel %vm2241, %v2224, %v1566
        %v2258 = vsel %vm2241, %v2225, %v1568
        %v2259 = vsel %vm2241, %v2226, %v1570
        %v2260 = vsel %vm2241, %v2227, %v1572
        %v2261 = vsel %vm2241, %v2228, %v1574
        %v2262 = vsel %vm2241, %v2229, %v1576
        %v2263 = vsel %vm2241, %v2230, %v1578
        %v2264 = vsel %vm2241, %v2231, %v1580
        %v2265 = vsel %vm2241, %v2232, %v1582
        %v2266 = vsel %vm2241, %v2233, %v1584
        %v2267 = vsel %vm2241, %v2234, %v1586
        %v2268 = vsel %vm2241, %v2235, %v1588
        %v2269 = vsel %vm2241, %v2236, %v1590
        %v2270 = vsel %vm2241, %v2237, %v1592
        %v2271 = vsel %vm2241, %v2238, %v1594
        %v2272 = vsel %vm2241, %v2239, %v1596
        %v2273 = vsel %vm2241, %v2240, %v1598
        %vm2274 = vcmask 162816
        %v2275 = vsel %vm2274, %v2242, %v1664
        %v2276 = vsel %vm2274, %v2243, %v1666
        %v2277 = vsel %vm2274, %v2244, %v1668
        %v2278 = vsel %vm2274, %v2245, %v1670
        %v2279 = vsel %vm2274, %v2246, %v1672
        %v2280 = vsel %vm2274, %v2247, %v1674
        %v2281 = vsel %vm2274, %v2248, %v1676
        %v2282 = vsel %vm2274, %v2249, %v1678
        %v2283 = vsel %vm2274, %v2250, %v1680
        %v2284 = vsel %vm2274, %v2251, %v1682
        %v2285 = vsel %vm2274, %v2252, %v1684
        %v2286 = vsel %vm2274, %v2253, %v1686
        %v2287 = vsel %vm2274, %v2254, %v1688
        %v2288 = vsel %vm2274, %v2255, %v1690
        %v2289 = vsel %vm2274, %v2256, %v1692
        %v2290 = vsel %vm2274, %v2257, %v1694
        %v2291 = vsel %vm2274, %v2258, %v1696
        %v2292 = vsel %vm2274, %v2259, %v1698
        %v2293 = vsel %vm2274, %v2260, %v1700
        %v2294 = vsel %vm2274, %v2261, %v1702
        %v2295 = vsel %vm2274, %v2262, %v1704
        %v2296 = vsel %vm2274, %v2263, %v1706
        %v2297 = vsel %vm2274, %v2264, %v1708
        %v2298 = vsel %vm2274, %v2265, %v1710
        %v2299 = vsel %vm2274, %v2266, %v1712
        %v2300 = vsel %vm2274, %v2267, %v1714
        %v2301 = vsel %vm2274, %v2268, %v1716
        %v2302 = vsel %vm2274, %v2269, %v1718
        %v2303 = vsel %vm2274, %v2270, %v1720
        %v2304 = vsel %vm2274, %v2271, %v1722
        %v2305 = vsel %vm2274, %v2272, %v1724
        %v2306 = vsel %vm2274, %v2273, %v1726
        %vm2307 = vcmask 195584
        %v2308 = vsel %vm2307, %v2275, %v1792
        %v2309 = vsel %vm2307, %v2276, %v1794
        %v2310 = vsel %vm2307, %v2277, %v1796
        %v2311 = vsel %vm2307, %v2278, %v1798
        %v2312 = vsel %vm2307, %v2279, %v1800
        %v2313 = vsel %vm2307, %v2280, %v1802
        %v2314 = vsel %vm2307, %v2281, %v1804
        %v2315 = vsel %vm2307, %v2282, %v1806
        %v2316 = vsel %vm2307, %v2283, %v1808
        %v2317 = vsel %vm2307, %v2284, %v1810
        %v2318 = vsel %vm2307, %v2285, %v1812
        %v2319 = vsel %vm2307, %v2286, %v1814
        %v2320 = vsel %vm2307, %v2287, %v1816
        %v2321 = vsel %vm2307, %v2288, %v1818
        %v2322 = vsel %vm2307, %v2289, %v1820
        %v2323 = vsel %vm2307, %v2290, %v1822
        %v2324 = vsel %vm2307, %v2291, %v1824
        %v2325 = vsel %vm2307, %v2292, %v1826
        %v2326 = vsel %vm2307, %v2293, %v1828
        %v2327 = vsel %vm2307, %v2294, %v1830
        %v2328 = vsel %vm2307, %v2295, %v1832
        %v2329 = vsel %vm2307, %v2296, %v1834
        %v2330 = vsel %vm2307, %v2297, %v1836
        %v2331 = vsel %vm2307, %v2298, %v1838
        %v2332 = vsel %vm2307, %v2299, %v1840
        %v2333 = vsel %vm2307, %v2300, %v1842
        %v2334 = vsel %vm2307, %v2301, %v1844
        %v2335 = vsel %vm2307, %v2302, %v1846
        %v2336 = vsel %vm2307, %v2303, %v1848
        %v2337 = vsel %vm2307, %v2304, %v1850
        %v2338 = vsel %vm2307, %v2305, %v1852
        %v2339 = vsel %vm2307, %v2306, %v1854
        %vm2340 = vcmask 228352
        %v2341 = vsel %vm2340, %v2308, %v1920
        %v2342 = vsel %vm2340, %v2309, %v1922
        %v2343 = vsel %vm2340, %v2310, %v1924
        %v2344 = vsel %vm2340, %v2311, %v1926
        %v2345 = vsel %vm2340, %v2312, %v1928
        %v2346 = vsel %vm2340, %v2313, %v1930
        %v2347 = vsel %vm2340, %v2314, %v1932
        %v2348 = vsel %vm2340, %v2315, %v1934
        %v2349 = vsel %vm2340, %v2316, %v1936
        %v2350 = vsel %vm2340, %v2317, %v1938
        %v2351 = vsel %vm2340, %v2318, %v1940
        %v2352 = vsel %vm2340, %v2319, %v1942
        %v2353 = vsel %vm2340, %v2320, %v1944
        %v2354 = vsel %vm2340, %v2321, %v1946
        %v2355 = vsel %vm2340, %v2322, %v1948
        %v2356 = vsel %vm2340, %v2323, %v1950
        %v2357 = vsel %vm2340, %v2324, %v1952
        %v2358 = vsel %vm2340, %v2325, %v1954
        %v2359 = vsel %vm2340, %v2326, %v1956
        %v2360 = vsel %vm2340, %v2327, %v1958
        %v2361 = vsel %vm2340, %v2328, %v1960
        %v2362 = vsel %vm2340, %v2329, %v1962
        %v2363 = vsel %vm2340, %v2330, %v1964
        %v2364 = vsel %vm2340, %v2331, %v1966
        %v2365 = vsel %vm2340, %v2332, %v1968
        %v2366 = vsel %vm2340, %v2333, %v1970
        %v2367 = vsel %vm2340, %v2334, %v1972
        %v2368 = vsel %vm2340, %v2335, %v1974
        %v2369 = vsel %vm2340, %v2336, %v1976
        %v2370 = vsel %vm2340, %v2337, %v1978
        %v2371 = vsel %vm2340, %v2338, %v1980
        %v2372 = vsel %vm2340, %v2339, %v1982
        %vm2373 = vcmask 261120
        %v2374 = vsel %vm2373, %v2341, %v2048
        %v2375 = vsel %vm2373, %v2342, %v2050
        %v2376 = vsel %vm2373, %v2343, %v2052
        %v2377 = vsel %vm2373, %v2344, %v2054
        %v2378 = vsel %vm2373, %v2345, %v2056
        %v2379 = vsel %vm2373, %v2346, %v2058
        %v2380 = vsel %vm2373, %v2347, %v2060
        %v2381 = vsel %vm2373, %v2348, %v2062
        %v2382 = vsel %vm2373, %v2349, %v2064
        %v2383 = vsel %vm2373, %v2350, %v2066
        %v2384 = vsel %vm2373, %v2351, %v2068
        %v2385 = vsel %vm2373, %v2352, %v2070
        %v2386 = vsel %vm2373, %v2353, %v2072
        %v2387 = vsel %vm2373, %v2354, %v2074
        %v2388 = vsel %vm2373, %v2355, %v2076
        %v2389 = vsel %vm2373, %v2356, %v2078
        %v2390 = vsel %vm2373, %v2357, %v2080
        %v2391 = vsel %vm2373, %v2358, %v2082
        %v2392 = vsel %vm2373, %v2359, %v2084
        %v2393 = vsel %vm2373, %v2360, %v2086
        %v2394 = vsel %vm2373, %v2361, %v2088
        %v2395 = vsel %vm2373, %v2362, %v2090
        %v2396 = vsel %vm2373, %v2363, %v2092
        %v2397 = vsel %vm2373, %v2364, %v2094
        %v2398 = vsel %vm2373, %v2365, %v2096
        %v2399 = vsel %vm2373, %v2366, %v2098
        %v2400 = vsel %vm2373, %v2367, %v2100
        %v2401 = vsel %vm2373, %v2368, %v2102
        %v2402 = vsel %vm2373, %v2369, %v2104
        %v2403 = vsel %vm2373, %v2370, %v2106
        %v2404 = vsel %vm2373, %v2371, %v2108
        %v2405 = vsel %vm2373, %v2372, %v2110
        %v2406 = vld [vmem:[%s3] sm:$0xff]
        %v2407 = vld [vmem:[%s3 + $0x8] sm:$0xff]
        %v2408 = vld [vmem:[%s3 + $0x10] sm:$0xff]
        %v2409 = vld [vmem:[%s3 + $0x18] sm:$0xff]
        %v2410 = vld [vmem:[%s3 + $0x20] sm:$0xf]
        %v2411 = vld [vmem:[%s4] sm:$0x1]
        %v2413 = vperm.slane %v2411, 0
        %vm2415 = vcmask 293888
        %v2417 = vsel %vm2415, %v2374, 0
        %v2420 = vsel %vm2415, %v2375, 0
        %v2423 = vsel %vm2415, %v2376, 0
        %v2426 = vsel %vm2415, %v2377, 0
        %v2429 = vsel %vm2415, %v2378, 0
        %v2432 = vsel %vm2415, %v2379, 0
        %v2435 = vsel %vm2415, %v2380, 0
        %v2438 = vsel %vm2415, %v2381, 0
        %v2441 = vsel %vm2415, %v2382, 0
        %v2444 = vsel %vm2415, %v2383, 0
        %v2447 = vsel %vm2415, %v2384, 0
        %v2450 = vsel %vm2415, %v2385, 0
        %v2453 = vsel %vm2415, %v2386, 0
        %v2456 = vsel %vm2415, %v2387, 0
        %v2459 = vsel %vm2415, %v2388, 0
        %v2462 = vsel %vm2415, %v2389, 0
        %v2465 = vsel %vm2415, %v2390, 0
        %v2468 = vsel %vm2415, %v2391, 0
        %v2471 = vsel %vm2415, %v2392, 0
        %v2474 = vsel %vm2415, %v2393, 0
        %v2477 = vsel %vm2415, %v2394, 0
        %v2480 = vsel %vm2415, %v2395, 0
        %v2483 = vsel %vm2415, %v2396, 0
        %v2486 = vsel %vm2415, %v2397, 0
        %v2489 = vsel %vm2415, %v2398, 0
        %v2492 = vsel %vm2415, %v2399, 0
        %v2495 = vsel %vm2415, %v2400, 0
        %v2498 = vsel %vm2415, %v2401, 0
        %v2501 = vsel %vm2415, %v2402, 0
        %v2504 = vsel %vm2415, %v2403, 0
        %v2507 = vsel %vm2415, %v2404, 0
        %v2510 = vsel %vm2415, %v2405, 0
        %v2513 = vsel %vm465, %v2410, 0
        %2515 = vmatpush.msra.mxu0 0.0
        %2516 = vmatpush.msra.mxu0 0.0
        %2517 = vmatpush.msra.mxu0 0.0
        %2518 = vmatpush.msra.mxu0 0.0
        %2519 = vmatpush.msra.mxu0 0.0
        %2520 = vmatpush.msra.mxu0 0.0
        %2521 = vmatpush.msra.mxu0 0.0
        %2522 = vmatpush.msra.mxu0 0.0
        %2523 = vmatpush.msra.mxu0 0.0
        %2524 = vmatpush.msra.mxu0 0.0
        %2525 = vmatpush.msra.mxu0 0.0
        %2526 = vmatpush.msra.mxu0 %v2513
        %2527 = vmatpush.msra.mxu0 %v2409
        %2528 = vmatpush.msra.mxu0 %v2408
        %2529 = vmatpush.msra.mxu0 %v2407
        %2530 = vmatpush.msra.mxu0 %v2406
        %2531 = vmatmul.f32.gmra.mxu0 %v2417
        %v2532 = vpop.f32.mrf.mxu0
        %v2533 = vadd.f32 %v2413, %v2532
        %2534 = vmatmul.f32.gmra.mxu0 %v2420
        %v2535 = vpop.f32.mrf.mxu0
        %v2536 = vadd.f32 %v2413, %v2535
        %2537 = vmatmul.f32.gmra.mxu0 %v2423
        %v2538 = vpop.f32.mrf.mxu0
        %v2539 = vadd.f32 %v2413, %v2538
        %2540 = vmatmul.f32.gmra.mxu0 %v2426
        %v2541 = vpop.f32.mrf.mxu0
        %v2542 = vadd.f32 %v2413, %v2541
        %2543 = vmatmul.f32.gmra.mxu0 %v2429
        %v2544 = vpop.f32.mrf.mxu0
        %v2545 = vadd.f32 %v2413, %v2544
        %2546 = vmatmul.f32.gmra.mxu0 %v2432
        %v2547 = vpop.f32.mrf.mxu0
        %v2548 = vadd.f32 %v2413, %v2547
        %2549 = vmatmul.f32.gmra.mxu0 %v2435
        %v2550 = vpop.f32.mrf.mxu0
        %v2551 = vadd.f32 %v2413, %v2550
        %2552 = vmatmul.f32.gmra.mxu0 %v2438
        %v2553 = vpop.f32.mrf.mxu0
        %v2554 = vadd.f32 %v2413, %v2553
        %2555 = vmatmul.f32.gmra.mxu0 %v2441
        %v2556 = vpop.f32.mrf.mxu0
        %v2557 = vadd.f32 %v2413, %v2556
        %2558 = vmatmul.f32.gmra.mxu0 %v2444
        %v2559 = vpop.f32.mrf.mxu0
        %v2560 = vadd.f32 %v2413, %v2559
        %2561 = vmatmul.f32.gmra.mxu0 %v2447
        %v2562 = vpop.f32.mrf.mxu0
        %v2563 = vadd.f32 %v2413, %v2562
        %2564 = vmatmul.f32.gmra.mxu0 %v2450
        %v2565 = vpop.f32.mrf.mxu0
        %v2566 = vadd.f32 %v2413, %v2565
        %2567 = vmatmul.f32.gmra.mxu0 %v2453
        %v2568 = vpop.f32.mrf.mxu0
        %v2569 = vadd.f32 %v2413, %v2568
        %2570 = vmatmul.f32.gmra.mxu0 %v2456
        %v2571 = vpop.f32.mrf.mxu0
        %v2572 = vadd.f32 %v2413, %v2571
        %2573 = vmatmul.f32.gmra.mxu0 %v2459
        %v2574 = vpop.f32.mrf.mxu0
        %v2575 = vadd.f32 %v2413, %v2574
        %2576 = vmatmul.f32.gmra.mxu0 %v2462
        %v2577 = vpop.f32.mrf.mxu0
        %v2578 = vadd.f32 %v2413, %v2577
        %2579 = vmatmul.f32.gmra.mxu0 %v2465
        %v2580 = vpop.f32.mrf.mxu0
        %v2581 = vadd.f32 %v2413, %v2580
        %2582 = vmatmul.f32.gmra.mxu0 %v2468
        %v2583 = vpop.f32.mrf.mxu0
        %v2584 = vadd.f32 %v2413, %v2583
        %2585 = vmatmul.f32.gmra.mxu0 %v2471
        %v2586 = vpop.f32.mrf.mxu0
        %v2587 = vadd.f32 %v2413, %v2586
        %2588 = vmatmul.f32.gmra.mxu0 %v2474
        %v2589 = vpop.f32.mrf.mxu0
        %v2590 = vadd.f32 %v2413, %v2589
        %2591 = vmatmul.f32.gmra.mxu0 %v2477
        %v2592 = vpop.f32.mrf.mxu0
        %v2593 = vadd.f32 %v2413, %v2592
        %2594 = vmatmul.f32.gmra.mxu0 %v2480
        %v2595 = vpop.f32.mrf.mxu0
        %v2596 = vadd.f32 %v2413, %v2595
        %2597 = vmatmul.f32.gmra.mxu0 %v2483
        %v2598 = vpop.f32.mrf.mxu0
        %v2599 = vadd.f32 %v2413, %v2598
        %2600 = vmatmul.f32.gmra.mxu0 %v2486
        %v2601 = vpop.f32.mrf.mxu0
        %v2602 = vadd.f32 %v2413, %v2601
        %2603 = vmatmul.f32.gmra.mxu0 %v2489
        %v2604 = vpop.f32.mrf.mxu0
        %v2605 = vadd.f32 %v2413, %v2604
        %2606 = vmatmul.f32.gmra.mxu0 %v2492
        %v2607 = vpop.f32.mrf.mxu0
        %v2608 = vadd.f32 %v2413, %v2607
        %2609 = vmatmul.f32.gmra.mxu0 %v2495
        %v2610 = vpop.f32.mrf.mxu0
        %v2611 = vadd.f32 %v2413, %v2610
        %2612 = vmatmul.f32.gmra.mxu0 %v2498
        %v2613 = vpop.f32.mrf.mxu0
        %v2614 = vadd.f32 %v2413, %v2613
        %2615 = vmatmul.f32.gmra.mxu0 %v2501
        %v2616 = vpop.f32.mrf.mxu0
        %v2617 = vadd.f32 %v2413, %v2616
        %2618 = vmatmul.f32.gmra.mxu0 %v2504
        %v2619 = vpop.f32.mrf.mxu0
        %v2620 = vadd.f32 %v2413, %v2619
        %2621 = vmatmul.f32.gmra.mxu0 %v2507
        %v2622 = vpop.f32.mrf.mxu0
        %v2623 = vadd.f32 %v2413, %v2622
        %2624 = vmatmul.f32.gmra.mxu0 %v2510
        %v2625 = vpop.f32.mrf.mxu0
        %v2626 = vadd.f32 %v2413, %v2625
        %2627 = vdwg.mxu0
        %v2628 = vmax.f32 %v2533, 0.0
        %v2629 = vmax.f32 %v2536, 0.0
        %v2630 = vmax.f32 %v2539, 0.0
        %v2631 = vmax.f32 %v2542, 0.0
        %v2632 = vmax.f32 %v2545, 0.0
        %v2633 = vmax.f32 %v2548, 0.0
        %v2634 = vmax.f32 %v2551, 0.0
        %v2635 = vmax.f32 %v2554, 0.0
        %v2636 = vmax.f32 %v2557, 0.0
        %v2637 = vmax.f32 %v2560, 0.0
        %v2638 = vmax.f32 %v2563, 0.0
        %v2639 = vmax.f32 %v2566, 0.0
        %v2640 = vmax.f32 %v2569, 0.0
        %v2641 = vmax.f32 %v2572, 0.0
        %v2642 = vmax.f32 %v2575, 0.0
        %v2643 = vmax.f32 %v2578, 0.0
        %v2644 = vmax.f32 %v2581, 0.0
        %v2645 = vmax.f32 %v2584, 0.0
        %v2646 = vmax.f32 %v2587, 0.0
        %v2647 = vmax.f32 %v2590, 0.0
        %v2648 = vmax.f32 %v2593, 0.0
        %v2649 = vmax.f32 %v2596, 0.0
        %v2650 = vmax.f32 %v2599, 0.0
        %v2651 = vmax.f32 %v2602, 0.0
        %v2652 = vmax.f32 %v2605, 0.0
        %v2653 = vmax.f32 %v2608, 0.0
        %v2654 = vmax.f32 %v2611, 0.0
        %v2655 = vmax.f32 %v2614, 0.0
        %v2656 = vmax.f32 %v2617, 0.0
        %v2657 = vmax.f32 %v2620, 0.0
        %v2658 = vmax.f32 %v2623, 0.0
        %v2659 = vmax.f32 %v2626, 0.0
        %2660 = vst.msk [vmem:[#allocation3] sm:$0xff] %vm368, 0.0
        %2661 = vst.msk [vmem:[#allocation3 + $0x8] sm:$0xff] %vm368, 0.0
        %vm2662 = vcmask 27648
        %2663 = vst.msk [vmem:[#allocation3 + $0x10] sm:$0xf] %vm2662, 0.0
        %2664 = vst.msk [vmem:[#allocation3 + $0x18] sm:$0xff] %vm368, 0.0
        %2665 = vst.msk [vmem:[#allocation3 + $0x20] sm:$0xff] %vm368, 0.0
        %2666 = vst.msk [vmem:[#allocation3 + $0x28] sm:$0xf] %vm2662, 0.0
        %2667 = vst.msk [vmem:[#allocation3 + $0x30] sm:$0xff] %vm368, 0.0
        %2668 = vst.msk [vmem:[#allocation3 + $0x38] sm:$0xff] %vm368, 0.0
        %2669 = vst.msk [vmem:[#allocation3 + $0x40] sm:$0xf] %vm2662, 0.0
        %2670 = vst.msk [vmem:[#allocation3 + $0x48] sm:$0xff] %vm368, 0.0
        %2671 = vst.msk [vmem:[#allocation3 + $0x50] sm:$0xff] %vm368, 0.0
        %2672 = vst.msk [vmem:[#allocation3 + $0x58] sm:$0xf] %vm2662, 0.0
        %2673 = vst.msk [vmem:[#allocation3 + $0x60] sm:$0xff] %vm368, 0.0
        %2674 = vst.msk [vmem:[#allocation3 + $0x68] sm:$0xff] %vm368, 0.0
        %2675 = vst.msk [vmem:[#allocation3 + $0x70] sm:$0xf] %vm2662, 0.0
        %2676 = vst.msk [vmem:[#allocation3 + $0x78] sm:$0xff] %vm368, 0.0
        %2677 = vst.msk [vmem:[#allocation3 + $0x80] sm:$0xff] %vm368, 0.0
        %2678 = vst.msk [vmem:[#allocation3 + $0x88] sm:$0xf] %vm2662, 0.0
        %2679 = vst.msk [vmem:[#allocation3 + $0x90] sm:$0xff] %vm368, 0.0
        %2680 = vst.msk [vmem:[#allocation3 + $0x98] sm:$0xff] %vm368, 0.0
        %2681 = vst.msk [vmem:[#allocation3 + $0xa0] sm:$0xf] %vm2662, 0.0
        %2682 = vst.msk [vmem:[#allocation3 + $0xa8] sm:$0xff] %vm368, 0.0
        %2683 = vst.msk [vmem:[#allocation3 + $0xb0] sm:$0xff] %vm368, 0.0
        %2684 = vst.msk [vmem:[#allocation3 + $0xb8] sm:$0xf] %vm2662, 0.0
        %2685 = vst.msk [vmem:[#allocation3 + $0xc0] sm:$0xff] %vm368, 0.0
        %2686 = vst.msk [vmem:[#allocation3 + $0xc8] sm:$0xff] %vm368, 0.0
        %2687 = vst.msk [vmem:[#allocation3 + $0xd0] sm:$0xf] %vm2662, 0.0
        %2688 = vst.msk [vmem:[#allocation3 + $0xd8] sm:$0xff] %vm368, 0.0
        %2689 = vst.msk [vmem:[#allocation3 + $0xe0] sm:$0xff] %vm368, 0.0
        %2690 = vst.msk [vmem:[#allocation3 + $0xe8] sm:$0xf] %vm2662, 0.0
        %2691 = vst.msk [vmem:[#allocation3 + $0xf0] sm:$0xff] %vm368, 0.0
        %2692 = vst.msk [vmem:[#allocation3 + $0xf8] sm:$0xff] %vm368, 0.0
        %2693 = vst.msk [vmem:[#allocation3 + $0x100] sm:$0xf] %vm2662, 0.0
        %2694 = vst.msk [vmem:[#allocation3 + $0x108] sm:$0xff] %vm368, 0.0
        %2695 = vst.msk [vmem:[#allocation3 + $0x110] sm:$0xff] %vm368, 0.0
        %2696 = vst.msk [vmem:[#allocation3 + $0x118] sm:$0xf] %vm2662, 0.0
        %2697 = vst.msk [vmem:[#allocation3 + $0x120] sm:$0xff] %vm368, 0.0
        %2698 = vst.msk [vmem:[#allocation3 + $0x128] sm:$0xff] %vm368, 0.0
        %2699 = vst.msk [vmem:[#allocation3 + $0x130] sm:$0xf] %vm2662, 0.0
        %2700 = vst.msk [vmem:[#allocation3 + $0x138] sm:$0xff] %vm368, 0.0
        %2701 = vst.msk [vmem:[#allocation3 + $0x140] sm:$0xff] %vm368, 0.0
        %2702 = vst.msk [vmem:[#allocation3 + $0x148] sm:$0xf] %vm2662, 0.0
        %2703 = vst.msk [vmem:[#allocation3 + $0x150] sm:$0xff] %vm368, 0.0
        %2704 = vst.msk [vmem:[#allocation3 + $0x158] sm:$0xff] %vm368, 0.0
        %2705 = vst.msk [vmem:[#allocation3 + $0x160] sm:$0xf] %vm2662, 0.0
        %2706 = vst.msk [vmem:[#allocation3 + $0x168] sm:$0xff] %vm368, 0.0
        %2707 = vst.msk [vmem:[#allocation3 + $0x170] sm:$0xff] %vm368, 0.0
        %2708 = vst.msk [vmem:[#allocation3 + $0x178] sm:$0xf] %vm2662, 0.0
        %2709 = vst.msk [vmem:[#allocation3 + $0x180] sm:$0xff] %vm368, 0.0
        %2710 = vst.msk [vmem:[#allocation3 + $0x188] sm:$0xff] %vm368, 0.0
        %2711 = vst.msk [vmem:[#allocation3 + $0x190] sm:$0xf] %vm2662, 0.0
        %2712 = vst.msk [vmem:[#allocation3 + $0x198] sm:$0xff] %vm368, 0.0
        %2713 = vst.msk [vmem:[#allocation3 + $0x1a0] sm:$0xff] %vm368, 0.0
        %2714 = vst.msk [vmem:[#allocation3 + $0x1a8] sm:$0xf] %vm2662, 0.0
        %2715 = vst.msk [vmem:[#allocation3 + $0x1b0] sm:$0xff] %vm368, 0.0
        %2716 = vst.msk [vmem:[#allocation3 + $0x1b8] sm:$0xff] %vm368, 0.0
        %2717 = vst.msk [vmem:[#allocation3 + $0x1c0] sm:$0xf] %vm2662, 0.0
        %2718 = vst.msk [vmem:[#allocation3 + $0x1c8] sm:$0xff] %vm368, 0.0
        %2719 = vst.msk [vmem:[#allocation3 + $0x1d0] sm:$0xff] %vm368, 0.0
        %2720 = vst.msk [vmem:[#allocation3 + $0x1d8] sm:$0xf] %vm2662, 0.0
        %2721 = vrot.lane.b32.xlu0 %v582, 116
        %v2722 = vpop.permute.xlu0 %2721
        %2723 = vrot.lane.b32.xlu0 %v583, 116
        %v2724 = vpop.permute.xlu0 %2723
        %2725 = vrot.lane.b32.xlu0 %v584, 116
        %v2726 = vpop.permute.xlu0 %2725
        %2727 = vrot.lane.b32.xlu0 %v585, 116
        %v2728 = vpop.permute.xlu0 %2727
        %2729 = vrot.lane.b32.xlu0 %v586, 116
        %v2730 = vpop.permute.xlu0 %2729
        %2731 = vrot.lane.b32.xlu0 %v587, 116
        %v2732 = vpop.permute.xlu0 %2731
        %2733 = vrot.lane.b32.xlu0 %v588, 116
        %v2734 = vpop.permute.xlu0 %2733
        %2735 = vrot.lane.b32.xlu0 %v589, 116
        %v2736 = vpop.permute.xlu0 %2735
        %2737 = vrot.lane.b32.xlu0 %v590, 116
        %v2738 = vpop.permute.xlu0 %2737
        %2739 = vrot.lane.b32.xlu0 %v591, 116
        %v2740 = vpop.permute.xlu0 %2739
        %2741 = vrot.lane.b32.xlu0 %v592, 116
        %v2742 = vpop.permute.xlu0 %2741
        %2743 = vrot.lane.b32.xlu0 %v593, 116
        %v2744 = vpop.permute.xlu0 %2743
        %2745 = vrot.lane.b32.xlu0 %v594, 116
        %v2746 = vpop.permute.xlu0 %2745
        %2747 = vrot.lane.b32.xlu0 %v595, 116
        %v2748 = vpop.permute.xlu0 %2747
        %2749 = vrot.lane.b32.xlu0 %v596, 116
        %v2750 = vpop.permute.xlu0 %2749
        %2751 = vrot.lane.b32.xlu0 %v597, 116
        %v2752 = vpop.permute.xlu0 %2751
        %2753 = vrot.lane.b32.xlu0 %v598, 116
        %v2754 = vpop.permute.xlu0 %2753
        %2755 = vrot.lane.b32.xlu0 %v599, 116
        %v2756 = vpop.permute.xlu0 %2755
        %2757 = vrot.lane.b32.xlu0 %v600, 116
        %v2758 = vpop.permute.xlu0 %2757
        %2759 = vrot.lane.b32.xlu0 %v601, 116
        %v2760 = vpop.permute.xlu0 %2759
        %2761 = vrot.lane.b32.xlu0 %v602, 116
        %v2762 = vpop.permute.xlu0 %2761
        %2763 = vrot.lane.b32.xlu0 %v603, 116
        %v2764 = vpop.permute.xlu0 %2763
        %2765 = vrot.lane.b32.xlu0 %v604, 116
        %v2766 = vpop.permute.xlu0 %2765
        %2767 = vrot.lane.b32.xlu0 %v605, 116
        %v2768 = vpop.permute.xlu0 %2767
        %2769 = vrot.lane.b32.xlu0 %v606, 116
        %v2770 = vpop.permute.xlu0 %2769
        %2771 = vrot.lane.b32.xlu0 %v607, 116
        %v2772 = vpop.permute.xlu0 %2771
        %2773 = vrot.lane.b32.xlu0 %v608, 116
        %v2774 = vpop.permute.xlu0 %2773
        %2775 = vrot.lane.b32.xlu0 %v609, 116
        %v2776 = vpop.permute.xlu0 %2775
        %2777 = vrot.lane.b32.xlu0 %v610, 116
        %v2778 = vpop.permute.xlu0 %2777
        %2779 = vrot.lane.b32.xlu0 %v611, 116
        %v2780 = vpop.permute.xlu0 %2779
        %2781 = vrot.lane.b32.xlu0 %v612, 116
        %v2782 = vpop.permute.xlu0 %2781
        %2783 = vrot.lane.b32.xlu0 %v613, 116
        %v2784 = vpop.permute.xlu0 %2783
        %s2817 = scalar_lea.vmem [#allocation3], 48
        %2818 = vst.msk [vmem:[%s2817 + $0x2] sm:$0xff] %vm368, %v2722
        %2819 = vst.msk [vmem:[%s2817 + $0xa] sm:$0xff] %vm368, %v2724
        %2820 = vst.msk [vmem:[%s2817 + $0x1a] sm:$0xff] %vm368, %v2726
        %2821 = vst.msk [vmem:[%s2817 + $0x22] sm:$0xff] %vm368, %v2728
        %2822 = vst.msk [vmem:[%s2817 + $0x32] sm:$0xff] %vm368, %v2730
        %2823 = vst.msk [vmem:[%s2817 + $0x3a] sm:$0xff] %vm368, %v2732
        %2824 = vst.msk [vmem:[%s2817 + $0x4a] sm:$0xff] %vm368, %v2734
        %2825 = vst.msk [vmem:[%s2817 + $0x52] sm:$0xff] %vm368, %v2736
        %2826 = vst.msk [vmem:[%s2817 + $0x62] sm:$0xff] %vm368, %v2738
        %2827 = vst.msk [vmem:[%s2817 + $0x6a] sm:$0xff] %vm368, %v2740
        %2828 = vst.msk [vmem:[%s2817 + $0x7a] sm:$0xff] %vm368, %v2742
        %2829 = vst.msk [vmem:[%s2817 + $0x82] sm:$0xff] %vm368, %v2744
        %2830 = vst.msk [vmem:[%s2817 + $0x92] sm:$0xff] %vm368, %v2746
        %2831 = vst.msk [vmem:[%s2817 + $0x9a] sm:$0xff] %vm368, %v2748
        %2832 = vst.msk [vmem:[%s2817 + $0xaa] sm:$0xff] %vm368, %v2750
        %2833 = vst.msk [vmem:[%s2817 + $0xb2] sm:$0xff] %vm368, %v2752
        %2834 = vst.msk [vmem:[%s2817 + $0xc2] sm:$0xff] %vm368, %v2754
        %2835 = vst.msk [vmem:[%s2817 + $0xca] sm:$0xff] %vm368, %v2756
        %2836 = vst.msk [vmem:[%s2817 + $0xda] sm:$0xff] %vm368, %v2758
        %2837 = vst.msk [vmem:[%s2817 + $0xe2] sm:$0xff] %vm368, %v2760
        %2838 = vst.msk [vmem:[%s2817 + $0xf2] sm:$0xff] %vm368, %v2762
        %2839 = vst.msk [vmem:[%s2817 + $0xfa] sm:$0xff] %vm368, %v2764
        %2840 = vst.msk [vmem:[%s2817 + $0x10a] sm:$0xff] %vm368, %v2766
        %2841 = vst.msk [vmem:[%s2817 + $0x112] sm:$0xff] %vm368, %v2768
        %2842 = vst.msk [vmem:[%s2817 + $0x122] sm:$0xff] %vm368, %v2770
        %2843 = vst.msk [vmem:[%s2817 + $0x12a] sm:$0xff] %vm368, %v2772
        %2844 = vst.msk [vmem:[%s2817 + $0x13a] sm:$0xff] %vm368, %v2774
        %2845 = vst.msk [vmem:[%s2817 + $0x142] sm:$0xff] %vm368, %v2776
        %2846 = vst.msk [vmem:[%s2817 + $0x152] sm:$0xff] %vm368, %v2778
        %2847 = vst.msk [vmem:[%s2817 + $0x15a] sm:$0xff] %vm368, %v2780
        %2848 = vst.msk [vmem:[%s2817 + $0x16a] sm:$0xff] %vm368, %v2782
        %2849 = vst.msk [vmem:[%s2817 + $0x172] sm:$0xff] %vm368, %v2784
        %v2850 = vld [vmem:[#allocation3] sm:$0xff]
        %v2851 = vld [vmem:[#allocation3 + $0x8] sm:$0xff]
        %v2852 = vld [vmem:[#allocation3 + $0x18] sm:$0xff]
        %v2853 = vld [vmem:[#allocation3 + $0x20] sm:$0xff]
        %v2854 = vld [vmem:[#allocation3 + $0x30] sm:$0xff]
        %v2855 = vld [vmem:[#allocation3 + $0x38] sm:$0xff]
        %v2856 = vld [vmem:[#allocation3 + $0x48] sm:$0xff]
        %v2857 = vld [vmem:[#allocation3 + $0x50] sm:$0xff]
        %v2858 = vld [vmem:[#allocation3 + $0x60] sm:$0xff]
        %v2859 = vld [vmem:[#allocation3 + $0x68] sm:$0xff]
        %v2860 = vld [vmem:[#allocation3 + $0x78] sm:$0xff]
        %v2861 = vld [vmem:[#allocation3 + $0x80] sm:$0xff]
        %v2862 = vld [vmem:[#allocation3 + $0x90] sm:$0xff]
        %v2863 = vld [vmem:[#allocation3 + $0x98] sm:$0xff]
        %v2864 = vld [vmem:[#allocation3 + $0xa8] sm:$0xff]
        %v2865 = vld [vmem:[#allocation3 + $0xb0] sm:$0xff]
        %v2866 = vld [vmem:[#allocation3 + $0xc0] sm:$0xff]
        %v2867 = vld [vmem:[#allocation3 + $0xc8] sm:$0xff]
        %v2868 = vld [vmem:[#allocation3 + $0xd8] sm:$0xff]
        %v2869 = vld [vmem:[#allocation3 + $0xe0] sm:$0xff]
        %v2870 = vld [vmem:[#allocation3 + $0xf0] sm:$0xff]
        %v2871 = vld [vmem:[#allocation3 + $0xf8] sm:$0xff]
        %v2872 = vld [vmem:[#allocation3 + $0x108] sm:$0xff]
        %v2873 = vld [vmem:[#allocation3 + $0x110] sm:$0xff]
        %v2874 = vld [vmem:[#allocation3 + $0x120] sm:$0xff]
        %v2875 = vld [vmem:[#allocation3 + $0x128] sm:$0xff]
        %v2876 = vld [vmem:[#allocation3 + $0x138] sm:$0xff]
        %v2877 = vld [vmem:[#allocation3 + $0x140] sm:$0xff]
        %v2878 = vld [vmem:[#allocation3 + $0x150] sm:$0xff]
        %v2879 = vld [vmem:[#allocation3 + $0x158] sm:$0xff]
        %v2880 = vld [vmem:[#allocation3 + $0x168] sm:$0xff]
        %v2881 = vld [vmem:[#allocation3 + $0x170] sm:$0xff]
        %v2882 = vld [vmem:[#allocation3 + $0x1] sm:$0xff]
        %v2883 = vld [vmem:[#allocation3 + $0x9] sm:$0xff]
        %v2884 = vld [vmem:[#allocation3 + $0x19] sm:$0xff]
        %v2885 = vld [vmem:[#allocation3 + $0x21] sm:$0xff]
        %v2886 = vld [vmem:[#allocation3 + $0x31] sm:$0xff]
        %v2887 = vld [vmem:[#allocation3 + $0x39] sm:$0xff]
        %v2888 = vld [vmem:[#allocation3 + $0x49] sm:$0xff]
        %v2889 = vld [vmem:[#allocation3 + $0x51] sm:$0xff]
        %v2890 = vld [vmem:[#allocation3 + $0x61] sm:$0xff]
        %v2891 = vld [vmem:[#allocation3 + $0x69] sm:$0xff]
        %v2892 = vld [vmem:[#allocation3 + $0x79] sm:$0xff]
        %v2893 = vld [vmem:[#allocation3 + $0x81] sm:$0xff]
        %v2894 = vld [vmem:[#allocation3 + $0x91] sm:$0xff]
        %v2895 = vld [vmem:[#allocation3 + $0x99] sm:$0xff]
        %v2896 = vld [vmem:[#allocation3 + $0xa9] sm:$0xff]
        %v2897 = vld [vmem:[#allocation3 + $0xb1] sm:$0xff]
        %v2898 = vld [vmem:[#allocation3 + $0xc1] sm:$0xff]
        %v2899 = vld [vmem:[#allocation3 + $0xc9] sm:$0xff]
        %v2900 = vld [vmem:[#allocation3 + $0xd9] sm:$0xff]
        %v2901 = vld [vmem:[#allocation3 + $0xe1] sm:$0xff]
        %v2902 = vld [vmem:[#allocation3 + $0xf1] sm:$0xff]
        %v2903 = vld [vmem:[#allocation3 + $0xf9] sm:$0xff]
        %v2904 = vld [vmem:[#allocation3 + $0x109] sm:$0xff]
        %v2905 = vld [vmem:[#allocation3 + $0x111] sm:$0xff]
        %v2906 = vld [vmem:[#allocation3 + $0x121] sm:$0xff]
        %v2907 = vld [vmem:[#allocation3 + $0x129] sm:$0xff]
        %v2908 = vld [vmem:[#allocation3 + $0x139] sm:$0xff]
        %v2909 = vld [vmem:[#allocation3 + $0x141] sm:$0xff]
        %v2910 = vld [vmem:[#allocation3 + $0x151] sm:$0xff]
        %v2911 = vld [vmem:[#allocation3 + $0x159] sm:$0xff]
        %v2912 = vld [vmem:[#allocation3 + $0x169] sm:$0xff]
        %v2913 = vld [vmem:[#allocation3 + $0x171] sm:$0xff]
        %v2914 = vld [vmem:[#allocation3 + $0x2] sm:$0xff]
        %v2915 = vld [vmem:[#allocation3 + $0xa] sm:$0xff]
        %v2916 = vld [vmem:[#allocation3 + $0x1a] sm:$0xff]
        %v2917 = vld [vmem:[#allocation3 + $0x22] sm:$0xff]
        %v2918 = vld [vmem:[#allocation3 + $0x32] sm:$0xff]
        %v2919 = vld [vmem:[#allocation3 + $0x3a] sm:$0xff]
        %v2920 = vld [vmem:[#allocation3 + $0x4a] sm:$0xff]
        %v2921 = vld [vmem:[#allocation3 + $0x52] sm:$0xff]
        %v2922 = vld [vmem:[#allocation3 + $0x62] sm:$0xff]
        %v2923 = vld [vmem:[#allocation3 + $0x6a] sm:$0xff]
        %v2924 = vld [vmem:[#allocation3 + $0x7a] sm:$0xff]
        %v2925 = vld [vmem:[#allocation3 + $0x82] sm:$0xff]
        %v2926 = vld [vmem:[#allocation3 + $0x92] sm:$0xff]
        %v2927 = vld [vmem:[#allocation3 + $0x9a] sm:$0xff]
        %v2928 = vld [vmem:[#allocation3 + $0xaa] sm:$0xff]
        %v2929 = vld [vmem:[#allocation3 + $0xb2] sm:$0xff]
        %v2930 = vld [vmem:[#allocation3 + $0xc2] sm:$0xff]
        %v2931 = vld [vmem:[#allocation3 + $0xca] sm:$0xff]
        %v2932 = vld [vmem:[#allocation3 + $0xda] sm:$0xff]
        %v2933 = vld [vmem:[#allocation3 + $0xe2] sm:$0xff]
        %v2934 = vld [vmem:[#allocation3 + $0xf2] sm:$0xff]
        %v2935 = vld [vmem:[#allocation3 + $0xfa] sm:$0xff]
        %v2936 = vld [vmem:[#allocation3 + $0x10a] sm:$0xff]
        %v2937 = vld [vmem:[#allocation3 + $0x112] sm:$0xff]
        %v2938 = vld [vmem:[#allocation3 + $0x122] sm:$0xff]
        %v2939 = vld [vmem:[#allocation3 + $0x12a] sm:$0xff]
        %v2940 = vld [vmem:[#allocation3 + $0x13a] sm:$0xff]
        %v2941 = vld [vmem:[#allocation3 + $0x142] sm:$0xff]
        %v2942 = vld [vmem:[#allocation3 + $0x152] sm:$0xff]
        %v2943 = vld [vmem:[#allocation3 + $0x15a] sm:$0xff]
        %v2944 = vld [vmem:[#allocation3 + $0x16a] sm:$0xff]
        %v2945 = vld [vmem:[#allocation3 + $0x172] sm:$0xff]
        %v2946 = vld [vmem:[#allocation3 + $0x3] sm:$0xff]
        %v2947 = vld [vmem:[#allocation3 + $0xb] sm:$0xff]
        %v2948 = vld [vmem:[#allocation3 + $0x1b] sm:$0xff]
        %v2949 = vld [vmem:[#allocation3 + $0x23] sm:$0xff]
        %v2950 = vld [vmem:[#allocation3 + $0x33] sm:$0xff]
        %v2951 = vld [vmem:[#allocation3 + $0x3b] sm:$0xff]
        %v2952 = vld [vmem:[#allocation3 + $0x4b] sm:$0xff]
        %v2953 = vld [vmem:[#allocation3 + $0x53] sm:$0xff]
        %v2954 = vld [vmem:[#allocation3 + $0x63] sm:$0xff]
        %v2955 = vld [vmem:[#allocation3 + $0x6b] sm:$0xff]
        %v2956 = vld [vmem:[#allocation3 + $0x7b] sm:$0xff]
        %v2957 = vld [vmem:[#allocation3 + $0x83] sm:$0xff]
        %v2958 = vld [vmem:[#allocation3 + $0x93] sm:$0xff]
        %v2959 = vld [vmem:[#allocation3 + $0x9b] sm:$0xff]
        %v2960 = vld [vmem:[#allocation3 + $0xab] sm:$0xff]
        %v2961 = vld [vmem:[#allocation3 + $0xb3] sm:$0xff]
        %v2962 = vld [vmem:[#allocation3 + $0xc3] sm:$0xff]
        %v2963 = vld [vmem:[#allocation3 + $0xcb] sm:$0xff]
        %v2964 = vld [vmem:[#allocation3 + $0xdb] sm:$0xff]
        %v2965 = vld [vmem:[#allocation3 + $0xe3] sm:$0xff]
        %v2966 = vld [vmem:[#allocation3 + $0xf3] sm:$0xff]
        %v2967 = vld [vmem:[#allocation3 + $0xfb] sm:$0xff]
        %v2968 = vld [vmem:[#allocation3 + $0x10b] sm:$0xff]
        %v2969 = vld [vmem:[#allocation3 + $0x113] sm:$0xff]
        %v2970 = vld [vmem:[#allocation3 + $0x123] sm:$0xff]
        %v2971 = vld [vmem:[#allocation3 + $0x12b] sm:$0xff]
        %v2972 = vld [vmem:[#allocation3 + $0x13b] sm:$0xff]
        %v2973 = vld [vmem:[#allocation3 + $0x143] sm:$0xff]
        %v2974 = vld [vmem:[#allocation3 + $0x153] sm:$0xff]
        %v2975 = vld [vmem:[#allocation3 + $0x15b] sm:$0xff]
        %v2976 = vld [vmem:[#allocation3 + $0x16b] sm:$0xff]
        %v2977 = vld [vmem:[#allocation3 + $0x173] sm:$0xff]
        %v2978 = vld [vmem:[#allocation3 + $0x4] sm:$0xff]
        %v2979 = vld [vmem:[#allocation3 + $0xc] sm:$0xff]
        %v2980 = vld [vmem:[#allocation3 + $0x1c] sm:$0xff]
        %v2981 = vld [vmem:[#allocation3 + $0x24] sm:$0xff]
        %v2982 = vld [vmem:[#allocation3 + $0x34] sm:$0xff]
        %v2983 = vld [vmem:[#allocation3 + $0x3c] sm:$0xff]
        %v2984 = vld [vmem:[#allocation3 + $0x4c] sm:$0xff]
        %v2985 = vld [vmem:[#allocation3 + $0x54] sm:$0xff]
        %v2986 = vld [vmem:[#allocation3 + $0x64] sm:$0xff]
        %v2987 = vld [vmem:[#allocation3 + $0x6c] sm:$0xff]
        %v2988 = vld [vmem:[#allocation3 + $0x7c] sm:$0xff]
        %v2989 = vld [vmem:[#allocation3 + $0x84] sm:$0xff]
        %v2990 = vld [vmem:[#allocation3 + $0x94] sm:$0xff]
        %v2991 = vld [vmem:[#allocation3 + $0x9c] sm:$0xff]
        %v2992 = vld [vmem:[#allocation3 + $0xac] sm:$0xff]
        %v2993 = vld [vmem:[#allocation3 + $0xb4] sm:$0xff]
        %v2994 = vld [vmem:[#allocation3 + $0xc4] sm:$0xff]
        %v2995 = vld [vmem:[#allocation3 + $0xcc] sm:$0xff]
        %v2996 = vld [vmem:[#allocation3 + $0xdc] sm:$0xff]
        %v2997 = vld [vmem:[#allocation3 + $0xe4] sm:$0xff]
        %v2998 = vld [vmem:[#allocation3 + $0xf4] sm:$0xff]
        %v2999 = vld [vmem:[#allocation3 + $0xfc] sm:$0xff]
        %v3000 = vld [vmem:[#allocation3 + $0x10c] sm:$0xff]
        %v3001 = vld [vmem:[#allocation3 + $0x114] sm:$0xff]
        %v3002 = vld [vmem:[#allocation3 + $0x124] sm:$0xff]
        %v3003 = vld [vmem:[#allocation3 + $0x12c] sm:$0xff]
        %v3004 = vld [vmem:[#allocation3 + $0x13c] sm:$0xff]
        %v3005 = vld [vmem:[#allocation3 + $0x144] sm:$0xff]
        %v3006 = vld [vmem:[#allocation3 + $0x154] sm:$0xff]
        %v3007 = vld [vmem:[#allocation3 + $0x15c] sm:$0xff]
        %v3008 = vld [vmem:[#allocation3 + $0x16c] sm:$0xff]
        %v3009 = vld [vmem:[#allocation3 + $0x174] sm:$0xff]
        %s3010 = scalar_lea.vmem [#allocation3], 24
        %v3011 = vld [vmem:[%s3010] sm:$0xff]
        %v3012 = vld [vmem:[%s3010 + $0x8] sm:$0xff]
        %v3013 = vld [vmem:[%s3010 + $0x18] sm:$0xff]
        %v3014 = vld [vmem:[%s3010 + $0x20] sm:$0xff]
        %v3015 = vld [vmem:[%s3010 + $0x30] sm:$0xff]
        %v3016 = vld [vmem:[%s3010 + $0x38] sm:$0xff]
        %v3017 = vld [vmem:[%s3010 + $0x48] sm:$0xff]
        %v3018 = vld [vmem:[%s3010 + $0x50] sm:$0xff]
        %v3019 = vld [vmem:[%s3010 + $0x60] sm:$0xff]
        %v3020 = vld [vmem:[%s3010 + $0x68] sm:$0xff]
        %v3021 = vld [vmem:[%s3010 + $0x78] sm:$0xff]
        %v3022 = vld [vmem:[%s3010 + $0x80] sm:$0xff]
        %v3023 = vld [vmem:[%s3010 + $0x90] sm:$0xff]
        %v3024 = vld [vmem:[%s3010 + $0x98] sm:$0xff]
        %v3025 = vld [vmem:[%s3010 + $0xa8] sm:$0xff]
        %v3026 = vld [vmem:[%s3010 + $0xb0] sm:$0xff]
        %v3027 = vld [vmem:[%s3010 + $0xc0] sm:$0xff]
        %v3028 = vld [vmem:[%s3010 + $0xc8] sm:$0xff]
        %v3029 = vld [vmem:[%s3010 + $0xd8] sm:$0xff]
        %v3030 = vld [vmem:[%s3010 + $0xe0] sm:$0xff]
        %v3031 = vld [vmem:[%s3010 + $0xf0] sm:$0xff]
        %v3032 = vld [vmem:[%s3010 + $0xf8] sm:$0xff]
        %v3033 = vld [vmem:[%s3010 + $0x108] sm:$0xff]
        %v3034 = vld [vmem:[%s3010 + $0x110] sm:$0xff]
        %v3035 = vld [vmem:[%s3010 + $0x120] sm:$0xff]
        %v3036 = vld [vmem:[%s3010 + $0x128] sm:$0xff]
        %v3037 = vld [vmem:[%s3010 + $0x138] sm:$0xff]
        %v3038 = vld [vmem:[%s3010 + $0x140] sm:$0xff]
        %v3039 = vld [vmem:[%s3010 + $0x150] sm:$0xff]
        %v3040 = vld [vmem:[%s3010 + $0x158] sm:$0xff]
        %v3041 = vld [vmem:[%s3010 + $0x168] sm:$0xff]
        %v3042 = vld [vmem:[%s3010 + $0x170] sm:$0xff]
        %v3043 = vld [vmem:[%s3010 + $0x1] sm:$0xff]
        %v3044 = vld [vmem:[%s3010 + $0x9] sm:$0xff]
        %v3045 = vld [vmem:[%s3010 + $0x19] sm:$0xff]
        %v3046 = vld [vmem:[%s3010 + $0x21] sm:$0xff]
        %v3047 = vld [vmem:[%s3010 + $0x31] sm:$0xff]
        %v3048 = vld [vmem:[%s3010 + $0x39] sm:$0xff]
        %v3049 = vld [vmem:[%s3010 + $0x49] sm:$0xff]
        %v3050 = vld [vmem:[%s3010 + $0x51] sm:$0xff]
        %v3051 = vld [vmem:[%s3010 + $0x61] sm:$0xff]
        %v3052 = vld [vmem:[%s3010 + $0x69] sm:$0xff]
        %v3053 = vld [vmem:[%s3010 + $0x79] sm:$0xff]
        %v3054 = vld [vmem:[%s3010 + $0x81] sm:$0xff]
        %v3055 = vld [vmem:[%s3010 + $0x91] sm:$0xff]
        %v3056 = vld [vmem:[%s3010 + $0x99] sm:$0xff]
        %v3057 = vld [vmem:[%s3010 + $0xa9] sm:$0xff]
        %v3058 = vld [vmem:[%s3010 + $0xb1] sm:$0xff]
        %v3059 = vld [vmem:[%s3010 + $0xc1] sm:$0xff]
        %v3060 = vld [vmem:[%s3010 + $0xc9] sm:$0xff]
        %v3061 = vld [vmem:[%s3010 + $0xd9] sm:$0xff]
        %v3062 = vld [vmem:[%s3010 + $0xe1] sm:$0xff]
        %v3063 = vld [vmem:[%s3010 + $0xf1] sm:$0xff]
        %v3064 = vld [vmem:[%s3010 + $0xf9] sm:$0xff]
        %v3065 = vld [vmem:[%s3010 + $0x109] sm:$0xff]
        %v3066 = vld [vmem:[%s3010 + $0x111] sm:$0xff]
        %v3067 = vld [vmem:[%s3010 + $0x121] sm:$0xff]
        %v3068 = vld [vmem:[%s3010 + $0x129] sm:$0xff]
        %v3069 = vld [vmem:[%s3010 + $0x139] sm:$0xff]
        %v3070 = vld [vmem:[%s3010 + $0x141] sm:$0xff]
        %v3071 = vld [vmem:[%s3010 + $0x151] sm:$0xff]
        %v3072 = vld [vmem:[%s3010 + $0x159] sm:$0xff]
        %v3073 = vld [vmem:[%s3010 + $0x169] sm:$0xff]
        %v3074 = vld [vmem:[%s3010 + $0x171] sm:$0xff]
        %v3075 = vld [vmem:[%s3010 + $0x2] sm:$0xff]
        %v3076 = vld [vmem:[%s3010 + $0xa] sm:$0xff]
        %v3077 = vld [vmem:[%s3010 + $0x1a] sm:$0xff]
        %v3078 = vld [vmem:[%s3010 + $0x22] sm:$0xff]
        %v3079 = vld [vmem:[%s3010 + $0x32] sm:$0xff]
        %v3080 = vld [vmem:[%s3010 + $0x3a] sm:$0xff]
        %v3081 = vld [vmem:[%s3010 + $0x4a] sm:$0xff]
        %v3082 = vld [vmem:[%s3010 + $0x52] sm:$0xff]
        %v3083 = vld [vmem:[%s3010 + $0x62] sm:$0xff]
        %v3084 = vld [vmem:[%s3010 + $0x6a] sm:$0xff]
        %v3085 = vld [vmem:[%s3010 + $0x7a] sm:$0xff]
        %v3086 = vld [vmem:[%s3010 + $0x82] sm:$0xff]
        %v3087 = vld [vmem:[%s3010 + $0x92] sm:$0xff]
        %v3088 = vld [vmem:[%s3010 + $0x9a] sm:$0xff]
        %v3089 = vld [vmem:[%s3010 + $0xaa] sm:$0xff]
        %v3090 = vld [vmem:[%s3010 + $0xb2] sm:$0xff]
        %v3091 = vld [vmem:[%s3010 + $0xc2] sm:$0xff]
        %v3092 = vld [vmem:[%s3010 + $0xca] sm:$0xff]
        %v3093 = vld [vmem:[%s3010 + $0xda] sm:$0xff]
        %v3094 = vld [vmem:[%s3010 + $0xe2] sm:$0xff]
        %v3095 = vld [vmem:[%s3010 + $0xf2] sm:$0xff]
        %v3096 = vld [vmem:[%s3010 + $0xfa] sm:$0xff]
        %v3097 = vld [vmem:[%s3010 + $0x10a] sm:$0xff]
        %v3098 = vld [vmem:[%s3010 + $0x112] sm:$0xff]
        %v3099 = vld [vmem:[%s3010 + $0x122] sm:$0xff]
        %v3100 = vld [vmem:[%s3010 + $0x12a] sm:$0xff]
        %v3101 = vld [vmem:[%s3010 + $0x13a] sm:$0xff]
        %v3102 = vld [vmem:[%s3010 + $0x142] sm:$0xff]
        %v3103 = vld [vmem:[%s3010 + $0x152] sm:$0xff]
        %v3104 = vld [vmem:[%s3010 + $0x15a] sm:$0xff]
        %v3105 = vld [vmem:[%s3010 + $0x16a] sm:$0xff]
        %v3106 = vld [vmem:[%s3010 + $0x172] sm:$0xff]
        %v3107 = vld [vmem:[%s3010 + $0x3] sm:$0xff]
        %v3108 = vld [vmem:[%s3010 + $0xb] sm:$0xff]
        %v3109 = vld [vmem:[%s3010 + $0x1b] sm:$0xff]
        %v3110 = vld [vmem:[%s3010 + $0x23] sm:$0xff]
        %v3111 = vld [vmem:[%s3010 + $0x33] sm:$0xff]
        %v3112 = vld [vmem:[%s3010 + $0x3b] sm:$0xff]
        %v3113 = vld [vmem:[%s3010 + $0x4b] sm:$0xff]
        %v3114 = vld [vmem:[%s3010 + $0x53] sm:$0xff]
        %v3115 = vld [vmem:[%s3010 + $0x63] sm:$0xff]
        %v3116 = vld [vmem:[%s3010 + $0x6b] sm:$0xff]
        %v3117 = vld [vmem:[%s3010 + $0x7b] sm:$0xff]
        %v3118 = vld [vmem:[%s3010 + $0x83] sm:$0xff]
        %v3119 = vld [vmem:[%s3010 + $0x93] sm:$0xff]
        %v3120 = vld [vmem:[%s3010 + $0x9b] sm:$0xff]
        %v3121 = vld [vmem:[%s3010 + $0xab] sm:$0xff]
        %v3122 = vld [vmem:[%s3010 + $0xb3] sm:$0xff]
        %v3123 = vld [vmem:[%s3010 + $0xc3] sm:$0xff]
        %v3124 = vld [vmem:[%s3010 + $0xcb] sm:$0xff]
        %v3125 = vld [vmem:[%s3010 + $0xdb] sm:$0xff]
        %v3126 = vld [vmem:[%s3010 + $0xe3] sm:$0xff]
        %v3127 = vld [vmem:[%s3010 + $0xf3] sm:$0xff]
        %v3128 = vld [vmem:[%s3010 + $0xfb] sm:$0xff]
        %v3129 = vld [vmem:[%s3010 + $0x10b] sm:$0xff]
        %v3130 = vld [vmem:[%s3010 + $0x113] sm:$0xff]
        %v3131 = vld [vmem:[%s3010 + $0x123] sm:$0xff]
        %v3132 = vld [vmem:[%s3010 + $0x12b] sm:$0xff]
        %v3133 = vld [vmem:[%s3010 + $0x13b] sm:$0xff]
        %v3134 = vld [vmem:[%s3010 + $0x143] sm:$0xff]
        %v3135 = vld [vmem:[%s3010 + $0x153] sm:$0xff]
        %v3136 = vld [vmem:[%s3010 + $0x15b] sm:$0xff]
        %v3137 = vld [vmem:[%s3010 + $0x16b] sm:$0xff]
        %v3138 = vld [vmem:[%s3010 + $0x173] sm:$0xff]
        %v3139 = vld [vmem:[%s3010 + $0x4] sm:$0xff]
        %v3140 = vld [vmem:[%s3010 + $0xc] sm:$0xff]
        %v3141 = vld [vmem:[%s3010 + $0x1c] sm:$0xff]
        %v3142 = vld [vmem:[%s3010 + $0x24] sm:$0xff]
        %v3143 = vld [vmem:[%s3010 + $0x34] sm:$0xff]
        %v3144 = vld [vmem:[%s3010 + $0x3c] sm:$0xff]
        %v3145 = vld [vmem:[%s3010 + $0x4c] sm:$0xff]
        %v3146 = vld [vmem:[%s3010 + $0x54] sm:$0xff]
        %v3147 = vld [vmem:[%s3010 + $0x64] sm:$0xff]
        %v3148 = vld [vmem:[%s3010 + $0x6c] sm:$0xff]
        %v3149 = vld [vmem:[%s3010 + $0x7c] sm:$0xff]
        %v3150 = vld [vmem:[%s3010 + $0x84] sm:$0xff]
        %v3151 = vld [vmem:[%s3010 + $0x94] sm:$0xff]
        %v3152 = vld [vmem:[%s3010 + $0x9c] sm:$0xff]
        %v3153 = vld [vmem:[%s3010 + $0xac] sm:$0xff]
        %v3154 = vld [vmem:[%s3010 + $0xb4] sm:$0xff]
        %v3155 = vld [vmem:[%s3010 + $0xc4] sm:$0xff]
        %v3156 = vld [vmem:[%s3010 + $0xcc] sm:$0xff]
        %v3157 = vld [vmem:[%s3010 + $0xdc] sm:$0xff]
        %v3158 = vld [vmem:[%s3010 + $0xe4] sm:$0xff]
        %v3159 = vld [vmem:[%s3010 + $0xf4] sm:$0xff]
        %v3160 = vld [vmem:[%s3010 + $0xfc] sm:$0xff]
        %v3161 = vld [vmem:[%s3010 + $0x10c] sm:$0xff]
        %v3162 = vld [vmem:[%s3010 + $0x114] sm:$0xff]
        %v3163 = vld [vmem:[%s3010 + $0x124] sm:$0xff]
        %v3164 = vld [vmem:[%s3010 + $0x12c] sm:$0xff]
        %v3165 = vld [vmem:[%s3010 + $0x13c] sm:$0xff]
        %v3166 = vld [vmem:[%s3010 + $0x144] sm:$0xff]
        %v3167 = vld [vmem:[%s3010 + $0x154] sm:$0xff]
        %v3168 = vld [vmem:[%s3010 + $0x15c] sm:$0xff]
        %v3169 = vld [vmem:[%s3010 + $0x16c] sm:$0xff]
        %v3170 = vld [vmem:[%s3010 + $0x174] sm:$0xff]
        %v3171 = vld [vmem:[%s2817] sm:$0xff]
        %v3172 = vld [vmem:[%s2817 + $0x8] sm:$0xff]
        %v3173 = vld [vmem:[%s2817 + $0x18] sm:$0xff]
        %v3174 = vld [vmem:[%s2817 + $0x20] sm:$0xff]
        %v3175 = vld [vmem:[%s2817 + $0x30] sm:$0xff]
        %v3176 = vld [vmem:[%s2817 + $0x38] sm:$0xff]
        %v3177 = vld [vmem:[%s2817 + $0x48] sm:$0xff]
        %v3178 = vld [vmem:[%s2817 + $0x50] sm:$0xff]
        %v3179 = vld [vmem:[%s2817 + $0x60] sm:$0xff]
        %v3180 = vld [vmem:[%s2817 + $0x68] sm:$0xff]
        %v3181 = vld [vmem:[%s2817 + $0x78] sm:$0xff]
        %v3182 = vld [vmem:[%s2817 + $0x80] sm:$0xff]
        %v3183 = vld [vmem:[%s2817 + $0x90] sm:$0xff]
        %v3184 = vld [vmem:[%s2817 + $0x98] sm:$0xff]
        %v3185 = vld [vmem:[%s2817 + $0xa8] sm:$0xff]
        %v3186 = vld [vmem:[%s2817 + $0xb0] sm:$0xff]
        %v3187 = vld [vmem:[%s2817 + $0xc0] sm:$0xff]
        %v3188 = vld [vmem:[%s2817 + $0xc8] sm:$0xff]
        %v3189 = vld [vmem:[%s2817 + $0xd8] sm:$0xff]
        %v3190 = vld [vmem:[%s2817 + $0xe0] sm:$0xff]
        %v3191 = vld [vmem:[%s2817 + $0xf0] sm:$0xff]
        %v3192 = vld [vmem:[%s2817 + $0xf8] sm:$0xff]
        %v3193 = vld [vmem:[%s2817 + $0x108] sm:$0xff]
        %v3194 = vld [vmem:[%s2817 + $0x110] sm:$0xff]
        %v3195 = vld [vmem:[%s2817 + $0x120] sm:$0xff]
        %v3196 = vld [vmem:[%s2817 + $0x128] sm:$0xff]
        %v3197 = vld [vmem:[%s2817 + $0x138] sm:$0xff]
        %v3198 = vld [vmem:[%s2817 + $0x140] sm:$0xff]
        %v3199 = vld [vmem:[%s2817 + $0x150] sm:$0xff]
        %v3200 = vld [vmem:[%s2817 + $0x158] sm:$0xff]
        %v3201 = vld [vmem:[%s2817 + $0x168] sm:$0xff]
        %v3202 = vld [vmem:[%s2817 + $0x170] sm:$0xff]
        %v3203 = vld [vmem:[%s2817 + $0x1] sm:$0xff]
        %v3204 = vld [vmem:[%s2817 + $0x9] sm:$0xff]
        %v3205 = vld [vmem:[%s2817 + $0x19] sm:$0xff]
        %v3206 = vld [vmem:[%s2817 + $0x21] sm:$0xff]
        %v3207 = vld [vmem:[%s2817 + $0x31] sm:$0xff]
        %v3208 = vld [vmem:[%s2817 + $0x39] sm:$0xff]
        %v3209 = vld [vmem:[%s2817 + $0x49] sm:$0xff]
        %v3210 = vld [vmem:[%s2817 + $0x51] sm:$0xff]
        %v3211 = vld [vmem:[%s2817 + $0x61] sm:$0xff]
        %v3212 = vld [vmem:[%s2817 + $0x69] sm:$0xff]
        %v3213 = vld [vmem:[%s2817 + $0x79] sm:$0xff]
        %v3214 = vld [vmem:[%s2817 + $0x81] sm:$0xff]
        %v3215 = vld [vmem:[%s2817 + $0x91] sm:$0xff]
        %v3216 = vld [vmem:[%s2817 + $0x99] sm:$0xff]
        %v3217 = vld [vmem:[%s2817 + $0xa9] sm:$0xff]
        %v3218 = vld [vmem:[%s2817 + $0xb1] sm:$0xff]
        %v3219 = vld [vmem:[%s2817 + $0xc1] sm:$0xff]
        %v3220 = vld [vmem:[%s2817 + $0xc9] sm:$0xff]
        %v3221 = vld [vmem:[%s2817 + $0xd9] sm:$0xff]
        %v3222 = vld [vmem:[%s2817 + $0xe1] sm:$0xff]
        %v3223 = vld [vmem:[%s2817 + $0xf1] sm:$0xff]
        %v3224 = vld [vmem:[%s2817 + $0xf9] sm:$0xff]
        %v3225 = vld [vmem:[%s2817 + $0x109] sm:$0xff]
        %v3226 = vld [vmem:[%s2817 + $0x111] sm:$0xff]
        %v3227 = vld [vmem:[%s2817 + $0x121] sm:$0xff]
        %v3228 = vld [vmem:[%s2817 + $0x129] sm:$0xff]
        %v3229 = vld [vmem:[%s2817 + $0x139] sm:$0xff]
        %v3230 = vld [vmem:[%s2817 + $0x141] sm:$0xff]
        %v3231 = vld [vmem:[%s2817 + $0x151] sm:$0xff]
        %v3232 = vld [vmem:[%s2817 + $0x159] sm:$0xff]
        %v3233 = vld [vmem:[%s2817 + $0x169] sm:$0xff]
        %v3234 = vld [vmem:[%s2817 + $0x171] sm:$0xff]
        %v3235 = vld [vmem:[%s2817 + $0x2] sm:$0xff]
        %v3236 = vld [vmem:[%s2817 + $0xa] sm:$0xff]
        %v3237 = vld [vmem:[%s2817 + $0x1a] sm:$0xff]
        %v3238 = vld [vmem:[%s2817 + $0x22] sm:$0xff]
        %v3239 = vld [vmem:[%s2817 + $0x32] sm:$0xff]
        %v3240 = vld [vmem:[%s2817 + $0x3a] sm:$0xff]
        %v3241 = vld [vmem:[%s2817 + $0x4a] sm:$0xff]
        %v3242 = vld [vmem:[%s2817 + $0x52] sm:$0xff]
        %v3243 = vld [vmem:[%s2817 + $0x62] sm:$0xff]
        %v3244 = vld [vmem:[%s2817 + $0x6a] sm:$0xff]
        %v3245 = vld [vmem:[%s2817 + $0x7a] sm:$0xff]
        %v3246 = vld [vmem:[%s2817 + $0x82] sm:$0xff]
        %v3247 = vld [vmem:[%s2817 + $0x92] sm:$0xff]
        %v3248 = vld [vmem:[%s2817 + $0x9a] sm:$0xff]
        %v3249 = vld [vmem:[%s2817 + $0xaa] sm:$0xff]
        %v3250 = vld [vmem:[%s2817 + $0xb2] sm:$0xff]
        %v3251 = vld [vmem:[%s2817 + $0xc2] sm:$0xff]
        %v3252 = vld [vmem:[%s2817 + $0xca] sm:$0xff]
        %v3253 = vld [vmem:[%s2817 + $0xda] sm:$0xff]
        %v3254 = vld [vmem:[%s2817 + $0xe2] sm:$0xff]
        %v3255 = vld [vmem:[%s2817 + $0xf2] sm:$0xff]
        %v3256 = vld [vmem:[%s2817 + $0xfa] sm:$0xff]
        %v3257 = vld [vmem:[%s2817 + $0x10a] sm:$0xff]
        %v3258 = vld [vmem:[%s2817 + $0x112] sm:$0xff]
        %v3259 = vld [vmem:[%s2817 + $0x122] sm:$0xff]
        %v3260 = vld [vmem:[%s2817 + $0x12a] sm:$0xff]
        %v3261 = vld [vmem:[%s2817 + $0x13a] sm:$0xff]
        %v3262 = vld [vmem:[%s2817 + $0x142] sm:$0xff]
        %v3263 = vld [vmem:[%s2817 + $0x152] sm:$0xff]
        %v3264 = vld [vmem:[%s2817 + $0x15a] sm:$0xff]
        %v3265 = vld [vmem:[%s2817 + $0x16a] sm:$0xff]
        %v3266 = vld [vmem:[%s2817 + $0x172] sm:$0xff]
        %v3267 = vld [vmem:[%s2817 + $0x3] sm:$0xff]
        %v3268 = vld [vmem:[%s2817 + $0xb] sm:$0xff]
        %v3269 = vld [vmem:[%s2817 + $0x1b] sm:$0xff]
        %v3270 = vld [vmem:[%s2817 + $0x23] sm:$0xff]
        %v3271 = vld [vmem:[%s2817 + $0x33] sm:$0xff]
        %v3272 = vld [vmem:[%s2817 + $0x3b] sm:$0xff]
        %v3273 = vld [vmem:[%s2817 + $0x4b] sm:$0xff]
        %v3274 = vld [vmem:[%s2817 + $0x53] sm:$0xff]
        %v3275 = vld [vmem:[%s2817 + $0x63] sm:$0xff]
        %v3276 = vld [vmem:[%s2817 + $0x6b] sm:$0xff]
        %v3277 = vld [vmem:[%s2817 + $0x7b] sm:$0xff]
        %v3278 = vld [vmem:[%s2817 + $0x83] sm:$0xff]
        %v3279 = vld [vmem:[%s2817 + $0x93] sm:$0xff]
        %v3280 = vld [vmem:[%s2817 + $0x9b] sm:$0xff]
        %v3281 = vld [vmem:[%s2817 + $0xab] sm:$0xff]
        %v3282 = vld [vmem:[%s2817 + $0xb3] sm:$0xff]
        %v3283 = vld [vmem:[%s2817 + $0xc3] sm:$0xff]
        %v3284 = vld [vmem:[%s2817 + $0xcb] sm:$0xff]
        %v3285 = vld [vmem:[%s2817 + $0xdb] sm:$0xff]
        %v3286 = vld [vmem:[%s2817 + $0xe3] sm:$0xff]
        %v3287 = vld [vmem:[%s2817 + $0xf3] sm:$0xff]
        %v3288 = vld [vmem:[%s2817 + $0xfb] sm:$0xff]
        %v3289 = vld [vmem:[%s2817 + $0x10b] sm:$0xff]
        %v3290 = vld [vmem:[%s2817 + $0x113] sm:$0xff]
        %v3291 = vld [vmem:[%s2817 + $0x123] sm:$0xff]
        %v3292 = vld [vmem:[%s2817 + $0x12b] sm:$0xff]
        %v3293 = vld [vmem:[%s2817 + $0x13b] sm:$0xff]
        %v3294 = vld [vmem:[%s2817 + $0x143] sm:$0xff]
        %v3295 = vld [vmem:[%s2817 + $0x153] sm:$0xff]
        %v3296 = vld [vmem:[%s2817 + $0x15b] sm:$0xff]
        %v3297 = vld [vmem:[%s2817 + $0x16b] sm:$0xff]
        %v3298 = vld [vmem:[%s2817 + $0x173] sm:$0xff]
        %v3299 = vld [vmem:[%s2817 + $0x4] sm:$0xff]
        %v3300 = vld [vmem:[%s2817 + $0xc] sm:$0xff]
        %v3301 = vld [vmem:[%s2817 + $0x1c] sm:$0xff]
        %v3302 = vld [vmem:[%s2817 + $0x24] sm:$0xff]
        %v3303 = vld [vmem:[%s2817 + $0x34] sm:$0xff]
        %v3304 = vld [vmem:[%s2817 + $0x3c] sm:$0xff]
        %v3305 = vld [vmem:[%s2817 + $0x4c] sm:$0xff]
        %v3306 = vld [vmem:[%s2817 + $0x54] sm:$0xff]
        %v3307 = vld [vmem:[%s2817 + $0x64] sm:$0xff]
        %v3308 = vld [vmem:[%s2817 + $0x6c] sm:$0xff]
        %v3309 = vld [vmem:[%s2817 + $0x7c] sm:$0xff]
        %v3310 = vld [vmem:[%s2817 + $0x84] sm:$0xff]
        %v3311 = vld [vmem:[%s2817 + $0x94] sm:$0xff]
        %v3312 = vld [vmem:[%s2817 + $0x9c] sm:$0xff]
        %v3313 = vld [vmem:[%s2817 + $0xac] sm:$0xff]
        %v3314 = vld [vmem:[%s2817 + $0xb4] sm:$0xff]
        %v3315 = vld [vmem:[%s2817 + $0xc4] sm:$0xff]
        %v3316 = vld [vmem:[%s2817 + $0xcc] sm:$0xff]
        %v3317 = vld [vmem:[%s2817 + $0xdc] sm:$0xff]
        %v3318 = vld [vmem:[%s2817 + $0xe4] sm:$0xff]
        %v3319 = vld [vmem:[%s2817 + $0xf4] sm:$0xff]
        %v3320 = vld [vmem:[%s2817 + $0xfc] sm:$0xff]
        %v3321 = vld [vmem:[%s2817 + $0x10c] sm:$0xff]
        %v3322 = vld [vmem:[%s2817 + $0x114] sm:$0xff]
        %v3323 = vld [vmem:[%s2817 + $0x124] sm:$0xff]
        %v3324 = vld [vmem:[%s2817 + $0x12c] sm:$0xff]
        %v3325 = vld [vmem:[%s2817 + $0x13c] sm:$0xff]
        %v3326 = vld [vmem:[%s2817 + $0x144] sm:$0xff]
        %v3327 = vld [vmem:[%s2817 + $0x154] sm:$0xff]
        %v3328 = vld [vmem:[%s2817 + $0x15c] sm:$0xff]
        %v3329 = vld [vmem:[%s2817 + $0x16c] sm:$0xff]
        %v3330 = vld [vmem:[%s2817 + $0x174] sm:$0xff]
        %s3331 = scalar_lea.vmem [#allocation3], 72
        %v3332 = vld [vmem:[%s3331] sm:$0xff]
        %v3333 = vld [vmem:[%s3331 + $0x8] sm:$0xff]
        %v3334 = vld [vmem:[%s3331 + $0x18] sm:$0xff]
        %v3335 = vld [vmem:[%s3331 + $0x20] sm:$0xff]
        %v3336 = vld [vmem:[%s3331 + $0x30] sm:$0xff]
        %v3337 = vld [vmem:[%s3331 + $0x38] sm:$0xff]
        %v3338 = vld [vmem:[%s3331 + $0x48] sm:$0xff]
        %v3339 = vld [vmem:[%s3331 + $0x50] sm:$0xff]
        %v3340 = vld [vmem:[%s3331 + $0x60] sm:$0xff]
        %v3341 = vld [vmem:[%s3331 + $0x68] sm:$0xff]
        %v3342 = vld [vmem:[%s3331 + $0x78] sm:$0xff]
        %v3343 = vld [vmem:[%s3331 + $0x80] sm:$0xff]
        %v3344 = vld [vmem:[%s3331 + $0x90] sm:$0xff]
        %v3345 = vld [vmem:[%s3331 + $0x98] sm:$0xff]
        %v3346 = vld [vmem:[%s3331 + $0xa8] sm:$0xff]
        %v3347 = vld [vmem:[%s3331 + $0xb0] sm:$0xff]
        %v3348 = vld [vmem:[%s3331 + $0xc0] sm:$0xff]
        %v3349 = vld [vmem:[%s3331 + $0xc8] sm:$0xff]
        %v3350 = vld [vmem:[%s3331 + $0xd8] sm:$0xff]
        %v3351 = vld [vmem:[%s3331 + $0xe0] sm:$0xff]
        %v3352 = vld [vmem:[%s3331 + $0xf0] sm:$0xff]
        %v3353 = vld [vmem:[%s3331 + $0xf8] sm:$0xff]
        %v3354 = vld [vmem:[%s3331 + $0x108] sm:$0xff]
        %v3355 = vld [vmem:[%s3331 + $0x110] sm:$0xff]
        %v3356 = vld [vmem:[%s3331 + $0x120] sm:$0xff]
        %v3357 = vld [vmem:[%s3331 + $0x128] sm:$0xff]
        %v3358 = vld [vmem:[%s3331 + $0x138] sm:$0xff]
        %v3359 = vld [vmem:[%s3331 + $0x140] sm:$0xff]
        %v3360 = vld [vmem:[%s3331 + $0x150] sm:$0xff]
        %v3361 = vld [vmem:[%s3331 + $0x158] sm:$0xff]
        %v3362 = vld [vmem:[%s3331 + $0x168] sm:$0xff]
        %v3363 = vld [vmem:[%s3331 + $0x170] sm:$0xff]
        %v3364 = vld [vmem:[%s3331 + $0x1] sm:$0xff]
        %v3365 = vld [vmem:[%s3331 + $0x9] sm:$0xff]
        %v3366 = vld [vmem:[%s3331 + $0x19] sm:$0xff]
        %v3367 = vld [vmem:[%s3331 + $0x21] sm:$0xff]
        %v3368 = vld [vmem:[%s3331 + $0x31] sm:$0xff]
        %v3369 = vld [vmem:[%s3331 + $0x39] sm:$0xff]
        %v3370 = vld [vmem:[%s3331 + $0x49] sm:$0xff]
        %v3371 = vld [vmem:[%s3331 + $0x51] sm:$0xff]
        %v3372 = vld [vmem:[%s3331 + $0x61] sm:$0xff]
        %v3373 = vld [vmem:[%s3331 + $0x69] sm:$0xff]
        %v3374 = vld [vmem:[%s3331 + $0x79] sm:$0xff]
        %v3375 = vld [vmem:[%s3331 + $0x81] sm:$0xff]
        %v3376 = vld [vmem:[%s3331 + $0x91] sm:$0xff]
        %v3377 = vld [vmem:[%s3331 + $0x99] sm:$0xff]
        %v3378 = vld [vmem:[%s3331 + $0xa9] sm:$0xff]
        %v3379 = vld [vmem:[%s3331 + $0xb1] sm:$0xff]
        %v3380 = vld [vmem:[%s3331 + $0xc1] sm:$0xff]
        %v3381 = vld [vmem:[%s3331 + $0xc9] sm:$0xff]
        %v3382 = vld [vmem:[%s3331 + $0xd9] sm:$0xff]
        %v3383 = vld [vmem:[%s3331 + $0xe1] sm:$0xff]
        %v3384 = vld [vmem:[%s3331 + $0xf1] sm:$0xff]
        %v3385 = vld [vmem:[%s3331 + $0xf9] sm:$0xff]
        %v3386 = vld [vmem:[%s3331 + $0x109] sm:$0xff]
        %v3387 = vld [vmem:[%s3331 + $0x111] sm:$0xff]
        %v3388 = vld [vmem:[%s3331 + $0x121] sm:$0xff]
        %v3389 = vld [vmem:[%s3331 + $0x129] sm:$0xff]
        %v3390 = vld [vmem:[%s3331 + $0x139] sm:$0xff]
        %v3391 = vld [vmem:[%s3331 + $0x141] sm:$0xff]
        %v3392 = vld [vmem:[%s3331 + $0x151] sm:$0xff]
        %v3393 = vld [vmem:[%s3331 + $0x159] sm:$0xff]
        %v3394 = vld [vmem:[%s3331 + $0x169] sm:$0xff]
        %v3395 = vld [vmem:[%s3331 + $0x171] sm:$0xff]
        %v3396 = vld [vmem:[%s3331 + $0x2] sm:$0xff]
        %v3397 = vld [vmem:[%s3331 + $0xa] sm:$0xff]
        %v3398 = vld [vmem:[%s3331 + $0x1a] sm:$0xff]
        %v3399 = vld [vmem:[%s3331 + $0x22] sm:$0xff]
        %v3400 = vld [vmem:[%s3331 + $0x32] sm:$0xff]
        %v3401 = vld [vmem:[%s3331 + $0x3a] sm:$0xff]
        %v3402 = vld [vmem:[%s3331 + $0x4a] sm:$0xff]
        %v3403 = vld [vmem:[%s3331 + $0x52] sm:$0xff]
        %v3404 = vld [vmem:[%s3331 + $0x62] sm:$0xff]
        %v3405 = vld [vmem:[%s3331 + $0x6a] sm:$0xff]
        %v3406 = vld [vmem:[%s3331 + $0x7a] sm:$0xff]
        %v3407 = vld [vmem:[%s3331 + $0x82] sm:$0xff]
        %v3408 = vld [vmem:[%s3331 + $0x92] sm:$0xff]
        %v3409 = vld [vmem:[%s3331 + $0x9a] sm:$0xff]
        %v3410 = vld [vmem:[%s3331 + $0xaa] sm:$0xff]
        %v3411 = vld [vmem:[%s3331 + $0xb2] sm:$0xff]
        %v3412 = vld [vmem:[%s3331 + $0xc2] sm:$0xff]
        %v3413 = vld [vmem:[%s3331 + $0xca] sm:$0xff]
        %v3414 = vld [vmem:[%s3331 + $0xda] sm:$0xff]
        %v3415 = vld [vmem:[%s3331 + $0xe2] sm:$0xff]
        %v3416 = vld [vmem:[%s3331 + $0xf2] sm:$0xff]
        %v3417 = vld [vmem:[%s3331 + $0xfa] sm:$0xff]
        %v3418 = vld [vmem:[%s3331 + $0x10a] sm:$0xff]
        %v3419 = vld [vmem:[%s3331 + $0x112] sm:$0xff]
        %v3420 = vld [vmem:[%s3331 + $0x122] sm:$0xff]
        %v3421 = vld [vmem:[%s3331 + $0x12a] sm:$0xff]
        %v3422 = vld [vmem:[%s3331 + $0x13a] sm:$0xff]
        %v3423 = vld [vmem:[%s3331 + $0x142] sm:$0xff]
        %v3424 = vld [vmem:[%s3331 + $0x152] sm:$0xff]
        %v3425 = vld [vmem:[%s3331 + $0x15a] sm:$0xff]
        %v3426 = vld [vmem:[%s3331 + $0x16a] sm:$0xff]
        %v3427 = vld [vmem:[%s3331 + $0x172] sm:$0xff]
        %v3428 = vld [vmem:[%s3331 + $0x3] sm:$0xff]
        %v3429 = vld [vmem:[%s3331 + $0xb] sm:$0xff]
        %v3430 = vld [vmem:[%s3331 + $0x1b] sm:$0xff]
        %v3431 = vld [vmem:[%s3331 + $0x23] sm:$0xff]
        %v3432 = vld [vmem:[%s3331 + $0x33] sm:$0xff]
        %v3433 = vld [vmem:[%s3331 + $0x3b] sm:$0xff]
        %v3434 = vld [vmem:[%s3331 + $0x4b] sm:$0xff]
        %v3435 = vld [vmem:[%s3331 + $0x53] sm:$0xff]
        %v3436 = vld [vmem:[%s3331 + $0x63] sm:$0xff]
        %v3437 = vld [vmem:[%s3331 + $0x6b] sm:$0xff]
        %v3438 = vld [vmem:[%s3331 + $0x7b] sm:$0xff]
        %v3439 = vld [vmem:[%s3331 + $0x83] sm:$0xff]
        %v3440 = vld [vmem:[%s3331 + $0x93] sm:$0xff]
        %v3441 = vld [vmem:[%s3331 + $0x9b] sm:$0xff]
        %v3442 = vld [vmem:[%s3331 + $0xab] sm:$0xff]
        %v3443 = vld [vmem:[%s3331 + $0xb3] sm:$0xff]
        %v3444 = vld [vmem:[%s3331 + $0xc3] sm:$0xff]
        %v3445 = vld [vmem:[%s3331 + $0xcb] sm:$0xff]
        %v3446 = vld [vmem:[%s3331 + $0xdb] sm:$0xff]
        %v3447 = vld [vmem:[%s3331 + $0xe3] sm:$0xff]
        %v3448 = vld [vmem:[%s3331 + $0xf3] sm:$0xff]
        %v3449 = vld [vmem:[%s3331 + $0xfb] sm:$0xff]
        %v3450 = vld [vmem:[%s3331 + $0x10b] sm:$0xff]
        %v3451 = vld [vmem:[%s3331 + $0x113] sm:$0xff]
        %v3452 = vld [vmem:[%s3331 + $0x123] sm:$0xff]
        %v3453 = vld [vmem:[%s3331 + $0x12b] sm:$0xff]
        %v3454 = vld [vmem:[%s3331 + $0x13b] sm:$0xff]
        %v3455 = vld [vmem:[%s3331 + $0x143] sm:$0xff]
        %v3456 = vld [vmem:[%s3331 + $0x153] sm:$0xff]
        %v3457 = vld [vmem:[%s3331 + $0x15b] sm:$0xff]
        %v3458 = vld [vmem:[%s3331 + $0x16b] sm:$0xff]
        %v3459 = vld [vmem:[%s3331 + $0x173] sm:$0xff]
        %v3460 = vld [vmem:[%s3331 + $0x4] sm:$0xff]
        %v3461 = vld [vmem:[%s3331 + $0xc] sm:$0xff]
        %v3462 = vld [vmem:[%s3331 + $0x1c] sm:$0xff]
        %v3463 = vld [vmem:[%s3331 + $0x24] sm:$0xff]
        %v3464 = vld [vmem:[%s3331 + $0x34] sm:$0xff]
        %v3465 = vld [vmem:[%s3331 + $0x3c] sm:$0xff]
        %v3466 = vld [vmem:[%s3331 + $0x4c] sm:$0xff]
        %v3467 = vld [vmem:[%s3331 + $0x54] sm:$0xff]
        %v3468 = vld [vmem:[%s3331 + $0x64] sm:$0xff]
        %v3469 = vld [vmem:[%s3331 + $0x6c] sm:$0xff]
        %v3470 = vld [vmem:[%s3331 + $0x7c] sm:$0xff]
        %v3471 = vld [vmem:[%s3331 + $0x84] sm:$0xff]
        %v3472 = vld [vmem:[%s3331 + $0x94] sm:$0xff]
        %v3473 = vld [vmem:[%s3331 + $0x9c] sm:$0xff]
        %v3474 = vld [vmem:[%s3331 + $0xac] sm:$0xff]
        %v3475 = vld [vmem:[%s3331 + $0xb4] sm:$0xff]
        %v3476 = vld [vmem:[%s3331 + $0xc4] sm:$0xff]
        %v3477 = vld [vmem:[%s3331 + $0xcc] sm:$0xff]
        %v3478 = vld [vmem:[%s3331 + $0xdc] sm:$0xff]
        %v3479 = vld [vmem:[%s3331 + $0xe4] sm:$0xff]
        %v3480 = vld [vmem:[%s3331 + $0xf4] sm:$0xff]
        %v3481 = vld [vmem:[%s3331 + $0xfc] sm:$0xff]
        %v3482 = vld [vmem:[%s3331 + $0x10c] sm:$0xff]
        %v3483 = vld [vmem:[%s3331 + $0x114] sm:$0xff]
        %v3484 = vld [vmem:[%s3331 + $0x124] sm:$0xff]
        %v3485 = vld [vmem:[%s3331 + $0x12c] sm:$0xff]
        %v3486 = vld [vmem:[%s3331 + $0x13c] sm:$0xff]
        %v3487 = vld [vmem:[%s3331 + $0x144] sm:$0xff]
        %v3488 = vld [vmem:[%s3331 + $0x154] sm:$0xff]
        %v3489 = vld [vmem:[%s3331 + $0x15c] sm:$0xff]
        %v3490 = vld [vmem:[%s3331 + $0x16c] sm:$0xff]
        %v3491 = vld [vmem:[%s3331 + $0x174] sm:$0xff]
        %s3492 = scalar_lea.vmem [#allocation3], 96
        %v3493 = vld [vmem:[%s3492] sm:$0xff]
        %v3494 = vld [vmem:[%s3492 + $0x8] sm:$0xff]
        %v3495 = vld [vmem:[%s3492 + $0x18] sm:$0xff]
        %v3496 = vld [vmem:[%s3492 + $0x20] sm:$0xff]
        %v3497 = vld [vmem:[%s3492 + $0x30] sm:$0xff]
        %v3498 = vld [vmem:[%s3492 + $0x38] sm:$0xff]
        %v3499 = vld [vmem:[%s3492 + $0x48] sm:$0xff]
        %v3500 = vld [vmem:[%s3492 + $0x50] sm:$0xff]
        %v3501 = vld [vmem:[%s3492 + $0x60] sm:$0xff]
        %v3502 = vld [vmem:[%s3492 + $0x68] sm:$0xff]
        %v3503 = vld [vmem:[%s3492 + $0x78] sm:$0xff]
        %v3504 = vld [vmem:[%s3492 + $0x80] sm:$0xff]
        %v3505 = vld [vmem:[%s3492 + $0x90] sm:$0xff]
        %v3506 = vld [vmem:[%s3492 + $0x98] sm:$0xff]
        %v3507 = vld [vmem:[%s3492 + $0xa8] sm:$0xff]
        %v3508 = vld [vmem:[%s3492 + $0xb0] sm:$0xff]
        %v3509 = vld [vmem:[%s3492 + $0xc0] sm:$0xff]
        %v3510 = vld [vmem:[%s3492 + $0xc8] sm:$0xff]
        %v3511 = vld [vmem:[%s3492 + $0xd8] sm:$0xff]
        %v3512 = vld [vmem:[%s3492 + $0xe0] sm:$0xff]
        %v3513 = vld [vmem:[%s3492 + $0xf0] sm:$0xff]
        %v3514 = vld [vmem:[%s3492 + $0xf8] sm:$0xff]
        %v3515 = vld [vmem:[%s3492 + $0x108] sm:$0xff]
        %v3516 = vld [vmem:[%s3492 + $0x110] sm:$0xff]
        %v3517 = vld [vmem:[%s3492 + $0x120] sm:$0xff]
        %v3518 = vld [vmem:[%s3492 + $0x128] sm:$0xff]
        %v3519 = vld [vmem:[%s3492 + $0x138] sm:$0xff]
        %v3520 = vld [vmem:[%s3492 + $0x140] sm:$0xff]
        %v3521 = vld [vmem:[%s3492 + $0x150] sm:$0xff]
        %v3522 = vld [vmem:[%s3492 + $0x158] sm:$0xff]
        %v3523 = vld [vmem:[%s3492 + $0x168] sm:$0xff]
        %v3524 = vld [vmem:[%s3492 + $0x170] sm:$0xff]
        %v3525 = vld [vmem:[%s3492 + $0x1] sm:$0xff]
        %v3526 = vld [vmem:[%s3492 + $0x9] sm:$0xff]
        %v3527 = vld [vmem:[%s3492 + $0x19] sm:$0xff]
        %v3528 = vld [vmem:[%s3492 + $0x21] sm:$0xff]
        %v3529 = vld [vmem:[%s3492 + $0x31] sm:$0xff]
        %v3530 = vld [vmem:[%s3492 + $0x39] sm:$0xff]
        %v3531 = vld [vmem:[%s3492 + $0x49] sm:$0xff]
        %v3532 = vld [vmem:[%s3492 + $0x51] sm:$0xff]
        %v3533 = vld [vmem:[%s3492 + $0x61] sm:$0xff]
        %v3534 = vld [vmem:[%s3492 + $0x69] sm:$0xff]
        %v3535 = vld [vmem:[%s3492 + $0x79] sm:$0xff]
        %v3536 = vld [vmem:[%s3492 + $0x81] sm:$0xff]
        %v3537 = vld [vmem:[%s3492 + $0x91] sm:$0xff]
        %v3538 = vld [vmem:[%s3492 + $0x99] sm:$0xff]
        %v3539 = vld [vmem:[%s3492 + $0xa9] sm:$0xff]
        %v3540 = vld [vmem:[%s3492 + $0xb1] sm:$0xff]
        %v3541 = vld [vmem:[%s3492 + $0xc1] sm:$0xff]
        %v3542 = vld [vmem:[%s3492 + $0xc9] sm:$0xff]
        %v3543 = vld [vmem:[%s3492 + $0xd9] sm:$0xff]
        %v3544 = vld [vmem:[%s3492 + $0xe1] sm:$0xff]
        %v3545 = vld [vmem:[%s3492 + $0xf1] sm:$0xff]
        %v3546 = vld [vmem:[%s3492 + $0xf9] sm:$0xff]
        %v3547 = vld [vmem:[%s3492 + $0x109] sm:$0xff]
        %v3548 = vld [vmem:[%s3492 + $0x111] sm:$0xff]
        %v3549 = vld [vmem:[%s3492 + $0x121] sm:$0xff]
        %v3550 = vld [vmem:[%s3492 + $0x129] sm:$0xff]
        %v3551 = vld [vmem:[%s3492 + $0x139] sm:$0xff]
        %v3552 = vld [vmem:[%s3492 + $0x141] sm:$0xff]
        %v3553 = vld [vmem:[%s3492 + $0x151] sm:$0xff]
        %v3554 = vld [vmem:[%s3492 + $0x159] sm:$0xff]
        %v3555 = vld [vmem:[%s3492 + $0x169] sm:$0xff]
        %v3556 = vld [vmem:[%s3492 + $0x171] sm:$0xff]
        %v3557 = vld [vmem:[%s3492 + $0x2] sm:$0xff]
        %v3558 = vld [vmem:[%s3492 + $0xa] sm:$0xff]
        %v3559 = vld [vmem:[%s3492 + $0x1a] sm:$0xff]
        %v3560 = vld [vmem:[%s3492 + $0x22] sm:$0xff]
        %v3561 = vld [vmem:[%s3492 + $0x32] sm:$0xff]
        %v3562 = vld [vmem:[%s3492 + $0x3a] sm:$0xff]
        %v3563 = vld [vmem:[%s3492 + $0x4a] sm:$0xff]
        %v3564 = vld [vmem:[%s3492 + $0x52] sm:$0xff]
        %v3565 = vld [vmem:[%s3492 + $0x62] sm:$0xff]
        %v3566 = vld [vmem:[%s3492 + $0x6a] sm:$0xff]
        %v3567 = vld [vmem:[%s3492 + $0x7a] sm:$0xff]
        %v3568 = vld [vmem:[%s3492 + $0x82] sm:$0xff]
        %v3569 = vld [vmem:[%s3492 + $0x92] sm:$0xff]
        %v3570 = vld [vmem:[%s3492 + $0x9a] sm:$0xff]
        %v3571 = vld [vmem:[%s3492 + $0xaa] sm:$0xff]
        %v3572 = vld [vmem:[%s3492 + $0xb2] sm:$0xff]
        %v3573 = vld [vmem:[%s3492 + $0xc2] sm:$0xff]
        %v3574 = vld [vmem:[%s3492 + $0xca] sm:$0xff]
        %v3575 = vld [vmem:[%s3492 + $0xda] sm:$0xff]
        %v3576 = vld [vmem:[%s3492 + $0xe2] sm:$0xff]
        %v3577 = vld [vmem:[%s3492 + $0xf2] sm:$0xff]
        %v3578 = vld [vmem:[%s3492 + $0xfa] sm:$0xff]
        %v3579 = vld [vmem:[%s3492 + $0x10a] sm:$0xff]
        %v3580 = vld [vmem:[%s3492 + $0x112] sm:$0xff]
        %v3581 = vld [vmem:[%s3492 + $0x122] sm:$0xff]
        %v3582 = vld [vmem:[%s3492 + $0x12a] sm:$0xff]
        %v3583 = vld [vmem:[%s3492 + $0x13a] sm:$0xff]
        %v3584 = vld [vmem:[%s3492 + $0x142] sm:$0xff]
        %v3585 = vld [vmem:[%s3492 + $0x152] sm:$0xff]
        %v3586 = vld [vmem:[%s3492 + $0x15a] sm:$0xff]
        %v3587 = vld [vmem:[%s3492 + $0x16a] sm:$0xff]
        %v3588 = vld [vmem:[%s3492 + $0x172] sm:$0xff]
        %v3589 = vld [vmem:[%s3492 + $0x3] sm:$0xff]
        %v3590 = vld [vmem:[%s3492 + $0xb] sm:$0xff]
        %v3591 = vld [vmem:[%s3492 + $0x1b] sm:$0xff]
        %v3592 = vld [vmem:[%s3492 + $0x23] sm:$0xff]
        %v3593 = vld [vmem:[%s3492 + $0x33] sm:$0xff]
        %v3594 = vld [vmem:[%s3492 + $0x3b] sm:$0xff]
        %v3595 = vld [vmem:[%s3492 + $0x4b] sm:$0xff]
        %v3596 = vld [vmem:[%s3492 + $0x53] sm:$0xff]
        %v3597 = vld [vmem:[%s3492 + $0x63] sm:$0xff]
        %v3598 = vld [vmem:[%s3492 + $0x6b] sm:$0xff]
        %v3599 = vld [vmem:[%s3492 + $0x7b] sm:$0xff]
        %v3600 = vld [vmem:[%s3492 + $0x83] sm:$0xff]
        %v3601 = vld [vmem:[%s3492 + $0x93] sm:$0xff]
        %v3602 = vld [vmem:[%s3492 + $0x9b] sm:$0xff]
        %v3603 = vld [vmem:[%s3492 + $0xab] sm:$0xff]
        %v3604 = vld [vmem:[%s3492 + $0xb3] sm:$0xff]
        %v3605 = vld [vmem:[%s3492 + $0xc3] sm:$0xff]
        %v3606 = vld [vmem:[%s3492 + $0xcb] sm:$0xff]
        %v3607 = vld [vmem:[%s3492 + $0xdb] sm:$0xff]
        %v3608 = vld [vmem:[%s3492 + $0xe3] sm:$0xff]
        %v3609 = vld [vmem:[%s3492 + $0xf3] sm:$0xff]
        %v3610 = vld [vmem:[%s3492 + $0xfb] sm:$0xff]
        %v3611 = vld [vmem:[%s3492 + $0x10b] sm:$0xff]
        %v3612 = vld [vmem:[%s3492 + $0x113] sm:$0xff]
        %v3613 = vld [vmem:[%s3492 + $0x123] sm:$0xff]
        %v3614 = vld [vmem:[%s3492 + $0x12b] sm:$0xff]
        %v3615 = vld [vmem:[%s3492 + $0x13b] sm:$0xff]
        %v3616 = vld [vmem:[%s3492 + $0x143] sm:$0xff]
        %v3617 = vld [vmem:[%s3492 + $0x153] sm:$0xff]
        %v3618 = vld [vmem:[%s3492 + $0x15b] sm:$0xff]
        %v3619 = vld [vmem:[%s3492 + $0x16b] sm:$0xff]
        %v3620 = vld [vmem:[%s3492 + $0x173] sm:$0xff]
        %v3621 = vld [vmem:[%s3492 + $0x4] sm:$0xff]
        %v3622 = vld [vmem:[%s3492 + $0xc] sm:$0xff]
        %v3623 = vld [vmem:[%s3492 + $0x1c] sm:$0xff]
        %v3624 = vld [vmem:[%s3492 + $0x24] sm:$0xff]
        %v3625 = vld [vmem:[%s3492 + $0x34] sm:$0xff]
        %v3626 = vld [vmem:[%s3492 + $0x3c] sm:$0xff]
        %v3627 = vld [vmem:[%s3492 + $0x4c] sm:$0xff]
        %v3628 = vld [vmem:[%s3492 + $0x54] sm:$0xff]
        %v3629 = vld [vmem:[%s3492 + $0x64] sm:$0xff]
        %v3630 = vld [vmem:[%s3492 + $0x6c] sm:$0xff]
        %v3631 = vld [vmem:[%s3492 + $0x7c] sm:$0xff]
        %v3632 = vld [vmem:[%s3492 + $0x84] sm:$0xff]
        %v3633 = vld [vmem:[%s3492 + $0x94] sm:$0xff]
        %v3634 = vld [vmem:[%s3492 + $0x9c] sm:$0xff]
        %v3635 = vld [vmem:[%s3492 + $0xac] sm:$0xff]
        %v3636 = vld [vmem:[%s3492 + $0xb4] sm:$0xff]
        %v3637 = vld [vmem:[%s3492 + $0xc4] sm:$0xff]
        %v3638 = vld [vmem:[%s3492 + $0xcc] sm:$0xff]
        %v3639 = vld [vmem:[%s3492 + $0xdc] sm:$0xff]
        %v3640 = vld [vmem:[%s3492 + $0xe4] sm:$0xff]
        %v3641 = vld [vmem:[%s3492 + $0xf4] sm:$0xff]
        %v3642 = vld [vmem:[%s3492 + $0xfc] sm:$0xff]
        %v3643 = vld [vmem:[%s3492 + $0x10c] sm:$0xff]
        %v3644 = vld [vmem:[%s3492 + $0x114] sm:$0xff]
        %v3645 = vld [vmem:[%s3492 + $0x124] sm:$0xff]
        %v3646 = vld [vmem:[%s3492 + $0x12c] sm:$0xff]
        %v3647 = vld [vmem:[%s3492 + $0x13c] sm:$0xff]
        %v3648 = vld [vmem:[%s3492 + $0x144] sm:$0xff]
        %v3649 = vld [vmem:[%s3492 + $0x154] sm:$0xff]
        %v3650 = vld [vmem:[%s3492 + $0x15c] sm:$0xff]
        %v3651 = vld [vmem:[%s3492 + $0x16c] sm:$0xff]
        %v3652 = vld [vmem:[%s3492 + $0x174] sm:$0xff]
        %3685 = vrot.lane.b32.xlu0 %v2882, 4
        %v3686 = vpop.permute.xlu0 %3685
        %3687 = vrot.lane.b32.xlu0 %v2883, 4
        %v3688 = vpop.permute.xlu0 %3687
        %3689 = vrot.lane.b32.xlu0 %v2884, 4
        %v3690 = vpop.permute.xlu0 %3689
        %3691 = vrot.lane.b32.xlu0 %v2885, 4
        %v3692 = vpop.permute.xlu0 %3691
        %3693 = vrot.lane.b32.xlu0 %v2886, 4
        %v3694 = vpop.permute.xlu0 %3693
        %3695 = vrot.lane.b32.xlu0 %v2887, 4
        %v3696 = vpop.permute.xlu0 %3695
        %3697 = vrot.lane.b32.xlu0 %v2888, 4
        %v3698 = vpop.permute.xlu0 %3697
        %3699 = vrot.lane.b32.xlu0 %v2889, 4
        %v3700 = vpop.permute.xlu0 %3699
        %3701 = vrot.lane.b32.xlu0 %v2890, 4
        %v3702 = vpop.permute.xlu0 %3701
        %3703 = vrot.lane.b32.xlu0 %v2891, 4
        %v3704 = vpop.permute.xlu0 %3703
        %3705 = vrot.lane.b32.xlu0 %v2892, 4
        %v3706 = vpop.permute.xlu0 %3705
        %3707 = vrot.lane.b32.xlu0 %v2893, 4
        %v3708 = vpop.permute.xlu0 %3707
        %3709 = vrot.lane.b32.xlu0 %v2894, 4
        %v3710 = vpop.permute.xlu0 %3709
        %3711 = vrot.lane.b32.xlu0 %v2895, 4
        %v3712 = vpop.permute.xlu0 %3711
        %3713 = vrot.lane.b32.xlu0 %v2896, 4
        %v3714 = vpop.permute.xlu0 %3713
        %3715 = vrot.lane.b32.xlu0 %v2897, 4
        %v3716 = vpop.permute.xlu0 %3715
        %3717 = vrot.lane.b32.xlu0 %v2898, 4
        %v3718 = vpop.permute.xlu0 %3717
        %3719 = vrot.lane.b32.xlu0 %v2899, 4
        %v3720 = vpop.permute.xlu0 %3719
        %3721 = vrot.lane.b32.xlu0 %v2900, 4
        %v3722 = vpop.permute.xlu0 %3721
        %3723 = vrot.lane.b32.xlu0 %v2901, 4
        %v3724 = vpop.permute.xlu0 %3723
        %3725 = vrot.lane.b32.xlu0 %v2902, 4
        %v3726 = vpop.permute.xlu0 %3725
        %3727 = vrot.lane.b32.xlu0 %v2903, 4
        %v3728 = vpop.permute.xlu0 %3727
        %3729 = vrot.lane.b32.xlu0 %v2904, 4
        %v3730 = vpop.permute.xlu0 %3729
        %3731 = vrot.lane.b32.xlu0 %v2905, 4
        %v3732 = vpop.permute.xlu0 %3731
        %3733 = vrot.lane.b32.xlu0 %v2906, 4
        %v3734 = vpop.permute.xlu0 %3733
        %3735 = vrot.lane.b32.xlu0 %v2907, 4
        %v3736 = vpop.permute.xlu0 %3735
        %3737 = vrot.lane.b32.xlu0 %v2908, 4
        %v3738 = vpop.permute.xlu0 %3737
        %3739 = vrot.lane.b32.xlu0 %v2909, 4
        %v3740 = vpop.permute.xlu0 %3739
        %3741 = vrot.lane.b32.xlu0 %v2910, 4
        %v3742 = vpop.permute.xlu0 %3741
        %3743 = vrot.lane.b32.xlu0 %v2911, 4
        %v3744 = vpop.permute.xlu0 %3743
        %3745 = vrot.lane.b32.xlu0 %v2912, 4
        %v3746 = vpop.permute.xlu0 %3745
        %3747 = vrot.lane.b32.xlu0 %v2913, 4
        %v3748 = vpop.permute.xlu0 %3747
        %3813 = vrot.lane.b32.xlu0 %v2914, 8
        %v3814 = vpop.permute.xlu0 %3813
        %3815 = vrot.lane.b32.xlu0 %v2915, 8
        %v3816 = vpop.permute.xlu0 %3815
        %3817 = vrot.lane.b32.xlu0 %v2916, 8
        %v3818 = vpop.permute.xlu0 %3817
        %3819 = vrot.lane.b32.xlu0 %v2917, 8
        %v3820 = vpop.permute.xlu0 %3819
        %3821 = vrot.lane.b32.xlu0 %v2918, 8
        %v3822 = vpop.permute.xlu0 %3821
        %3823 = vrot.lane.b32.xlu0 %v2919, 8
        %v3824 = vpop.permute.xlu0 %3823
        %3825 = vrot.lane.b32.xlu0 %v2920, 8
        %v3826 = vpop.permute.xlu0 %3825
        %3827 = vrot.lane.b32.xlu0 %v2921, 8
        %v3828 = vpop.permute.xlu0 %3827
        %3829 = vrot.lane.b32.xlu0 %v2922, 8
        %v3830 = vpop.permute.xlu0 %3829
        %3831 = vrot.lane.b32.xlu0 %v2923, 8
        %v3832 = vpop.permute.xlu0 %3831
        %3833 = vrot.lane.b32.xlu0 %v2924, 8
        %v3834 = vpop.permute.xlu0 %3833
        %3835 = vrot.lane.b32.xlu0 %v2925, 8
        %v3836 = vpop.permute.xlu0 %3835
        %3837 = vrot.lane.b32.xlu0 %v2926, 8
        %v3838 = vpop.permute.xlu0 %3837
        %3839 = vrot.lane.b32.xlu0 %v2927, 8
        %v3840 = vpop.permute.xlu0 %3839
        %3841 = vrot.lane.b32.xlu0 %v2928, 8
        %v3842 = vpop.permute.xlu0 %3841
        %3843 = vrot.lane.b32.xlu0 %v2929, 8
        %v3844 = vpop.permute.xlu0 %3843
        %3845 = vrot.lane.b32.xlu0 %v2930, 8
        %v3846 = vpop.permute.xlu0 %3845
        %3847 = vrot.lane.b32.xlu0 %v2931, 8
        %v3848 = vpop.permute.xlu0 %3847
        %3849 = vrot.lane.b32.xlu0 %v2932, 8
        %v3850 = vpop.permute.xlu0 %3849
        %3851 = vrot.lane.b32.xlu0 %v2933, 8
        %v3852 = vpop.permute.xlu0 %3851
        %3853 = vrot.lane.b32.xlu0 %v2934, 8
        %v3854 = vpop.permute.xlu0 %3853
        %3855 = vrot.lane.b32.xlu0 %v2935, 8
        %v3856 = vpop.permute.xlu0 %3855
        %3857 = vrot.lane.b32.xlu0 %v2936, 8
        %v3858 = vpop.permute.xlu0 %3857
        %3859 = vrot.lane.b32.xlu0 %v2937, 8
        %v3860 = vpop.permute.xlu0 %3859
        %3861 = vrot.lane.b32.xlu0 %v2938, 8
        %v3862 = vpop.permute.xlu0 %3861
        %3863 = vrot.lane.b32.xlu0 %v2939, 8
        %v3864 = vpop.permute.xlu0 %3863
        %3865 = vrot.lane.b32.xlu0 %v2940, 8
        %v3866 = vpop.permute.xlu0 %3865
        %3867 = vrot.lane.b32.xlu0 %v2941, 8
        %v3868 = vpop.permute.xlu0 %3867
        %3869 = vrot.lane.b32.xlu0 %v2942, 8
        %v3870 = vpop.permute.xlu0 %3869
        %3871 = vrot.lane.b32.xlu0 %v2943, 8
        %v3872 = vpop.permute.xlu0 %3871
        %3873 = vrot.lane.b32.xlu0 %v2944, 8
        %v3874 = vpop.permute.xlu0 %3873
        %3875 = vrot.lane.b32.xlu0 %v2945, 8
        %v3876 = vpop.permute.xlu0 %3875
        %3941 = vrot.lane.b32.xlu0 %v2946, 12
        %v3942 = vpop.permute.xlu0 %3941
        %3943 = vrot.lane.b32.xlu0 %v2947, 12
        %v3944 = vpop.permute.xlu0 %3943
        %3945 = vrot.lane.b32.xlu0 %v2948, 12
        %v3946 = vpop.permute.xlu0 %3945
        %3947 = vrot.lane.b32.xlu0 %v2949, 12
        %v3948 = vpop.permute.xlu0 %3947
        %3949 = vrot.lane.b32.xlu0 %v2950, 12
        %v3950 = vpop.permute.xlu0 %3949
        %3951 = vrot.lane.b32.xlu0 %v2951, 12
        %v3952 = vpop.permute.xlu0 %3951
        %3953 = vrot.lane.b32.xlu0 %v2952, 12
        %v3954 = vpop.permute.xlu0 %3953
        %3955 = vrot.lane.b32.xlu0 %v2953, 12
        %v3956 = vpop.permute.xlu0 %3955
        %3957 = vrot.lane.b32.xlu0 %v2954, 12
        %v3958 = vpop.permute.xlu0 %3957
        %3959 = vrot.lane.b32.xlu0 %v2955, 12
        %v3960 = vpop.permute.xlu0 %3959
        %3961 = vrot.lane.b32.xlu0 %v2956, 12
        %v3962 = vpop.permute.xlu0 %3961
        %3963 = vrot.lane.b32.xlu0 %v2957, 12
        %v3964 = vpop.permute.xlu0 %3963
        %3965 = vrot.lane.b32.xlu0 %v2958, 12
        %v3966 = vpop.permute.xlu0 %3965
        %3967 = vrot.lane.b32.xlu0 %v2959, 12
        %v3968 = vpop.permute.xlu0 %3967
        %3969 = vrot.lane.b32.xlu0 %v2960, 12
        %v3970 = vpop.permute.xlu0 %3969
        %3971 = vrot.lane.b32.xlu0 %v2961, 12
        %v3972 = vpop.permute.xlu0 %3971
        %3973 = vrot.lane.b32.xlu0 %v2962, 12
        %v3974 = vpop.permute.xlu0 %3973
        %3975 = vrot.lane.b32.xlu0 %v2963, 12
        %v3976 = vpop.permute.xlu0 %3975
        %3977 = vrot.lane.b32.xlu0 %v2964, 12
        %v3978 = vpop.permute.xlu0 %3977
        %3979 = vrot.lane.b32.xlu0 %v2965, 12
        %v3980 = vpop.permute.xlu0 %3979
        %3981 = vrot.lane.b32.xlu0 %v2966, 12
        %v3982 = vpop.permute.xlu0 %3981
        %3983 = vrot.lane.b32.xlu0 %v2967, 12
        %v3984 = vpop.permute.xlu0 %3983
        %3985 = vrot.lane.b32.xlu0 %v2968, 12
        %v3986 = vpop.permute.xlu0 %3985
        %3987 = vrot.lane.b32.xlu0 %v2969, 12
        %v3988 = vpop.permute.xlu0 %3987
        %3989 = vrot.lane.b32.xlu0 %v2970, 12
        %v3990 = vpop.permute.xlu0 %3989
        %3991 = vrot.lane.b32.xlu0 %v2971, 12
        %v3992 = vpop.permute.xlu0 %3991
        %3993 = vrot.lane.b32.xlu0 %v2972, 12
        %v3994 = vpop.permute.xlu0 %3993
        %3995 = vrot.lane.b32.xlu0 %v2973, 12
        %v3996 = vpop.permute.xlu0 %3995
        %3997 = vrot.lane.b32.xlu0 %v2974, 12
        %v3998 = vpop.permute.xlu0 %3997
        %3999 = vrot.lane.b32.xlu0 %v2975, 12
        %v4000 = vpop.permute.xlu0 %3999
        %4001 = vrot.lane.b32.xlu0 %v2976, 12
        %v4002 = vpop.permute.xlu0 %4001
        %4003 = vrot.lane.b32.xlu0 %v2977, 12
        %v4004 = vpop.permute.xlu0 %4003
        %4069 = vrot.lane.b32.xlu0 %v2978, 16
        %v4070 = vpop.permute.xlu0 %4069
        %4071 = vrot.lane.b32.xlu0 %v2979, 16
        %v4072 = vpop.permute.xlu0 %4071
        %4073 = vrot.lane.b32.xlu0 %v2980, 16
        %v4074 = vpop.permute.xlu0 %4073
        %4075 = vrot.lane.b32.xlu0 %v2981, 16
        %v4076 = vpop.permute.xlu0 %4075
        %4077 = vrot.lane.b32.xlu0 %v2982, 16
        %v4078 = vpop.permute.xlu0 %4077
        %4079 = vrot.lane.b32.xlu0 %v2983, 16
        %v4080 = vpop.permute.xlu0 %4079
        %4081 = vrot.lane.b32.xlu0 %v2984, 16
        %v4082 = vpop.permute.xlu0 %4081
        %4083 = vrot.lane.b32.xlu0 %v2985, 16
        %v4084 = vpop.permute.xlu0 %4083
        %4085 = vrot.lane.b32.xlu0 %v2986, 16
        %v4086 = vpop.permute.xlu0 %4085
        %4087 = vrot.lane.b32.xlu0 %v2987, 16
        %v4088 = vpop.permute.xlu0 %4087
        %4089 = vrot.lane.b32.xlu0 %v2988, 16
        %v4090 = vpop.permute.xlu0 %4089
        %4091 = vrot.lane.b32.xlu0 %v2989, 16
        %v4092 = vpop.permute.xlu0 %4091
        %4093 = vrot.lane.b32.xlu0 %v2990, 16
        %v4094 = vpop.permute.xlu0 %4093
        %4095 = vrot.lane.b32.xlu0 %v2991, 16
        %v4096 = vpop.permute.xlu0 %4095
        %4097 = vrot.lane.b32.xlu0 %v2992, 16
        %v4098 = vpop.permute.xlu0 %4097
        %4099 = vrot.lane.b32.xlu0 %v2993, 16
        %v4100 = vpop.permute.xlu0 %4099
        %4101 = vrot.lane.b32.xlu0 %v2994, 16
        %v4102 = vpop.permute.xlu0 %4101
        %4103 = vrot.lane.b32.xlu0 %v2995, 16
        %v4104 = vpop.permute.xlu0 %4103
        %4105 = vrot.lane.b32.xlu0 %v2996, 16
        %v4106 = vpop.permute.xlu0 %4105
        %4107 = vrot.lane.b32.xlu0 %v2997, 16
        %v4108 = vpop.permute.xlu0 %4107
        %4109 = vrot.lane.b32.xlu0 %v2998, 16
        %v4110 = vpop.permute.xlu0 %4109
        %4111 = vrot.lane.b32.xlu0 %v2999, 16
        %v4112 = vpop.permute.xlu0 %4111
        %4113 = vrot.lane.b32.xlu0 %v3000, 16
        %v4114 = vpop.permute.xlu0 %4113
        %4115 = vrot.lane.b32.xlu0 %v3001, 16
        %v4116 = vpop.permute.xlu0 %4115
        %4117 = vrot.lane.b32.xlu0 %v3002, 16
        %v4118 = vpop.permute.xlu0 %4117
        %4119 = vrot.lane.b32.xlu0 %v3003, 16
        %v4120 = vpop.permute.xlu0 %4119
        %4121 = vrot.lane.b32.xlu0 %v3004, 16
        %v4122 = vpop.permute.xlu0 %4121
        %4123 = vrot.lane.b32.xlu0 %v3005, 16
        %v4124 = vpop.permute.xlu0 %4123
        %4125 = vrot.lane.b32.xlu0 %v3006, 16
        %v4126 = vpop.permute.xlu0 %4125
        %4127 = vrot.lane.b32.xlu0 %v3007, 16
        %v4128 = vpop.permute.xlu0 %4127
        %4129 = vrot.lane.b32.xlu0 %v3008, 16
        %v4130 = vpop.permute.xlu0 %4129
        %4131 = vrot.lane.b32.xlu0 %v3009, 16
        %v4132 = vpop.permute.xlu0 %4131
        %4197 = vrot.lane.b32.xlu0 %v3011, 20
        %v4198 = vpop.permute.xlu0 %4197
        %4199 = vrot.lane.b32.xlu0 %v3012, 20
        %v4200 = vpop.permute.xlu0 %4199
        %4201 = vrot.lane.b32.xlu0 %v3013, 20
        %v4202 = vpop.permute.xlu0 %4201
        %4203 = vrot.lane.b32.xlu0 %v3014, 20
        %v4204 = vpop.permute.xlu0 %4203
        %4205 = vrot.lane.b32.xlu0 %v3015, 20
        %v4206 = vpop.permute.xlu0 %4205
        %4207 = vrot.lane.b32.xlu0 %v3016, 20
        %v4208 = vpop.permute.xlu0 %4207
        %4209 = vrot.lane.b32.xlu0 %v3017, 20
        %v4210 = vpop.permute.xlu0 %4209
        %4211 = vrot.lane.b32.xlu0 %v3018, 20
        %v4212 = vpop.permute.xlu0 %4211
        %4213 = vrot.lane.b32.xlu0 %v3019, 20
        %v4214 = vpop.permute.xlu0 %4213
        %4215 = vrot.lane.b32.xlu0 %v3020, 20
        %v4216 = vpop.permute.xlu0 %4215
        %4217 = vrot.lane.b32.xlu0 %v3021, 20
        %v4218 = vpop.permute.xlu0 %4217
        %4219 = vrot.lane.b32.xlu0 %v3022, 20
        %v4220 = vpop.permute.xlu0 %4219
        %4221 = vrot.lane.b32.xlu0 %v3023, 20
        %v4222 = vpop.permute.xlu0 %4221
        %4223 = vrot.lane.b32.xlu0 %v3024, 20
        %v4224 = vpop.permute.xlu0 %4223
        %4225 = vrot.lane.b32.xlu0 %v3025, 20
        %v4226 = vpop.permute.xlu0 %4225
        %4227 = vrot.lane.b32.xlu0 %v3026, 20
        %v4228 = vpop.permute.xlu0 %4227
        %4229 = vrot.lane.b32.xlu0 %v3027, 20
        %v4230 = vpop.permute.xlu0 %4229
        %4231 = vrot.lane.b32.xlu0 %v3028, 20
        %v4232 = vpop.permute.xlu0 %4231
        %4233 = vrot.lane.b32.xlu0 %v3029, 20
        %v4234 = vpop.permute.xlu0 %4233
        %4235 = vrot.lane.b32.xlu0 %v3030, 20
        %v4236 = vpop.permute.xlu0 %4235
        %4237 = vrot.lane.b32.xlu0 %v3031, 20
        %v4238 = vpop.permute.xlu0 %4237
        %4239 = vrot.lane.b32.xlu0 %v3032, 20
        %v4240 = vpop.permute.xlu0 %4239
        %4241 = vrot.lane.b32.xlu0 %v3033, 20
        %v4242 = vpop.permute.xlu0 %4241
        %4243 = vrot.lane.b32.xlu0 %v3034, 20
        %v4244 = vpop.permute.xlu0 %4243
        %4245 = vrot.lane.b32.xlu0 %v3035, 20
        %v4246 = vpop.permute.xlu0 %4245
        %4247 = vrot.lane.b32.xlu0 %v3036, 20
        %v4248 = vpop.permute.xlu0 %4247
        %4249 = vrot.lane.b32.xlu0 %v3037, 20
        %v4250 = vpop.permute.xlu0 %4249
        %4251 = vrot.lane.b32.xlu0 %v3038, 20
        %v4252 = vpop.permute.xlu0 %4251
        %4253 = vrot.lane.b32.xlu0 %v3039, 20
        %v4254 = vpop.permute.xlu0 %4253
        %4255 = vrot.lane.b32.xlu0 %v3040, 20
        %v4256 = vpop.permute.xlu0 %4255
        %4257 = vrot.lane.b32.xlu0 %v3041, 20
        %v4258 = vpop.permute.xlu0 %4257
        %4259 = vrot.lane.b32.xlu0 %v3042, 20
        %v4260 = vpop.permute.xlu0 %4259
        %4325 = vrot.lane.b32.xlu0 %v3043, 24
        %v4326 = vpop.permute.xlu0 %4325
        %4327 = vrot.lane.b32.xlu0 %v3044, 24
        %v4328 = vpop.permute.xlu0 %4327
        %4329 = vrot.lane.b32.xlu0 %v3045, 24
        %v4330 = vpop.permute.xlu0 %4329
        %4331 = vrot.lane.b32.xlu0 %v3046, 24
        %v4332 = vpop.permute.xlu0 %4331
        %4333 = vrot.lane.b32.xlu0 %v3047, 24
        %v4334 = vpop.permute.xlu0 %4333
        %4335 = vrot.lane.b32.xlu0 %v3048, 24
        %v4336 = vpop.permute.xlu0 %4335
        %4337 = vrot.lane.b32.xlu0 %v3049, 24
        %v4338 = vpop.permute.xlu0 %4337
        %4339 = vrot.lane.b32.xlu0 %v3050, 24
        %v4340 = vpop.permute.xlu0 %4339
        %4341 = vrot.lane.b32.xlu0 %v3051, 24
        %v4342 = vpop.permute.xlu0 %4341
        %4343 = vrot.lane.b32.xlu0 %v3052, 24
        %v4344 = vpop.permute.xlu0 %4343
        %4345 = vrot.lane.b32.xlu0 %v3053, 24
        %v4346 = vpop.permute.xlu0 %4345
        %4347 = vrot.lane.b32.xlu0 %v3054, 24
        %v4348 = vpop.permute.xlu0 %4347
        %4349 = vrot.lane.b32.xlu0 %v3055, 24
        %v4350 = vpop.permute.xlu0 %4349
        %4351 = vrot.lane.b32.xlu0 %v3056, 24
        %v4352 = vpop.permute.xlu0 %4351
        %4353 = vrot.lane.b32.xlu0 %v3057, 24
        %v4354 = vpop.permute.xlu0 %4353
        %4355 = vrot.lane.b32.xlu0 %v3058, 24
        %v4356 = vpop.permute.xlu0 %4355
        %4357 = vrot.lane.b32.xlu0 %v3059, 24
        %v4358 = vpop.permute.xlu0 %4357
        %4359 = vrot.lane.b32.xlu0 %v3060, 24
        %v4360 = vpop.permute.xlu0 %4359
        %4361 = vrot.lane.b32.xlu0 %v3061, 24
        %v4362 = vpop.permute.xlu0 %4361
        %4363 = vrot.lane.b32.xlu0 %v3062, 24
        %v4364 = vpop.permute.xlu0 %4363
        %4365 = vrot.lane.b32.xlu0 %v3063, 24
        %v4366 = vpop.permute.xlu0 %4365
        %4367 = vrot.lane.b32.xlu0 %v3064, 24
        %v4368 = vpop.permute.xlu0 %4367
        %4369 = vrot.lane.b32.xlu0 %v3065, 24
        %v4370 = vpop.permute.xlu0 %4369
        %4371 = vrot.lane.b32.xlu0 %v3066, 24
        %v4372 = vpop.permute.xlu0 %4371
        %4373 = vrot.lane.b32.xlu0 %v3067, 24
        %v4374 = vpop.permute.xlu0 %4373
        %4375 = vrot.lane.b32.xlu0 %v3068, 24
        %v4376 = vpop.permute.xlu0 %4375
        %4377 = vrot.lane.b32.xlu0 %v3069, 24
        %v4378 = vpop.permute.xlu0 %4377
        %4379 = vrot.lane.b32.xlu0 %v3070, 24
        %v4380 = vpop.permute.xlu0 %4379
        %4381 = vrot.lane.b32.xlu0 %v3071, 24
        %v4382 = vpop.permute.xlu0 %4381
        %4383 = vrot.lane.b32.xlu0 %v3072, 24
        %v4384 = vpop.permute.xlu0 %4383
        %4385 = vrot.lane.b32.xlu0 %v3073, 24
        %v4386 = vpop.permute.xlu0 %4385
        %4387 = vrot.lane.b32.xlu0 %v3074, 24
        %v4388 = vpop.permute.xlu0 %4387
        %4453 = vrot.lane.b32.xlu0 %v3075, 28
        %v4454 = vpop.permute.xlu0 %4453
        %4455 = vrot.lane.b32.xlu0 %v3076, 28
        %v4456 = vpop.permute.xlu0 %4455
        %4457 = vrot.lane.b32.xlu0 %v3077, 28
        %v4458 = vpop.permute.xlu0 %4457
        %4459 = vrot.lane.b32.xlu0 %v3078, 28
        %v4460 = vpop.permute.xlu0 %4459
        %4461 = vrot.lane.b32.xlu0 %v3079, 28
        %v4462 = vpop.permute.xlu0 %4461
        %4463 = vrot.lane.b32.xlu0 %v3080, 28
        %v4464 = vpop.permute.xlu0 %4463
        %4465 = vrot.lane.b32.xlu0 %v3081, 28
        %v4466 = vpop.permute.xlu0 %4465
        %4467 = vrot.lane.b32.xlu0 %v3082, 28
        %v4468 = vpop.permute.xlu0 %4467
        %4469 = vrot.lane.b32.xlu0 %v3083, 28
        %v4470 = vpop.permute.xlu0 %4469
        %4471 = vrot.lane.b32.xlu0 %v3084, 28
        %v4472 = vpop.permute.xlu0 %4471
        %4473 = vrot.lane.b32.xlu0 %v3085, 28
        %v4474 = vpop.permute.xlu0 %4473
        %4475 = vrot.lane.b32.xlu0 %v3086, 28
        %v4476 = vpop.permute.xlu0 %4475
        %4477 = vrot.lane.b32.xlu0 %v3087, 28
        %v4478 = vpop.permute.xlu0 %4477
        %4479 = vrot.lane.b32.xlu0 %v3088, 28
        %v4480 = vpop.permute.xlu0 %4479
        %4481 = vrot.lane.b32.xlu0 %v3089, 28
        %v4482 = vpop.permute.xlu0 %4481
        %4483 = vrot.lane.b32.xlu0 %v3090, 28
        %v4484 = vpop.permute.xlu0 %4483
        %4485 = vrot.lane.b32.xlu0 %v3091, 28
        %v4486 = vpop.permute.xlu0 %4485
        %4487 = vrot.lane.b32.xlu0 %v3092, 28
        %v4488 = vpop.permute.xlu0 %4487
        %4489 = vrot.lane.b32.xlu0 %v3093, 28
        %v4490 = vpop.permute.xlu0 %4489
        %4491 = vrot.lane.b32.xlu0 %v3094, 28
        %v4492 = vpop.permute.xlu0 %4491
        %4493 = vrot.lane.b32.xlu0 %v3095, 28
        %v4494 = vpop.permute.xlu0 %4493
        %4495 = vrot.lane.b32.xlu0 %v3096, 28
        %v4496 = vpop.permute.xlu0 %4495
        %4497 = vrot.lane.b32.xlu0 %v3097, 28
        %v4498 = vpop.permute.xlu0 %4497
        %4499 = vrot.lane.b32.xlu0 %v3098, 28
        %v4500 = vpop.permute.xlu0 %4499
        %4501 = vrot.lane.b32.xlu0 %v3099, 28
        %v4502 = vpop.permute.xlu0 %4501
        %4503 = vrot.lane.b32.xlu0 %v3100, 28
        %v4504 = vpop.permute.xlu0 %4503
        %4505 = vrot.lane.b32.xlu0 %v3101, 28
        %v4506 = vpop.permute.xlu0 %4505
        %4507 = vrot.lane.b32.xlu0 %v3102, 28
        %v4508 = vpop.permute.xlu0 %4507
        %4509 = vrot.lane.b32.xlu0 %v3103, 28
        %v4510 = vpop.permute.xlu0 %4509
        %4511 = vrot.lane.b32.xlu0 %v3104, 28
        %v4512 = vpop.permute.xlu0 %4511
        %4513 = vrot.lane.b32.xlu0 %v3105, 28
        %v4514 = vpop.permute.xlu0 %4513
        %4515 = vrot.lane.b32.xlu0 %v3106, 28
        %v4516 = vpop.permute.xlu0 %4515
        %4581 = vrot.lane.b32.xlu0 %v3107, 32
        %v4582 = vpop.permute.xlu0 %4581
        %4583 = vrot.lane.b32.xlu0 %v3108, 32
        %v4584 = vpop.permute.xlu0 %4583
        %4585 = vrot.lane.b32.xlu0 %v3109, 32
        %v4586 = vpop.permute.xlu0 %4585
        %4587 = vrot.lane.b32.xlu0 %v3110, 32
        %v4588 = vpop.permute.xlu0 %4587
        %4589 = vrot.lane.b32.xlu0 %v3111, 32
        %v4590 = vpop.permute.xlu0 %4589
        %4591 = vrot.lane.b32.xlu0 %v3112, 32
        %v4592 = vpop.permute.xlu0 %4591
        %4593 = vrot.lane.b32.xlu0 %v3113, 32
        %v4594 = vpop.permute.xlu0 %4593
        %4595 = vrot.lane.b32.xlu0 %v3114, 32
        %v4596 = vpop.permute.xlu0 %4595
        %4597 = vrot.lane.b32.xlu0 %v3115, 32
        %v4598 = vpop.permute.xlu0 %4597
        %4599 = vrot.lane.b32.xlu0 %v3116, 32
        %v4600 = vpop.permute.xlu0 %4599
        %4601 = vrot.lane.b32.xlu0 %v3117, 32
        %v4602 = vpop.permute.xlu0 %4601
        %4603 = vrot.lane.b32.xlu0 %v3118, 32
        %v4604 = vpop.permute.xlu0 %4603
        %4605 = vrot.lane.b32.xlu0 %v3119, 32
        %v4606 = vpop.permute.xlu0 %4605
        %4607 = vrot.lane.b32.xlu0 %v3120, 32
        %v4608 = vpop.permute.xlu0 %4607
        %4609 = vrot.lane.b32.xlu0 %v3121, 32
        %v4610 = vpop.permute.xlu0 %4609
        %4611 = vrot.lane.b32.xlu0 %v3122, 32
        %v4612 = vpop.permute.xlu0 %4611
        %4613 = vrot.lane.b32.xlu0 %v3123, 32
        %v4614 = vpop.permute.xlu0 %4613
        %4615 = vrot.lane.b32.xlu0 %v3124, 32
        %v4616 = vpop.permute.xlu0 %4615
        %4617 = vrot.lane.b32.xlu0 %v3125, 32
        %v4618 = vpop.permute.xlu0 %4617
        %4619 = vrot.lane.b32.xlu0 %v3126, 32
        %v4620 = vpop.permute.xlu0 %4619
        %4621 = vrot.lane.b32.xlu0 %v3127, 32
        %v4622 = vpop.permute.xlu0 %4621
        %4623 = vrot.lane.b32.xlu0 %v3128, 32
        %v4624 = vpop.permute.xlu0 %4623
        %4625 = vrot.lane.b32.xlu0 %v3129, 32
        %v4626 = vpop.permute.xlu0 %4625
        %4627 = vrot.lane.b32.xlu0 %v3130, 32
        %v4628 = vpop.permute.xlu0 %4627
        %4629 = vrot.lane.b32.xlu0 %v3131, 32
        %v4630 = vpop.permute.xlu0 %4629
        %4631 = vrot.lane.b32.xlu0 %v3132, 32
        %v4632 = vpop.permute.xlu0 %4631
        %4633 = vrot.lane.b32.xlu0 %v3133, 32
        %v4634 = vpop.permute.xlu0 %4633
        %4635 = vrot.lane.b32.xlu0 %v3134, 32
        %v4636 = vpop.permute.xlu0 %4635
        %4637 = vrot.lane.b32.xlu0 %v3135, 32
        %v4638 = vpop.permute.xlu0 %4637
        %4639 = vrot.lane.b32.xlu0 %v3136, 32
        %v4640 = vpop.permute.xlu0 %4639
        %4641 = vrot.lane.b32.xlu0 %v3137, 32
        %v4642 = vpop.permute.xlu0 %4641
        %4643 = vrot.lane.b32.xlu0 %v3138, 32
        %v4644 = vpop.permute.xlu0 %4643
        %4709 = vrot.lane.b32.xlu0 %v3139, 36
        %v4710 = vpop.permute.xlu0 %4709
        %4711 = vrot.lane.b32.xlu0 %v3140, 36
        %v4712 = vpop.permute.xlu0 %4711
        %4713 = vrot.lane.b32.xlu0 %v3141, 36
        %v4714 = vpop.permute.xlu0 %4713
        %4715 = vrot.lane.b32.xlu0 %v3142, 36
        %v4716 = vpop.permute.xlu0 %4715
        %4717 = vrot.lane.b32.xlu0 %v3143, 36
        %v4718 = vpop.permute.xlu0 %4717
        %4719 = vrot.lane.b32.xlu0 %v3144, 36
        %v4720 = vpop.permute.xlu0 %4719
        %4721 = vrot.lane.b32.xlu0 %v3145, 36
        %v4722 = vpop.permute.xlu0 %4721
        %4723 = vrot.lane.b32.xlu0 %v3146, 36
        %v4724 = vpop.permute.xlu0 %4723
        %4725 = vrot.lane.b32.xlu0 %v3147, 36
        %v4726 = vpop.permute.xlu0 %4725
        %4727 = vrot.lane.b32.xlu0 %v3148, 36
        %v4728 = vpop.permute.xlu0 %4727
        %4729 = vrot.lane.b32.xlu0 %v3149, 36
        %v4730 = vpop.permute.xlu0 %4729
        %4731 = vrot.lane.b32.xlu0 %v3150, 36
        %v4732 = vpop.permute.xlu0 %4731
        %4733 = vrot.lane.b32.xlu0 %v3151, 36
        %v4734 = vpop.permute.xlu0 %4733
        %4735 = vrot.lane.b32.xlu0 %v3152, 36
        %v4736 = vpop.permute.xlu0 %4735
        %4737 = vrot.lane.b32.xlu0 %v3153, 36
        %v4738 = vpop.permute.xlu0 %4737
        %4739 = vrot.lane.b32.xlu0 %v3154, 36
        %v4740 = vpop.permute.xlu0 %4739
        %4741 = vrot.lane.b32.xlu0 %v3155, 36
        %v4742 = vpop.permute.xlu0 %4741
        %4743 = vrot.lane.b32.xlu0 %v3156, 36
        %v4744 = vpop.permute.xlu0 %4743
        %4745 = vrot.lane.b32.xlu0 %v3157, 36
        %v4746 = vpop.permute.xlu0 %4745
        %4747 = vrot.lane.b32.xlu0 %v3158, 36
        %v4748 = vpop.permute.xlu0 %4747
        %4749 = vrot.lane.b32.xlu0 %v3159, 36
        %v4750 = vpop.permute.xlu0 %4749
        %4751 = vrot.lane.b32.xlu0 %v3160, 36
        %v4752 = vpop.permute.xlu0 %4751
        %4753 = vrot.lane.b32.xlu0 %v3161, 36
        %v4754 = vpop.permute.xlu0 %4753
        %4755 = vrot.lane.b32.xlu0 %v3162, 36
        %v4756 = vpop.permute.xlu0 %4755
        %4757 = vrot.lane.b32.xlu0 %v3163, 36
        %v4758 = vpop.permute.xlu0 %4757
        %4759 = vrot.lane.b32.xlu0 %v3164, 36
        %v4760 = vpop.permute.xlu0 %4759
        %4761 = vrot.lane.b32.xlu0 %v3165, 36
        %v4762 = vpop.permute.xlu0 %4761
        %4763 = vrot.lane.b32.xlu0 %v3166, 36
        %v4764 = vpop.permute.xlu0 %4763
        %4765 = vrot.lane.b32.xlu0 %v3167, 36
        %v4766 = vpop.permute.xlu0 %4765
        %4767 = vrot.lane.b32.xlu0 %v3168, 36
        %v4768 = vpop.permute.xlu0 %4767
        %4769 = vrot.lane.b32.xlu0 %v3169, 36
        %v4770 = vpop.permute.xlu0 %4769
        %4771 = vrot.lane.b32.xlu0 %v3170, 36
        %v4772 = vpop.permute.xlu0 %4771
        %4837 = vrot.lane.b32.xlu0 %v3171, 40
        %v4838 = vpop.permute.xlu0 %4837
        %4839 = vrot.lane.b32.xlu0 %v3172, 40
        %v4840 = vpop.permute.xlu0 %4839
        %4841 = vrot.lane.b32.xlu0 %v3173, 40
        %v4842 = vpop.permute.xlu0 %4841
        %4843 = vrot.lane.b32.xlu0 %v3174, 40
        %v4844 = vpop.permute.xlu0 %4843
        %4845 = vrot.lane.b32.xlu0 %v3175, 40
        %v4846 = vpop.permute.xlu0 %4845
        %4847 = vrot.lane.b32.xlu0 %v3176, 40
        %v4848 = vpop.permute.xlu0 %4847
        %4849 = vrot.lane.b32.xlu0 %v3177, 40
        %v4850 = vpop.permute.xlu0 %4849
        %4851 = vrot.lane.b32.xlu0 %v3178, 40
        %v4852 = vpop.permute.xlu0 %4851
        %4853 = vrot.lane.b32.xlu0 %v3179, 40
        %v4854 = vpop.permute.xlu0 %4853
        %4855 = vrot.lane.b32.xlu0 %v3180, 40
        %v4856 = vpop.permute.xlu0 %4855
        %4857 = vrot.lane.b32.xlu0 %v3181, 40
        %v4858 = vpop.permute.xlu0 %4857
        %4859 = vrot.lane.b32.xlu0 %v3182, 40
        %v4860 = vpop.permute.xlu0 %4859
        %4861 = vrot.lane.b32.xlu0 %v3183, 40
        %v4862 = vpop.permute.xlu0 %4861
        %4863 = vrot.lane.b32.xlu0 %v3184, 40
        %v4864 = vpop.permute.xlu0 %4863
        %4865 = vrot.lane.b32.xlu0 %v3185, 40
        %v4866 = vpop.permute.xlu0 %4865
        %4867 = vrot.lane.b32.xlu0 %v3186, 40
        %v4868 = vpop.permute.xlu0 %4867
        %4869 = vrot.lane.b32.xlu0 %v3187, 40
        %v4870 = vpop.permute.xlu0 %4869
        %4871 = vrot.lane.b32.xlu0 %v3188, 40
        %v4872 = vpop.permute.xlu0 %4871
        %4873 = vrot.lane.b32.xlu0 %v3189, 40
        %v4874 = vpop.permute.xlu0 %4873
        %4875 = vrot.lane.b32.xlu0 %v3190, 40
        %v4876 = vpop.permute.xlu0 %4875
        %4877 = vrot.lane.b32.xlu0 %v3191, 40
        %v4878 = vpop.permute.xlu0 %4877
        %4879 = vrot.lane.b32.xlu0 %v3192, 40
        %v4880 = vpop.permute.xlu0 %4879
        %4881 = vrot.lane.b32.xlu0 %v3193, 40
        %v4882 = vpop.permute.xlu0 %4881
        %4883 = vrot.lane.b32.xlu0 %v3194, 40
        %v4884 = vpop.permute.xlu0 %4883
        %4885 = vrot.lane.b32.xlu0 %v3195, 40
        %v4886 = vpop.permute.xlu0 %4885
        %4887 = vrot.lane.b32.xlu0 %v3196, 40
        %v4888 = vpop.permute.xlu0 %4887
        %4889 = vrot.lane.b32.xlu0 %v3197, 40
        %v4890 = vpop.permute.xlu0 %4889
        %4891 = vrot.lane.b32.xlu0 %v3198, 40
        %v4892 = vpop.permute.xlu0 %4891
        %4893 = vrot.lane.b32.xlu0 %v3199, 40
        %v4894 = vpop.permute.xlu0 %4893
        %4895 = vrot.lane.b32.xlu0 %v3200, 40
        %v4896 = vpop.permute.xlu0 %4895
        %4897 = vrot.lane.b32.xlu0 %v3201, 40
        %v4898 = vpop.permute.xlu0 %4897
        %4899 = vrot.lane.b32.xlu0 %v3202, 40
        %v4900 = vpop.permute.xlu0 %4899
        %4965 = vrot.lane.b32.xlu0 %v3203, 44
        %v4966 = vpop.permute.xlu0 %4965
        %4967 = vrot.lane.b32.xlu0 %v3204, 44
        %v4968 = vpop.permute.xlu0 %4967
        %4969 = vrot.lane.b32.xlu0 %v3205, 44
        %v4970 = vpop.permute.xlu0 %4969
        %4971 = vrot.lane.b32.xlu0 %v3206, 44
        %v4972 = vpop.permute.xlu0 %4971
        %4973 = vrot.lane.b32.xlu0 %v3207, 44
        %v4974 = vpop.permute.xlu0 %4973
        %4975 = vrot.lane.b32.xlu0 %v3208, 44
        %v4976 = vpop.permute.xlu0 %4975
        %4977 = vrot.lane.b32.xlu0 %v3209, 44
        %v4978 = vpop.permute.xlu0 %4977
        %4979 = vrot.lane.b32.xlu0 %v3210, 44
        %v4980 = vpop.permute.xlu0 %4979
        %4981 = vrot.lane.b32.xlu0 %v3211, 44
        %v4982 = vpop.permute.xlu0 %4981
        %4983 = vrot.lane.b32.xlu0 %v3212, 44
        %v4984 = vpop.permute.xlu0 %4983
        %4985 = vrot.lane.b32.xlu0 %v3213, 44
        %v4986 = vpop.permute.xlu0 %4985
        %4987 = vrot.lane.b32.xlu0 %v3214, 44
        %v4988 = vpop.permute.xlu0 %4987
        %4989 = vrot.lane.b32.xlu0 %v3215, 44
        %v4990 = vpop.permute.xlu0 %4989
        %4991 = vrot.lane.b32.xlu0 %v3216, 44
        %v4992 = vpop.permute.xlu0 %4991
        %4993 = vrot.lane.b32.xlu0 %v3217, 44
        %v4994 = vpop.permute.xlu0 %4993
        %4995 = vrot.lane.b32.xlu0 %v3218, 44
        %v4996 = vpop.permute.xlu0 %4995
        %4997 = vrot.lane.b32.xlu0 %v3219, 44
        %v4998 = vpop.permute.xlu0 %4997
        %4999 = vrot.lane.b32.xlu0 %v3220, 44
        %v5000 = vpop.permute.xlu0 %4999
        %5001 = vrot.lane.b32.xlu0 %v3221, 44
        %v5002 = vpop.permute.xlu0 %5001
        %5003 = vrot.lane.b32.xlu0 %v3222, 44
        %v5004 = vpop.permute.xlu0 %5003
        %5005 = vrot.lane.b32.xlu0 %v3223, 44
        %v5006 = vpop.permute.xlu0 %5005
        %5007 = vrot.lane.b32.xlu0 %v3224, 44
        %v5008 = vpop.permute.xlu0 %5007
        %5009 = vrot.lane.b32.xlu0 %v3225, 44
        %v5010 = vpop.permute.xlu0 %5009
        %5011 = vrot.lane.b32.xlu0 %v3226, 44
        %v5012 = vpop.permute.xlu0 %5011
        %5013 = vrot.lane.b32.xlu0 %v3227, 44
        %v5014 = vpop.permute.xlu0 %5013
        %5015 = vrot.lane.b32.xlu0 %v3228, 44
        %v5016 = vpop.permute.xlu0 %5015
        %5017 = vrot.lane.b32.xlu0 %v3229, 44
        %v5018 = vpop.permute.xlu0 %5017
        %5019 = vrot.lane.b32.xlu0 %v3230, 44
        %v5020 = vpop.permute.xlu0 %5019
        %5021 = vrot.lane.b32.xlu0 %v3231, 44
        %v5022 = vpop.permute.xlu0 %5021
        %5023 = vrot.lane.b32.xlu0 %v3232, 44
        %v5024 = vpop.permute.xlu0 %5023
        %5025 = vrot.lane.b32.xlu0 %v3233, 44
        %v5026 = vpop.permute.xlu0 %5025
        %5027 = vrot.lane.b32.xlu0 %v3234, 44
        %v5028 = vpop.permute.xlu0 %5027
        %5093 = vrot.lane.b32.xlu0 %v3235, 48
        %v5094 = vpop.permute.xlu0 %5093
        %5095 = vrot.lane.b32.xlu0 %v3236, 48
        %v5096 = vpop.permute.xlu0 %5095
        %5097 = vrot.lane.b32.xlu0 %v3237, 48
        %v5098 = vpop.permute.xlu0 %5097
        %5099 = vrot.lane.b32.xlu0 %v3238, 48
        %v5100 = vpop.permute.xlu0 %5099
        %5101 = vrot.lane.b32.xlu0 %v3239, 48
        %v5102 = vpop.permute.xlu0 %5101
        %5103 = vrot.lane.b32.xlu0 %v3240, 48
        %v5104 = vpop.permute.xlu0 %5103
        %5105 = vrot.lane.b32.xlu0 %v3241, 48
        %v5106 = vpop.permute.xlu0 %5105
        %5107 = vrot.lane.b32.xlu0 %v3242, 48
        %v5108 = vpop.permute.xlu0 %5107
        %5109 = vrot.lane.b32.xlu0 %v3243, 48
        %v5110 = vpop.permute.xlu0 %5109
        %5111 = vrot.lane.b32.xlu0 %v3244, 48
        %v5112 = vpop.permute.xlu0 %5111
        %5113 = vrot.lane.b32.xlu0 %v3245, 48
        %v5114 = vpop.permute.xlu0 %5113
        %5115 = vrot.lane.b32.xlu0 %v3246, 48
        %v5116 = vpop.permute.xlu0 %5115
        %5117 = vrot.lane.b32.xlu0 %v3247, 48
        %v5118 = vpop.permute.xlu0 %5117
        %5119 = vrot.lane.b32.xlu0 %v3248, 48
        %v5120 = vpop.permute.xlu0 %5119
        %5121 = vrot.lane.b32.xlu0 %v3249, 48
        %v5122 = vpop.permute.xlu0 %5121
        %5123 = vrot.lane.b32.xlu0 %v3250, 48
        %v5124 = vpop.permute.xlu0 %5123
        %5125 = vrot.lane.b32.xlu0 %v3251, 48
        %v5126 = vpop.permute.xlu0 %5125
        %5127 = vrot.lane.b32.xlu0 %v3252, 48
        %v5128 = vpop.permute.xlu0 %5127
        %5129 = vrot.lane.b32.xlu0 %v3253, 48
        %v5130 = vpop.permute.xlu0 %5129
        %5131 = vrot.lane.b32.xlu0 %v3254, 48
        %v5132 = vpop.permute.xlu0 %5131
        %5133 = vrot.lane.b32.xlu0 %v3255, 48
        %v5134 = vpop.permute.xlu0 %5133
        %5135 = vrot.lane.b32.xlu0 %v3256, 48
        %v5136 = vpop.permute.xlu0 %5135
        %5137 = vrot.lane.b32.xlu0 %v3257, 48
        %v5138 = vpop.permute.xlu0 %5137
        %5139 = vrot.lane.b32.xlu0 %v3258, 48
        %v5140 = vpop.permute.xlu0 %5139
        %5141 = vrot.lane.b32.xlu0 %v3259, 48
        %v5142 = vpop.permute.xlu0 %5141
        %5143 = vrot.lane.b32.xlu0 %v3260, 48
        %v5144 = vpop.permute.xlu0 %5143
        %5145 = vrot.lane.b32.xlu0 %v3261, 48
        %v5146 = vpop.permute.xlu0 %5145
        %5147 = vrot.lane.b32.xlu0 %v3262, 48
        %v5148 = vpop.permute.xlu0 %5147
        %5149 = vrot.lane.b32.xlu0 %v3263, 48
        %v5150 = vpop.permute.xlu0 %5149
        %5151 = vrot.lane.b32.xlu0 %v3264, 48
        %v5152 = vpop.permute.xlu0 %5151
        %5153 = vrot.lane.b32.xlu0 %v3265, 48
        %v5154 = vpop.permute.xlu0 %5153
        %5155 = vrot.lane.b32.xlu0 %v3266, 48
        %v5156 = vpop.permute.xlu0 %5155
        %5221 = vrot.lane.b32.xlu0 %v3267, 52
        %v5222 = vpop.permute.xlu0 %5221
        %5223 = vrot.lane.b32.xlu0 %v3268, 52
        %v5224 = vpop.permute.xlu0 %5223
        %5225 = vrot.lane.b32.xlu0 %v3269, 52
        %v5226 = vpop.permute.xlu0 %5225
        %5227 = vrot.lane.b32.xlu0 %v3270, 52
        %v5228 = vpop.permute.xlu0 %5227
        %5229 = vrot.lane.b32.xlu0 %v3271, 52
        %v5230 = vpop.permute.xlu0 %5229
        %5231 = vrot.lane.b32.xlu0 %v3272, 52
        %v5232 = vpop.permute.xlu0 %5231
        %5233 = vrot.lane.b32.xlu0 %v3273, 52
        %v5234 = vpop.permute.xlu0 %5233
        %5235 = vrot.lane.b32.xlu0 %v3274, 52
        %v5236 = vpop.permute.xlu0 %5235
        %5237 = vrot.lane.b32.xlu0 %v3275, 52
        %v5238 = vpop.permute.xlu0 %5237
        %5239 = vrot.lane.b32.xlu0 %v3276, 52
        %v5240 = vpop.permute.xlu0 %5239
        %5241 = vrot.lane.b32.xlu0 %v3277, 52
        %v5242 = vpop.permute.xlu0 %5241
        %5243 = vrot.lane.b32.xlu0 %v3278, 52
        %v5244 = vpop.permute.xlu0 %5243
        %5245 = vrot.lane.b32.xlu0 %v3279, 52
        %v5246 = vpop.permute.xlu0 %5245
        %5247 = vrot.lane.b32.xlu0 %v3280, 52
        %v5248 = vpop.permute.xlu0 %5247
        %5249 = vrot.lane.b32.xlu0 %v3281, 52
        %v5250 = vpop.permute.xlu0 %5249
        %5251 = vrot.lane.b32.xlu0 %v3282, 52
        %v5252 = vpop.permute.xlu0 %5251
        %5253 = vrot.lane.b32.xlu0 %v3283, 52
        %v5254 = vpop.permute.xlu0 %5253
        %5255 = vrot.lane.b32.xlu0 %v3284, 52
        %v5256 = vpop.permute.xlu0 %5255
        %5257 = vrot.lane.b32.xlu0 %v3285, 52
        %v5258 = vpop.permute.xlu0 %5257
        %5259 = vrot.lane.b32.xlu0 %v3286, 52
        %v5260 = vpop.permute.xlu0 %5259
        %5261 = vrot.lane.b32.xlu0 %v3287, 52
        %v5262 = vpop.permute.xlu0 %5261
        %5263 = vrot.lane.b32.xlu0 %v3288, 52
        %v5264 = vpop.permute.xlu0 %5263
        %5265 = vrot.lane.b32.xlu0 %v3289, 52
        %v5266 = vpop.permute.xlu0 %5265
        %5267 = vrot.lane.b32.xlu0 %v3290, 52
        %v5268 = vpop.permute.xlu0 %5267
        %5269 = vrot.lane.b32.xlu0 %v3291, 52
        %v5270 = vpop.permute.xlu0 %5269
        %5271 = vrot.lane.b32.xlu0 %v3292, 52
        %v5272 = vpop.permute.xlu0 %5271
        %5273 = vrot.lane.b32.xlu0 %v3293, 52
        %v5274 = vpop.permute.xlu0 %5273
        %5275 = vrot.lane.b32.xlu0 %v3294, 52
        %v5276 = vpop.permute.xlu0 %5275
        %5277 = vrot.lane.b32.xlu0 %v3295, 52
        %v5278 = vpop.permute.xlu0 %5277
        %5279 = vrot.lane.b32.xlu0 %v3296, 52
        %v5280 = vpop.permute.xlu0 %5279
        %5281 = vrot.lane.b32.xlu0 %v3297, 52
        %v5282 = vpop.permute.xlu0 %5281
        %5283 = vrot.lane.b32.xlu0 %v3298, 52
        %v5284 = vpop.permute.xlu0 %5283
        %5349 = vrot.lane.b32.xlu0 %v3299, 56
        %v5350 = vpop.permute.xlu0 %5349
        %5351 = vrot.lane.b32.xlu0 %v3300, 56
        %v5352 = vpop.permute.xlu0 %5351
        %5353 = vrot.lane.b32.xlu0 %v3301, 56
        %v5354 = vpop.permute.xlu0 %5353
        %5355 = vrot.lane.b32.xlu0 %v3302, 56
        %v5356 = vpop.permute.xlu0 %5355
        %5357 = vrot.lane.b32.xlu0 %v3303, 56
        %v5358 = vpop.permute.xlu0 %5357
        %5359 = vrot.lane.b32.xlu0 %v3304, 56
        %v5360 = vpop.permute.xlu0 %5359
        %5361 = vrot.lane.b32.xlu0 %v3305, 56
        %v5362 = vpop.permute.xlu0 %5361
        %5363 = vrot.lane.b32.xlu0 %v3306, 56
        %v5364 = vpop.permute.xlu0 %5363
        %5365 = vrot.lane.b32.xlu0 %v3307, 56
        %v5366 = vpop.permute.xlu0 %5365
        %5367 = vrot.lane.b32.xlu0 %v3308, 56
        %v5368 = vpop.permute.xlu0 %5367
        %5369 = vrot.lane.b32.xlu0 %v3309, 56
        %v5370 = vpop.permute.xlu0 %5369
        %5371 = vrot.lane.b32.xlu0 %v3310, 56
        %v5372 = vpop.permute.xlu0 %5371
        %5373 = vrot.lane.b32.xlu0 %v3311, 56
        %v5374 = vpop.permute.xlu0 %5373
        %5375 = vrot.lane.b32.xlu0 %v3312, 56
        %v5376 = vpop.permute.xlu0 %5375
        %5377 = vrot.lane.b32.xlu0 %v3313, 56
        %v5378 = vpop.permute.xlu0 %5377
        %5379 = vrot.lane.b32.xlu0 %v3314, 56
        %v5380 = vpop.permute.xlu0 %5379
        %5381 = vrot.lane.b32.xlu0 %v3315, 56
        %v5382 = vpop.permute.xlu0 %5381
        %5383 = vrot.lane.b32.xlu0 %v3316, 56
        %v5384 = vpop.permute.xlu0 %5383
        %5385 = vrot.lane.b32.xlu0 %v3317, 56
        %v5386 = vpop.permute.xlu0 %5385
        %5387 = vrot.lane.b32.xlu0 %v3318, 56
        %v5388 = vpop.permute.xlu0 %5387
        %5389 = vrot.lane.b32.xlu0 %v3319, 56
        %v5390 = vpop.permute.xlu0 %5389
        %5391 = vrot.lane.b32.xlu0 %v3320, 56
        %v5392 = vpop.permute.xlu0 %5391
        %5393 = vrot.lane.b32.xlu0 %v3321, 56
        %v5394 = vpop.permute.xlu0 %5393
        %5395 = vrot.lane.b32.xlu0 %v3322, 56
        %v5396 = vpop.permute.xlu0 %5395
        %5397 = vrot.lane.b32.xlu0 %v3323, 56
        %v5398 = vpop.permute.xlu0 %5397
        %5399 = vrot.lane.b32.xlu0 %v3324, 56
        %v5400 = vpop.permute.xlu0 %5399
        %5401 = vrot.lane.b32.xlu0 %v3325, 56
        %v5402 = vpop.permute.xlu0 %5401
        %5403 = vrot.lane.b32.xlu0 %v3326, 56
        %v5404 = vpop.permute.xlu0 %5403
        %5405 = vrot.lane.b32.xlu0 %v3327, 56
        %v5406 = vpop.permute.xlu0 %5405
        %5407 = vrot.lane.b32.xlu0 %v3328, 56
        %v5408 = vpop.permute.xlu0 %5407
        %5409 = vrot.lane.b32.xlu0 %v3329, 56
        %v5410 = vpop.permute.xlu0 %5409
        %5411 = vrot.lane.b32.xlu0 %v3330, 56
        %v5412 = vpop.permute.xlu0 %5411
        %5477 = vrot.lane.b32.xlu0 %v3332, 60
        %v5478 = vpop.permute.xlu0 %5477
        %5479 = vrot.lane.b32.xlu0 %v3333, 60
        %v5480 = vpop.permute.xlu0 %5479
        %5481 = vrot.lane.b32.xlu0 %v3334, 60
        %v5482 = vpop.permute.xlu0 %5481
        %5483 = vrot.lane.b32.xlu0 %v3335, 60
        %v5484 = vpop.permute.xlu0 %5483
        %5485 = vrot.lane.b32.xlu0 %v3336, 60
        %v5486 = vpop.permute.xlu0 %5485
        %5487 = vrot.lane.b32.xlu0 %v3337, 60
        %v5488 = vpop.permute.xlu0 %5487
        %5489 = vrot.lane.b32.xlu0 %v3338, 60
        %v5490 = vpop.permute.xlu0 %5489
        %5491 = vrot.lane.b32.xlu0 %v3339, 60
        %v5492 = vpop.permute.xlu0 %5491
        %5493 = vrot.lane.b32.xlu0 %v3340, 60
        %v5494 = vpop.permute.xlu0 %5493
        %5495 = vrot.lane.b32.xlu0 %v3341, 60
        %v5496 = vpop.permute.xlu0 %5495
        %5497 = vrot.lane.b32.xlu0 %v3342, 60
        %v5498 = vpop.permute.xlu0 %5497
        %5499 = vrot.lane.b32.xlu0 %v3343, 60
        %v5500 = vpop.permute.xlu0 %5499
        %5501 = vrot.lane.b32.xlu0 %v3344, 60
        %v5502 = vpop.permute.xlu0 %5501
        %5503 = vrot.lane.b32.xlu0 %v3345, 60
        %v5504 = vpop.permute.xlu0 %5503
        %5505 = vrot.lane.b32.xlu0 %v3346, 60
        %v5506 = vpop.permute.xlu0 %5505
        %5507 = vrot.lane.b32.xlu0 %v3347, 60
        %v5508 = vpop.permute.xlu0 %5507
        %5509 = vrot.lane.b32.xlu0 %v3348, 60
        %v5510 = vpop.permute.xlu0 %5509
        %5511 = vrot.lane.b32.xlu0 %v3349, 60
        %v5512 = vpop.permute.xlu0 %5511
        %5513 = vrot.lane.b32.xlu0 %v3350, 60
        %v5514 = vpop.permute.xlu0 %5513
        %5515 = vrot.lane.b32.xlu0 %v3351, 60
        %v5516 = vpop.permute.xlu0 %5515
        %5517 = vrot.lane.b32.xlu0 %v3352, 60
        %v5518 = vpop.permute.xlu0 %5517
        %5519 = vrot.lane.b32.xlu0 %v3353, 60
        %v5520 = vpop.permute.xlu0 %5519
        %5521 = vrot.lane.b32.xlu0 %v3354, 60
        %v5522 = vpop.permute.xlu0 %5521
        %5523 = vrot.lane.b32.xlu0 %v3355, 60
        %v5524 = vpop.permute.xlu0 %5523
        %5525 = vrot.lane.b32.xlu0 %v3356, 60
        %v5526 = vpop.permute.xlu0 %5525
        %5527 = vrot.lane.b32.xlu0 %v3357, 60
        %v5528 = vpop.permute.xlu0 %5527
        %5529 = vrot.lane.b32.xlu0 %v3358, 60
        %v5530 = vpop.permute.xlu0 %5529
        %5531 = vrot.lane.b32.xlu0 %v3359, 60
        %v5532 = vpop.permute.xlu0 %5531
        %5533 = vrot.lane.b32.xlu0 %v3360, 60
        %v5534 = vpop.permute.xlu0 %5533
        %5535 = vrot.lane.b32.xlu0 %v3361, 60
        %v5536 = vpop.permute.xlu0 %5535
        %5537 = vrot.lane.b32.xlu0 %v3362, 60
        %v5538 = vpop.permute.xlu0 %5537
        %5539 = vrot.lane.b32.xlu0 %v3363, 60
        %v5540 = vpop.permute.xlu0 %5539
        %v5573 = vsel %vm368, %v2850, %v3686
        %v5574 = vsel %vm368, %v2851, %v3688
        %v5575 = vsel %vm368, %v2852, %v3690
        %v5576 = vsel %vm368, %v2853, %v3692
        %v5577 = vsel %vm368, %v2854, %v3694
        %v5578 = vsel %vm368, %v2855, %v3696
        %v5579 = vsel %vm368, %v2856, %v3698
        %v5580 = vsel %vm368, %v2857, %v3700
        %v5581 = vsel %vm368, %v2858, %v3702
        %v5582 = vsel %vm368, %v2859, %v3704
        %v5583 = vsel %vm368, %v2860, %v3706
        %v5584 = vsel %vm368, %v2861, %v3708
        %v5585 = vsel %vm368, %v2862, %v3710
        %v5586 = vsel %vm368, %v2863, %v3712
        %v5587 = vsel %vm368, %v2864, %v3714
        %v5588 = vsel %vm368, %v2865, %v3716
        %v5589 = vsel %vm368, %v2866, %v3718
        %v5590 = vsel %vm368, %v2867, %v3720
        %v5591 = vsel %vm368, %v2868, %v3722
        %v5592 = vsel %vm368, %v2869, %v3724
        %v5593 = vsel %vm368, %v2870, %v3726
        %v5594 = vsel %vm368, %v2871, %v3728
        %v5595 = vsel %vm368, %v2872, %v3730
        %v5596 = vsel %vm368, %v2873, %v3732
        %v5597 = vsel %vm368, %v2874, %v3734
        %v5598 = vsel %vm368, %v2875, %v3736
        %v5599 = vsel %vm368, %v2876, %v3738
        %v5600 = vsel %vm368, %v2877, %v3740
        %v5601 = vsel %vm368, %v2878, %v3742
        %v5602 = vsel %vm368, %v2879, %v3744
        %v5603 = vsel %vm368, %v2880, %v3746
        %v5604 = vsel %vm368, %v2881, %v3748
        %v5605 = vsel %vm2175, %v5573, %v3814
        %v5606 = vsel %vm2175, %v5574, %v3816
        %v5607 = vsel %vm2175, %v5575, %v3818
        %v5608 = vsel %vm2175, %v5576, %v3820
        %v5609 = vsel %vm2175, %v5577, %v3822
        %v5610 = vsel %vm2175, %v5578, %v3824
        %v5611 = vsel %vm2175, %v5579, %v3826
        %v5612 = vsel %vm2175, %v5580, %v3828
        %v5613 = vsel %vm2175, %v5581, %v3830
        %v5614 = vsel %vm2175, %v5582, %v3832
        %v5615 = vsel %vm2175, %v5583, %v3834
        %v5616 = vsel %vm2175, %v5584, %v3836
        %v5617 = vsel %vm2175, %v5585, %v3838
        %v5618 = vsel %vm2175, %v5586, %v3840
        %v5619 = vsel %vm2175, %v5587, %v3842
        %v5620 = vsel %vm2175, %v5588, %v3844
        %v5621 = vsel %vm2175, %v5589, %v3846
        %v5622 = vsel %vm2175, %v5590, %v3848
        %v5623 = vsel %vm2175, %v5591, %v3850
        %v5624 = vsel %vm2175, %v5592, %v3852
        %v5625 = vsel %vm2175, %v5593, %v3854
        %v5626 = vsel %vm2175, %v5594, %v3856
        %v5627 = vsel %vm2175, %v5595, %v3858
        %v5628 = vsel %vm2175, %v5596, %v3860
        %v5629 = vsel %vm2175, %v5597, %v3862
        %v5630 = vsel %vm2175, %v5598, %v3864
        %v5631 = vsel %vm2175, %v5599, %v3866
        %v5632 = vsel %vm2175, %v5600, %v3868
        %v5633 = vsel %vm2175, %v5601, %v3870
        %v5634 = vsel %vm2175, %v5602, %v3872
        %v5635 = vsel %vm2175, %v5603, %v3874
        %v5636 = vsel %vm2175, %v5604, %v3876
        %v5637 = vsel %vm2208, %v5605, %v3942
        %v5638 = vsel %vm2208, %v5606, %v3944
        %v5639 = vsel %vm2208, %v5607, %v3946
        %v5640 = vsel %vm2208, %v5608, %v3948
        %v5641 = vsel %vm2208, %v5609, %v3950
        %v5642 = vsel %vm2208, %v5610, %v3952
        %v5643 = vsel %vm2208, %v5611, %v3954
        %v5644 = vsel %vm2208, %v5612, %v3956
        %v5645 = vsel %vm2208, %v5613, %v3958
        %v5646 = vsel %vm2208, %v5614, %v3960
        %v5647 = vsel %vm2208, %v5615, %v3962
        %v5648 = vsel %vm2208, %v5616, %v3964
        %v5649 = vsel %vm2208, %v5617, %v3966
        %v5650 = vsel %vm2208, %v5618, %v3968
        %v5651 = vsel %vm2208, %v5619, %v3970
        %v5652 = vsel %vm2208, %v5620, %v3972
        %v5653 = vsel %vm2208, %v5621, %v3974
        %v5654 = vsel %vm2208, %v5622, %v3976
        %v5655 = vsel %vm2208, %v5623, %v3978
        %v5656 = vsel %vm2208, %v5624, %v3980
        %v5657 = vsel %vm2208, %v5625, %v3982
        %v5658 = vsel %vm2208, %v5626, %v3984
        %v5659 = vsel %vm2208, %v5627, %v3986
        %v5660 = vsel %vm2208, %v5628, %v3988
        %v5661 = vsel %vm2208, %v5629, %v3990
        %v5662 = vsel %vm2208, %v5630, %v3992
        %v5663 = vsel %vm2208, %v5631, %v3994
        %v5664 = vsel %vm2208, %v5632, %v3996
        %v5665 = vsel %vm2208, %v5633, %v3998
        %v5666 = vsel %vm2208, %v5634, %v4000
        %v5667 = vsel %vm2208, %v5635, %v4002
        %v5668 = vsel %vm2208, %v5636, %v4004
        %v5669 = vsel %vm2241, %v5637, %v4070
        %v5670 = vsel %vm2241, %v5638, %v4072
        %v5671 = vsel %vm2241, %v5639, %v4074
        %v5672 = vsel %vm2241, %v5640, %v4076
        %v5673 = vsel %vm2241, %v5641, %v4078
        %v5674 = vsel %vm2241, %v5642, %v4080
        %v5675 = vsel %vm2241, %v5643, %v4082
        %v5676 = vsel %vm2241, %v5644, %v4084
        %v5677 = vsel %vm2241, %v5645, %v4086
        %v5678 = vsel %vm2241, %v5646, %v4088
        %v5679 = vsel %vm2241, %v5647, %v4090
        %v5680 = vsel %vm2241, %v5648, %v4092
        %v5681 = vsel %vm2241, %v5649, %v4094
        %v5682 = vsel %vm2241, %v5650, %v4096
        %v5683 = vsel %vm2241, %v5651, %v4098
        %v5684 = vsel %vm2241, %v5652, %v4100
        %v5685 = vsel %vm2241, %v5653, %v4102
        %v5686 = vsel %vm2241, %v5654, %v4104
        %v5687 = vsel %vm2241, %v5655, %v4106
        %v5688 = vsel %vm2241, %v5656, %v4108
        %v5689 = vsel %vm2241, %v5657, %v4110
        %v5690 = vsel %vm2241, %v5658, %v4112
        %v5691 = vsel %vm2241, %v5659, %v4114
        %v5692 = vsel %vm2241, %v5660, %v4116
        %v5693 = vsel %vm2241, %v5661, %v4118
        %v5694 = vsel %vm2241, %v5662, %v4120
        %v5695 = vsel %vm2241, %v5663, %v4122
        %v5696 = vsel %vm2241, %v5664, %v4124
        %v5697 = vsel %vm2241, %v5665, %v4126
        %v5698 = vsel %vm2241, %v5666, %v4128
        %v5699 = vsel %vm2241, %v5667, %v4130
        %v5700 = vsel %vm2241, %v5668, %v4132
        %v5701 = vsel %vm2274, %v5669, %v4198
        %v5702 = vsel %vm2274, %v5670, %v4200
        %v5703 = vsel %vm2274, %v5671, %v4202
        %v5704 = vsel %vm2274, %v5672, %v4204
        %v5705 = vsel %vm2274, %v5673, %v4206
        %v5706 = vsel %vm2274, %v5674, %v4208
        %v5707 = vsel %vm2274, %v5675, %v4210
        %v5708 = vsel %vm2274, %v5676, %v4212
        %v5709 = vsel %vm2274, %v5677, %v4214
        %v5710 = vsel %vm2274, %v5678, %v4216
        %v5711 = vsel %vm2274, %v5679, %v4218
        %v5712 = vsel %vm2274, %v5680, %v4220
        %v5713 = vsel %vm2274, %v5681, %v4222
        %v5714 = vsel %vm2274, %v5682, %v4224
        %v5715 = vsel %vm2274, %v5683, %v4226
        %v5716 = vsel %vm2274, %v5684, %v4228
        %v5717 = vsel %vm2274, %v5685, %v4230
        %v5718 = vsel %vm2274, %v5686, %v4232
        %v5719 = vsel %vm2274, %v5687, %v4234
        %v5720 = vsel %vm2274, %v5688, %v4236
        %v5721 = vsel %vm2274, %v5689, %v4238
        %v5722 = vsel %vm2274, %v5690, %v4240
        %v5723 = vsel %vm2274, %v5691, %v4242
        %v5724 = vsel %vm2274, %v5692, %v4244
        %v5725 = vsel %vm2274, %v5693, %v4246
        %v5726 = vsel %vm2274, %v5694, %v4248
        %v5727 = vsel %vm2274, %v5695, %v4250
        %v5728 = vsel %vm2274, %v5696, %v4252
        %v5729 = vsel %vm2274, %v5697, %v4254
        %v5730 = vsel %vm2274, %v5698, %v4256
        %v5731 = vsel %vm2274, %v5699, %v4258
        %v5732 = vsel %vm2274, %v5700, %v4260
        %v5733 = vsel %vm2307, %v5701, %v4326
        %v5734 = vsel %vm2307, %v5702, %v4328
        %v5735 = vsel %vm2307, %v5703, %v4330
        %v5736 = vsel %vm2307, %v5704, %v4332
        %v5737 = vsel %vm2307, %v5705, %v4334
        %v5738 = vsel %vm2307, %v5706, %v4336
        %v5739 = vsel %vm2307, %v5707, %v4338
        %v5740 = vsel %vm2307, %v5708, %v4340
        %v5741 = vsel %vm2307, %v5709, %v4342
        %v5742 = vsel %vm2307, %v5710, %v4344
        %v5743 = vsel %vm2307, %v5711, %v4346
        %v5744 = vsel %vm2307, %v5712, %v4348
        %v5745 = vsel %vm2307, %v5713, %v4350
        %v5746 = vsel %vm2307, %v5714, %v4352
        %v5747 = vsel %vm2307, %v5715, %v4354
        %v5748 = vsel %vm2307, %v5716, %v4356
        %v5749 = vsel %vm2307, %v5717, %v4358
        %v5750 = vsel %vm2307, %v5718, %v4360
        %v5751 = vsel %vm2307, %v5719, %v4362
        %v5752 = vsel %vm2307, %v5720, %v4364
        %v5753 = vsel %vm2307, %v5721, %v4366
        %v5754 = vsel %vm2307, %v5722, %v4368
        %v5755 = vsel %vm2307, %v5723, %v4370
        %v5756 = vsel %vm2307, %v5724, %v4372
        %v5757 = vsel %vm2307, %v5725, %v4374
        %v5758 = vsel %vm2307, %v5726, %v4376
        %v5759 = vsel %vm2307, %v5727, %v4378
        %v5760 = vsel %vm2307, %v5728, %v4380
        %v5761 = vsel %vm2307, %v5729, %v4382
        %v5762 = vsel %vm2307, %v5730, %v4384
        %v5763 = vsel %vm2307, %v5731, %v4386
        %v5764 = vsel %vm2307, %v5732, %v4388
        %v5765 = vsel %vm2340, %v5733, %v4454
        %v5766 = vsel %vm2340, %v5734, %v4456
        %v5767 = vsel %vm2340, %v5735, %v4458
        %v5768 = vsel %vm2340, %v5736, %v4460
        %v5769 = vsel %vm2340, %v5737, %v4462
        %v5770 = vsel %vm2340, %v5738, %v4464
        %v5771 = vsel %vm2340, %v5739, %v4466
        %v5772 = vsel %vm2340, %v5740, %v4468
        %v5773 = vsel %vm2340, %v5741, %v4470
        %v5774 = vsel %vm2340, %v5742, %v4472
        %v5775 = vsel %vm2340, %v5743, %v4474
        %v5776 = vsel %vm2340, %v5744, %v4476
        %v5777 = vsel %vm2340, %v5745, %v4478
        %v5778 = vsel %vm2340, %v5746, %v4480
        %v5779 = vsel %vm2340, %v5747, %v4482
        %v5780 = vsel %vm2340, %v5748, %v4484
        %v5781 = vsel %vm2340, %v5749, %v4486
        %v5782 = vsel %vm2340, %v5750, %v4488
        %v5783 = vsel %vm2340, %v5751, %v4490
        %v5784 = vsel %vm2340, %v5752, %v4492
        %v5785 = vsel %vm2340, %v5753, %v4494
        %v5786 = vsel %vm2340, %v5754, %v4496
        %v5787 = vsel %vm2340, %v5755, %v4498
        %v5788 = vsel %vm2340, %v5756, %v4500
        %v5789 = vsel %vm2340, %v5757, %v4502
        %v5790 = vsel %vm2340, %v5758, %v4504
        %v5791 = vsel %vm2340, %v5759, %v4506
        %v5792 = vsel %vm2340, %v5760, %v4508
        %v5793 = vsel %vm2340, %v5761, %v4510
        %v5794 = vsel %vm2340, %v5762, %v4512
        %v5795 = vsel %vm2340, %v5763, %v4514
        %v5796 = vsel %vm2340, %v5764, %v4516
        %v5797 = vsel %vm2373, %v5765, %v4582
        %v5798 = vsel %vm2373, %v5766, %v4584
        %v5799 = vsel %vm2373, %v5767, %v4586
        %v5800 = vsel %vm2373, %v5768, %v4588
        %v5801 = vsel %vm2373, %v5769, %v4590
        %v5802 = vsel %vm2373, %v5770, %v4592
        %v5803 = vsel %vm2373, %v5771, %v4594
        %v5804 = vsel %vm2373, %v5772, %v4596
        %v5805 = vsel %vm2373, %v5773, %v4598
        %v5806 = vsel %vm2373, %v5774, %v4600
        %v5807 = vsel %vm2373, %v5775, %v4602
        %v5808 = vsel %vm2373, %v5776, %v4604
        %v5809 = vsel %vm2373, %v5777, %v4606
        %v5810 = vsel %vm2373, %v5778, %v4608
        %v5811 = vsel %vm2373, %v5779, %v4610
        %v5812 = vsel %vm2373, %v5780, %v4612
        %v5813 = vsel %vm2373, %v5781, %v4614
        %v5814 = vsel %vm2373, %v5782, %v4616
        %v5815 = vsel %vm2373, %v5783, %v4618
        %v5816 = vsel %vm2373, %v5784, %v4620
        %v5817 = vsel %vm2373, %v5785, %v4622
        %v5818 = vsel %vm2373, %v5786, %v4624
        %v5819 = vsel %vm2373, %v5787, %v4626
        %v5820 = vsel %vm2373, %v5788, %v4628
        %v5821 = vsel %vm2373, %v5789, %v4630
        %v5822 = vsel %vm2373, %v5790, %v4632
        %v5823 = vsel %vm2373, %v5791, %v4634
        %v5824 = vsel %vm2373, %v5792, %v4636
        %v5825 = vsel %vm2373, %v5793, %v4638
        %v5826 = vsel %vm2373, %v5794, %v4640
        %v5827 = vsel %vm2373, %v5795, %v4642
        %v5828 = vsel %vm2373, %v5796, %v4644
        %v5829 = vsel %vm2415, %v5797, %v4710
        %v5830 = vsel %vm2415, %v5798, %v4712
        %v5831 = vsel %vm2415, %v5799, %v4714
        %v5832 = vsel %vm2415, %v5800, %v4716
        %v5833 = vsel %vm2415, %v5801, %v4718
        %v5834 = vsel %vm2415, %v5802, %v4720
        %v5835 = vsel %vm2415, %v5803, %v4722
        %v5836 = vsel %vm2415, %v5804, %v4724
        %v5837 = vsel %vm2415, %v5805, %v4726
        %v5838 = vsel %vm2415, %v5806, %v4728
        %v5839 = vsel %vm2415, %v5807, %v4730
        %v5840 = vsel %vm2415, %v5808, %v4732
        %v5841 = vsel %vm2415, %v5809, %v4734
        %v5842 = vsel %vm2415, %v5810, %v4736
        %v5843 = vsel %vm2415, %v5811, %v4738
        %v5844 = vsel %vm2415, %v5812, %v4740
        %v5845 = vsel %vm2415, %v5813, %v4742
        %v5846 = vsel %vm2415, %v5814, %v4744
        %v5847 = vsel %vm2415, %v5815, %v4746
        %v5848 = vsel %vm2415, %v5816, %v4748
        %v5849 = vsel %vm2415, %v5817, %v4750
        %v5850 = vsel %vm2415, %v5818, %v4752
        %v5851 = vsel %vm2415, %v5819, %v4754
        %v5852 = vsel %vm2415, %v5820, %v4756
        %v5853 = vsel %vm2415, %v5821, %v4758
        %v5854 = vsel %vm2415, %v5822, %v4760
        %v5855 = vsel %vm2415, %v5823, %v4762
        %v5856 = vsel %vm2415, %v5824, %v4764
        %v5857 = vsel %vm2415, %v5825, %v4766
        %v5858 = vsel %vm2415, %v5826, %v4768
        %v5859 = vsel %vm2415, %v5827, %v4770
        %v5860 = vsel %vm2415, %v5828, %v4772
        %vm5861 = vcmask 326656
        %v5862 = vsel %vm5861, %v5829, %v4838
        %v5863 = vsel %vm5861, %v5830, %v4840
        %v5864 = vsel %vm5861, %v5831, %v4842
        %v5865 = vsel %vm5861, %v5832, %v4844
        %v5866 = vsel %vm5861, %v5833, %v4846
        %v5867 = vsel %vm5861, %v5834, %v4848
        %v5868 = vsel %vm5861, %v5835, %v4850
        %v5869 = vsel %vm5861, %v5836, %v4852
        %v5870 = vsel %vm5861, %v5837, %v4854
        %v5871 = vsel %vm5861, %v5838, %v4856
        %v5872 = vsel %vm5861, %v5839, %v4858
        %v5873 = vsel %vm5861, %v5840, %v4860
        %v5874 = vsel %vm5861, %v5841, %v4862
        %v5875 = vsel %vm5861, %v5842, %v4864
        %v5876 = vsel %vm5861, %v5843, %v4866
        %v5877 = vsel %vm5861, %v5844, %v4868
        %v5878 = vsel %vm5861, %v5845, %v4870
        %v5879 = vsel %vm5861, %v5846, %v4872
        %v5880 = vsel %vm5861, %v5847, %v4874
        %v5881 = vsel %vm5861, %v5848, %v4876
        %v5882 = vsel %vm5861, %v5849, %v4878
        %v5883 = vsel %vm5861, %v5850, %v4880
        %v5884 = vsel %vm5861, %v5851, %v4882
        %v5885 = vsel %vm5861, %v5852, %v4884
        %v5886 = vsel %vm5861, %v5853, %v4886
        %v5887 = vsel %vm5861, %v5854, %v4888
        %v5888 = vsel %vm5861, %v5855, %v4890
        %v5889 = vsel %vm5861, %v5856, %v4892
        %v5890 = vsel %vm5861, %v5857, %v4894
        %v5891 = vsel %vm5861, %v5858, %v4896
        %v5892 = vsel %vm5861, %v5859, %v4898
        %v5893 = vsel %vm5861, %v5860, %v4900
        %vm5894 = vcmask 359424
        %v5895 = vsel %vm5894, %v5862, %v4966
        %v5896 = vsel %vm5894, %v5863, %v4968
        %v5897 = vsel %vm5894, %v5864, %v4970
        %v5898 = vsel %vm5894, %v5865, %v4972
        %v5899 = vsel %vm5894, %v5866, %v4974
        %v5900 = vsel %vm5894, %v5867, %v4976
        %v5901 = vsel %vm5894, %v5868, %v4978
        %v5902 = vsel %vm5894, %v5869, %v4980
        %v5903 = vsel %vm5894, %v5870, %v4982
        %v5904 = vsel %vm5894, %v5871, %v4984
        %v5905 = vsel %vm5894, %v5872, %v4986
        %v5906 = vsel %vm5894, %v5873, %v4988
        %v5907 = vsel %vm5894, %v5874, %v4990
        %v5908 = vsel %vm5894, %v5875, %v4992
        %v5909 = vsel %vm5894, %v5876, %v4994
        %v5910 = vsel %vm5894, %v5877, %v4996
        %v5911 = vsel %vm5894, %v5878, %v4998
        %v5912 = vsel %vm5894, %v5879, %v5000
        %v5913 = vsel %vm5894, %v5880, %v5002
        %v5914 = vsel %vm5894, %v5881, %v5004
        %v5915 = vsel %vm5894, %v5882, %v5006
        %v5916 = vsel %vm5894, %v5883, %v5008
        %v5917 = vsel %vm5894, %v5884, %v5010
        %v5918 = vsel %vm5894, %v5885, %v5012
        %v5919 = vsel %vm5894, %v5886, %v5014
        %v5920 = vsel %vm5894, %v5887, %v5016
        %v5921 = vsel %vm5894, %v5888, %v5018
        %v5922 = vsel %vm5894, %v5889, %v5020
        %v5923 = vsel %vm5894, %v5890, %v5022
        %v5924 = vsel %vm5894, %v5891, %v5024
        %v5925 = vsel %vm5894, %v5892, %v5026
        %v5926 = vsel %vm5894, %v5893, %v5028
        %vm5927 = vcmask 392192
        %v5928 = vsel %vm5927, %v5895, %v5094
        %v5929 = vsel %vm5927, %v5896, %v5096
        %v5930 = vsel %vm5927, %v5897, %v5098
        %v5931 = vsel %vm5927, %v5898, %v5100
        %v5932 = vsel %vm5927, %v5899, %v5102
        %v5933 = vsel %vm5927, %v5900, %v5104
        %v5934 = vsel %vm5927, %v5901, %v5106
        %v5935 = vsel %vm5927, %v5902, %v5108
        %v5936 = vsel %vm5927, %v5903, %v5110
        %v5937 = vsel %vm5927, %v5904, %v5112
        %v5938 = vsel %vm5927, %v5905, %v5114
        %v5939 = vsel %vm5927, %v5906, %v5116
        %v5940 = vsel %vm5927, %v5907, %v5118
        %v5941 = vsel %vm5927, %v5908, %v5120
        %v5942 = vsel %vm5927, %v5909, %v5122
        %v5943 = vsel %vm5927, %v5910, %v5124
        %v5944 = vsel %vm5927, %v5911, %v5126
        %v5945 = vsel %vm5927, %v5912, %v5128
        %v5946 = vsel %vm5927, %v5913, %v5130
        %v5947 = vsel %vm5927, %v5914, %v5132
        %v5948 = vsel %vm5927, %v5915, %v5134
        %v5949 = vsel %vm5927, %v5916, %v5136
        %v5950 = vsel %vm5927, %v5917, %v5138
        %v5951 = vsel %vm5927, %v5918, %v5140
        %v5952 = vsel %vm5927, %v5919, %v5142
        %v5953 = vsel %vm5927, %v5920, %v5144
        %v5954 = vsel %vm5927, %v5921, %v5146
        %v5955 = vsel %vm5927, %v5922, %v5148
        %v5956 = vsel %vm5927, %v5923, %v5150
        %v5957 = vsel %vm5927, %v5924, %v5152
        %v5958 = vsel %vm5927, %v5925, %v5154
        %v5959 = vsel %vm5927, %v5926, %v5156
        %vm5960 = vcmask 424960
        %v5961 = vsel %vm5960, %v5928, %v5222
        %v5962 = vsel %vm5960, %v5929, %v5224
        %v5963 = vsel %vm5960, %v5930, %v5226
        %v5964 = vsel %vm5960, %v5931, %v5228
        %v5965 = vsel %vm5960, %v5932, %v5230
        %v5966 = vsel %vm5960, %v5933, %v5232
        %v5967 = vsel %vm5960, %v5934, %v5234
        %v5968 = vsel %vm5960, %v5935, %v5236
        %v5969 = vsel %vm5960, %v5936, %v5238
        %v5970 = vsel %vm5960, %v5937, %v5240
        %v5971 = vsel %vm5960, %v5938, %v5242
        %v5972 = vsel %vm5960, %v5939, %v5244
        %v5973 = vsel %vm5960, %v5940, %v5246
        %v5974 = vsel %vm5960, %v5941, %v5248
        %v5975 = vsel %vm5960, %v5942, %v5250
        %v5976 = vsel %vm5960, %v5943, %v5252
        %v5977 = vsel %vm5960, %v5944, %v5254
        %v5978 = vsel %vm5960, %v5945, %v5256
        %v5979 = vsel %vm5960, %v5946, %v5258
        %v5980 = vsel %vm5960, %v5947, %v5260
        %v5981 = vsel %vm5960, %v5948, %v5262
        %v5982 = vsel %vm5960, %v5949, %v5264
        %v5983 = vsel %vm5960, %v5950, %v5266
        %v5984 = vsel %vm5960, %v5951, %v5268
        %v5985 = vsel %vm5960, %v5952, %v5270
        %v5986 = vsel %vm5960, %v5953, %v5272
        %v5987 = vsel %vm5960, %v5954, %v5274
        %v5988 = vsel %vm5960, %v5955, %v5276
        %v5989 = vsel %vm5960, %v5956, %v5278
        %v5990 = vsel %vm5960, %v5957, %v5280
        %v5991 = vsel %vm5960, %v5958, %v5282
        %v5992 = vsel %vm5960, %v5959, %v5284
        %vm5993 = vcmask 457728
        %v5994 = vsel %vm5993, %v5961, %v5350
        %v5995 = vsel %vm5993, %v5962, %v5352
        %v5996 = vsel %vm5993, %v5963, %v5354
        %v5997 = vsel %vm5993, %v5964, %v5356
        %v5998 = vsel %vm5993, %v5965, %v5358
        %v5999 = vsel %vm5993, %v5966, %v5360
        %v6000 = vsel %vm5993, %v5967, %v5362
        %v6001 = vsel %vm5993, %v5968, %v5364
        %v6002 = vsel %vm5993, %v5969, %v5366
        %v6003 = vsel %vm5993, %v5970, %v5368
        %v6004 = vsel %vm5993, %v5971, %v5370
        %v6005 = vsel %vm5993, %v5972, %v5372
        %v6006 = vsel %vm5993, %v5973, %v5374
        %v6007 = vsel %vm5993, %v5974, %v5376
        %v6008 = vsel %vm5993, %v5975, %v5378
        %v6009 = vsel %vm5993, %v5976, %v5380
        %v6010 = vsel %vm5993, %v5977, %v5382
        %v6011 = vsel %vm5993, %v5978, %v5384
        %v6012 = vsel %vm5993, %v5979, %v5386
        %v6013 = vsel %vm5993, %v5980, %v5388
        %v6014 = vsel %vm5993, %v5981, %v5390
        %v6015 = vsel %vm5993, %v5982, %v5392
        %v6016 = vsel %vm5993, %v5983, %v5394
        %v6017 = vsel %vm5993, %v5984, %v5396
        %v6018 = vsel %vm5993, %v5985, %v5398
        %v6019 = vsel %vm5993, %v5986, %v5400
        %v6020 = vsel %vm5993, %v5987, %v5402
        %v6021 = vsel %vm5993, %v5988, %v5404
        %v6022 = vsel %vm5993, %v5989, %v5406
        %v6023 = vsel %vm5993, %v5990, %v5408
        %v6024 = vsel %vm5993, %v5991, %v5410
        %v6025 = vsel %vm5993, %v5992, %v5412
        %vm6026 = vcmask 490496
        %v6027 = vsel %vm6026, %v5994, %v5478
        %v6028 = vsel %vm6026, %v5995, %v5480
        %v6029 = vsel %vm6026, %v5996, %v5482
        %v6030 = vsel %vm6026, %v5997, %v5484
        %v6031 = vsel %vm6026, %v5998, %v5486
        %v6032 = vsel %vm6026, %v5999, %v5488
        %v6033 = vsel %vm6026, %v6000, %v5490
        %v6034 = vsel %vm6026, %v6001, %v5492
        %v6035 = vsel %vm6026, %v6002, %v5494
        %v6036 = vsel %vm6026, %v6003, %v5496
        %v6037 = vsel %vm6026, %v6004, %v5498
        %v6038 = vsel %vm6026, %v6005, %v5500
        %v6039 = vsel %vm6026, %v6006, %v5502
        %v6040 = vsel %vm6026, %v6007, %v5504
        %v6041 = vsel %vm6026, %v6008, %v5506
        %v6042 = vsel %vm6026, %v6009, %v5508
        %v6043 = vsel %vm6026, %v6010, %v5510
        %v6044 = vsel %vm6026, %v6011, %v5512
        %v6045 = vsel %vm6026, %v6012, %v5514
        %v6046 = vsel %vm6026, %v6013, %v5516
        %v6047 = vsel %vm6026, %v6014, %v5518
        %v6048 = vsel %vm6026, %v6015, %v5520
        %v6049 = vsel %vm6026, %v6016, %v5522
        %v6050 = vsel %vm6026, %v6017, %v5524
        %v6051 = vsel %vm6026, %v6018, %v5526
        %v6052 = vsel %vm6026, %v6019, %v5528
        %v6053 = vsel %vm6026, %v6020, %v5530
        %v6054 = vsel %vm6026, %v6021, %v5532
        %v6055 = vsel %vm6026, %v6022, %v5534
        %v6056 = vsel %vm6026, %v6023, %v5536
        %v6057 = vsel %vm6026, %v6024, %v5538
        %v6058 = vsel %vm6026, %v6025, %v5540
        %6091 = vrot.lane.b32.xlu0 %v3396, 4
        %v6092 = vpop.permute.xlu0 %6091
        %6093 = vrot.lane.b32.xlu0 %v3397, 4
        %v6094 = vpop.permute.xlu0 %6093
        %6095 = vrot.lane.b32.xlu0 %v3398, 4
        %v6096 = vpop.permute.xlu0 %6095
        %6097 = vrot.lane.b32.xlu0 %v3399, 4
        %v6098 = vpop.permute.xlu0 %6097
        %6099 = vrot.lane.b32.xlu0 %v3400, 4
        %v6100 = vpop.permute.xlu0 %6099
        %6101 = vrot.lane.b32.xlu0 %v3401, 4
        %v6102 = vpop.permute.xlu0 %6101
        %6103 = vrot.lane.b32.xlu0 %v3402, 4
        %v6104 = vpop.permute.xlu0 %6103
        %6105 = vrot.lane.b32.xlu0 %v3403, 4
        %v6106 = vpop.permute.xlu0 %6105
        %6107 = vrot.lane.b32.xlu0 %v3404, 4
        %v6108 = vpop.permute.xlu0 %6107
        %6109 = vrot.lane.b32.xlu0 %v3405, 4
        %v6110 = vpop.permute.xlu0 %6109
        %6111 = vrot.lane.b32.xlu0 %v3406, 4
        %v6112 = vpop.permute.xlu0 %6111
        %6113 = vrot.lane.b32.xlu0 %v3407, 4
        %v6114 = vpop.permute.xlu0 %6113
        %6115 = vrot.lane.b32.xlu0 %v3408, 4
        %v6116 = vpop.permute.xlu0 %6115
        %6117 = vrot.lane.b32.xlu0 %v3409, 4
        %v6118 = vpop.permute.xlu0 %6117
        %6119 = vrot.lane.b32.xlu0 %v3410, 4
        %v6120 = vpop.permute.xlu0 %6119
        %6121 = vrot.lane.b32.xlu0 %v3411, 4
        %v6122 = vpop.permute.xlu0 %6121
        %6123 = vrot.lane.b32.xlu0 %v3412, 4
        %v6124 = vpop.permute.xlu0 %6123
        %6125 = vrot.lane.b32.xlu0 %v3413, 4
        %v6126 = vpop.permute.xlu0 %6125
        %6127 = vrot.lane.b32.xlu0 %v3414, 4
        %v6128 = vpop.permute.xlu0 %6127
        %6129 = vrot.lane.b32.xlu0 %v3415, 4
        %v6130 = vpop.permute.xlu0 %6129
        %6131 = vrot.lane.b32.xlu0 %v3416, 4
        %v6132 = vpop.permute.xlu0 %6131
        %6133 = vrot.lane.b32.xlu0 %v3417, 4
        %v6134 = vpop.permute.xlu0 %6133
        %6135 = vrot.lane.b32.xlu0 %v3418, 4
        %v6136 = vpop.permute.xlu0 %6135
        %6137 = vrot.lane.b32.xlu0 %v3419, 4
        %v6138 = vpop.permute.xlu0 %6137
        %6139 = vrot.lane.b32.xlu0 %v3420, 4
        %v6140 = vpop.permute.xlu0 %6139
        %6141 = vrot.lane.b32.xlu0 %v3421, 4
        %v6142 = vpop.permute.xlu0 %6141
        %6143 = vrot.lane.b32.xlu0 %v3422, 4
        %v6144 = vpop.permute.xlu0 %6143
        %6145 = vrot.lane.b32.xlu0 %v3423, 4
        %v6146 = vpop.permute.xlu0 %6145
        %6147 = vrot.lane.b32.xlu0 %v3424, 4
        %v6148 = vpop.permute.xlu0 %6147
        %6149 = vrot.lane.b32.xlu0 %v3425, 4
        %v6150 = vpop.permute.xlu0 %6149
        %6151 = vrot.lane.b32.xlu0 %v3426, 4
        %v6152 = vpop.permute.xlu0 %6151
        %6153 = vrot.lane.b32.xlu0 %v3427, 4
        %v6154 = vpop.permute.xlu0 %6153
        %6219 = vrot.lane.b32.xlu0 %v3428, 8
        %v6220 = vpop.permute.xlu0 %6219
        %6221 = vrot.lane.b32.xlu0 %v3429, 8
        %v6222 = vpop.permute.xlu0 %6221
        %6223 = vrot.lane.b32.xlu0 %v3430, 8
        %v6224 = vpop.permute.xlu0 %6223
        %6225 = vrot.lane.b32.xlu0 %v3431, 8
        %v6226 = vpop.permute.xlu0 %6225
        %6227 = vrot.lane.b32.xlu0 %v3432, 8
        %v6228 = vpop.permute.xlu0 %6227
        %6229 = vrot.lane.b32.xlu0 %v3433, 8
        %v6230 = vpop.permute.xlu0 %6229
        %6231 = vrot.lane.b32.xlu0 %v3434, 8
        %v6232 = vpop.permute.xlu0 %6231
        %6233 = vrot.lane.b32.xlu0 %v3435, 8
        %v6234 = vpop.permute.xlu0 %6233
        %6235 = vrot.lane.b32.xlu0 %v3436, 8
        %v6236 = vpop.permute.xlu0 %6235
        %6237 = vrot.lane.b32.xlu0 %v3437, 8
        %v6238 = vpop.permute.xlu0 %6237
        %6239 = vrot.lane.b32.xlu0 %v3438, 8
        %v6240 = vpop.permute.xlu0 %6239
        %6241 = vrot.lane.b32.xlu0 %v3439, 8
        %v6242 = vpop.permute.xlu0 %6241
        %6243 = vrot.lane.b32.xlu0 %v3440, 8
        %v6244 = vpop.permute.xlu0 %6243
        %6245 = vrot.lane.b32.xlu0 %v3441, 8
        %v6246 = vpop.permute.xlu0 %6245
        %6247 = vrot.lane.b32.xlu0 %v3442, 8
        %v6248 = vpop.permute.xlu0 %6247
        %6249 = vrot.lane.b32.xlu0 %v3443, 8
        %v6250 = vpop.permute.xlu0 %6249
        %6251 = vrot.lane.b32.xlu0 %v3444, 8
        %v6252 = vpop.permute.xlu0 %6251
        %6253 = vrot.lane.b32.xlu0 %v3445, 8
        %v6254 = vpop.permute.xlu0 %6253
        %6255 = vrot.lane.b32.xlu0 %v3446, 8
        %v6256 = vpop.permute.xlu0 %6255
        %6257 = vrot.lane.b32.xlu0 %v3447, 8
        %v6258 = vpop.permute.xlu0 %6257
        %6259 = vrot.lane.b32.xlu0 %v3448, 8
        %v6260 = vpop.permute.xlu0 %6259
        %6261 = vrot.lane.b32.xlu0 %v3449, 8
        %v6262 = vpop.permute.xlu0 %6261
        %6263 = vrot.lane.b32.xlu0 %v3450, 8
        %v6264 = vpop.permute.xlu0 %6263
        %6265 = vrot.lane.b32.xlu0 %v3451, 8
        %v6266 = vpop.permute.xlu0 %6265
        %6267 = vrot.lane.b32.xlu0 %v3452, 8
        %v6268 = vpop.permute.xlu0 %6267
        %6269 = vrot.lane.b32.xlu0 %v3453, 8
        %v6270 = vpop.permute.xlu0 %6269
        %6271 = vrot.lane.b32.xlu0 %v3454, 8
        %v6272 = vpop.permute.xlu0 %6271
        %6273 = vrot.lane.b32.xlu0 %v3455, 8
        %v6274 = vpop.permute.xlu0 %6273
        %6275 = vrot.lane.b32.xlu0 %v3456, 8
        %v6276 = vpop.permute.xlu0 %6275
        %6277 = vrot.lane.b32.xlu0 %v3457, 8
        %v6278 = vpop.permute.xlu0 %6277
        %6279 = vrot.lane.b32.xlu0 %v3458, 8
        %v6280 = vpop.permute.xlu0 %6279
        %6281 = vrot.lane.b32.xlu0 %v3459, 8
        %v6282 = vpop.permute.xlu0 %6281
        %6347 = vrot.lane.b32.xlu0 %v3460, 12
        %v6348 = vpop.permute.xlu0 %6347
        %6349 = vrot.lane.b32.xlu0 %v3461, 12
        %v6350 = vpop.permute.xlu0 %6349
        %6351 = vrot.lane.b32.xlu0 %v3462, 12
        %v6352 = vpop.permute.xlu0 %6351
        %6353 = vrot.lane.b32.xlu0 %v3463, 12
        %v6354 = vpop.permute.xlu0 %6353
        %6355 = vrot.lane.b32.xlu0 %v3464, 12
        %v6356 = vpop.permute.xlu0 %6355
        %6357 = vrot.lane.b32.xlu0 %v3465, 12
        %v6358 = vpop.permute.xlu0 %6357
        %6359 = vrot.lane.b32.xlu0 %v3466, 12
        %v6360 = vpop.permute.xlu0 %6359
        %6361 = vrot.lane.b32.xlu0 %v3467, 12
        %v6362 = vpop.permute.xlu0 %6361
        %6363 = vrot.lane.b32.xlu0 %v3468, 12
        %v6364 = vpop.permute.xlu0 %6363
        %6365 = vrot.lane.b32.xlu0 %v3469, 12
        %v6366 = vpop.permute.xlu0 %6365
        %6367 = vrot.lane.b32.xlu0 %v3470, 12
        %v6368 = vpop.permute.xlu0 %6367
        %6369 = vrot.lane.b32.xlu0 %v3471, 12
        %v6370 = vpop.permute.xlu0 %6369
        %6371 = vrot.lane.b32.xlu0 %v3472, 12
        %v6372 = vpop.permute.xlu0 %6371
        %6373 = vrot.lane.b32.xlu0 %v3473, 12
        %v6374 = vpop.permute.xlu0 %6373
        %6375 = vrot.lane.b32.xlu0 %v3474, 12
        %v6376 = vpop.permute.xlu0 %6375
        %6377 = vrot.lane.b32.xlu0 %v3475, 12
        %v6378 = vpop.permute.xlu0 %6377
        %6379 = vrot.lane.b32.xlu0 %v3476, 12
        %v6380 = vpop.permute.xlu0 %6379
        %6381 = vrot.lane.b32.xlu0 %v3477, 12
        %v6382 = vpop.permute.xlu0 %6381
        %6383 = vrot.lane.b32.xlu0 %v3478, 12
        %v6384 = vpop.permute.xlu0 %6383
        %6385 = vrot.lane.b32.xlu0 %v3479, 12
        %v6386 = vpop.permute.xlu0 %6385
        %6387 = vrot.lane.b32.xlu0 %v3480, 12
        %v6388 = vpop.permute.xlu0 %6387
        %6389 = vrot.lane.b32.xlu0 %v3481, 12
        %v6390 = vpop.permute.xlu0 %6389
        %6391 = vrot.lane.b32.xlu0 %v3482, 12
        %v6392 = vpop.permute.xlu0 %6391
        %6393 = vrot.lane.b32.xlu0 %v3483, 12
        %v6394 = vpop.permute.xlu0 %6393
        %6395 = vrot.lane.b32.xlu0 %v3484, 12
        %v6396 = vpop.permute.xlu0 %6395
        %6397 = vrot.lane.b32.xlu0 %v3485, 12
        %v6398 = vpop.permute.xlu0 %6397
        %6399 = vrot.lane.b32.xlu0 %v3486, 12
        %v6400 = vpop.permute.xlu0 %6399
        %6401 = vrot.lane.b32.xlu0 %v3487, 12
        %v6402 = vpop.permute.xlu0 %6401
        %6403 = vrot.lane.b32.xlu0 %v3488, 12
        %v6404 = vpop.permute.xlu0 %6403
        %6405 = vrot.lane.b32.xlu0 %v3489, 12
        %v6406 = vpop.permute.xlu0 %6405
        %6407 = vrot.lane.b32.xlu0 %v3490, 12
        %v6408 = vpop.permute.xlu0 %6407
        %6409 = vrot.lane.b32.xlu0 %v3491, 12
        %v6410 = vpop.permute.xlu0 %6409
        %6475 = vrot.lane.b32.xlu0 %v3493, 16
        %v6476 = vpop.permute.xlu0 %6475
        %6477 = vrot.lane.b32.xlu0 %v3494, 16
        %v6478 = vpop.permute.xlu0 %6477
        %6479 = vrot.lane.b32.xlu0 %v3495, 16
        %v6480 = vpop.permute.xlu0 %6479
        %6481 = vrot.lane.b32.xlu0 %v3496, 16
        %v6482 = vpop.permute.xlu0 %6481
        %6483 = vrot.lane.b32.xlu0 %v3497, 16
        %v6484 = vpop.permute.xlu0 %6483
        %6485 = vrot.lane.b32.xlu0 %v3498, 16
        %v6486 = vpop.permute.xlu0 %6485
        %6487 = vrot.lane.b32.xlu0 %v3499, 16
        %v6488 = vpop.permute.xlu0 %6487
        %6489 = vrot.lane.b32.xlu0 %v3500, 16
        %v6490 = vpop.permute.xlu0 %6489
        %6491 = vrot.lane.b32.xlu0 %v3501, 16
        %v6492 = vpop.permute.xlu0 %6491
        %6493 = vrot.lane.b32.xlu0 %v3502, 16
        %v6494 = vpop.permute.xlu0 %6493
        %6495 = vrot.lane.b32.xlu0 %v3503, 16
        %v6496 = vpop.permute.xlu0 %6495
        %6497 = vrot.lane.b32.xlu0 %v3504, 16
        %v6498 = vpop.permute.xlu0 %6497
        %6499 = vrot.lane.b32.xlu0 %v3505, 16
        %v6500 = vpop.permute.xlu0 %6499
        %6501 = vrot.lane.b32.xlu0 %v3506, 16
        %v6502 = vpop.permute.xlu0 %6501
        %6503 = vrot.lane.b32.xlu0 %v3507, 16
        %v6504 = vpop.permute.xlu0 %6503
        %6505 = vrot.lane.b32.xlu0 %v3508, 16
        %v6506 = vpop.permute.xlu0 %6505
        %6507 = vrot.lane.b32.xlu0 %v3509, 16
        %v6508 = vpop.permute.xlu0 %6507
        %6509 = vrot.lane.b32.xlu0 %v3510, 16
        %v6510 = vpop.permute.xlu0 %6509
        %6511 = vrot.lane.b32.xlu0 %v3511, 16
        %v6512 = vpop.permute.xlu0 %6511
        %6513 = vrot.lane.b32.xlu0 %v3512, 16
        %v6514 = vpop.permute.xlu0 %6513
        %6515 = vrot.lane.b32.xlu0 %v3513, 16
        %v6516 = vpop.permute.xlu0 %6515
        %6517 = vrot.lane.b32.xlu0 %v3514, 16
        %v6518 = vpop.permute.xlu0 %6517
        %6519 = vrot.lane.b32.xlu0 %v3515, 16
        %v6520 = vpop.permute.xlu0 %6519
        %6521 = vrot.lane.b32.xlu0 %v3516, 16
        %v6522 = vpop.permute.xlu0 %6521
        %6523 = vrot.lane.b32.xlu0 %v3517, 16
        %v6524 = vpop.permute.xlu0 %6523
        %6525 = vrot.lane.b32.xlu0 %v3518, 16
        %v6526 = vpop.permute.xlu0 %6525
        %6527 = vrot.lane.b32.xlu0 %v3519, 16
        %v6528 = vpop.permute.xlu0 %6527
        %6529 = vrot.lane.b32.xlu0 %v3520, 16
        %v6530 = vpop.permute.xlu0 %6529
        %6531 = vrot.lane.b32.xlu0 %v3521, 16
        %v6532 = vpop.permute.xlu0 %6531
        %6533 = vrot.lane.b32.xlu0 %v3522, 16
        %v6534 = vpop.permute.xlu0 %6533
        %6535 = vrot.lane.b32.xlu0 %v3523, 16
        %v6536 = vpop.permute.xlu0 %6535
        %6537 = vrot.lane.b32.xlu0 %v3524, 16
        %v6538 = vpop.permute.xlu0 %6537
        %6603 = vrot.lane.b32.xlu0 %v3525, 20
        %v6604 = vpop.permute.xlu0 %6603
        %6605 = vrot.lane.b32.xlu0 %v3526, 20
        %v6606 = vpop.permute.xlu0 %6605
        %6607 = vrot.lane.b32.xlu0 %v3527, 20
        %v6608 = vpop.permute.xlu0 %6607
        %6609 = vrot.lane.b32.xlu0 %v3528, 20
        %v6610 = vpop.permute.xlu0 %6609
        %6611 = vrot.lane.b32.xlu0 %v3529, 20
        %v6612 = vpop.permute.xlu0 %6611
        %6613 = vrot.lane.b32.xlu0 %v3530, 20
        %v6614 = vpop.permute.xlu0 %6613
        %6615 = vrot.lane.b32.xlu0 %v3531, 20
        %v6616 = vpop.permute.xlu0 %6615
        %6617 = vrot.lane.b32.xlu0 %v3532, 20
        %v6618 = vpop.permute.xlu0 %6617
        %6619 = vrot.lane.b32.xlu0 %v3533, 20
        %v6620 = vpop.permute.xlu0 %6619
        %6621 = vrot.lane.b32.xlu0 %v3534, 20
        %v6622 = vpop.permute.xlu0 %6621
        %6623 = vrot.lane.b32.xlu0 %v3535, 20
        %v6624 = vpop.permute.xlu0 %6623
        %6625 = vrot.lane.b32.xlu0 %v3536, 20
        %v6626 = vpop.permute.xlu0 %6625
        %6627 = vrot.lane.b32.xlu0 %v3537, 20
        %v6628 = vpop.permute.xlu0 %6627
        %6629 = vrot.lane.b32.xlu0 %v3538, 20
        %v6630 = vpop.permute.xlu0 %6629
        %6631 = vrot.lane.b32.xlu0 %v3539, 20
        %v6632 = vpop.permute.xlu0 %6631
        %6633 = vrot.lane.b32.xlu0 %v3540, 20
        %v6634 = vpop.permute.xlu0 %6633
        %6635 = vrot.lane.b32.xlu0 %v3541, 20
        %v6636 = vpop.permute.xlu0 %6635
        %6637 = vrot.lane.b32.xlu0 %v3542, 20
        %v6638 = vpop.permute.xlu0 %6637
        %6639 = vrot.lane.b32.xlu0 %v3543, 20
        %v6640 = vpop.permute.xlu0 %6639
        %6641 = vrot.lane.b32.xlu0 %v3544, 20
        %v6642 = vpop.permute.xlu0 %6641
        %6643 = vrot.lane.b32.xlu0 %v3545, 20
        %v6644 = vpop.permute.xlu0 %6643
        %6645 = vrot.lane.b32.xlu0 %v3546, 20
        %v6646 = vpop.permute.xlu0 %6645
        %6647 = vrot.lane.b32.xlu0 %v3547, 20
        %v6648 = vpop.permute.xlu0 %6647
        %6649 = vrot.lane.b32.xlu0 %v3548, 20
        %v6650 = vpop.permute.xlu0 %6649
        %6651 = vrot.lane.b32.xlu0 %v3549, 20
        %v6652 = vpop.permute.xlu0 %6651
        %6653 = vrot.lane.b32.xlu0 %v3550, 20
        %v6654 = vpop.permute.xlu0 %6653
        %6655 = vrot.lane.b32.xlu0 %v3551, 20
        %v6656 = vpop.permute.xlu0 %6655
        %6657 = vrot.lane.b32.xlu0 %v3552, 20
        %v6658 = vpop.permute.xlu0 %6657
        %6659 = vrot.lane.b32.xlu0 %v3553, 20
        %v6660 = vpop.permute.xlu0 %6659
        %6661 = vrot.lane.b32.xlu0 %v3554, 20
        %v6662 = vpop.permute.xlu0 %6661
        %6663 = vrot.lane.b32.xlu0 %v3555, 20
        %v6664 = vpop.permute.xlu0 %6663
        %6665 = vrot.lane.b32.xlu0 %v3556, 20
        %v6666 = vpop.permute.xlu0 %6665
        %6731 = vrot.lane.b32.xlu0 %v3557, 24
        %v6732 = vpop.permute.xlu0 %6731
        %6733 = vrot.lane.b32.xlu0 %v3558, 24
        %v6734 = vpop.permute.xlu0 %6733
        %6735 = vrot.lane.b32.xlu0 %v3559, 24
        %v6736 = vpop.permute.xlu0 %6735
        %6737 = vrot.lane.b32.xlu0 %v3560, 24
        %v6738 = vpop.permute.xlu0 %6737
        %6739 = vrot.lane.b32.xlu0 %v3561, 24
        %v6740 = vpop.permute.xlu0 %6739
        %6741 = vrot.lane.b32.xlu0 %v3562, 24
        %v6742 = vpop.permute.xlu0 %6741
        %6743 = vrot.lane.b32.xlu0 %v3563, 24
        %v6744 = vpop.permute.xlu0 %6743
        %6745 = vrot.lane.b32.xlu0 %v3564, 24
        %v6746 = vpop.permute.xlu0 %6745
        %6747 = vrot.lane.b32.xlu0 %v3565, 24
        %v6748 = vpop.permute.xlu0 %6747
        %6749 = vrot.lane.b32.xlu0 %v3566, 24
        %v6750 = vpop.permute.xlu0 %6749
        %6751 = vrot.lane.b32.xlu0 %v3567, 24
        %v6752 = vpop.permute.xlu0 %6751
        %6753 = vrot.lane.b32.xlu0 %v3568, 24
        %v6754 = vpop.permute.xlu0 %6753
        %6755 = vrot.lane.b32.xlu0 %v3569, 24
        %v6756 = vpop.permute.xlu0 %6755
        %6757 = vrot.lane.b32.xlu0 %v3570, 24
        %v6758 = vpop.permute.xlu0 %6757
        %6759 = vrot.lane.b32.xlu0 %v3571, 24
        %v6760 = vpop.permute.xlu0 %6759
        %6761 = vrot.lane.b32.xlu0 %v3572, 24
        %v6762 = vpop.permute.xlu0 %6761
        %6763 = vrot.lane.b32.xlu0 %v3573, 24
        %v6764 = vpop.permute.xlu0 %6763
        %6765 = vrot.lane.b32.xlu0 %v3574, 24
        %v6766 = vpop.permute.xlu0 %6765
        %6767 = vrot.lane.b32.xlu0 %v3575, 24
        %v6768 = vpop.permute.xlu0 %6767
        %6769 = vrot.lane.b32.xlu0 %v3576, 24
        %v6770 = vpop.permute.xlu0 %6769
        %6771 = vrot.lane.b32.xlu0 %v3577, 24
        %v6772 = vpop.permute.xlu0 %6771
        %6773 = vrot.lane.b32.xlu0 %v3578, 24
        %v6774 = vpop.permute.xlu0 %6773
        %6775 = vrot.lane.b32.xlu0 %v3579, 24
        %v6776 = vpop.permute.xlu0 %6775
        %6777 = vrot.lane.b32.xlu0 %v3580, 24
        %v6778 = vpop.permute.xlu0 %6777
        %6779 = vrot.lane.b32.xlu0 %v3581, 24
        %v6780 = vpop.permute.xlu0 %6779
        %6781 = vrot.lane.b32.xlu0 %v3582, 24
        %v6782 = vpop.permute.xlu0 %6781
        %6783 = vrot.lane.b32.xlu0 %v3583, 24
        %v6784 = vpop.permute.xlu0 %6783
        %6785 = vrot.lane.b32.xlu0 %v3584, 24
        %v6786 = vpop.permute.xlu0 %6785
        %6787 = vrot.lane.b32.xlu0 %v3585, 24
        %v6788 = vpop.permute.xlu0 %6787
        %6789 = vrot.lane.b32.xlu0 %v3586, 24
        %v6790 = vpop.permute.xlu0 %6789
        %6791 = vrot.lane.b32.xlu0 %v3587, 24
        %v6792 = vpop.permute.xlu0 %6791
        %6793 = vrot.lane.b32.xlu0 %v3588, 24
        %v6794 = vpop.permute.xlu0 %6793
        %6859 = vrot.lane.b32.xlu0 %v3589, 28
        %v6860 = vpop.permute.xlu0 %6859
        %6861 = vrot.lane.b32.xlu0 %v3590, 28
        %v6862 = vpop.permute.xlu0 %6861
        %6863 = vrot.lane.b32.xlu0 %v3591, 28
        %v6864 = vpop.permute.xlu0 %6863
        %6865 = vrot.lane.b32.xlu0 %v3592, 28
        %v6866 = vpop.permute.xlu0 %6865
        %6867 = vrot.lane.b32.xlu0 %v3593, 28
        %v6868 = vpop.permute.xlu0 %6867
        %6869 = vrot.lane.b32.xlu0 %v3594, 28
        %v6870 = vpop.permute.xlu0 %6869
        %6871 = vrot.lane.b32.xlu0 %v3595, 28
        %v6872 = vpop.permute.xlu0 %6871
        %6873 = vrot.lane.b32.xlu0 %v3596, 28
        %v6874 = vpop.permute.xlu0 %6873
        %6875 = vrot.lane.b32.xlu0 %v3597, 28
        %v6876 = vpop.permute.xlu0 %6875
        %6877 = vrot.lane.b32.xlu0 %v3598, 28
        %v6878 = vpop.permute.xlu0 %6877
        %6879 = vrot.lane.b32.xlu0 %v3599, 28
        %v6880 = vpop.permute.xlu0 %6879
        %6881 = vrot.lane.b32.xlu0 %v3600, 28
        %v6882 = vpop.permute.xlu0 %6881
        %6883 = vrot.lane.b32.xlu0 %v3601, 28
        %v6884 = vpop.permute.xlu0 %6883
        %6885 = vrot.lane.b32.xlu0 %v3602, 28
        %v6886 = vpop.permute.xlu0 %6885
        %6887 = vrot.lane.b32.xlu0 %v3603, 28
        %v6888 = vpop.permute.xlu0 %6887
        %6889 = vrot.lane.b32.xlu0 %v3604, 28
        %v6890 = vpop.permute.xlu0 %6889
        %6891 = vrot.lane.b32.xlu0 %v3605, 28
        %v6892 = vpop.permute.xlu0 %6891
        %6893 = vrot.lane.b32.xlu0 %v3606, 28
        %v6894 = vpop.permute.xlu0 %6893
        %6895 = vrot.lane.b32.xlu0 %v3607, 28
        %v6896 = vpop.permute.xlu0 %6895
        %6897 = vrot.lane.b32.xlu0 %v3608, 28
        %v6898 = vpop.permute.xlu0 %6897
        %6899 = vrot.lane.b32.xlu0 %v3609, 28
        %v6900 = vpop.permute.xlu0 %6899
        %6901 = vrot.lane.b32.xlu0 %v3610, 28
        %v6902 = vpop.permute.xlu0 %6901
        %6903 = vrot.lane.b32.xlu0 %v3611, 28
        %v6904 = vpop.permute.xlu0 %6903
        %6905 = vrot.lane.b32.xlu0 %v3612, 28
        %v6906 = vpop.permute.xlu0 %6905
        %6907 = vrot.lane.b32.xlu0 %v3613, 28
        %v6908 = vpop.permute.xlu0 %6907
        %6909 = vrot.lane.b32.xlu0 %v3614, 28
        %v6910 = vpop.permute.xlu0 %6909
        %6911 = vrot.lane.b32.xlu0 %v3615, 28
        %v6912 = vpop.permute.xlu0 %6911
        %6913 = vrot.lane.b32.xlu0 %v3616, 28
        %v6914 = vpop.permute.xlu0 %6913
        %6915 = vrot.lane.b32.xlu0 %v3617, 28
        %v6916 = vpop.permute.xlu0 %6915
        %6917 = vrot.lane.b32.xlu0 %v3618, 28
        %v6918 = vpop.permute.xlu0 %6917
        %6919 = vrot.lane.b32.xlu0 %v3619, 28
        %v6920 = vpop.permute.xlu0 %6919
        %6921 = vrot.lane.b32.xlu0 %v3620, 28
        %v6922 = vpop.permute.xlu0 %6921
        %6987 = vrot.lane.b32.xlu0 %v3621, 32
        %v6988 = vpop.permute.xlu0 %6987
        %6989 = vrot.lane.b32.xlu0 %v3622, 32
        %v6990 = vpop.permute.xlu0 %6989
        %6991 = vrot.lane.b32.xlu0 %v3623, 32
        %v6992 = vpop.permute.xlu0 %6991
        %6993 = vrot.lane.b32.xlu0 %v3624, 32
        %v6994 = vpop.permute.xlu0 %6993
        %6995 = vrot.lane.b32.xlu0 %v3625, 32
        %v6996 = vpop.permute.xlu0 %6995
        %6997 = vrot.lane.b32.xlu0 %v3626, 32
        %v6998 = vpop.permute.xlu0 %6997
        %6999 = vrot.lane.b32.xlu0 %v3627, 32
        %v7000 = vpop.permute.xlu0 %6999
        %7001 = vrot.lane.b32.xlu0 %v3628, 32
        %v7002 = vpop.permute.xlu0 %7001
        %7003 = vrot.lane.b32.xlu0 %v3629, 32
        %v7004 = vpop.permute.xlu0 %7003
        %7005 = vrot.lane.b32.xlu0 %v3630, 32
        %v7006 = vpop.permute.xlu0 %7005
        %7007 = vrot.lane.b32.xlu0 %v3631, 32
        %v7008 = vpop.permute.xlu0 %7007
        %7009 = vrot.lane.b32.xlu0 %v3632, 32
        %v7010 = vpop.permute.xlu0 %7009
        %7011 = vrot.lane.b32.xlu0 %v3633, 32
        %v7012 = vpop.permute.xlu0 %7011
        %7013 = vrot.lane.b32.xlu0 %v3634, 32
        %v7014 = vpop.permute.xlu0 %7013
        %7015 = vrot.lane.b32.xlu0 %v3635, 32
        %v7016 = vpop.permute.xlu0 %7015
        %7017 = vrot.lane.b32.xlu0 %v3636, 32
        %v7018 = vpop.permute.xlu0 %7017
        %7019 = vrot.lane.b32.xlu0 %v3637, 32
        %v7020 = vpop.permute.xlu0 %7019
        %7021 = vrot.lane.b32.xlu0 %v3638, 32
        %v7022 = vpop.permute.xlu0 %7021
        %7023 = vrot.lane.b32.xlu0 %v3639, 32
        %v7024 = vpop.permute.xlu0 %7023
        %7025 = vrot.lane.b32.xlu0 %v3640, 32
        %v7026 = vpop.permute.xlu0 %7025
        %7027 = vrot.lane.b32.xlu0 %v3641, 32
        %v7028 = vpop.permute.xlu0 %7027
        %7029 = vrot.lane.b32.xlu0 %v3642, 32
        %v7030 = vpop.permute.xlu0 %7029
        %7031 = vrot.lane.b32.xlu0 %v3643, 32
        %v7032 = vpop.permute.xlu0 %7031
        %7033 = vrot.lane.b32.xlu0 %v3644, 32
        %v7034 = vpop.permute.xlu0 %7033
        %7035 = vrot.lane.b32.xlu0 %v3645, 32
        %v7036 = vpop.permute.xlu0 %7035
        %7037 = vrot.lane.b32.xlu0 %v3646, 32
        %v7038 = vpop.permute.xlu0 %7037
        %7039 = vrot.lane.b32.xlu0 %v3647, 32
        %v7040 = vpop.permute.xlu0 %7039
        %7041 = vrot.lane.b32.xlu0 %v3648, 32
        %v7042 = vpop.permute.xlu0 %7041
        %7043 = vrot.lane.b32.xlu0 %v3649, 32
        %v7044 = vpop.permute.xlu0 %7043
        %7045 = vrot.lane.b32.xlu0 %v3650, 32
        %v7046 = vpop.permute.xlu0 %7045
        %7047 = vrot.lane.b32.xlu0 %v3651, 32
        %v7048 = vpop.permute.xlu0 %7047
        %7049 = vrot.lane.b32.xlu0 %v3652, 32
        %v7050 = vpop.permute.xlu0 %7049
        %v7083 = vsel %vm368, %v3364, %v6092
        %v7084 = vsel %vm368, %v3365, %v6094
        %v7085 = vsel %vm368, %v3366, %v6096
        %v7086 = vsel %vm368, %v3367, %v6098
        %v7087 = vsel %vm368, %v3368, %v6100
        %v7088 = vsel %vm368, %v3369, %v6102
        %v7089 = vsel %vm368, %v3370, %v6104
        %v7090 = vsel %vm368, %v3371, %v6106
        %v7091 = vsel %vm368, %v3372, %v6108
        %v7092 = vsel %vm368, %v3373, %v6110
        %v7093 = vsel %vm368, %v3374, %v6112
        %v7094 = vsel %vm368, %v3375, %v6114
        %v7095 = vsel %vm368, %v3376, %v6116
        %v7096 = vsel %vm368, %v3377, %v6118
        %v7097 = vsel %vm368, %v3378, %v6120
        %v7098 = vsel %vm368, %v3379, %v6122
        %v7099 = vsel %vm368, %v3380, %v6124
        %v7100 = vsel %vm368, %v3381, %v6126
        %v7101 = vsel %vm368, %v3382, %v6128
        %v7102 = vsel %vm368, %v3383, %v6130
        %v7103 = vsel %vm368, %v3384, %v6132
        %v7104 = vsel %vm368, %v3385, %v6134
        %v7105 = vsel %vm368, %v3386, %v6136
        %v7106 = vsel %vm368, %v3387, %v6138
        %v7107 = vsel %vm368, %v3388, %v6140
        %v7108 = vsel %vm368, %v3389, %v6142
        %v7109 = vsel %vm368, %v3390, %v6144
        %v7110 = vsel %vm368, %v3391, %v6146
        %v7111 = vsel %vm368, %v3392, %v6148
        %v7112 = vsel %vm368, %v3393, %v6150
        %v7113 = vsel %vm368, %v3394, %v6152
        %v7114 = vsel %vm368, %v3395, %v6154
        %v7115 = vsel %vm2175, %v7083, %v6220
        %v7116 = vsel %vm2175, %v7084, %v6222
        %v7117 = vsel %vm2175, %v7085, %v6224
        %v7118 = vsel %vm2175, %v7086, %v6226
        %v7119 = vsel %vm2175, %v7087, %v6228
        %v7120 = vsel %vm2175, %v7088, %v6230
        %v7121 = vsel %vm2175, %v7089, %v6232
        %v7122 = vsel %vm2175, %v7090, %v6234
        %v7123 = vsel %vm2175, %v7091, %v6236
        %v7124 = vsel %vm2175, %v7092, %v6238
        %v7125 = vsel %vm2175, %v7093, %v6240
        %v7126 = vsel %vm2175, %v7094, %v6242
        %v7127 = vsel %vm2175, %v7095, %v6244
        %v7128 = vsel %vm2175, %v7096, %v6246
        %v7129 = vsel %vm2175, %v7097, %v6248
        %v7130 = vsel %vm2175, %v7098, %v6250
        %v7131 = vsel %vm2175, %v7099, %v6252
        %v7132 = vsel %vm2175, %v7100, %v6254
        %v7133 = vsel %vm2175, %v7101, %v6256
        %v7134 = vsel %vm2175, %v7102, %v6258
        %v7135 = vsel %vm2175, %v7103, %v6260
        %v7136 = vsel %vm2175, %v7104, %v6262
        %v7137 = vsel %vm2175, %v7105, %v6264
        %v7138 = vsel %vm2175, %v7106, %v6266
        %v7139 = vsel %vm2175, %v7107, %v6268
        %v7140 = vsel %vm2175, %v7108, %v6270
        %v7141 = vsel %vm2175, %v7109, %v6272
        %v7142 = vsel %vm2175, %v7110, %v6274
        %v7143 = vsel %vm2175, %v7111, %v6276
        %v7144 = vsel %vm2175, %v7112, %v6278
        %v7145 = vsel %vm2175, %v7113, %v6280
        %v7146 = vsel %vm2175, %v7114, %v6282
        %v7147 = vsel %vm2208, %v7115, %v6348
        %v7148 = vsel %vm2208, %v7116, %v6350
        %v7149 = vsel %vm2208, %v7117, %v6352
        %v7150 = vsel %vm2208, %v7118, %v6354
        %v7151 = vsel %vm2208, %v7119, %v6356
        %v7152 = vsel %vm2208, %v7120, %v6358
        %v7153 = vsel %vm2208, %v7121, %v6360
        %v7154 = vsel %vm2208, %v7122, %v6362
        %v7155 = vsel %vm2208, %v7123, %v6364
        %v7156 = vsel %vm2208, %v7124, %v6366
        %v7157 = vsel %vm2208, %v7125, %v6368
        %v7158 = vsel %vm2208, %v7126, %v6370
        %v7159 = vsel %vm2208, %v7127, %v6372
        %v7160 = vsel %vm2208, %v7128, %v6374
        %v7161 = vsel %vm2208, %v7129, %v6376
        %v7162 = vsel %vm2208, %v7130, %v6378
        %v7163 = vsel %vm2208, %v7131, %v6380
        %v7164 = vsel %vm2208, %v7132, %v6382
        %v7165 = vsel %vm2208, %v7133, %v6384
        %v7166 = vsel %vm2208, %v7134, %v6386
        %v7167 = vsel %vm2208, %v7135, %v6388
        %v7168 = vsel %vm2208, %v7136, %v6390
        %v7169 = vsel %vm2208, %v7137, %v6392
        %v7170 = vsel %vm2208, %v7138, %v6394
        %v7171 = vsel %vm2208, %v7139, %v6396
        %v7172 = vsel %vm2208, %v7140, %v6398
        %v7173 = vsel %vm2208, %v7141, %v6400
        %v7174 = vsel %vm2208, %v7142, %v6402
        %v7175 = vsel %vm2208, %v7143, %v6404
        %v7176 = vsel %vm2208, %v7144, %v6406
        %v7177 = vsel %vm2208, %v7145, %v6408
        %v7178 = vsel %vm2208, %v7146, %v6410
        %v7179 = vsel %vm2241, %v7147, %v6476
        %v7180 = vsel %vm2241, %v7148, %v6478
        %v7181 = vsel %vm2241, %v7149, %v6480
        %v7182 = vsel %vm2241, %v7150, %v6482
        %v7183 = vsel %vm2241, %v7151, %v6484
        %v7184 = vsel %vm2241, %v7152, %v6486
        %v7185 = vsel %vm2241, %v7153, %v6488
        %v7186 = vsel %vm2241, %v7154, %v6490
        %v7187 = vsel %vm2241, %v7155, %v6492
        %v7188 = vsel %vm2241, %v7156, %v6494
        %v7189 = vsel %vm2241, %v7157, %v6496
        %v7190 = vsel %vm2241, %v7158, %v6498
        %v7191 = vsel %vm2241, %v7159, %v6500
        %v7192 = vsel %vm2241, %v7160, %v6502
        %v7193 = vsel %vm2241, %v7161, %v6504
        %v7194 = vsel %vm2241, %v7162, %v6506
        %v7195 = vsel %vm2241, %v7163, %v6508
        %v7196 = vsel %vm2241, %v7164, %v6510
        %v7197 = vsel %vm2241, %v7165, %v6512
        %v7198 = vsel %vm2241, %v7166, %v6514
        %v7199 = vsel %vm2241, %v7167, %v6516
        %v7200 = vsel %vm2241, %v7168, %v6518
        %v7201 = vsel %vm2241, %v7169, %v6520
        %v7202 = vsel %vm2241, %v7170, %v6522
        %v7203 = vsel %vm2241, %v7171, %v6524
        %v7204 = vsel %vm2241, %v7172, %v6526
        %v7205 = vsel %vm2241, %v7173, %v6528
        %v7206 = vsel %vm2241, %v7174, %v6530
        %v7207 = vsel %vm2241, %v7175, %v6532
        %v7208 = vsel %vm2241, %v7176, %v6534
        %v7209 = vsel %vm2241, %v7177, %v6536
        %v7210 = vsel %vm2241, %v7178, %v6538
        %v7211 = vsel %vm2274, %v7179, %v6604
        %v7212 = vsel %vm2274, %v7180, %v6606
        %v7213 = vsel %vm2274, %v7181, %v6608
        %v7214 = vsel %vm2274, %v7182, %v6610
        %v7215 = vsel %vm2274, %v7183, %v6612
        %v7216 = vsel %vm2274, %v7184, %v6614
        %v7217 = vsel %vm2274, %v7185, %v6616
        %v7218 = vsel %vm2274, %v7186, %v6618
        %v7219 = vsel %vm2274, %v7187, %v6620
        %v7220 = vsel %vm2274, %v7188, %v6622
        %v7221 = vsel %vm2274, %v7189, %v6624
        %v7222 = vsel %vm2274, %v7190, %v6626
        %v7223 = vsel %vm2274, %v7191, %v6628
        %v7224 = vsel %vm2274, %v7192, %v6630
        %v7225 = vsel %vm2274, %v7193, %v6632
        %v7226 = vsel %vm2274, %v7194, %v6634
        %v7227 = vsel %vm2274, %v7195, %v6636
        %v7228 = vsel %vm2274, %v7196, %v6638
        %v7229 = vsel %vm2274, %v7197, %v6640
        %v7230 = vsel %vm2274, %v7198, %v6642
        %v7231 = vsel %vm2274, %v7199, %v6644
        %v7232 = vsel %vm2274, %v7200, %v6646
        %v7233 = vsel %vm2274, %v7201, %v6648
        %v7234 = vsel %vm2274, %v7202, %v6650
        %v7235 = vsel %vm2274, %v7203, %v6652
        %v7236 = vsel %vm2274, %v7204, %v6654
        %v7237 = vsel %vm2274, %v7205, %v6656
        %v7238 = vsel %vm2274, %v7206, %v6658
        %v7239 = vsel %vm2274, %v7207, %v6660
        %v7240 = vsel %vm2274, %v7208, %v6662
        %v7241 = vsel %vm2274, %v7209, %v6664
        %v7242 = vsel %vm2274, %v7210, %v6666
        %v7243 = vsel %vm2307, %v7211, %v6732
        %v7244 = vsel %vm2307, %v7212, %v6734
        %v7245 = vsel %vm2307, %v7213, %v6736
        %v7246 = vsel %vm2307, %v7214, %v6738
        %v7247 = vsel %vm2307, %v7215, %v6740
        %v7248 = vsel %vm2307, %v7216, %v6742
        %v7249 = vsel %vm2307, %v7217, %v6744
        %v7250 = vsel %vm2307, %v7218, %v6746
        %v7251 = vsel %vm2307, %v7219, %v6748
        %v7252 = vsel %vm2307, %v7220, %v6750
        %v7253 = vsel %vm2307, %v7221, %v6752
        %v7254 = vsel %vm2307, %v7222, %v6754
        %v7255 = vsel %vm2307, %v7223, %v6756
        %v7256 = vsel %vm2307, %v7224, %v6758
        %v7257 = vsel %vm2307, %v7225, %v6760
        %v7258 = vsel %vm2307, %v7226, %v6762
        %v7259 = vsel %vm2307, %v7227, %v6764
        %v7260 = vsel %vm2307, %v7228, %v6766
        %v7261 = vsel %vm2307, %v7229, %v6768
        %v7262 = vsel %vm2307, %v7230, %v6770
        %v7263 = vsel %vm2307, %v7231, %v6772
        %v7264 = vsel %vm2307, %v7232, %v6774
        %v7265 = vsel %vm2307, %v7233, %v6776
        %v7266 = vsel %vm2307, %v7234, %v6778
        %v7267 = vsel %vm2307, %v7235, %v6780
        %v7268 = vsel %vm2307, %v7236, %v6782
        %v7269 = vsel %vm2307, %v7237, %v6784
        %v7270 = vsel %vm2307, %v7238, %v6786
        %v7271 = vsel %vm2307, %v7239, %v6788
        %v7272 = vsel %vm2307, %v7240, %v6790
        %v7273 = vsel %vm2307, %v7241, %v6792
        %v7274 = vsel %vm2307, %v7242, %v6794
        %v7275 = vsel %vm2340, %v7243, %v6860
        %v7276 = vsel %vm2340, %v7244, %v6862
        %v7277 = vsel %vm2340, %v7245, %v6864
        %v7278 = vsel %vm2340, %v7246, %v6866
        %v7279 = vsel %vm2340, %v7247, %v6868
        %v7280 = vsel %vm2340, %v7248, %v6870
        %v7281 = vsel %vm2340, %v7249, %v6872
        %v7282 = vsel %vm2340, %v7250, %v6874
        %v7283 = vsel %vm2340, %v7251, %v6876
        %v7284 = vsel %vm2340, %v7252, %v6878
        %v7285 = vsel %vm2340, %v7253, %v6880
        %v7286 = vsel %vm2340, %v7254, %v6882
        %v7287 = vsel %vm2340, %v7255, %v6884
        %v7288 = vsel %vm2340, %v7256, %v6886
        %v7289 = vsel %vm2340, %v7257, %v6888
        %v7290 = vsel %vm2340, %v7258, %v6890
        %v7291 = vsel %vm2340, %v7259, %v6892
        %v7292 = vsel %vm2340, %v7260, %v6894
        %v7293 = vsel %vm2340, %v7261, %v6896
        %v7294 = vsel %vm2340, %v7262, %v6898
        %v7295 = vsel %vm2340, %v7263, %v6900
        %v7296 = vsel %vm2340, %v7264, %v6902
        %v7297 = vsel %vm2340, %v7265, %v6904
        %v7298 = vsel %vm2340, %v7266, %v6906
        %v7299 = vsel %vm2340, %v7267, %v6908
        %v7300 = vsel %vm2340, %v7268, %v6910
        %v7301 = vsel %vm2340, %v7269, %v6912
        %v7302 = vsel %vm2340, %v7270, %v6914
        %v7303 = vsel %vm2340, %v7271, %v6916
        %v7304 = vsel %vm2340, %v7272, %v6918
        %v7305 = vsel %vm2340, %v7273, %v6920
        %v7306 = vsel %vm2340, %v7274, %v6922
        %v7307 = vsel %vm2373, %v7275, %v6988
        %v7308 = vsel %vm2373, %v7276, %v6990
        %v7309 = vsel %vm2373, %v7277, %v6992
        %v7310 = vsel %vm2373, %v7278, %v6994
        %v7311 = vsel %vm2373, %v7279, %v6996
        %v7312 = vsel %vm2373, %v7280, %v6998
        %v7313 = vsel %vm2373, %v7281, %v7000
        %v7314 = vsel %vm2373, %v7282, %v7002
        %v7315 = vsel %vm2373, %v7283, %v7004
        %v7316 = vsel %vm2373, %v7284, %v7006
        %v7317 = vsel %vm2373, %v7285, %v7008
        %v7318 = vsel %vm2373, %v7286, %v7010
        %v7319 = vsel %vm2373, %v7287, %v7012
        %v7320 = vsel %vm2373, %v7288, %v7014
        %v7321 = vsel %vm2373, %v7289, %v7016
        %v7322 = vsel %vm2373, %v7290, %v7018
        %v7323 = vsel %vm2373, %v7291, %v7020
        %v7324 = vsel %vm2373, %v7292, %v7022
        %v7325 = vsel %vm2373, %v7293, %v7024
        %v7326 = vsel %vm2373, %v7294, %v7026
        %v7327 = vsel %vm2373, %v7295, %v7028
        %v7328 = vsel %vm2373, %v7296, %v7030
        %v7329 = vsel %vm2373, %v7297, %v7032
        %v7330 = vsel %vm2373, %v7298, %v7034
        %v7331 = vsel %vm2373, %v7299, %v7036
        %v7332 = vsel %vm2373, %v7300, %v7038
        %v7333 = vsel %vm2373, %v7301, %v7040
        %v7334 = vsel %vm2373, %v7302, %v7042
        %v7335 = vsel %vm2373, %v7303, %v7044
        %v7336 = vsel %vm2373, %v7304, %v7046
        %v7337 = vsel %vm2373, %v7305, %v7048
        %v7338 = vsel %vm2373, %v7306, %v7050
        %7371 = vrot.lane.b32.xlu0 %v7307, 64
        %v7372 = vpop.permute.xlu0 %7371
        %7373 = vrot.lane.b32.xlu0 %v7308, 64
        %v7374 = vpop.permute.xlu0 %7373
        %7375 = vrot.lane.b32.xlu0 %v7309, 64
        %v7376 = vpop.permute.xlu0 %7375
        %7377 = vrot.lane.b32.xlu0 %v7310, 64
        %v7378 = vpop.permute.xlu0 %7377
        %7379 = vrot.lane.b32.xlu0 %v7311, 64
        %v7380 = vpop.permute.xlu0 %7379
        %7381 = vrot.lane.b32.xlu0 %v7312, 64
        %v7382 = vpop.permute.xlu0 %7381
        %7383 = vrot.lane.b32.xlu0 %v7313, 64
        %v7384 = vpop.permute.xlu0 %7383
        %7385 = vrot.lane.b32.xlu0 %v7314, 64
        %v7386 = vpop.permute.xlu0 %7385
        %7387 = vrot.lane.b32.xlu0 %v7315, 64
        %v7388 = vpop.permute.xlu0 %7387
        %7389 = vrot.lane.b32.xlu0 %v7316, 64
        %v7390 = vpop.permute.xlu0 %7389
        %7391 = vrot.lane.b32.xlu0 %v7317, 64
        %v7392 = vpop.permute.xlu0 %7391
        %7393 = vrot.lane.b32.xlu0 %v7318, 64
        %v7394 = vpop.permute.xlu0 %7393
        %7395 = vrot.lane.b32.xlu0 %v7319, 64
        %v7396 = vpop.permute.xlu0 %7395
        %7397 = vrot.lane.b32.xlu0 %v7320, 64
        %v7398 = vpop.permute.xlu0 %7397
        %7399 = vrot.lane.b32.xlu0 %v7321, 64
        %v7400 = vpop.permute.xlu0 %7399
        %7401 = vrot.lane.b32.xlu0 %v7322, 64
        %v7402 = vpop.permute.xlu0 %7401
        %7403 = vrot.lane.b32.xlu0 %v7323, 64
        %v7404 = vpop.permute.xlu0 %7403
        %7405 = vrot.lane.b32.xlu0 %v7324, 64
        %v7406 = vpop.permute.xlu0 %7405
        %7407 = vrot.lane.b32.xlu0 %v7325, 64
        %v7408 = vpop.permute.xlu0 %7407
        %7409 = vrot.lane.b32.xlu0 %v7326, 64
        %v7410 = vpop.permute.xlu0 %7409
        %7411 = vrot.lane.b32.xlu0 %v7327, 64
        %v7412 = vpop.permute.xlu0 %7411
        %7413 = vrot.lane.b32.xlu0 %v7328, 64
        %v7414 = vpop.permute.xlu0 %7413
        %7415 = vrot.lane.b32.xlu0 %v7329, 64
        %v7416 = vpop.permute.xlu0 %7415
        %7417 = vrot.lane.b32.xlu0 %v7330, 64
        %v7418 = vpop.permute.xlu0 %7417
        %7419 = vrot.lane.b32.xlu0 %v7331, 64
        %v7420 = vpop.permute.xlu0 %7419
        %7421 = vrot.lane.b32.xlu0 %v7332, 64
        %v7422 = vpop.permute.xlu0 %7421
        %7423 = vrot.lane.b32.xlu0 %v7333, 64
        %v7424 = vpop.permute.xlu0 %7423
        %7425 = vrot.lane.b32.xlu0 %v7334, 64
        %v7426 = vpop.permute.xlu0 %7425
        %7427 = vrot.lane.b32.xlu0 %v7335, 64
        %v7428 = vpop.permute.xlu0 %7427
        %7429 = vrot.lane.b32.xlu0 %v7336, 64
        %v7430 = vpop.permute.xlu0 %7429
        %7431 = vrot.lane.b32.xlu0 %v7337, 64
        %v7432 = vpop.permute.xlu0 %7431
        %7433 = vrot.lane.b32.xlu0 %v7338, 64
        %v7434 = vpop.permute.xlu0 %7433
        %vm7467 = vcmask 523264
        %v7468 = vsel %vm7467, %v6027, %v7372
        %v7469 = vsel %vm7467, %v6028, %v7374
        %v7470 = vsel %vm7467, %v6029, %v7376
        %v7471 = vsel %vm7467, %v6030, %v7378
        %v7472 = vsel %vm7467, %v6031, %v7380
        %v7473 = vsel %vm7467, %v6032, %v7382
        %v7474 = vsel %vm7467, %v6033, %v7384
        %v7475 = vsel %vm7467, %v6034, %v7386
        %v7476 = vsel %vm7467, %v6035, %v7388
        %v7477 = vsel %vm7467, %v6036, %v7390
        %v7478 = vsel %vm7467, %v6037, %v7392
        %v7479 = vsel %vm7467, %v6038, %v7394
        %v7480 = vsel %vm7467, %v6039, %v7396
        %v7481 = vsel %vm7467, %v6040, %v7398
        %v7482 = vsel %vm7467, %v6041, %v7400
        %v7483 = vsel %vm7467, %v6042, %v7402
        %v7484 = vsel %vm7467, %v6043, %v7404
        %v7485 = vsel %vm7467, %v6044, %v7406
        %v7486 = vsel %vm7467, %v6045, %v7408
        %v7487 = vsel %vm7467, %v6046, %v7410
        %v7488 = vsel %vm7467, %v6047, %v7412
        %v7489 = vsel %vm7467, %v6048, %v7414
        %v7490 = vsel %vm7467, %v6049, %v7416
        %v7491 = vsel %vm7467, %v6050, %v7418
        %v7492 = vsel %vm7467, %v6051, %v7420
        %v7493 = vsel %vm7467, %v6052, %v7422
        %v7494 = vsel %vm7467, %v6053, %v7424
        %v7495 = vsel %vm7467, %v6054, %v7426
        %v7496 = vsel %vm7467, %v6055, %v7428
        %v7497 = vsel %vm7467, %v6056, %v7430
        %v7498 = vsel %vm7467, %v6057, %v7432
        %v7499 = vsel %vm7467, %v6058, %v7434
        %v7500 = vld [vmem:[%s5] sm:$0xff]
        %v7501 = vld [vmem:[%s5 + $0x8] sm:$0xff]
        %v7502 = vld [vmem:[%s5 + $0x10] sm:$0xff]
        %v7503 = vld [vmem:[%s5 + $0x18] sm:$0xff]
        %v7504 = vld [vmem:[%s5 + $0x20] sm:$0xff]
        %v7505 = vld [vmem:[%s5 + $0x28] sm:$0xff]
        %v7506 = vld [vmem:[%s5 + $0x30] sm:$0xff]
        %v7507 = vld [vmem:[%s5 + $0x38] sm:$0xff]
        %v7508 = vld [vmem:[%s5 + $0x40] sm:$0xff]
        %v7509 = vld [vmem:[%s5 + $0x48] sm:$0xff]
        %v7510 = vld [vmem:[%s5 + $0x50] sm:$0xff]
        %v7511 = vld [vmem:[%s5 + $0x58] sm:$0xff]
        %v7512 = vld [vmem:[%s5 + $0x60] sm:$0xf]
        %v7513 = vld [vmem:[%s6] sm:$0x1]
        %v7515 = vperm.slane %v7513, 0
        %vm7517 = vcmask 818176
        %v7519 = vsel %vm7517, %v7468, 0
        %v7522 = vsel %vm7517, %v7469, 0
        %v7525 = vsel %vm7517, %v7470, 0
        %v7528 = vsel %vm7517, %v7471, 0
        %v7531 = vsel %vm7517, %v7472, 0
        %v7534 = vsel %vm7517, %v7473, 0
        %v7537 = vsel %vm7517, %v7474, 0
        %v7540 = vsel %vm7517, %v7475, 0
        %v7543 = vsel %vm7517, %v7476, 0
        %v7546 = vsel %vm7517, %v7477, 0
        %v7549 = vsel %vm7517, %v7478, 0
        %v7552 = vsel %vm7517, %v7479, 0
        %v7555 = vsel %vm7517, %v7480, 0
        %v7558 = vsel %vm7517, %v7481, 0
        %v7561 = vsel %vm7517, %v7482, 0
        %v7564 = vsel %vm7517, %v7483, 0
        %v7567 = vsel %vm7517, %v7484, 0
        %v7570 = vsel %vm7517, %v7485, 0
        %v7573 = vsel %vm7517, %v7486, 0
        %v7576 = vsel %vm7517, %v7487, 0
        %v7579 = vsel %vm7517, %v7488, 0
        %v7582 = vsel %vm7517, %v7489, 0
        %v7585 = vsel %vm7517, %v7490, 0
        %v7588 = vsel %vm7517, %v7491, 0
        %v7591 = vsel %vm7517, %v7492, 0
        %v7594 = vsel %vm7517, %v7493, 0
        %v7597 = vsel %vm7517, %v7494, 0
        %v7600 = vsel %vm7517, %v7495, 0
        %v7603 = vsel %vm7517, %v7496, 0
        %v7606 = vsel %vm7517, %v7497, 0
        %v7609 = vsel %vm7517, %v7498, 0
        %v7612 = vsel %vm7517, %v7499, 0
        %v7615 = vsel %vm465, %v7512, 0
        %7617 = vmatpush.msra.mxu0 0.0
        %7618 = vmatpush.msra.mxu0 0.0
        %7619 = vmatpush.msra.mxu0 0.0
        %7620 = vmatpush.msra.mxu0 %v7615
        %7621 = vmatpush.msra.mxu0 %v7511
        %7622 = vmatpush.msra.mxu0 %v7510
        %7623 = vmatpush.msra.mxu0 %v7509
        %7624 = vmatpush.msra.mxu0 %v7508
        %7625 = vmatpush.msra.mxu0 %v7507
        %7626 = vmatpush.msra.mxu0 %v7506
        %7627 = vmatpush.msra.mxu0 %v7505
        %7628 = vmatpush.msra.mxu0 %v7504
        %7629 = vmatpush.msra.mxu0 %v7503
        %7630 = vmatpush.msra.mxu0 %v7502
        %7631 = vmatpush.msra.mxu0 %v7501
        %7632 = vmatpush.msra.mxu0 %v7500
        %7633 = vmatmul.f32.gmra.mxu0 %v7519
        %v7634 = vpop.f32.mrf.mxu0
        %v7635 = vadd.f32 %v7515, %v7634
        %7636 = vmatmul.f32.gmra.mxu0 %v7522
        %v7637 = vpop.f32.mrf.mxu0
        %v7638 = vadd.f32 %v7515, %v7637
        %7639 = vmatmul.f32.gmra.mxu0 %v7525
        %v7640 = vpop.f32.mrf.mxu0
        %v7641 = vadd.f32 %v7515, %v7640
        %7642 = vmatmul.f32.gmra.mxu0 %v7528
        %v7643 = vpop.f32.mrf.mxu0
        %v7644 = vadd.f32 %v7515, %v7643
        %7645 = vmatmul.f32.gmra.mxu0 %v7531
        %v7646 = vpop.f32.mrf.mxu0
        %v7647 = vadd.f32 %v7515, %v7646
        %7648 = vmatmul.f32.gmra.mxu0 %v7534
        %v7649 = vpop.f32.mrf.mxu0
        %v7650 = vadd.f32 %v7515, %v7649
        %7651 = vmatmul.f32.gmra.mxu0 %v7537
        %v7652 = vpop.f32.mrf.mxu0
        %v7653 = vadd.f32 %v7515, %v7652
        %7654 = vmatmul.f32.gmra.mxu0 %v7540
        %v7655 = vpop.f32.mrf.mxu0
        %v7656 = vadd.f32 %v7515, %v7655
        %7657 = vmatmul.f32.gmra.mxu0 %v7543
        %v7658 = vpop.f32.mrf.mxu0
        %v7659 = vadd.f32 %v7515, %v7658
        %7660 = vmatmul.f32.gmra.mxu0 %v7546
        %v7661 = vpop.f32.mrf.mxu0
        %v7662 = vadd.f32 %v7515, %v7661
        %7663 = vmatmul.f32.gmra.mxu0 %v7549
        %v7664 = vpop.f32.mrf.mxu0
        %v7665 = vadd.f32 %v7515, %v7664
        %7666 = vmatmul.f32.gmra.mxu0 %v7552
        %v7667 = vpop.f32.mrf.mxu0
        %v7668 = vadd.f32 %v7515, %v7667
        %7669 = vmatmul.f32.gmra.mxu0 %v7555
        %v7670 = vpop.f32.mrf.mxu0
        %v7671 = vadd.f32 %v7515, %v7670
        %7672 = vmatmul.f32.gmra.mxu0 %v7558
        %v7673 = vpop.f32.mrf.mxu0
        %v7674 = vadd.f32 %v7515, %v7673
        %7675 = vmatmul.f32.gmra.mxu0 %v7561
        %v7676 = vpop.f32.mrf.mxu0
        %v7677 = vadd.f32 %v7515, %v7676
        %7678 = vmatmul.f32.gmra.mxu0 %v7564
        %v7679 = vpop.f32.mrf.mxu0
        %v7680 = vadd.f32 %v7515, %v7679
        %7681 = vmatmul.f32.gmra.mxu0 %v7567
        %v7682 = vpop.f32.mrf.mxu0
        %v7683 = vadd.f32 %v7515, %v7682
        %7684 = vmatmul.f32.gmra.mxu0 %v7570
        %v7685 = vpop.f32.mrf.mxu0
        %v7686 = vadd.f32 %v7515, %v7685
        %7687 = vmatmul.f32.gmra.mxu0 %v7573
        %v7688 = vpop.f32.mrf.mxu0
        %v7689 = vadd.f32 %v7515, %v7688
        %7690 = vmatmul.f32.gmra.mxu0 %v7576
        %v7691 = vpop.f32.mrf.mxu0
        %v7692 = vadd.f32 %v7515, %v7691
        %7693 = vmatmul.f32.gmra.mxu0 %v7579
        %v7694 = vpop.f32.mrf.mxu0
        %v7695 = vadd.f32 %v7515, %v7694
        %7696 = vmatmul.f32.gmra.mxu0 %v7582
        %v7697 = vpop.f32.mrf.mxu0
        %v7698 = vadd.f32 %v7515, %v7697
        %7699 = vmatmul.f32.gmra.mxu0 %v7585
        %v7700 = vpop.f32.mrf.mxu0
        %v7701 = vadd.f32 %v7515, %v7700
        %7702 = vmatmul.f32.gmra.mxu0 %v7588
        %v7703 = vpop.f32.mrf.mxu0
        %v7704 = vadd.f32 %v7515, %v7703
        %7705 = vmatmul.f32.gmra.mxu0 %v7591
        %v7706 = vpop.f32.mrf.mxu0
        %v7707 = vadd.f32 %v7515, %v7706
        %7708 = vmatmul.f32.gmra.mxu0 %v7594
        %v7709 = vpop.f32.mrf.mxu0
        %v7710 = vadd.f32 %v7515, %v7709
        %7711 = vmatmul.f32.gmra.mxu0 %v7597
        %v7712 = vpop.f32.mrf.mxu0
        %v7713 = vadd.f32 %v7515, %v7712
        %7714 = vmatmul.f32.gmra.mxu0 %v7600
        %v7715 = vpop.f32.mrf.mxu0
        %v7716 = vadd.f32 %v7515, %v7715
        %7717 = vmatmul.f32.gmra.mxu0 %v7603
        %v7718 = vpop.f32.mrf.mxu0
        %v7719 = vadd.f32 %v7515, %v7718
        %7720 = vmatmul.f32.gmra.mxu0 %v7606
        %v7721 = vpop.f32.mrf.mxu0
        %v7722 = vadd.f32 %v7515, %v7721
        %7723 = vmatmul.f32.gmra.mxu0 %v7609
        %v7724 = vpop.f32.mrf.mxu0
        %v7725 = vadd.f32 %v7515, %v7724
        %7726 = vmatmul.f32.gmra.mxu0 %v7612
        %v7727 = vpop.f32.mrf.mxu0
        %v7728 = vadd.f32 %v7515, %v7727
        %7729 = vdwg.mxu0
        %v7730 = vmax.f32 %v7635, 0.0
        %v7731 = vmax.f32 %v7638, 0.0
        %v7732 = vmax.f32 %v7641, 0.0
        %v7733 = vmax.f32 %v7644, 0.0
        %v7734 = vmax.f32 %v7647, 0.0
        %v7735 = vmax.f32 %v7650, 0.0
        %v7736 = vmax.f32 %v7653, 0.0
        %v7737 = vmax.f32 %v7656, 0.0
        %v7738 = vmax.f32 %v7659, 0.0
        %v7739 = vmax.f32 %v7662, 0.0
        %v7740 = vmax.f32 %v7665, 0.0
        %v7741 = vmax.f32 %v7668, 0.0
        %v7742 = vmax.f32 %v7671, 0.0
        %v7743 = vmax.f32 %v7674, 0.0
        %v7744 = vmax.f32 %v7677, 0.0
        %v7745 = vmax.f32 %v7680, 0.0
        %v7746 = vmax.f32 %v7683, 0.0
        %v7747 = vmax.f32 %v7686, 0.0
        %v7748 = vmax.f32 %v7689, 0.0
        %v7749 = vmax.f32 %v7692, 0.0
        %v7750 = vmax.f32 %v7695, 0.0
        %v7751 = vmax.f32 %v7698, 0.0
        %v7752 = vmax.f32 %v7701, 0.0
        %v7753 = vmax.f32 %v7704, 0.0
        %v7754 = vmax.f32 %v7707, 0.0
        %v7755 = vmax.f32 %v7710, 0.0
        %v7756 = vmax.f32 %v7713, 0.0
        %v7757 = vmax.f32 %v7716, 0.0
        %v7758 = vmax.f32 %v7719, 0.0
        %v7759 = vmax.f32 %v7722, 0.0
        %v7760 = vmax.f32 %v7725, 0.0
        %v7761 = vmax.f32 %v7728, 0.0
        %7762 = vst.msk [vmem:[#allocation4] sm:$0xff] %vm368, -inf
        %7763 = vst.msk [vmem:[#allocation4 + $0x8] sm:$0xff] %vm368, -inf
        %7764 = vst.msk [vmem:[#allocation4 + $0x10] sm:$0x3] %vm616, -inf
        %7765 = vst.msk [vmem:[#allocation4 + $0x18] sm:$0xff] %vm368, -inf
        %7766 = vst.msk [vmem:[#allocation4 + $0x20] sm:$0xff] %vm368, -inf
        %7767 = vst.msk [vmem:[#allocation4 + $0x28] sm:$0x3] %vm616, -inf
        %7768 = vst.msk [vmem:[#allocation4 + $0x30] sm:$0xff] %vm368, -inf
        %7769 = vst.msk [vmem:[#allocation4 + $0x38] sm:$0xff] %vm368, -inf
        %7770 = vst.msk [vmem:[#allocation4 + $0x40] sm:$0x3] %vm616, -inf
        %7771 = vst.msk [vmem:[#allocation4 + $0x48] sm:$0xff] %vm368, -inf
        %7772 = vst.msk [vmem:[#allocation4 + $0x50] sm:$0xff] %vm368, -inf
        %7773 = vst.msk [vmem:[#allocation4 + $0x58] sm:$0x3] %vm616, -inf
        %7774 = vst.msk [vmem:[#allocation4 + $0x60] sm:$0xff] %vm368, -inf
        %7775 = vst.msk [vmem:[#allocation4 + $0x68] sm:$0xff] %vm368, -inf
        %7776 = vst.msk [vmem:[#allocation4 + $0x70] sm:$0x3] %vm616, -inf
        %7777 = vst.msk [vmem:[#allocation4 + $0x78] sm:$0xff] %vm368, -inf
        %7778 = vst.msk [vmem:[#allocation4 + $0x80] sm:$0xff] %vm368, -inf
        %7779 = vst.msk [vmem:[#allocation4 + $0x88] sm:$0x3] %vm616, -inf
        %7780 = vst.msk [vmem:[#allocation4 + $0x90] sm:$0xff] %vm368, -inf
        %7781 = vst.msk [vmem:[#allocation4 + $0x98] sm:$0xff] %vm368, -inf
        %7782 = vst.msk [vmem:[#allocation4 + $0xa0] sm:$0x3] %vm616, -inf
        %7783 = vst.msk [vmem:[#allocation4 + $0xa8] sm:$0xff] %vm368, -inf
        %7784 = vst.msk [vmem:[#allocation4 + $0xb0] sm:$0xff] %vm368, -inf
        %7785 = vst.msk [vmem:[#allocation4 + $0xb8] sm:$0x3] %vm616, -inf
        %7786 = vst.msk [vmem:[#allocation4 + $0xc0] sm:$0xff] %vm368, -inf
        %7787 = vst.msk [vmem:[#allocation4 + $0xc8] sm:$0xff] %vm368, -inf
        %7788 = vst.msk [vmem:[#allocation4 + $0xd0] sm:$0x3] %vm616, -inf
        %7789 = vst.msk [vmem:[#allocation4 + $0xd8] sm:$0xff] %vm368, -inf
        %7790 = vst.msk [vmem:[#allocation4 + $0xe0] sm:$0xff] %vm368, -inf
        %7791 = vst.msk [vmem:[#allocation4 + $0xe8] sm:$0x3] %vm616, -inf
        %7792 = vst.msk [vmem:[#allocation4 + $0xf0] sm:$0xff] %vm368, -inf
        %7793 = vst.msk [vmem:[#allocation4 + $0xf8] sm:$0xff] %vm368, -inf
        %7794 = vst.msk [vmem:[#allocation4 + $0x100] sm:$0x3] %vm616, -inf
        %7795 = vst.msk [vmem:[#allocation4 + $0x108] sm:$0xff] %vm368, -inf
        %7796 = vst.msk [vmem:[#allocation4 + $0x110] sm:$0xff] %vm368, -inf
        %7797 = vst.msk [vmem:[#allocation4 + $0x118] sm:$0x3] %vm616, -inf
        %7798 = vst.msk [vmem:[#allocation4 + $0x120] sm:$0xff] %vm368, -inf
        %7799 = vst.msk [vmem:[#allocation4 + $0x128] sm:$0xff] %vm368, -inf
        %7800 = vst.msk [vmem:[#allocation4 + $0x130] sm:$0x3] %vm616, -inf
        %7801 = vst.msk [vmem:[#allocation4 + $0x138] sm:$0xff] %vm368, -inf
        %7802 = vst.msk [vmem:[#allocation4 + $0x140] sm:$0xff] %vm368, -inf
        %7803 = vst.msk [vmem:[#allocation4 + $0x148] sm:$0x3] %vm616, -inf
        %7804 = vst.msk [vmem:[#allocation4 + $0x150] sm:$0xff] %vm368, -inf
        %7805 = vst.msk [vmem:[#allocation4 + $0x158] sm:$0xff] %vm368, -inf
        %7806 = vst.msk [vmem:[#allocation4 + $0x160] sm:$0x3] %vm616, -inf
        %7807 = vst.msk [vmem:[#allocation4 + $0x168] sm:$0xff] %vm368, -inf
        %7808 = vst.msk [vmem:[#allocation4 + $0x170] sm:$0xff] %vm368, -inf
        %7809 = vst.msk [vmem:[#allocation4 + $0x178] sm:$0x3] %vm616, -inf
        %7810 = vst.msk [vmem:[#allocation4 + $0x180] sm:$0xff] %vm368, -inf
        %7811 = vst.msk [vmem:[#allocation4 + $0x188] sm:$0xff] %vm368, -inf
        %7812 = vst.msk [vmem:[#allocation4 + $0x190] sm:$0x3] %vm616, -inf
        %7813 = vst.msk [vmem:[#allocation4 + $0x198] sm:$0xff] %vm368, -inf
        %7814 = vst.msk [vmem:[#allocation4 + $0x1a0] sm:$0xff] %vm368, -inf
        %7815 = vst.msk [vmem:[#allocation4 + $0x1a8] sm:$0x3] %vm616, -inf
        %s7816 = scalar_lea.vmem [#allocation4], 24
        %7817 = vst.msk [vmem:[%s7816 + $0x1] sm:$0xff] %vm368, %v331
        %7818 = vst.msk [vmem:[%s7816 + $0x9] sm:$0xff] %vm368, %v332
        %7819 = vst.msk [vmem:[%s7816 + $0x19] sm:$0xff] %vm368, %v333
        %7820 = vst.msk [vmem:[%s7816 + $0x21] sm:$0xff] %vm368, %v334
        %7821 = vst.msk [vmem:[%s7816 + $0x31] sm:$0xff] %vm368, %v335
        %7822 = vst.msk [vmem:[%s7816 + $0x39] sm:$0xff] %vm368, %v336
        %7823 = vst.msk [vmem:[%s7816 + $0x49] sm:$0xff] %vm368, %v337
        %7824 = vst.msk [vmem:[%s7816 + $0x51] sm:$0xff] %vm368, %v338
        %7825 = vst.msk [vmem:[%s7816 + $0x61] sm:$0xff] %vm368, %v339
        %7826 = vst.msk [vmem:[%s7816 + $0x69] sm:$0xff] %vm368, %v340
        %7827 = vst.msk [vmem:[%s7816 + $0x79] sm:$0xff] %vm368, %v341
        %7828 = vst.msk [vmem:[%s7816 + $0x81] sm:$0xff] %vm368, %v342
        %7829 = vst.msk [vmem:[%s7816 + $0x91] sm:$0xff] %vm368, %v343
        %7830 = vst.msk [vmem:[%s7816 + $0x99] sm:$0xff] %vm368, %v344
        %7831 = vst.msk [vmem:[%s7816 + $0xa9] sm:$0xff] %vm368, %v345
        %7832 = vst.msk [vmem:[%s7816 + $0xb1] sm:$0xff] %vm368, %v346
        %7833 = vst.msk [vmem:[%s7816 + $0xc1] sm:$0xff] %vm368, %v347
        %7834 = vst.msk [vmem:[%s7816 + $0xc9] sm:$0xff] %vm368, %v348
        %7835 = vst.msk [vmem:[%s7816 + $0xd9] sm:$0xff] %vm368, %v349
        %7836 = vst.msk [vmem:[%s7816 + $0xe1] sm:$0xff] %vm368, %v350
        %7837 = vst.msk [vmem:[%s7816 + $0xf1] sm:$0xff] %vm368, %v351
        %7838 = vst.msk [vmem:[%s7816 + $0xf9] sm:$0xff] %vm368, %v352
        %7839 = vst.msk [vmem:[%s7816 + $0x109] sm:$0xff] %vm368, %v353
        %7840 = vst.msk [vmem:[%s7816 + $0x111] sm:$0xff] %vm368, %v354
        %7841 = vst.msk [vmem:[%s7816 + $0x121] sm:$0xff] %vm368, %v355
        %7842 = vst.msk [vmem:[%s7816 + $0x129] sm:$0xff] %vm368, %v356
        %7843 = vst.msk [vmem:[%s7816 + $0x139] sm:$0xff] %vm368, %v357
        %7844 = vst.msk [vmem:[%s7816 + $0x141] sm:$0xff] %vm368, %v358
        %7845 = vst.msk [vmem:[%s7816 + $0x151] sm:$0xff] %vm368, %v359
        %7846 = vst.msk [vmem:[%s7816 + $0x159] sm:$0xff] %vm368, %v360
        %7847 = vst.msk [vmem:[%s7816 + $0x169] sm:$0xff] %vm368, %v361
        %7848 = vst.msk [vmem:[%s7816 + $0x171] sm:$0xff] %vm368, %v362
        %v7849 = vld [vmem:[#allocation4] sm:$0xff]
        %v7850 = vld [vmem:[#allocation4 + $0x8] sm:$0xff]
        %v7851 = vld [vmem:[#allocation4 + $0x18] sm:$0xff]
        %v7852 = vld [vmem:[#allocation4 + $0x20] sm:$0xff]
        %v7853 = vld [vmem:[#allocation4 + $0x30] sm:$0xff]
        %v7854 = vld [vmem:[#allocation4 + $0x38] sm:$0xff]
        %v7855 = vld [vmem:[#allocation4 + $0x48] sm:$0xff]
        %v7856 = vld [vmem:[#allocation4 + $0x50] sm:$0xff]
        %v7857 = vld [vmem:[#allocation4 + $0x60] sm:$0xff]
        %v7858 = vld [vmem:[#allocation4 + $0x68] sm:$0xff]
        %v7859 = vld [vmem:[#allocation4 + $0x78] sm:$0xff]
        %v7860 = vld [vmem:[#allocation4 + $0x80] sm:$0xff]
        %v7861 = vld [vmem:[#allocation4 + $0x90] sm:$0xff]
        %v7862 = vld [vmem:[#allocation4 + $0x98] sm:$0xff]
        %v7863 = vld [vmem:[#allocation4 + $0xa8] sm:$0xff]
        %v7864 = vld [vmem:[#allocation4 + $0xb0] sm:$0xff]
        %v7865 = vld [vmem:[#allocation4 + $0xc0] sm:$0xff]
        %v7866 = vld [vmem:[#allocation4 + $0xc8] sm:$0xff]
        %v7867 = vld [vmem:[#allocation4 + $0xd8] sm:$0xff]
        %v7868 = vld [vmem:[#allocation4 + $0xe0] sm:$0xff]
        %v7869 = vld [vmem:[#allocation4 + $0xf0] sm:$0xff]
        %v7870 = vld [vmem:[#allocation4 + $0xf8] sm:$0xff]
        %v7871 = vld [vmem:[#allocation4 + $0x108] sm:$0xff]
        %v7872 = vld [vmem:[#allocation4 + $0x110] sm:$0xff]
        %v7873 = vld [vmem:[#allocation4 + $0x120] sm:$0xff]
        %v7874 = vld [vmem:[#allocation4 + $0x128] sm:$0xff]
        %v7875 = vld [vmem:[#allocation4 + $0x138] sm:$0xff]
        %v7876 = vld [vmem:[#allocation4 + $0x140] sm:$0xff]
        %v7877 = vld [vmem:[#allocation4 + $0x150] sm:$0xff]
        %v7878 = vld [vmem:[#allocation4 + $0x158] sm:$0xff]
        %v7879 = vld [vmem:[#allocation4 + $0x168] sm:$0xff]
        %v7880 = vld [vmem:[#allocation4 + $0x170] sm:$0xff]
        %v7881 = vld [vmem:[#allocation4 + $0x1] sm:$0xff]
        %v7882 = vld [vmem:[#allocation4 + $0x9] sm:$0xff]
        %v7883 = vld [vmem:[#allocation4 + $0x19] sm:$0xff]
        %v7884 = vld [vmem:[#allocation4 + $0x21] sm:$0xff]
        %v7885 = vld [vmem:[#allocation4 + $0x31] sm:$0xff]
        %v7886 = vld [vmem:[#allocation4 + $0x39] sm:$0xff]
        %v7887 = vld [vmem:[#allocation4 + $0x49] sm:$0xff]
        %v7888 = vld [vmem:[#allocation4 + $0x51] sm:$0xff]
        %v7889 = vld [vmem:[#allocation4 + $0x61] sm:$0xff]
        %v7890 = vld [vmem:[#allocation4 + $0x69] sm:$0xff]
        %v7891 = vld [vmem:[#allocation4 + $0x79] sm:$0xff]
        %v7892 = vld [vmem:[#allocation4 + $0x81] sm:$0xff]
        %v7893 = vld [vmem:[#allocation4 + $0x91] sm:$0xff]
        %v7894 = vld [vmem:[#allocation4 + $0x99] sm:$0xff]
        %v7895 = vld [vmem:[#allocation4 + $0xa9] sm:$0xff]
        %v7896 = vld [vmem:[#allocation4 + $0xb1] sm:$0xff]
        %v7897 = vld [vmem:[#allocation4 + $0xc1] sm:$0xff]
        %v7898 = vld [vmem:[#allocation4 + $0xc9] sm:$0xff]
        %v7899 = vld [vmem:[#allocation4 + $0xd9] sm:$0xff]
        %v7900 = vld [vmem:[#allocation4 + $0xe1] sm:$0xff]
        %v7901 = vld [vmem:[#allocation4 + $0xf1] sm:$0xff]
        %v7902 = vld [vmem:[#allocation4 + $0xf9] sm:$0xff]
        %v7903 = vld [vmem:[#allocation4 + $0x109] sm:$0xff]
        %v7904 = vld [vmem:[#allocation4 + $0x111] sm:$0xff]
        %v7905 = vld [vmem:[#allocation4 + $0x121] sm:$0xff]
        %v7906 = vld [vmem:[#allocation4 + $0x129] sm:$0xff]
        %v7907 = vld [vmem:[#allocation4 + $0x139] sm:$0xff]
        %v7908 = vld [vmem:[#allocation4 + $0x141] sm:$0xff]
        %v7909 = vld [vmem:[#allocation4 + $0x151] sm:$0xff]
        %v7910 = vld [vmem:[#allocation4 + $0x159] sm:$0xff]
        %v7911 = vld [vmem:[#allocation4 + $0x169] sm:$0xff]
        %v7912 = vld [vmem:[#allocation4 + $0x171] sm:$0xff]
        %v7913 = vmax.f32 %v7849, %v7881
        %v7914 = vmax.f32 %v7850, %v7882
        %v7915 = vmax.f32 %v7851, %v7883
        %v7916 = vmax.f32 %v7852, %v7884
        %v7917 = vmax.f32 %v7853, %v7885
        %v7918 = vmax.f32 %v7854, %v7886
        %v7919 = vmax.f32 %v7855, %v7887
        %v7920 = vmax.f32 %v7856, %v7888
        %v7921 = vmax.f32 %v7857, %v7889
        %v7922 = vmax.f32 %v7858, %v7890
        %v7923 = vmax.f32 %v7859, %v7891
        %v7924 = vmax.f32 %v7860, %v7892
        %v7925 = vmax.f32 %v7861, %v7893
        %v7926 = vmax.f32 %v7862, %v7894
        %v7927 = vmax.f32 %v7863, %v7895
        %v7928 = vmax.f32 %v7864, %v7896
        %v7929 = vmax.f32 %v7865, %v7897
        %v7930 = vmax.f32 %v7866, %v7898
        %v7931 = vmax.f32 %v7867, %v7899
        %v7932 = vmax.f32 %v7868, %v7900
        %v7933 = vmax.f32 %v7869, %v7901
        %v7934 = vmax.f32 %v7870, %v7902
        %v7935 = vmax.f32 %v7871, %v7903
        %v7936 = vmax.f32 %v7872, %v7904
        %v7937 = vmax.f32 %v7873, %v7905
        %v7938 = vmax.f32 %v7874, %v7906
        %v7939 = vmax.f32 %v7875, %v7907
        %v7940 = vmax.f32 %v7876, %v7908
        %v7941 = vmax.f32 %v7877, %v7909
        %v7942 = vmax.f32 %v7878, %v7910
        %v7943 = vmax.f32 %v7879, %v7911
        %v7944 = vmax.f32 %v7880, %v7912
        %v7945 = vld [vmem:[#allocation4 + $0x2] sm:$0xff]
        %v7946 = vld [vmem:[#allocation4 + $0xa] sm:$0xff]
        %v7947 = vld [vmem:[#allocation4 + $0x1a] sm:$0xff]
        %v7948 = vld [vmem:[#allocation4 + $0x22] sm:$0xff]
        %v7949 = vld [vmem:[#allocation4 + $0x32] sm:$0xff]
        %v7950 = vld [vmem:[#allocation4 + $0x3a] sm:$0xff]
        %v7951 = vld [vmem:[#allocation4 + $0x4a] sm:$0xff]
        %v7952 = vld [vmem:[#allocation4 + $0x52] sm:$0xff]
        %v7953 = vld [vmem:[#allocation4 + $0x62] sm:$0xff]
        %v7954 = vld [vmem:[#allocation4 + $0x6a] sm:$0xff]
        %v7955 = vld [vmem:[#allocation4 + $0x7a] sm:$0xff]
        %v7956 = vld [vmem:[#allocation4 + $0x82] sm:$0xff]
        %v7957 = vld [vmem:[#allocation4 + $0x92] sm:$0xff]
        %v7958 = vld [vmem:[#allocation4 + $0x9a] sm:$0xff]
        %v7959 = vld [vmem:[#allocation4 + $0xaa] sm:$0xff]
        %v7960 = vld [vmem:[#allocation4 + $0xb2] sm:$0xff]
        %v7961 = vld [vmem:[#allocation4 + $0xc2] sm:$0xff]
        %v7962 = vld [vmem:[#allocation4 + $0xca] sm:$0xff]
        %v7963 = vld [vmem:[#allocation4 + $0xda] sm:$0xff]
        %v7964 = vld [vmem:[#allocation4 + $0xe2] sm:$0xff]
        %v7965 = vld [vmem:[#allocation4 + $0xf2] sm:$0xff]
        %v7966 = vld [vmem:[#allocation4 + $0xfa] sm:$0xff]
        %v7967 = vld [vmem:[#allocation4 + $0x10a] sm:$0xff]
        %v7968 = vld [vmem:[#allocation4 + $0x112] sm:$0xff]
        %v7969 = vld [vmem:[#allocation4 + $0x122] sm:$0xff]
        %v7970 = vld [vmem:[#allocation4 + $0x12a] sm:$0xff]
        %v7971 = vld [vmem:[#allocation4 + $0x13a] sm:$0xff]
        %v7972 = vld [vmem:[#allocation4 + $0x142] sm:$0xff]
        %v7973 = vld [vmem:[#allocation4 + $0x152] sm:$0xff]
        %v7974 = vld [vmem:[#allocation4 + $0x15a] sm:$0xff]
        %v7975 = vld [vmem:[#allocation4 + $0x16a] sm:$0xff]
        %v7976 = vld [vmem:[#allocation4 + $0x172] sm:$0xff]
        %v7977 = vmax.f32 %v7913, %v7945
        %v7978 = vmax.f32 %v7914, %v7946
        %v7979 = vmax.f32 %v7915, %v7947
        %v7980 = vmax.f32 %v7916, %v7948
        %v7981 = vmax.f32 %v7917, %v7949
        %v7982 = vmax.f32 %v7918, %v7950
        %v7983 = vmax.f32 %v7919, %v7951
        %v7984 = vmax.f32 %v7920, %v7952
        %v7985 = vmax.f32 %v7921, %v7953
        %v7986 = vmax.f32 %v7922, %v7954
        %v7987 = vmax.f32 %v7923, %v7955
        %v7988 = vmax.f32 %v7924, %v7956
        %v7989 = vmax.f32 %v7925, %v7957
        %v7990 = vmax.f32 %v7926, %v7958
        %v7991 = vmax.f32 %v7927, %v7959
        %v7992 = vmax.f32 %v7928, %v7960
        %v7993 = vmax.f32 %v7929, %v7961
        %v7994 = vmax.f32 %v7930, %v7962
        %v7995 = vmax.f32 %v7931, %v7963
        %v7996 = vmax.f32 %v7932, %v7964
        %v7997 = vmax.f32 %v7933, %v7965
        %v7998 = vmax.f32 %v7934, %v7966
        %v7999 = vmax.f32 %v7935, %v7967
        %v8000 = vmax.f32 %v7936, %v7968
        %v8001 = vmax.f32 %v7937, %v7969
        %v8002 = vmax.f32 %v7938, %v7970
        %v8003 = vmax.f32 %v7939, %v7971
        %v8004 = vmax.f32 %v7940, %v7972
        %v8005 = vmax.f32 %v7941, %v7973
        %v8006 = vmax.f32 %v7942, %v7974
        %v8007 = vmax.f32 %v7943, %v7975
        %v8008 = vmax.f32 %v7944, %v7976
        %v8009 = vld [vmem:[%s7816] sm:$0xff]
        %v8010 = vld [vmem:[%s7816 + $0x8] sm:$0xff]
        %v8011 = vld [vmem:[%s7816 + $0x18] sm:$0xff]
        %v8012 = vld [vmem:[%s7816 + $0x20] sm:$0xff]
        %v8013 = vld [vmem:[%s7816 + $0x30] sm:$0xff]
        %v8014 = vld [vmem:[%s7816 + $0x38] sm:$0xff]
        %v8015 = vld [vmem:[%s7816 + $0x48] sm:$0xff]
        %v8016 = vld [vmem:[%s7816 + $0x50] sm:$0xff]
        %v8017 = vld [vmem:[%s7816 + $0x60] sm:$0xff]
        %v8018 = vld [vmem:[%s7816 + $0x68] sm:$0xff]
        %v8019 = vld [vmem:[%s7816 + $0x78] sm:$0xff]
        %v8020 = vld [vmem:[%s7816 + $0x80] sm:$0xff]
        %v8021 = vld [vmem:[%s7816 + $0x90] sm:$0xff]
        %v8022 = vld [vmem:[%s7816 + $0x98] sm:$0xff]
        %v8023 = vld [vmem:[%s7816 + $0xa8] sm:$0xff]
        %v8024 = vld [vmem:[%s7816 + $0xb0] sm:$0xff]
        %v8025 = vld [vmem:[%s7816 + $0xc0] sm:$0xff]
        %v8026 = vld [vmem:[%s7816 + $0xc8] sm:$0xff]
        %v8027 = vld [vmem:[%s7816 + $0xd8] sm:$0xff]
        %v8028 = vld [vmem:[%s7816 + $0xe0] sm:$0xff]
        %v8029 = vld [vmem:[%s7816 + $0xf0] sm:$0xff]
        %v8030 = vld [vmem:[%s7816 + $0xf8] sm:$0xff]
        %v8031 = vld [vmem:[%s7816 + $0x108] sm:$0xff]
        %v8032 = vld [vmem:[%s7816 + $0x110] sm:$0xff]
        %v8033 = vld [vmem:[%s7816 + $0x120] sm:$0xff]
        %v8034 = vld [vmem:[%s7816 + $0x128] sm:$0xff]
        %v8035 = vld [vmem:[%s7816 + $0x138] sm:$0xff]
        %v8036 = vld [vmem:[%s7816 + $0x140] sm:$0xff]
        %v8037 = vld [vmem:[%s7816 + $0x150] sm:$0xff]
        %v8038 = vld [vmem:[%s7816 + $0x158] sm:$0xff]
        %v8039 = vld [vmem:[%s7816 + $0x168] sm:$0xff]
        %v8040 = vld [vmem:[%s7816 + $0x170] sm:$0xff]
        %v8041 = vmax.f32 %v7977, %v8009
        %v8042 = vmax.f32 %v7978, %v8010
        %v8043 = vmax.f32 %v7979, %v8011
        %v8044 = vmax.f32 %v7980, %v8012
        %v8045 = vmax.f32 %v7981, %v8013
        %v8046 = vmax.f32 %v7982, %v8014
        %v8047 = vmax.f32 %v7983, %v8015
        %v8048 = vmax.f32 %v7984, %v8016
        %v8049 = vmax.f32 %v7985, %v8017
        %v8050 = vmax.f32 %v7986, %v8018
        %v8051 = vmax.f32 %v7987, %v8019
        %v8052 = vmax.f32 %v7988, %v8020
        %v8053 = vmax.f32 %v7989, %v8021
        %v8054 = vmax.f32 %v7990, %v8022
        %v8055 = vmax.f32 %v7991, %v8023
        %v8056 = vmax.f32 %v7992, %v8024
        %v8057 = vmax.f32 %v7993, %v8025
        %v8058 = vmax.f32 %v7994, %v8026
        %v8059 = vmax.f32 %v7995, %v8027
        %v8060 = vmax.f32 %v7996, %v8028
        %v8061 = vmax.f32 %v7997, %v8029
        %v8062 = vmax.f32 %v7998, %v8030
        %v8063 = vmax.f32 %v7999, %v8031
        %v8064 = vmax.f32 %v8000, %v8032
        %v8065 = vmax.f32 %v8001, %v8033
        %v8066 = vmax.f32 %v8002, %v8034
        %v8067 = vmax.f32 %v8003, %v8035
        %v8068 = vmax.f32 %v8004, %v8036
        %v8069 = vmax.f32 %v8005, %v8037
        %v8070 = vmax.f32 %v8006, %v8038
        %v8071 = vmax.f32 %v8007, %v8039
        %v8072 = vmax.f32 %v8008, %v8040
        %v8073 = vld [vmem:[%s7816 + $0x1] sm:$0xff]
        %v8074 = vld [vmem:[%s7816 + $0x9] sm:$0xff]
        %v8075 = vld [vmem:[%s7816 + $0x19] sm:$0xff]
        %v8076 = vld [vmem:[%s7816 + $0x21] sm:$0xff]
        %v8077 = vld [vmem:[%s7816 + $0x31] sm:$0xff]
        %v8078 = vld [vmem:[%s7816 + $0x39] sm:$0xff]
        %v8079 = vld [vmem:[%s7816 + $0x49] sm:$0xff]
        %v8080 = vld [vmem:[%s7816 + $0x51] sm:$0xff]
        %v8081 = vld [vmem:[%s7816 + $0x61] sm:$0xff]
        %v8082 = vld [vmem:[%s7816 + $0x69] sm:$0xff]
        %v8083 = vld [vmem:[%s7816 + $0x79] sm:$0xff]
        %v8084 = vld [vmem:[%s7816 + $0x81] sm:$0xff]
        %v8085 = vld [vmem:[%s7816 + $0x91] sm:$0xff]
        %v8086 = vld [vmem:[%s7816 + $0x99] sm:$0xff]
        %v8087 = vld [vmem:[%s7816 + $0xa9] sm:$0xff]
        %v8088 = vld [vmem:[%s7816 + $0xb1] sm:$0xff]
        %v8089 = vld [vmem:[%s7816 + $0xc1] sm:$0xff]
        %v8090 = vld [vmem:[%s7816 + $0xc9] sm:$0xff]
        %v8091 = vld [vmem:[%s7816 + $0xd9] sm:$0xff]
        %v8092 = vld [vmem:[%s7816 + $0xe1] sm:$0xff]
        %v8093 = vld [vmem:[%s7816 + $0xf1] sm:$0xff]
        %v8094 = vld [vmem:[%s7816 + $0xf9] sm:$0xff]
        %v8095 = vld [vmem:[%s7816 + $0x109] sm:$0xff]
        %v8096 = vld [vmem:[%s7816 + $0x111] sm:$0xff]
        %v8097 = vld [vmem:[%s7816 + $0x121] sm:$0xff]
        %v8098 = vld [vmem:[%s7816 + $0x129] sm:$0xff]
        %v8099 = vld [vmem:[%s7816 + $0x139] sm:$0xff]
        %v8100 = vld [vmem:[%s7816 + $0x141] sm:$0xff]
        %v8101 = vld [vmem:[%s7816 + $0x151] sm:$0xff]
        %v8102 = vld [vmem:[%s7816 + $0x159] sm:$0xff]
        %v8103 = vld [vmem:[%s7816 + $0x169] sm:$0xff]
        %v8104 = vld [vmem:[%s7816 + $0x171] sm:$0xff]
        %v8105 = vmax.f32 %v8041, %v8073
        %v8106 = vmax.f32 %v8042, %v8074
        %v8107 = vmax.f32 %v8043, %v8075
        %v8108 = vmax.f32 %v8044, %v8076
        %v8109 = vmax.f32 %v8045, %v8077
        %v8110 = vmax.f32 %v8046, %v8078
        %v8111 = vmax.f32 %v8047, %v8079
        %v8112 = vmax.f32 %v8048, %v8080
        %v8113 = vmax.f32 %v8049, %v8081
        %v8114 = vmax.f32 %v8050, %v8082
        %v8115 = vmax.f32 %v8051, %v8083
        %v8116 = vmax.f32 %v8052, %v8084
        %v8117 = vmax.f32 %v8053, %v8085
        %v8118 = vmax.f32 %v8054, %v8086
        %v8119 = vmax.f32 %v8055, %v8087
        %v8120 = vmax.f32 %v8056, %v8088
        %v8121 = vmax.f32 %v8057, %v8089
        %v8122 = vmax.f32 %v8058, %v8090
        %v8123 = vmax.f32 %v8059, %v8091
        %v8124 = vmax.f32 %v8060, %v8092
        %v8125 = vmax.f32 %v8061, %v8093
        %v8126 = vmax.f32 %v8062, %v8094
        %v8127 = vmax.f32 %v8063, %v8095
        %v8128 = vmax.f32 %v8064, %v8096
        %v8129 = vmax.f32 %v8065, %v8097
        %v8130 = vmax.f32 %v8066, %v8098
        %v8131 = vmax.f32 %v8067, %v8099
        %v8132 = vmax.f32 %v8068, %v8100
        %v8133 = vmax.f32 %v8069, %v8101
        %v8134 = vmax.f32 %v8070, %v8102
        %v8135 = vmax.f32 %v8071, %v8103
        %v8136 = vmax.f32 %v8072, %v8104
        %v8137 = vld [vmem:[%s7816 + $0x2] sm:$0xff]
        %v8138 = vld [vmem:[%s7816 + $0xa] sm:$0xff]
        %v8139 = vld [vmem:[%s7816 + $0x1a] sm:$0xff]
        %v8140 = vld [vmem:[%s7816 + $0x22] sm:$0xff]
        %v8141 = vld [vmem:[%s7816 + $0x32] sm:$0xff]
        %v8142 = vld [vmem:[%s7816 + $0x3a] sm:$0xff]
        %v8143 = vld [vmem:[%s7816 + $0x4a] sm:$0xff]
        %v8144 = vld [vmem:[%s7816 + $0x52] sm:$0xff]
        %v8145 = vld [vmem:[%s7816 + $0x62] sm:$0xff]
        %v8146 = vld [vmem:[%s7816 + $0x6a] sm:$0xff]
        %v8147 = vld [vmem:[%s7816 + $0x7a] sm:$0xff]
        %v8148 = vld [vmem:[%s7816 + $0x82] sm:$0xff]
        %v8149 = vld [vmem:[%s7816 + $0x92] sm:$0xff]
        %v8150 = vld [vmem:[%s7816 + $0x9a] sm:$0xff]
        %v8151 = vld [vmem:[%s7816 + $0xaa] sm:$0xff]
        %v8152 = vld [vmem:[%s7816 + $0xb2] sm:$0xff]
        %v8153 = vld [vmem:[%s7816 + $0xc2] sm:$0xff]
        %v8154 = vld [vmem:[%s7816 + $0xca] sm:$0xff]
        %v8155 = vld [vmem:[%s7816 + $0xda] sm:$0xff]
        %v8156 = vld [vmem:[%s7816 + $0xe2] sm:$0xff]
        %v8157 = vld [vmem:[%s7816 + $0xf2] sm:$0xff]
        %v8158 = vld [vmem:[%s7816 + $0xfa] sm:$0xff]
        %v8159 = vld [vmem:[%s7816 + $0x10a] sm:$0xff]
        %v8160 = vld [vmem:[%s7816 + $0x112] sm:$0xff]
        %v8161 = vld [vmem:[%s7816 + $0x122] sm:$0xff]
        %v8162 = vld [vmem:[%s7816 + $0x12a] sm:$0xff]
        %v8163 = vld [vmem:[%s7816 + $0x13a] sm:$0xff]
        %v8164 = vld [vmem:[%s7816 + $0x142] sm:$0xff]
        %v8165 = vld [vmem:[%s7816 + $0x152] sm:$0xff]
        %v8166 = vld [vmem:[%s7816 + $0x15a] sm:$0xff]
        %v8167 = vld [vmem:[%s7816 + $0x16a] sm:$0xff]
        %v8168 = vld [vmem:[%s7816 + $0x172] sm:$0xff]
        %v8169 = vmax.f32 %v8105, %v8137
        %v8170 = vmax.f32 %v8106, %v8138
        %v8171 = vmax.f32 %v8107, %v8139
        %v8172 = vmax.f32 %v8108, %v8140
        %v8173 = vmax.f32 %v8109, %v8141
        %v8174 = vmax.f32 %v8110, %v8142
        %v8175 = vmax.f32 %v8111, %v8143
        %v8176 = vmax.f32 %v8112, %v8144
        %v8177 = vmax.f32 %v8113, %v8145
        %v8178 = vmax.f32 %v8114, %v8146
        %v8179 = vmax.f32 %v8115, %v8147
        %v8180 = vmax.f32 %v8116, %v8148
        %v8181 = vmax.f32 %v8117, %v8149
        %v8182 = vmax.f32 %v8118, %v8150
        %v8183 = vmax.f32 %v8119, %v8151
        %v8184 = vmax.f32 %v8120, %v8152
        %v8185 = vmax.f32 %v8121, %v8153
        %v8186 = vmax.f32 %v8122, %v8154
        %v8187 = vmax.f32 %v8123, %v8155
        %v8188 = vmax.f32 %v8124, %v8156
        %v8189 = vmax.f32 %v8125, %v8157
        %v8190 = vmax.f32 %v8126, %v8158
        %v8191 = vmax.f32 %v8127, %v8159
        %v8192 = vmax.f32 %v8128, %v8160
        %v8193 = vmax.f32 %v8129, %v8161
        %v8194 = vmax.f32 %v8130, %v8162
        %v8195 = vmax.f32 %v8131, %v8163
        %v8196 = vmax.f32 %v8132, %v8164
        %v8197 = vmax.f32 %v8133, %v8165
        %v8198 = vmax.f32 %v8134, %v8166
        %v8199 = vmax.f32 %v8135, %v8167
        %v8200 = vmax.f32 %v8136, %v8168
        %s8201 = scalar_lea.vmem [#allocation4], 48
        %v8202 = vld [vmem:[%s8201] sm:$0xff]
        %v8203 = vld [vmem:[%s8201 + $0x8] sm:$0xff]
        %v8204 = vld [vmem:[%s8201 + $0x18] sm:$0xff]
        %v8205 = vld [vmem:[%s8201 + $0x20] sm:$0xff]
        %v8206 = vld [vmem:[%s8201 + $0x30] sm:$0xff]
        %v8207 = vld [vmem:[%s8201 + $0x38] sm:$0xff]
        %v8208 = vld [vmem:[%s8201 + $0x48] sm:$0xff]
        %v8209 = vld [vmem:[%s8201 + $0x50] sm:$0xff]
        %v8210 = vld [vmem:[%s8201 + $0x60] sm:$0xff]
        %v8211 = vld [vmem:[%s8201 + $0x68] sm:$0xff]
        %v8212 = vld [vmem:[%s8201 + $0x78] sm:$0xff]
        %v8213 = vld [vmem:[%s8201 + $0x80] sm:$0xff]
        %v8214 = vld [vmem:[%s8201 + $0x90] sm:$0xff]
        %v8215 = vld [vmem:[%s8201 + $0x98] sm:$0xff]
        %v8216 = vld [vmem:[%s8201 + $0xa8] sm:$0xff]
        %v8217 = vld [vmem:[%s8201 + $0xb0] sm:$0xff]
        %v8218 = vld [vmem:[%s8201 + $0xc0] sm:$0xff]
        %v8219 = vld [vmem:[%s8201 + $0xc8] sm:$0xff]
        %v8220 = vld [vmem:[%s8201 + $0xd8] sm:$0xff]
        %v8221 = vld [vmem:[%s8201 + $0xe0] sm:$0xff]
        %v8222 = vld [vmem:[%s8201 + $0xf0] sm:$0xff]
        %v8223 = vld [vmem:[%s8201 + $0xf8] sm:$0xff]
        %v8224 = vld [vmem:[%s8201 + $0x108] sm:$0xff]
        %v8225 = vld [vmem:[%s8201 + $0x110] sm:$0xff]
        %v8226 = vld [vmem:[%s8201 + $0x120] sm:$0xff]
        %v8227 = vld [vmem:[%s8201 + $0x128] sm:$0xff]
        %v8228 = vld [vmem:[%s8201 + $0x138] sm:$0xff]
        %v8229 = vld [vmem:[%s8201 + $0x140] sm:$0xff]
        %v8230 = vld [vmem:[%s8201 + $0x150] sm:$0xff]
        %v8231 = vld [vmem:[%s8201 + $0x158] sm:$0xff]
        %v8232 = vld [vmem:[%s8201 + $0x168] sm:$0xff]
        %v8233 = vld [vmem:[%s8201 + $0x170] sm:$0xff]
        %v8234 = vmax.f32 %v8169, %v8202
        %v8235 = vmax.f32 %v8170, %v8203
        %v8236 = vmax.f32 %v8171, %v8204
        %v8237 = vmax.f32 %v8172, %v8205
        %v8238 = vmax.f32 %v8173, %v8206
        %v8239 = vmax.f32 %v8174, %v8207
        %v8240 = vmax.f32 %v8175, %v8208
        %v8241 = vmax.f32 %v8176, %v8209
        %v8242 = vmax.f32 %v8177, %v8210
        %v8243 = vmax.f32 %v8178, %v8211
        %v8244 = vmax.f32 %v8179, %v8212
        %v8245 = vmax.f32 %v8180, %v8213
        %v8246 = vmax.f32 %v8181, %v8214
        %v8247 = vmax.f32 %v8182, %v8215
        %v8248 = vmax.f32 %v8183, %v8216
        %v8249 = vmax.f32 %v8184, %v8217
        %v8250 = vmax.f32 %v8185, %v8218
        %v8251 = vmax.f32 %v8186, %v8219
        %v8252 = vmax.f32 %v8187, %v8220
        %v8253 = vmax.f32 %v8188, %v8221
        %v8254 = vmax.f32 %v8189, %v8222
        %v8255 = vmax.f32 %v8190, %v8223
        %v8256 = vmax.f32 %v8191, %v8224
        %v8257 = vmax.f32 %v8192, %v8225
        %v8258 = vmax.f32 %v8193, %v8226
        %v8259 = vmax.f32 %v8194, %v8227
        %v8260 = vmax.f32 %v8195, %v8228
        %v8261 = vmax.f32 %v8196, %v8229
        %v8262 = vmax.f32 %v8197, %v8230
        %v8263 = vmax.f32 %v8198, %v8231
        %v8264 = vmax.f32 %v8199, %v8232
        %v8265 = vmax.f32 %v8200, %v8233
        %v8266 = vld [vmem:[%s8201 + $0x1] sm:$0xff]
        %v8267 = vld [vmem:[%s8201 + $0x9] sm:$0xff]
        %v8268 = vld [vmem:[%s8201 + $0x19] sm:$0xff]
        %v8269 = vld [vmem:[%s8201 + $0x21] sm:$0xff]
        %v8270 = vld [vmem:[%s8201 + $0x31] sm:$0xff]
        %v8271 = vld [vmem:[%s8201 + $0x39] sm:$0xff]
        %v8272 = vld [vmem:[%s8201 + $0x49] sm:$0xff]
        %v8273 = vld [vmem:[%s8201 + $0x51] sm:$0xff]
        %v8274 = vld [vmem:[%s8201 + $0x61] sm:$0xff]
        %v8275 = vld [vmem:[%s8201 + $0x69] sm:$0xff]
        %v8276 = vld [vmem:[%s8201 + $0x79] sm:$0xff]
        %v8277 = vld [vmem:[%s8201 + $0x81] sm:$0xff]
        %v8278 = vld [vmem:[%s8201 + $0x91] sm:$0xff]
        %v8279 = vld [vmem:[%s8201 + $0x99] sm:$0xff]
        %v8280 = vld [vmem:[%s8201 + $0xa9] sm:$0xff]
        %v8281 = vld [vmem:[%s8201 + $0xb1] sm:$0xff]
        %v8282 = vld [vmem:[%s8201 + $0xc1] sm:$0xff]
        %v8283 = vld [vmem:[%s8201 + $0xc9] sm:$0xff]
        %v8284 = vld [vmem:[%s8201 + $0xd9] sm:$0xff]
        %v8285 = vld [vmem:[%s8201 + $0xe1] sm:$0xff]
        %v8286 = vld [vmem:[%s8201 + $0xf1] sm:$0xff]
        %v8287 = vld [vmem:[%s8201 + $0xf9] sm:$0xff]
        %v8288 = vld [vmem:[%s8201 + $0x109] sm:$0xff]
        %v8289 = vld [vmem:[%s8201 + $0x111] sm:$0xff]
        %v8290 = vld [vmem:[%s8201 + $0x121] sm:$0xff]
        %v8291 = vld [vmem:[%s8201 + $0x129] sm:$0xff]
        %v8292 = vld [vmem:[%s8201 + $0x139] sm:$0xff]
        %v8293 = vld [vmem:[%s8201 + $0x141] sm:$0xff]
        %v8294 = vld [vmem:[%s8201 + $0x151] sm:$0xff]
        %v8295 = vld [vmem:[%s8201 + $0x159] sm:$0xff]
        %v8296 = vld [vmem:[%s8201 + $0x169] sm:$0xff]
        %v8297 = vld [vmem:[%s8201 + $0x171] sm:$0xff]
        %v8298 = vmax.f32 %v8234, %v8266
        %v8299 = vmax.f32 %v8235, %v8267
        %v8300 = vmax.f32 %v8236, %v8268
        %v8301 = vmax.f32 %v8237, %v8269
        %v8302 = vmax.f32 %v8238, %v8270
        %v8303 = vmax.f32 %v8239, %v8271
        %v8304 = vmax.f32 %v8240, %v8272
        %v8305 = vmax.f32 %v8241, %v8273
        %v8306 = vmax.f32 %v8242, %v8274
        %v8307 = vmax.f32 %v8243, %v8275
        %v8308 = vmax.f32 %v8244, %v8276
        %v8309 = vmax.f32 %v8245, %v8277
        %v8310 = vmax.f32 %v8246, %v8278
        %v8311 = vmax.f32 %v8247, %v8279
        %v8312 = vmax.f32 %v8248, %v8280
        %v8313 = vmax.f32 %v8249, %v8281
        %v8314 = vmax.f32 %v8250, %v8282
        %v8315 = vmax.f32 %v8251, %v8283
        %v8316 = vmax.f32 %v8252, %v8284
        %v8317 = vmax.f32 %v8253, %v8285
        %v8318 = vmax.f32 %v8254, %v8286
        %v8319 = vmax.f32 %v8255, %v8287
        %v8320 = vmax.f32 %v8256, %v8288
        %v8321 = vmax.f32 %v8257, %v8289
        %v8322 = vmax.f32 %v8258, %v8290
        %v8323 = vmax.f32 %v8259, %v8291
        %v8324 = vmax.f32 %v8260, %v8292
        %v8325 = vmax.f32 %v8261, %v8293
        %v8326 = vmax.f32 %v8262, %v8294
        %v8327 = vmax.f32 %v8263, %v8295
        %v8328 = vmax.f32 %v8264, %v8296
        %v8329 = vmax.f32 %v8265, %v8297
        %v8330 = vld [vmem:[%s8201 + $0x2] sm:$0xff]
        %v8331 = vld [vmem:[%s8201 + $0xa] sm:$0xff]
        %v8332 = vld [vmem:[%s8201 + $0x1a] sm:$0xff]
        %v8333 = vld [vmem:[%s8201 + $0x22] sm:$0xff]
        %v8334 = vld [vmem:[%s8201 + $0x32] sm:$0xff]
        %v8335 = vld [vmem:[%s8201 + $0x3a] sm:$0xff]
        %v8336 = vld [vmem:[%s8201 + $0x4a] sm:$0xff]
        %v8337 = vld [vmem:[%s8201 + $0x52] sm:$0xff]
        %v8338 = vld [vmem:[%s8201 + $0x62] sm:$0xff]
        %v8339 = vld [vmem:[%s8201 + $0x6a] sm:$0xff]
        %v8340 = vld [vmem:[%s8201 + $0x7a] sm:$0xff]
        %v8341 = vld [vmem:[%s8201 + $0x82] sm:$0xff]
        %v8342 = vld [vmem:[%s8201 + $0x92] sm:$0xff]
        %v8343 = vld [vmem:[%s8201 + $0x9a] sm:$0xff]
        %v8344 = vld [vmem:[%s8201 + $0xaa] sm:$0xff]
        %v8345 = vld [vmem:[%s8201 + $0xb2] sm:$0xff]
        %v8346 = vld [vmem:[%s8201 + $0xc2] sm:$0xff]
        %v8347 = vld [vmem:[%s8201 + $0xca] sm:$0xff]
        %v8348 = vld [vmem:[%s8201 + $0xda] sm:$0xff]
        %v8349 = vld [vmem:[%s8201 + $0xe2] sm:$0xff]
        %v8350 = vld [vmem:[%s8201 + $0xf2] sm:$0xff]
        %v8351 = vld [vmem:[%s8201 + $0xfa] sm:$0xff]
        %v8352 = vld [vmem:[%s8201 + $0x10a] sm:$0xff]
        %v8353 = vld [vmem:[%s8201 + $0x112] sm:$0xff]
        %v8354 = vld [vmem:[%s8201 + $0x122] sm:$0xff]
        %v8355 = vld [vmem:[%s8201 + $0x12a] sm:$0xff]
        %v8356 = vld [vmem:[%s8201 + $0x13a] sm:$0xff]
        %v8357 = vld [vmem:[%s8201 + $0x142] sm:$0xff]
        %v8358 = vld [vmem:[%s8201 + $0x152] sm:$0xff]
        %v8359 = vld [vmem:[%s8201 + $0x15a] sm:$0xff]
        %v8360 = vld [vmem:[%s8201 + $0x16a] sm:$0xff]
        %v8361 = vld [vmem:[%s8201 + $0x172] sm:$0xff]
        %v8362 = vmax.f32 %v8298, %v8330
        %v8363 = vmax.f32 %v8299, %v8331
        %v8364 = vmax.f32 %v8300, %v8332
        %v8365 = vmax.f32 %v8301, %v8333
        %v8366 = vmax.f32 %v8302, %v8334
        %v8367 = vmax.f32 %v8303, %v8335
        %v8368 = vmax.f32 %v8304, %v8336
        %v8369 = vmax.f32 %v8305, %v8337
        %v8370 = vmax.f32 %v8306, %v8338
        %v8371 = vmax.f32 %v8307, %v8339
        %v8372 = vmax.f32 %v8308, %v8340
        %v8373 = vmax.f32 %v8309, %v8341
        %v8374 = vmax.f32 %v8310, %v8342
        %v8375 = vmax.f32 %v8311, %v8343
        %v8376 = vmax.f32 %v8312, %v8344
        %v8377 = vmax.f32 %v8313, %v8345
        %v8378 = vmax.f32 %v8314, %v8346
        %v8379 = vmax.f32 %v8315, %v8347
        %v8380 = vmax.f32 %v8316, %v8348
        %v8381 = vmax.f32 %v8317, %v8349
        %v8382 = vmax.f32 %v8318, %v8350
        %v8383 = vmax.f32 %v8319, %v8351
        %v8384 = vmax.f32 %v8320, %v8352
        %v8385 = vmax.f32 %v8321, %v8353
        %v8386 = vmax.f32 %v8322, %v8354
        %v8387 = vmax.f32 %v8323, %v8355
        %v8388 = vmax.f32 %v8324, %v8356
        %v8389 = vmax.f32 %v8325, %v8357
        %v8390 = vmax.f32 %v8326, %v8358
        %v8391 = vmax.f32 %v8327, %v8359
        %v8392 = vmax.f32 %v8328, %v8360
        %v8393 = vmax.f32 %v8329, %v8361
        %v8394 = vld [vmem:[%s7] sm:$0xf]
        %v8395 = vld [vmem:[%s8] sm:$0x1]
        %v8397 = vperm.slane %v8395, 0
        %v8400 = vsel %vm368, %v8362, 0
        %v8403 = vsel %vm368, %v8363, 0
        %v8406 = vsel %vm368, %v8364, 0
        %v8409 = vsel %vm368, %v8365, 0
        %v8412 = vsel %vm368, %v8366, 0
        %v8415 = vsel %vm368, %v8367, 0
        %v8418 = vsel %vm368, %v8368, 0
        %v8421 = vsel %vm368, %v8369, 0
        %v8424 = vsel %vm368, %v8370, 0
        %v8427 = vsel %vm368, %v8371, 0
        %v8430 = vsel %vm368, %v8372, 0
        %v8433 = vsel %vm368, %v8373, 0
        %v8436 = vsel %vm368, %v8374, 0
        %v8439 = vsel %vm368, %v8375, 0
        %v8442 = vsel %vm368, %v8376, 0
        %v8445 = vsel %vm368, %v8377, 0
        %v8448 = vsel %vm368, %v8378, 0
        %v8451 = vsel %vm368, %v8379, 0
        %v8454 = vsel %vm368, %v8380, 0
        %v8457 = vsel %vm368, %v8381, 0
        %v8460 = vsel %vm368, %v8382, 0
        %v8463 = vsel %vm368, %v8383, 0
        %v8466 = vsel %vm368, %v8384, 0
        %v8469 = vsel %vm368, %v8385, 0
        %v8472 = vsel %vm368, %v8386, 0
        %v8475 = vsel %vm368, %v8387, 0
        %v8478 = vsel %vm368, %v8388, 0
        %v8481 = vsel %vm368, %v8389, 0
        %v8484 = vsel %vm368, %v8390, 0
        %v8487 = vsel %vm368, %v8391, 0
        %v8490 = vsel %vm368, %v8392, 0
        %v8493 = vsel %vm368, %v8393, 0
        %v8496 = vsel %vm465, %v8394, 0
        %8498 = vmatpush.msra.mxu0 0.0
        %8499 = vmatpush.msra.mxu0 0.0
        %8500 = vmatpush.msra.mxu0 0.0
        %8501 = vmatpush.msra.mxu0 0.0
        %8502 = vmatpush.msra.mxu0 0.0
        %8503 = vmatpush.msra.mxu0 0.0
        %8504 = vmatpush.msra.mxu0 0.0
        %8505 = vmatpush.msra.mxu0 0.0
        %8506 = vmatpush.msra.mxu0 0.0
        %8507 = vmatpush.msra.mxu0 0.0
        %8508 = vmatpush.msra.mxu0 0.0
        %8509 = vmatpush.msra.mxu0 0.0
        %8510 = vmatpush.msra.mxu0 0.0
        %8511 = vmatpush.msra.mxu0 0.0
        %8512 = vmatpush.msra.mxu0 0.0
        %8513 = vmatpush.msra.mxu0 %v8496
        %8514 = vmatmul.f32.gmra.mxu0 %v8400
        %v8515 = vpop.f32.mrf.mxu0
        %v8516 = vadd.f32 %v8397, %v8515
        %8517 = vmatmul.f32.gmra.mxu0 %v8403
        %v8518 = vpop.f32.mrf.mxu0
        %v8519 = vadd.f32 %v8397, %v8518
        %8520 = vmatmul.f32.gmra.mxu0 %v8406
        %v8521 = vpop.f32.mrf.mxu0
        %v8522 = vadd.f32 %v8397, %v8521
        %8523 = vmatmul.f32.gmra.mxu0 %v8409
        %v8524 = vpop.f32.mrf.mxu0
        %v8525 = vadd.f32 %v8397, %v8524
        %8526 = vmatmul.f32.gmra.mxu0 %v8412
        %v8527 = vpop.f32.mrf.mxu0
        %v8528 = vadd.f32 %v8397, %v8527
        %8529 = vmatmul.f32.gmra.mxu0 %v8415
        %v8530 = vpop.f32.mrf.mxu0
        %v8531 = vadd.f32 %v8397, %v8530
        %8532 = vmatmul.f32.gmra.mxu0 %v8418
        %v8533 = vpop.f32.mrf.mxu0
        %v8534 = vadd.f32 %v8397, %v8533
        %8535 = vmatmul.f32.gmra.mxu0 %v8421
        %v8536 = vpop.f32.mrf.mxu0
        %v8537 = vadd.f32 %v8397, %v8536
        %8538 = vmatmul.f32.gmra.mxu0 %v8424
        %v8539 = vpop.f32.mrf.mxu0
        %v8540 = vadd.f32 %v8397, %v8539
        %8541 = vmatmul.f32.gmra.mxu0 %v8427
        %v8542 = vpop.f32.mrf.mxu0
        %v8543 = vadd.f32 %v8397, %v8542
        %8544 = vmatmul.f32.gmra.mxu0 %v8430
        %v8545 = vpop.f32.mrf.mxu0
        %v8546 = vadd.f32 %v8397, %v8545
        %8547 = vmatmul.f32.gmra.mxu0 %v8433
        %v8548 = vpop.f32.mrf.mxu0
        %v8549 = vadd.f32 %v8397, %v8548
        %8550 = vmatmul.f32.gmra.mxu0 %v8436
        %v8551 = vpop.f32.mrf.mxu0
        %v8552 = vadd.f32 %v8397, %v8551
        %8553 = vmatmul.f32.gmra.mxu0 %v8439
        %v8554 = vpop.f32.mrf.mxu0
        %v8555 = vadd.f32 %v8397, %v8554
        %8556 = vmatmul.f32.gmra.mxu0 %v8442
        %v8557 = vpop.f32.mrf.mxu0
        %v8558 = vadd.f32 %v8397, %v8557
        %8559 = vmatmul.f32.gmra.mxu0 %v8445
        %v8560 = vpop.f32.mrf.mxu0
        %v8561 = vadd.f32 %v8397, %v8560
        %8562 = vmatmul.f32.gmra.mxu0 %v8448
        %v8563 = vpop.f32.mrf.mxu0
        %v8564 = vadd.f32 %v8397, %v8563
        %8565 = vmatmul.f32.gmra.mxu0 %v8451
        %v8566 = vpop.f32.mrf.mxu0
        %v8567 = vadd.f32 %v8397, %v8566
        %8568 = vmatmul.f32.gmra.mxu0 %v8454
        %v8569 = vpop.f32.mrf.mxu0
        %v8570 = vadd.f32 %v8397, %v8569
        %8571 = vmatmul.f32.gmra.mxu0 %v8457
        %v8572 = vpop.f32.mrf.mxu0
        %v8573 = vadd.f32 %v8397, %v8572
        %8574 = vmatmul.f32.gmra.mxu0 %v8460
        %v8575 = vpop.f32.mrf.mxu0
        %v8576 = vadd.f32 %v8397, %v8575
        %8577 = vmatmul.f32.gmra.mxu0 %v8463
        %v8578 = vpop.f32.mrf.mxu0
        %v8579 = vadd.f32 %v8397, %v8578
        %8580 = vmatmul.f32.gmra.mxu0 %v8466
        %v8581 = vpop.f32.mrf.mxu0
        %v8582 = vadd.f32 %v8397, %v8581
        %8583 = vmatmul.f32.gmra.mxu0 %v8469
        %v8584 = vpop.f32.mrf.mxu0
        %v8585 = vadd.f32 %v8397, %v8584
        %8586 = vmatmul.f32.gmra.mxu0 %v8472
        %v8587 = vpop.f32.mrf.mxu0
        %v8588 = vadd.f32 %v8397, %v8587
        %8589 = vmatmul.f32.gmra.mxu0 %v8475
        %v8590 = vpop.f32.mrf.mxu0
        %v8591 = vadd.f32 %v8397, %v8590
        %8592 = vmatmul.f32.gmra.mxu0 %v8478
        %v8593 = vpop.f32.mrf.mxu0
        %v8594 = vadd.f32 %v8397, %v8593
        %8595 = vmatmul.f32.gmra.mxu0 %v8481
        %v8596 = vpop.f32.mrf.mxu0
        %v8597 = vadd.f32 %v8397, %v8596
        %8598 = vmatmul.f32.gmra.mxu0 %v8484
        %v8599 = vpop.f32.mrf.mxu0
        %v8600 = vadd.f32 %v8397, %v8599
        %8601 = vmatmul.f32.gmra.mxu0 %v8487
        %v8602 = vpop.f32.mrf.mxu0
        %v8603 = vadd.f32 %v8397, %v8602
        %8604 = vmatmul.f32.gmra.mxu0 %v8490
        %v8605 = vpop.f32.mrf.mxu0
        %v8606 = vadd.f32 %v8397, %v8605
        %8607 = vmatmul.f32.gmra.mxu0 %v8493
        %v8608 = vpop.f32.mrf.mxu0
        %v8609 = vadd.f32 %v8397, %v8608
        %8610 = vdwg.mxu0
        %v8611 = vmax.f32 %v8516, 0.0
        %v8612 = vmax.f32 %v8519, 0.0
        %v8613 = vmax.f32 %v8522, 0.0
        %v8614 = vmax.f32 %v8525, 0.0
        %v8615 = vmax.f32 %v8528, 0.0
        %v8616 = vmax.f32 %v8531, 0.0
        %v8617 = vmax.f32 %v8534, 0.0
        %v8618 = vmax.f32 %v8537, 0.0
        %v8619 = vmax.f32 %v8540, 0.0
        %v8620 = vmax.f32 %v8543, 0.0
        %v8621 = vmax.f32 %v8546, 0.0
        %v8622 = vmax.f32 %v8549, 0.0
        %v8623 = vmax.f32 %v8552, 0.0
        %v8624 = vmax.f32 %v8555, 0.0
        %v8625 = vmax.f32 %v8558, 0.0
        %v8626 = vmax.f32 %v8561, 0.0
        %v8627 = vmax.f32 %v8564, 0.0
        %v8628 = vmax.f32 %v8567, 0.0
        %v8629 = vmax.f32 %v8570, 0.0
        %v8630 = vmax.f32 %v8573, 0.0
        %v8631 = vmax.f32 %v8576, 0.0
        %v8632 = vmax.f32 %v8579, 0.0
        %v8633 = vmax.f32 %v8582, 0.0
        %v8634 = vmax.f32 %v8585, 0.0
        %v8635 = vmax.f32 %v8588, 0.0
        %v8636 = vmax.f32 %v8591, 0.0
        %v8637 = vmax.f32 %v8594, 0.0
        %v8638 = vmax.f32 %v8597, 0.0
        %v8639 = vmax.f32 %v8600, 0.0
        %v8640 = vmax.f32 %v8603, 0.0
        %v8641 = vmax.f32 %v8606, 0.0
        %v8642 = vmax.f32 %v8609, 0.0
        %8675 = vrot.lane.b32.xlu0 %v2628, 8
        %v8676 = vpop.permute.xlu0 %8675
        %8677 = vrot.lane.b32.xlu0 %v2629, 8
        %v8678 = vpop.permute.xlu0 %8677
        %8679 = vrot.lane.b32.xlu0 %v2630, 8
        %v8680 = vpop.permute.xlu0 %8679
        %8681 = vrot.lane.b32.xlu0 %v2631, 8
        %v8682 = vpop.permute.xlu0 %8681
        %8683 = vrot.lane.b32.xlu0 %v2632, 8
        %v8684 = vpop.permute.xlu0 %8683
        %8685 = vrot.lane.b32.xlu0 %v2633, 8
        %v8686 = vpop.permute.xlu0 %8685
        %8687 = vrot.lane.b32.xlu0 %v2634, 8
        %v8688 = vpop.permute.xlu0 %8687
        %8689 = vrot.lane.b32.xlu0 %v2635, 8
        %v8690 = vpop.permute.xlu0 %8689
        %8691 = vrot.lane.b32.xlu0 %v2636, 8
        %v8692 = vpop.permute.xlu0 %8691
        %8693 = vrot.lane.b32.xlu0 %v2637, 8
        %v8694 = vpop.permute.xlu0 %8693
        %8695 = vrot.lane.b32.xlu0 %v2638, 8
        %v8696 = vpop.permute.xlu0 %8695
        %8697 = vrot.lane.b32.xlu0 %v2639, 8
        %v8698 = vpop.permute.xlu0 %8697
        %8699 = vrot.lane.b32.xlu0 %v2640, 8
        %v8700 = vpop.permute.xlu0 %8699
        %8701 = vrot.lane.b32.xlu0 %v2641, 8
        %v8702 = vpop.permute.xlu0 %8701
        %8703 = vrot.lane.b32.xlu0 %v2642, 8
        %v8704 = vpop.permute.xlu0 %8703
        %8705 = vrot.lane.b32.xlu0 %v2643, 8
        %v8706 = vpop.permute.xlu0 %8705
        %8707 = vrot.lane.b32.xlu0 %v2644, 8
        %v8708 = vpop.permute.xlu0 %8707
        %8709 = vrot.lane.b32.xlu0 %v2645, 8
        %v8710 = vpop.permute.xlu0 %8709
        %8711 = vrot.lane.b32.xlu0 %v2646, 8
        %v8712 = vpop.permute.xlu0 %8711
        %8713 = vrot.lane.b32.xlu0 %v2647, 8
        %v8714 = vpop.permute.xlu0 %8713
        %8715 = vrot.lane.b32.xlu0 %v2648, 8
        %v8716 = vpop.permute.xlu0 %8715
        %8717 = vrot.lane.b32.xlu0 %v2649, 8
        %v8718 = vpop.permute.xlu0 %8717
        %8719 = vrot.lane.b32.xlu0 %v2650, 8
        %v8720 = vpop.permute.xlu0 %8719
        %8721 = vrot.lane.b32.xlu0 %v2651, 8
        %v8722 = vpop.permute.xlu0 %8721
        %8723 = vrot.lane.b32.xlu0 %v2652, 8
        %v8724 = vpop.permute.xlu0 %8723
        %8725 = vrot.lane.b32.xlu0 %v2653, 8
        %v8726 = vpop.permute.xlu0 %8725
        %8727 = vrot.lane.b32.xlu0 %v2654, 8
        %v8728 = vpop.permute.xlu0 %8727
        %8729 = vrot.lane.b32.xlu0 %v2655, 8
        %v8730 = vpop.permute.xlu0 %8729
        %8731 = vrot.lane.b32.xlu0 %v2656, 8
        %v8732 = vpop.permute.xlu0 %8731
        %8733 = vrot.lane.b32.xlu0 %v2657, 8
        %v8734 = vpop.permute.xlu0 %8733
        %8735 = vrot.lane.b32.xlu0 %v2658, 8
        %v8736 = vpop.permute.xlu0 %8735
        %8737 = vrot.lane.b32.xlu0 %v2659, 8
        %v8738 = vpop.permute.xlu0 %8737
        %8803 = vrot.lane.b32.xlu0 %v7730, 16
        %v8804 = vpop.permute.xlu0 %8803
        %8805 = vrot.lane.b32.xlu0 %v7731, 16
        %v8806 = vpop.permute.xlu0 %8805
        %8807 = vrot.lane.b32.xlu0 %v7732, 16
        %v8808 = vpop.permute.xlu0 %8807
        %8809 = vrot.lane.b32.xlu0 %v7733, 16
        %v8810 = vpop.permute.xlu0 %8809
        %8811 = vrot.lane.b32.xlu0 %v7734, 16
        %v8812 = vpop.permute.xlu0 %8811
        %8813 = vrot.lane.b32.xlu0 %v7735, 16
        %v8814 = vpop.permute.xlu0 %8813
        %8815 = vrot.lane.b32.xlu0 %v7736, 16
        %v8816 = vpop.permute.xlu0 %8815
        %8817 = vrot.lane.b32.xlu0 %v7737, 16
        %v8818 = vpop.permute.xlu0 %8817
        %8819 = vrot.lane.b32.xlu0 %v7738, 16
        %v8820 = vpop.permute.xlu0 %8819
        %8821 = vrot.lane.b32.xlu0 %v7739, 16
        %v8822 = vpop.permute.xlu0 %8821
        %8823 = vrot.lane.b32.xlu0 %v7740, 16
        %v8824 = vpop.permute.xlu0 %8823
        %8825 = vrot.lane.b32.xlu0 %v7741, 16
        %v8826 = vpop.permute.xlu0 %8825
        %8827 = vrot.lane.b32.xlu0 %v7742, 16
        %v8828 = vpop.permute.xlu0 %8827
        %8829 = vrot.lane.b32.xlu0 %v7743, 16
        %v8830 = vpop.permute.xlu0 %8829
        %8831 = vrot.lane.b32.xlu0 %v7744, 16
        %v8832 = vpop.permute.xlu0 %8831
        %8833 = vrot.lane.b32.xlu0 %v7745, 16
        %v8834 = vpop.permute.xlu0 %8833
        %8835 = vrot.lane.b32.xlu0 %v7746, 16
        %v8836 = vpop.permute.xlu0 %8835
        %8837 = vrot.lane.b32.xlu0 %v7747, 16
        %v8838 = vpop.permute.xlu0 %8837
        %8839 = vrot.lane.b32.xlu0 %v7748, 16
        %v8840 = vpop.permute.xlu0 %8839
        %8841 = vrot.lane.b32.xlu0 %v7749, 16
        %v8842 = vpop.permute.xlu0 %8841
        %8843 = vrot.lane.b32.xlu0 %v7750, 16
        %v8844 = vpop.permute.xlu0 %8843
        %8845 = vrot.lane.b32.xlu0 %v7751, 16
        %v8846 = vpop.permute.xlu0 %8845
        %8847 = vrot.lane.b32.xlu0 %v7752, 16
        %v8848 = vpop.permute.xlu0 %8847
        %8849 = vrot.lane.b32.xlu0 %v7753, 16
        %v8850 = vpop.permute.xlu0 %8849
        %8851 = vrot.lane.b32.xlu0 %v7754, 16
        %v8852 = vpop.permute.xlu0 %8851
        %8853 = vrot.lane.b32.xlu0 %v7755, 16
        %v8854 = vpop.permute.xlu0 %8853
        %8855 = vrot.lane.b32.xlu0 %v7756, 16
        %v8856 = vpop.permute.xlu0 %8855
        %8857 = vrot.lane.b32.xlu0 %v7757, 16
        %v8858 = vpop.permute.xlu0 %8857
        %8859 = vrot.lane.b32.xlu0 %v7758, 16
        %v8860 = vpop.permute.xlu0 %8859
        %8861 = vrot.lane.b32.xlu0 %v7759, 16
        %v8862 = vpop.permute.xlu0 %8861
        %8863 = vrot.lane.b32.xlu0 %v7760, 16
        %v8864 = vpop.permute.xlu0 %8863
        %8865 = vrot.lane.b32.xlu0 %v7761, 16
        %v8866 = vpop.permute.xlu0 %8865
        %8931 = vrot.lane.b32.xlu0 %v8611, 24
        %v8932 = vpop.permute.xlu0 %8931
        %8933 = vrot.lane.b32.xlu0 %v8612, 24
        %v8934 = vpop.permute.xlu0 %8933
        %8935 = vrot.lane.b32.xlu0 %v8613, 24
        %v8936 = vpop.permute.xlu0 %8935
        %8937 = vrot.lane.b32.xlu0 %v8614, 24
        %v8938 = vpop.permute.xlu0 %8937
        %8939 = vrot.lane.b32.xlu0 %v8615, 24
        %v8940 = vpop.permute.xlu0 %8939
        %8941 = vrot.lane.b32.xlu0 %v8616, 24
        %v8942 = vpop.permute.xlu0 %8941
        %8943 = vrot.lane.b32.xlu0 %v8617, 24
        %v8944 = vpop.permute.xlu0 %8943
        %8945 = vrot.lane.b32.xlu0 %v8618, 24
        %v8946 = vpop.permute.xlu0 %8945
        %8947 = vrot.lane.b32.xlu0 %v8619, 24
        %v8948 = vpop.permute.xlu0 %8947
        %8949 = vrot.lane.b32.xlu0 %v8620, 24
        %v8950 = vpop.permute.xlu0 %8949
        %8951 = vrot.lane.b32.xlu0 %v8621, 24
        %v8952 = vpop.permute.xlu0 %8951
        %8953 = vrot.lane.b32.xlu0 %v8622, 24
        %v8954 = vpop.permute.xlu0 %8953
        %8955 = vrot.lane.b32.xlu0 %v8623, 24
        %v8956 = vpop.permute.xlu0 %8955
        %8957 = vrot.lane.b32.xlu0 %v8624, 24
        %v8958 = vpop.permute.xlu0 %8957
        %8959 = vrot.lane.b32.xlu0 %v8625, 24
        %v8960 = vpop.permute.xlu0 %8959
        %8961 = vrot.lane.b32.xlu0 %v8626, 24
        %v8962 = vpop.permute.xlu0 %8961
        %8963 = vrot.lane.b32.xlu0 %v8627, 24
        %v8964 = vpop.permute.xlu0 %8963
        %8965 = vrot.lane.b32.xlu0 %v8628, 24
        %v8966 = vpop.permute.xlu0 %8965
        %8967 = vrot.lane.b32.xlu0 %v8629, 24
        %v8968 = vpop.permute.xlu0 %8967
        %8969 = vrot.lane.b32.xlu0 %v8630, 24
        %v8970 = vpop.permute.xlu0 %8969
        %8971 = vrot.lane.b32.xlu0 %v8631, 24
        %v8972 = vpop.permute.xlu0 %8971
        %8973 = vrot.lane.b32.xlu0 %v8632, 24
        %v8974 = vpop.permute.xlu0 %8973
        %8975 = vrot.lane.b32.xlu0 %v8633, 24
        %v8976 = vpop.permute.xlu0 %8975
        %8977 = vrot.lane.b32.xlu0 %v8634, 24
        %v8978 = vpop.permute.xlu0 %8977
        %8979 = vrot.lane.b32.xlu0 %v8635, 24
        %v8980 = vpop.permute.xlu0 %8979
        %8981 = vrot.lane.b32.xlu0 %v8636, 24
        %v8982 = vpop.permute.xlu0 %8981
        %8983 = vrot.lane.b32.xlu0 %v8637, 24
        %v8984 = vpop.permute.xlu0 %8983
        %8985 = vrot.lane.b32.xlu0 %v8638, 24
        %v8986 = vpop.permute.xlu0 %8985
        %8987 = vrot.lane.b32.xlu0 %v8639, 24
        %v8988 = vpop.permute.xlu0 %8987
        %8989 = vrot.lane.b32.xlu0 %v8640, 24
        %v8990 = vpop.permute.xlu0 %8989
        %8991 = vrot.lane.b32.xlu0 %v8641, 24
        %v8992 = vpop.permute.xlu0 %8991
        %8993 = vrot.lane.b32.xlu0 %v8642, 24
        %v8994 = vpop.permute.xlu0 %8993
        %v9027 = vsel %vm2175, %v487, %v8676
        %v9028 = vsel %vm2175, %v490, %v8678
        %v9029 = vsel %vm2175, %v493, %v8680
        %v9030 = vsel %vm2175, %v496, %v8682
        %v9031 = vsel %vm2175, %v499, %v8684
        %v9032 = vsel %vm2175, %v502, %v8686
        %v9033 = vsel %vm2175, %v505, %v8688
        %v9034 = vsel %vm2175, %v508, %v8690
        %v9035 = vsel %vm2175, %v511, %v8692
        %v9036 = vsel %vm2175, %v514, %v8694
        %v9037 = vsel %vm2175, %v517, %v8696
        %v9038 = vsel %vm2175, %v520, %v8698
        %v9039 = vsel %vm2175, %v523, %v8700
        %v9040 = vsel %vm2175, %v526, %v8702
        %v9041 = vsel %vm2175, %v529, %v8704
        %v9042 = vsel %vm2175, %v532, %v8706
        %v9043 = vsel %vm2175, %v535, %v8708
        %v9044 = vsel %vm2175, %v538, %v8710
        %v9045 = vsel %vm2175, %v541, %v8712
        %v9046 = vsel %vm2175, %v544, %v8714
        %v9047 = vsel %vm2175, %v547, %v8716
        %v9048 = vsel %vm2175, %v550, %v8718
        %v9049 = vsel %vm2175, %v553, %v8720
        %v9050 = vsel %vm2175, %v556, %v8722
        %v9051 = vsel %vm2175, %v559, %v8724
        %v9052 = vsel %vm2175, %v562, %v8726
        %v9053 = vsel %vm2175, %v565, %v8728
        %v9054 = vsel %vm2175, %v568, %v8730
        %v9055 = vsel %vm2175, %v571, %v8732
        %v9056 = vsel %vm2175, %v574, %v8734
        %v9057 = vsel %vm2175, %v577, %v8736
        %v9058 = vsel %vm2175, %v580, %v8738
        %v9059 = vsel %vm2241, %v9027, %v8804
        %v9060 = vsel %vm2241, %v9028, %v8806
        %v9061 = vsel %vm2241, %v9029, %v8808
        %v9062 = vsel %vm2241, %v9030, %v8810
        %v9063 = vsel %vm2241, %v9031, %v8812
        %v9064 = vsel %vm2241, %v9032, %v8814
        %v9065 = vsel %vm2241, %v9033, %v8816
        %v9066 = vsel %vm2241, %v9034, %v8818
        %v9067 = vsel %vm2241, %v9035, %v8820
        %v9068 = vsel %vm2241, %v9036, %v8822
        %v9069 = vsel %vm2241, %v9037, %v8824
        %v9070 = vsel %vm2241, %v9038, %v8826
        %v9071 = vsel %vm2241, %v9039, %v8828
        %v9072 = vsel %vm2241, %v9040, %v8830
        %v9073 = vsel %vm2241, %v9041, %v8832
        %v9074 = vsel %vm2241, %v9042, %v8834
        %v9075 = vsel %vm2241, %v9043, %v8836
        %v9076 = vsel %vm2241, %v9044, %v8838
        %v9077 = vsel %vm2241, %v9045, %v8840
        %v9078 = vsel %vm2241, %v9046, %v8842
        %v9079 = vsel %vm2241, %v9047, %v8844
        %v9080 = vsel %vm2241, %v9048, %v8846
        %v9081 = vsel %vm2241, %v9049, %v8848
        %v9082 = vsel %vm2241, %v9050, %v8850
        %v9083 = vsel %vm2241, %v9051, %v8852
        %v9084 = vsel %vm2241, %v9052, %v8854
        %v9085 = vsel %vm2241, %v9053, %v8856
        %v9086 = vsel %vm2241, %v9054, %v8858
        %v9087 = vsel %vm2241, %v9055, %v8860
        %v9088 = vsel %vm2241, %v9056, %v8862
        %v9089 = vsel %vm2241, %v9057, %v8864
        %v9090 = vsel %vm2241, %v9058, %v8866
        %v9091 = vsel %vm2307, %v9059, %v8932
        %v9092 = vsel %vm2307, %v9060, %v8934
        %v9093 = vsel %vm2307, %v9061, %v8936
        %v9094 = vsel %vm2307, %v9062, %v8938
        %v9095 = vsel %vm2307, %v9063, %v8940
        %v9096 = vsel %vm2307, %v9064, %v8942
        %v9097 = vsel %vm2307, %v9065, %v8944
        %v9098 = vsel %vm2307, %v9066, %v8946
        %v9099 = vsel %vm2307, %v9067, %v8948
        %v9100 = vsel %vm2307, %v9068, %v8950
        %v9101 = vsel %vm2307, %v9069, %v8952
        %v9102 = vsel %vm2307, %v9070, %v8954
        %v9103 = vsel %vm2307, %v9071, %v8956
        %v9104 = vsel %vm2307, %v9072, %v8958
        %v9105 = vsel %vm2307, %v9073, %v8960
        %v9106 = vsel %vm2307, %v9074, %v8962
        %v9107 = vsel %vm2307, %v9075, %v8964
        %v9108 = vsel %vm2307, %v9076, %v8966
        %v9109 = vsel %vm2307, %v9077, %v8968
        %v9110 = vsel %vm2307, %v9078, %v8970
        %v9111 = vsel %vm2307, %v9079, %v8972
        %v9112 = vsel %vm2307, %v9080, %v8974
        %v9113 = vsel %vm2307, %v9081, %v8976
        %v9114 = vsel %vm2307, %v9082, %v8978
        %v9115 = vsel %vm2307, %v9083, %v8980
        %v9116 = vsel %vm2307, %v9084, %v8982
        %v9117 = vsel %vm2307, %v9085, %v8984
        %v9118 = vsel %vm2307, %v9086, %v8986
        %v9119 = vsel %vm2307, %v9087, %v8988
        %v9120 = vsel %vm2307, %v9088, %v8990
        %v9121 = vsel %vm2307, %v9089, %v8992
        %v9122 = vsel %vm2307, %v9090, %v8994
        %9123 = vst.msk [vmem:[%s325] sm:$0xff] %vm2373, %v9091
        %9124 = vst.msk [vmem:[%s325 + $0x8] sm:$0xff] %vm2373, %v9092
        %9125 = vst.msk [vmem:[%s325 + $0x10] sm:$0xff] %vm2373, %v9093
        %9126 = vst.msk [vmem:[%s325 + $0x18] sm:$0xff] %vm2373, %v9094
        %9127 = vst.msk [vmem:[%s325 + $0x20] sm:$0xff] %vm2373, %v9095
        %9128 = vst.msk [vmem:[%s325 + $0x28] sm:$0xff] %vm2373, %v9096
        %9129 = vst.msk [vmem:[%s325 + $0x30] sm:$0xff] %vm2373, %v9097
        %9130 = vst.msk [vmem:[%s325 + $0x38] sm:$0xff] %vm2373, %v9098
        %9131 = vst.msk [vmem:[%s325 + $0x40] sm:$0xff] %vm2373, %v9099
        %9132 = vst.msk [vmem:[%s325 + $0x48] sm:$0xff] %vm2373, %v9100
        %9133 = vst.msk [vmem:[%s325 + $0x50] sm:$0xff] %vm2373, %v9101
        %9134 = vst.msk [vmem:[%s325 + $0x58] sm:$0xff] %vm2373, %v9102
        %9135 = vst.msk [vmem:[%s325 + $0x60] sm:$0xff] %vm2373, %v9103
        %9136 = vst.msk [vmem:[%s325 + $0x68] sm:$0xff] %vm2373, %v9104
        %9137 = vst.msk [vmem:[%s325 + $0x70] sm:$0xff] %vm2373, %v9105
        %9138 = vst.msk [vmem:[%s325 + $0x78] sm:$0xff] %vm2373, %v9106
        %9139 = vst.msk [vmem:[%s325 + $0x80] sm:$0xff] %vm2373, %v9107
        %9140 = vst.msk [vmem:[%s325 + $0x88] sm:$0xff] %vm2373, %v9108
        %9141 = vst.msk [vmem:[%s325 + $0x90] sm:$0xff] %vm2373, %v9109
        %9142 = vst.msk [vmem:[%s325 + $0x98] sm:$0xff] %vm2373, %v9110
        %9143 = vst.msk [vmem:[%s325 + $0xa0] sm:$0xff] %vm2373, %v9111
        %9144 = vst.msk [vmem:[%s325 + $0xa8] sm:$0xff] %vm2373, %v9112
        %9145 = vst.msk [vmem:[%s325 + $0xb0] sm:$0xff] %vm2373, %v9113
        %9146 = vst.msk [vmem:[%s325 + $0xb8] sm:$0xff] %vm2373, %v9114
        %9147 = vst.msk [vmem:[%s325 + $0xc0] sm:$0xff] %vm2373, %v9115
        %9148 = vst.msk [vmem:[%s325 + $0xc8] sm:$0xff] %vm2373, %v9116
        %9149 = vst.msk [vmem:[%s325 + $0xd0] sm:$0xff] %vm2373, %v9117
        %9150 = vst.msk [vmem:[%s325 + $0xd8] sm:$0xff] %vm2373, %v9118
        %9151 = vst.msk [vmem:[%s325 + $0xe0] sm:$0xff] %vm2373, %v9119
        %9152 = vst.msk [vmem:[%s325 + $0xe8] sm:$0xff] %vm2373, %v9120
        %9153 = vst.msk [vmem:[%s325 + $0xf0] sm:$0xff] %vm2373, %v9121
        %9154 = vst.msk [vmem:[%s325 + $0xf8] sm:$0xff] %vm2373, %v9122
        %s9155 = sand.u32 %s225, 1
        %s9156 = scalar_lea.sflag [#allocation6], %s9155
        %s9157 = sand.u32 %s225, 1
        %s9158 = smul.addr %s9157, 256
        %s9159 = scalar_lea.vmem [#allocation5], %s9158
        // Predicated region
        $region57: #{inception_forward.1} parent=55 // pred_check
          %p9160 = pneg %p235
        $region58: #{inception_forward.1} parent=55 // pred_check_branch
          %9162 = sbr.rel (%p9160) target = $region60
        $region59: #{inception_forward.1} parent=55 // pred_region
          %9164 = vsyncadd %s9156, 0
          %s9165 = smul.addr %s23, 32
          %s9166 = smul.addr %s9165, 8
          %s9167 = scalar_lea.hbm %s9, %s9166
          %s9168 = sshll.u32 %s9159, 4
          %s9169 = int_to_ptr.vmem [resolvable:$true] %s9168
          %s9170 = sshll.u32 %s9167, 4
          %s9171 = int_to_ptr.hbm [resolvable:$true] %s9170
          %9176 = dma.vmem_to_hbm [thread:$0]  %s9169, 4096, %s9171, %s9156, 128, 128, 8
        $region60: #{inception_forward.1} parent=55 // pred_fallthru
          _
      $region56: #{inception_forward.1} parent=5 // pred_fallthru
        _
      %p9177 = scmp.le.s32.totalorder 2, %s18
      // Predicated region
      $region61: #{inception_forward.1} parent=5 // pred_check
        %p9178 = pneg %p9177
      $region62: #{inception_forward.1} parent=5 // pred_check_branch
        %9180 = sbr.rel (%p9178) target = $region64
      $region63: #{inception_forward.1} parent=5 // pred_region
        %s9181 = ssub.s32 %s18, 2
        // Predicated region
        $region65: #{inception_forward.1} parent=63 // pred_check
          %p9182 = pneg %p241
        $region66: #{inception_forward.1} parent=63 // pred_check_branch
          %9184 = sbr.rel (%p9182) target = $region68
        $region67: #{inception_forward.1} parent=63 // pred_region
          %s9185 = sand.u32 %s226, 1
          %s9186 = scalar_lea.sflag [#allocation6], %s9185
          %s9187 = sand.u32 %s226, 1
          %s9188 = smul.addr %s9187, 256
          %s9189 = scalar_lea.vmem [#allocation5], %s9188
          %9191 = dma.done %s9186, 4096
        $region68: #{inception_forward.1} parent=63 // pred_fallthru
          _
      $region64: #{inception_forward.1} parent=5 // pred_fallthru
        _
    $region6: #{inception_forward.1} parent=1 // loop_footer
      %s22 = sadd.s32 1, %s18
    $region7: #{inception_forward.1} parent=1 // loop_footer_branch
      %17 = sbr.rel target = $region3
    $region8: #{inception_forward.1} parent=1 // loop_exit
      _
    %9192 = vsyncpa [#allocation6], 1
    %s9193 = scalar_lea.sflag [#allocation6], 1
    %9194 = vsyncpa %s9193, 1

</llo_original>
